<compile_context>
chip_gen: v7x
topology: tpu7x:2x2x1
jax: 0.10.0
libtpu: 0.0.40
codegen_flags: <defaults>
</compile_context>

<pallas_src>
import jax
import jax.numpy as jnp
from jax.experimental import pallas as pl
from jax.experimental.pallas import tpu as pltpu


_UNET_KEYS = ("w1", "b1", "gamma", "beta", "w2", "b2", "wid", "bid")
_FRE_KEYS = ("wm1", "bm1", "wm2", "bm2", "wp1", "bp1", "wp2", "bp2")
_CAT_KEYS = ("wcat", "bcat")


def _lrelu(v, slope=0.1):
    return jnp.where(v > 0, v, slope * v)


def _mean_hw(p):
    """(B, H, W) -> (B, 1, 1) spatial mean via two single-axis reductions."""
    s = jnp.sum(p, axis=2, keepdims=True)
    s = jnp.sum(s, axis=1, keepdims=True)
    return s * (1.0 / float(p.shape[1] * p.shape[2]))


# ----------------------------------------------------------------------------
# In-kernel building blocks (pure functions on values + a halo scratch ref).
# ----------------------------------------------------------------------------
def _conv3x3_from_halo(pad_ref, base, prm, woff, boff, cin, cout, B, H, W):
    """3x3 'same' conv.  Inputs live zero-bordered in pad_ref[base:base+cin].
    Weights are flat (3, 3, cin, cout); returns a list of cout (B,H,W) planes."""
    accs = [jnp.zeros((B, H, W), jnp.float32) + prm[boff + co] for co in range(cout)]
    for ci in range(cin):
        for ky in range(3):
            for kx in range(3):
                patch = pad_ref[base + ci, :, ky:ky + H, kx:kx + W]   # (B,H,W)
                kbase = woff + ((ky * 3 + kx) * cin + ci) * cout
                for co in range(cout):
                    accs[co] = accs[co] + patch * prm[kbase + co]
    return accs


def _unet_conv_block(in_planes, pad_ref, prm, o, cin, cout, B, H, W):
    """UNetConvBlock: conv3x3 -> HIN(first half) -> lrelu -> conv3x3 -> lrelu
    -> + identity(1x1 conv).  in_planes: list of cin (B,H,W) planes."""
    # conv_1: stage inputs in halo slots [0, cin)   (border already zero)
    for ci in range(cin):
        pad_ref[ci, :, 1:H + 1, 1:W + 1] = in_planes[ci]
    c1 = _conv3x3_from_halo(pad_ref, 0, prm, o["w1"], o["b1"], cin, cout, B, H, W)

    # Half-instance-norm (per sample, biased variance, one-pass stats) + lrelu.
    half = cout // 2
    mids = []
    for c in range(cout):
        p = c1[c]
        if c < half:
            mu = _mean_hw(p)
            var = _mean_hw(p * p) - mu * mu
            p = (p - mu) * jax.lax.rsqrt(var + 1e-5) * prm[o["gamma"] + c] + prm[o["beta"] + c]
        mids.append(_lrelu(p))

    # conv_2: stage intermediates in halo slots [cin, cin+cout)
    for c in range(cout):
        pad_ref[cin + c, :, 1:H + 1, 1:W + 1] = mids[c]
    c2 = _conv3x3_from_halo(pad_ref, cin, prm, o["w2"], o["b2"], cout, cout, B, H, W)

    outs = []
    for co in range(cout):
        ident = jnp.zeros((B, H, W), jnp.float32) + prm[o["bid"] + co]
        for ci in range(cin):
            ident = ident + in_planes[ci] * prm[o["wid"] + ci * cout + co]
        outs.append(_lrelu(c2[co]) + ident)
    return outs


# ----------------------------------------------------------------------------
# Kernel 1: SpaBlock (x + InvBlock(x)) + FreBlock, whole batch, single step.
# ----------------------------------------------------------------------------
def _make_spa_fre_kernel(B, C, H, W, Fr, s1, spa_offs, fre_offs):
    s2 = C - s1

    def kernel(x_ref, mag_ref, pha_ref, spa_prm, fre_prm,
               xs_ref, re_ref, im_ref, pad_ref):
        # Zero the halo scratch once; every conv overwrites only the interior,
        # so the 1-pixel zero border stays valid across all six convs.
        pad_ref[...] = jnp.zeros(pad_ref.shape, jnp.float32)

        # ------------------- SpaBlock -------------------
        x = [x_ref[c] for c in range(C)]              # (B,H,W) each, loaded once
        x1, x2 = x[:s1], x[s1:]

        f = _unet_conv_block(x2, pad_ref, spa_prm, spa_offs["F"], s2, s1, B, H, W)
        y1 = [x1[i] + f[i] for i in range(s1)]

        h = _unet_conv_block(y1, pad_ref, spa_prm, spa_offs["H"], s1, s2, B, H, W)
        g = _unet_conv_block(y1, pad_ref, spa_prm, spa_offs["G"], s1, s2, B, H, W)

        for c in range(s1):
            xs_ref[c] = x[c] + y1[c]
        for i in range(s2):
            sig = 1.0 / (1.0 + jnp.exp(-h[i]))         # sigmoid via EUP exp
            s = 0.8 * (sig * 2.0 - 1.0)
            y2 = x2[i] * jnp.exp(s) + g[i]
            xs_ref[s1 + i] = x[s1 + i] + y2

        # ------------------- FreBlock (1x1 conv paths) -------------------
        def conv1x1(vs, woff, boff):
            outs = []
            for co in range(C):
                acc = jnp.zeros((B, Fr), jnp.float32) + fre_prm[boff + co]
                for ci in range(C):
                    acc = acc + vs[ci] * fre_prm[woff + ci * C + co]
                outs.append(acc)
            return outs

        mag = [mag_ref[c] for c in range(C)]           # lane-dense (B, Fr) rows
        pha = [pha_ref[c] for c in range(C)]

        m = conv1x1(mag, fre_offs["wm1"], fre_offs["bm1"])
        m = [_lrelu(v) for v in m]
        m = conv1x1(m, fre_offs["wm2"], fre_offs["bm2"])

        p = conv1x1(pha, fre_offs["wp1"], fre_offs["bp1"])
        p = [_lrelu(v) for v in p]
        p = conv1x1(p, fre_offs["wp2"], fre_offs["bp2"])

        for c in range(C):
            re_ref[c] = m[c] * jnp.cos(p[c])
            im_ref[c] = m[c] * jnp.sin(p[c])

    return kernel


def spa_fre_call(xc, mag_c, pha_c, spa_prm, fre_prm, spa_offs, fre_offs, s1):
    C, B, H, W = xc.shape
    Fr = mag_c.shape[-1]
    vmem = pl.BlockSpec(memory_space=pltpu.MemorySpace.VMEM)
    smem = pl.BlockSpec(memory_space=pltpu.MemorySpace.SMEM)
    return pl.pallas_call(
        _make_spa_fre_kernel(B, C, H, W, Fr, s1, spa_offs, fre_offs),
        out_shape=(jax.ShapeDtypeStruct((C, B, H, W), jnp.float32),
                   jax.ShapeDtypeStruct((C, B, Fr), jnp.float32),
                   jax.ShapeDtypeStruct((C, B, Fr), jnp.float32)),
        in_specs=[vmem, vmem, vmem, smem, smem],
        out_specs=(vmem, vmem, vmem),
        scratch_shapes=[pltpu.VMEM((C, B, H + 2, W + 2), jnp.float32)],
    )(xc, mag_c, pha_c, spa_prm, fre_prm)


# ----------------------------------------------------------------------------
# Kernel 2: final 1x1 conv over cat([x_spatial, x_freq_spatial]) + residual.
# Operates on lane-dense (C, B, H*W) slabs (H*W = 256 -> unmasked full stores).
# ----------------------------------------------------------------------------
def _make_cat_kernel(C, cat_offs):
    w_off, b_off = cat_offs["wcat"], cat_offs["bcat"]

    def kernel(xs_ref, xf_ref, xo_ref, prm, out_ref):
        xs = [xs_ref[c] for c in range(C)]
        xf = [xf_ref[c] for c in range(C)]
        for co in range(C):
            acc = xo_ref[co] + prm[b_off + co]          # residual + bias
            for ci in range(C):
                acc = acc + xs[ci] * prm[w_off + ci * C + co]
                acc = acc + xf[ci] * prm[w_off + (C + ci) * C + co]
            out_ref[co] = acc

    return kernel


def cat_conv_residual(xs2, xf2, xo2, cat_prm, cat_offs):
    C = xs2.shape[0]
    vmem = pl.BlockSpec(memory_space=pltpu.MemorySpace.VMEM)
    smem = pl.BlockSpec(memory_space=pltpu.MemorySpace.SMEM)
    return pl.pallas_call(
        _make_cat_kernel(C, cat_offs),
        out_shape=jax.ShapeDtypeStruct(xs2.shape, jnp.float32),
        in_specs=[vmem, vmem, vmem, smem],
        out_specs=vmem,
    )(xs2, xf2, xo2, cat_prm)


# ----------------------------------------------------------------------------
# Parameter packing: one flat f32 SMEM vector per kernel + static Python offsets.
# ----------------------------------------------------------------------------
def _pack_group(d, keys):
    flats, offs, off = [], {}, 0
    for k in keys:
        a = jnp.asarray(d[k], jnp.float32).reshape(-1)
        offs[k] = off
        off += a.shape[0]
        flats.append(a)
    return jnp.concatenate(flats), offs


def _pack_unet_group(spa):
    flats, offs, off = [], {}, 0
    for blk in ("F", "H", "G"):
        offs[blk] = {}
        for k in _UNET_KEYS:
            a = jnp.asarray(spa[blk][k], jnp.float32).reshape(-1)
            offs[blk][k] = off
            off += a.shape[0]
            flats.append(a)
    return jnp.concatenate(flats), offs


# ----------------------------------------------------------------------------
# Plain-JAX glue: FFTs, abs/angle, complex recombine, layout plumbing.
# ----------------------------------------------------------------------------
def process_block(x, params):
    B, C, H, W = x.shape
    s1 = C // 2

    spa_prm, spa_offs = _pack_unet_group(params["spa"])
    fre_prm, fre_offs = _pack_group(params["fre"], _FRE_KEYS)
    cat_prm, cat_offs = _pack_group(
        {"wcat": params["wcat"], "bcat": params["bcat"]}, _CAT_KEYS)

    # Channel-major layout for the kernels: (C, B, H, W).
    xc = jnp.transpose(x.astype(jnp.float32), (1, 0, 2, 3))

    # TODO(synk): rfft2/irfft2 have no Pallas TPU primitive; they stay in XLA.
    x_freq = jnp.fft.rfft2(xc, axes=(-2, -1))                  # norm='backward'
    Wr = x_freq.shape[-1]
    # TODO(synk): atan2/angle lowering in Mosaic is not guaranteed, so abs/angle
    # stay fused with the FFT epilogue in XLA rather than inside the kernel.
    mag_c = jnp.abs(x_freq).astype(jnp.float32).reshape(C, B, H * Wr)
    pha_c = jnp.angle(x_freq).astype(jnp.float32).reshape(C, B, H * Wr)

    xs_c, re_c, im_c = spa_fre_call(xc, mag_c, pha_c, spa_prm, fre_prm,
                                    spa_offs, fre_offs, s1)

    x_freq_out = jax.lax.complex(re_c, im_c).reshape(C, B, H, Wr)
    xfs_c = jnp.fft.irfft2(x_freq_out, s=(H, W), axes=(-2, -1))   # (C,B,H,W)

    out_c = cat_conv_residual(xs_c.reshape(C, B, H * W),
                              xfs_c.astype(jnp.float32).reshape(C, B, H * W),
                              xc.reshape(C, B, H * W),
                              cat_prm, cat_offs)
    return jnp.transpose(out_c.reshape(C, B, H, W), (1, 0, 2, 3))


# ----------------------------------------------------------------------------
# Deterministic parameter initialization (shapes follow the module __init__).
# NOTE: frequency_spatial / spatial_frequency convs are unused in forward.
# ----------------------------------------------------------------------------
def init_params(key, nc):
    s1, s2 = nc // 2, nc - nc // 2
    keys = iter(jax.random.split(key, 32))

    def w(shape, scale=0.1):
        return jax.random.normal(next(keys), shape, jnp.float32) * scale

    def unet(cin, cout):
        return {
            "w1": w((3, 3, cin, cout)), "b1": w((cout,), 0.05),
            "gamma": jnp.ones((cout // 2,), jnp.float32),
            "beta": jnp.zeros((cout // 2,), jnp.float32),
            "w2": w((3, 3, cout, cout)), "b2": w((cout,), 0.05),
            "wid": w((cin, cout)), "bid": w((cout,), 0.05),
        }

    return {
        "spa": {"F": unet(s2, s1), "G": unet(s1, s2), "H": unet(s1, s2)},
        "fre": {"wm1": w((nc, nc)), "bm1": w((nc,), 0.05),
                "wm2": w((nc, nc)), "bm2": w((nc,), 0.05),
                "wp1": w((nc, nc)), "bp1": w((nc,), 0.05),
                "wp2": w((nc, nc)), "bp2": w((nc,), 0.05)},
        "wcat": w((2 * nc, nc)), "bcat": w((nc,), 0.05),
    }


if __name__ == "__main__":
    key = jax.random.PRNGKey(0)
    kx, kp = jax.random.split(key)
    B, C, H, W = 2, 4, 16, 16
    x = jax.random.normal(kx, (B, C, H, W), jnp.float32)
    params = init_params(kp, C)

    fwd = jax.jit(process_block)
    out = fwd(x, params)
    out = jax.block_until_ready(out)

    assert out.shape == (B, C, H, W), out.shape
    assert out.dtype == jnp.float32
    assert bool(jnp.all(jnp.isfinite(out)))
    print("KERNEL_OK")
</pallas_src>

<mosaic_0001>
module attributes {stable_mosaic.version = 11 : i64} {
  func.func @kernel(%arg0: memref<4x2x16x16xf32, #tpu.memory_space<vmem>>, %arg1: memref<4x2x144xf32, #tpu.memory_space<vmem>>, %arg2: memref<4x2x144xf32, #tpu.memory_space<vmem>>, %arg3: memref<252xf32, #tpu.memory_space<smem>>, %arg4: memref<80xf32, #tpu.memory_space<smem>>, %arg5: memref<4x2x16x16xf32, #tpu.memory_space<vmem>>, %arg6: memref<4x2x144xf32, #tpu.memory_space<vmem>>, %arg7: memref<4x2x144xf32, #tpu.memory_space<vmem>>, %arg8: memref<4x2x18x18xf32, #tpu.memory_space<vmem>>) attributes {dimension_semantics = [], scalar_prefetch = 0 : i64, scratch_operands = 1 : i64, tpu.core_type = #tpu.core_type<tc>} {
    %cst = arith.constant 0.000000e+00 : f32
    %0 = vector.broadcast %cst : f32 to vector<4x2x18x18xf32>
    %c0 = arith.constant 0 : index
    %c0_0 = arith.constant 0 : index
    %c0_1 = arith.constant 0 : index
    %c0_2 = arith.constant 0 : index
    %1 = vector.load %arg8[%c0, %c0_0, %c0_1, %c0_2] : memref<4x2x18x18xf32, #tpu.memory_space<vmem>>, vector<4x2x18x18xf32>
    tpu.vector_store %arg8[%c0, %c0_0, %c0_1, %c0_2], %0 {strides = array<i32>} : memref<4x2x18x18xf32, #tpu.memory_space<vmem>>, vector<4x2x18x18xf32>,
    %c0_3 = arith.constant 0 : index
    %c0_4 = arith.constant 0 : index
    %c0_5 = arith.constant 0 : index
    %c0_6 = arith.constant 0 : index
    %2 = vector.load %arg0[%c0_3, %c0_4, %c0_5, %c0_6] : memref<4x2x16x16xf32, #tpu.memory_space<vmem>>, vector<1x2x16x16xf32>
    %3 = vector.shape_cast %2 : vector<1x2x16x16xf32> to vector<2x16x16xf32>
    %c1 = arith.constant 1 : index
    %c0_7 = arith.constant 0 : index
    %c0_8 = arith.constant 0 : index
    %c0_9 = arith.constant 0 : index
    %4 = vector.load %arg0[%c1, %c0_7, %c0_8, %c0_9] : memref<4x2x16x16xf32, #tpu.memory_space<vmem>>, vector<1x2x16x16xf32>
    %5 = vector.shape_cast %4 : vector<1x2x16x16xf32> to vector<2x16x16xf32>
    %c2 = arith.constant 2 : index
    %c0_10 = arith.constant 0 : index
    %c0_11 = arith.constant 0 : index
    %c0_12 = arith.constant 0 : index
    %6 = vector.load %arg0[%c2, %c0_10, %c0_11, %c0_12] : memref<4x2x16x16xf32, #tpu.memory_space<vmem>>, vector<1x2x16x16xf32>
    %7 = vector.shape_cast %6 : vector<1x2x16x16xf32> to vector<2x16x16xf32>
    %c3 = arith.constant 3 : index
    %c0_13 = arith.constant 0 : index
    %c0_14 = arith.constant 0 : index
    %c0_15 = arith.constant 0 : index
    %8 = vector.load %arg0[%c3, %c0_13, %c0_14, %c0_15] : memref<4x2x16x16xf32, #tpu.memory_space<vmem>>, vector<1x2x16x16xf32>
    %9 = vector.shape_cast %8 : vector<1x2x16x16xf32> to vector<2x16x16xf32>
    %c0_16 = arith.constant 0 : index
    %c0_17 = arith.constant 0 : index
    %c1_18 = arith.constant 1 : index
    %c1_19 = arith.constant 1 : index
    %10 = vector.load %arg8[%c0_16, %c0_17, %c1_18, %c1_19] : memref<4x2x18x18xf32, #tpu.memory_space<vmem>>, vector<1x2x16x16xf32>
    %11 = vector.shape_cast %10 : vector<1x2x16x16xf32> to vector<2x16x16xf32>
    %12 = vector.shape_cast %7 : vector<2x16x16xf32> to vector<1x2x16x16xf32>
    tpu.vector_store %arg8[%c0_16, %c0_17, %c1_18, %c1_19], %12 {strides = array<i32>} : memref<4x2x18x18xf32, #tpu.memory_space<vmem>>, vector<1x2x16x16xf32>,
    %c1_20 = arith.constant 1 : index
    %c0_21 = arith.constant 0 : index
    %c1_22 = arith.constant 1 : index
    %c1_23 = arith.constant 1 : index
    %13 = vector.load %arg8[%c1_20, %c0_21, %c1_22, %c1_23] : memref<4x2x18x18xf32, #tpu.memory_space<vmem>>, vector<1x2x16x16xf32>
    %14 = vector.shape_cast %13 : vector<1x2x16x16xf32> to vector<2x16x16xf32>
    %15 = vector.shape_cast %9 : vector<2x16x16xf32> to vector<1x2x16x16xf32>
    tpu.vector_store %arg8[%c1_20, %c0_21, %c1_22, %c1_23], %15 {strides = array<i32>} : memref<4x2x18x18xf32, #tpu.memory_space<vmem>>, vector<1x2x16x16xf32>,
    %cst_24 = arith.constant 0.000000e+00 : f32
    %16 = vector.broadcast %cst_24 : f32 to vector<2x16x16xf32>
    %c36 = arith.constant 36 : index
    %17 = memref.load %arg3[%c36] : memref<252xf32, #tpu.memory_space<smem>>
    %18 = vector.broadcast %17 : f32 to vector<2x16x16xf32>
    %19 = arith.addf %16, %18 : vector<2x16x16xf32>
    %cst_25 = arith.constant 0.000000e+00 : f32
    %20 = vector.broadcast %cst_25 : f32 to vector<2x16x16xf32>
    %c37 = arith.constant 37 : index
    %21 = memref.load %arg3[%c37] : memref<252xf32, #tpu.memory_space<smem>>
    %22 = vector.broadcast %21 : f32 to vector<2x16x16xf32>
    %23 = arith.addf %20, %22 : vector<2x16x16xf32>
    %c0_26 = arith.constant 0 : index
    %c0_27 = arith.constant 0 : index
    %c0_28 = arith.constant 0 : index
    %c0_29 = arith.constant 0 : index
    %24 = vector.load %arg8[%c0_26, %c0_27, %c0_28, %c0_29] : memref<4x2x18x18xf32, #tpu.memory_space<vmem>>, vector<1x2x16x16xf32>
    %25 = vector.shape_cast %24 : vector<1x2x16x16xf32> to vector<2x16x16xf32>
    %c0_30 = arith.constant 0 : index
    %26 = memref.load %arg3[%c0_30] : memref<252xf32, #tpu.memory_space<smem>>
    %27 = vector.broadcast %26 : f32 to vector<2x16x16xf32>
    %28 = arith.mulf %25, %27 : vector<2x16x16xf32>
    %29 = arith.addf %19, %28 : vector<2x16x16xf32>
    %c1_31 = arith.constant 1 : index
    %30 = memref.load %arg3[%c1_31] : memref<252xf32, #tpu.memory_space<smem>>
    %31 = vector.broadcast %30 : f32 to vector<2x16x16xf32>
    %32 = arith.mulf %25, %31 : vector<2x16x16xf32>
    %33 = arith.addf %23, %32 : vector<2x16x16xf32>
    %c0_32 = arith.constant 0 : index
    %c0_33 = arith.constant 0 : index
    %c0_34 = arith.constant 0 : index
    %c1_35 = arith.constant 1 : index
    %34 = vector.load %arg8[%c0_32, %c0_33, %c0_34, %c1_35] : memref<4x2x18x18xf32, #tpu.memory_space<vmem>>, vector<1x2x16x16xf32>
    %35 = vector.shape_cast %34 : vector<1x2x16x16xf32> to vector<2x16x16xf32>
    %c4 = arith.constant 4 : index
    %36 = memref.load %arg3[%c4] : memref<252xf32, #tpu.memory_space<smem>>
    %37 = vector.broadcast %36 : f32 to vector<2x16x16xf32>
    %38 = arith.mulf %35, %37 : vector<2x16x16xf32>
    %39 = arith.addf %29, %38 : vector<2x16x16xf32>
    %c5 = arith.constant 5 : index
    %40 = memref.load %arg3[%c5] : memref<252xf32, #tpu.memory_space<smem>>
    %41 = vector.broadcast %40 : f32 to vector<2x16x16xf32>
    %42 = arith.mulf %35, %41 : vector<2x16x16xf32>
    %43 = arith.addf %33, %42 : vector<2x16x16xf32>
    %c0_36 = arith.constant 0 : index
    %c0_37 = arith.constant 0 : index
    %c0_38 = arith.constant 0 : index
    %c2_39 = arith.constant 2 : index
    %44 = vector.load %arg8[%c0_36, %c0_37, %c0_38, %c2_39] : memref<4x2x18x18xf32, #tpu.memory_space<vmem>>, vector<1x2x16x16xf32>
    %45 = vector.shape_cast %44 : vector<1x2x16x16xf32> to vector<2x16x16xf32>
    %c8 = arith.constant 8 : index
    %46 = memref.load %arg3[%c8] : memref<252xf32, #tpu.memory_space<smem>>
    %47 = vector.broadcast %46 : f32 to vector<2x16x16xf32>
    %48 = arith.mulf %45, %47 : vector<2x16x16xf32>
    %49 = arith.addf %39, %48 : vector<2x16x16xf32>
    %c9 = arith.constant 9 : index
    %50 = memref.load %arg3[%c9] : memref<252xf32, #tpu.memory_space<smem>>
    %51 = vector.broadcast %50 : f32 to vector<2x16x16xf32>
    %52 = arith.mulf %45, %51 : vector<2x16x16xf32>
    %53 = arith.addf %43, %52 : vector<2x16x16xf32>
    %c0_40 = arith.constant 0 : index
    %c0_41 = arith.constant 0 : index
    %c1_42 = arith.constant 1 : index
    %c0_43 = arith.constant 0 : index
    %54 = vector.load %arg8[%c0_40, %c0_41, %c1_42, %c0_43] : memref<4x2x18x18xf32, #tpu.memory_space<vmem>>, vector<1x2x16x16xf32>
    %55 = vector.shape_cast %54 : vector<1x2x16x16xf32> to vector<2x16x16xf32>
    %c12 = arith.constant 12 : index
    %56 = memref.load %arg3[%c12] : memref<252xf32, #tpu.memory_space<smem>>
    %57 = vector.broadcast %56 : f32 to vector<2x16x16xf32>
    %58 = arith.mulf %55, %57 : vector<2x16x16xf32>
    %59 = arith.addf %49, %58 : vector<2x16x16xf32>
    %c13 = arith.constant 13 : index
    %60 = memref.load %arg3[%c13] : memref<252xf32, #tpu.memory_space<smem>>
    %61 = vector.broadcast %60 : f32 to vector<2x16x16xf32>
    %62 = arith.mulf %55, %61 : vector<2x16x16xf32>
    %63 = arith.addf %53, %62 : vector<2x16x16xf32>
    %c0_44 = arith.constant 0 : index
    %c0_45 = arith.constant 0 : index
    %c1_46 = arith.constant 1 : index
    %c1_47 = arith.constant 1 : index
    %64 = vector.load %arg8[%c0_44, %c0_45, %c1_46, %c1_47] : memref<4x2x18x18xf32, #tpu.memory_space<vmem>>, vector<1x2x16x16xf32>
    %65 = vector.shape_cast %64 : vector<1x2x16x16xf32> to vector<2x16x16xf32>
    %c16 = arith.constant 16 : index
    %66 = memref.load %arg3[%c16] : memref<252xf32, #tpu.memory_space<smem>>
    %67 = vector.broadcast %66 : f32 to vector<2x16x16xf32>
    %68 = arith.mulf %65, %67 : vector<2x16x16xf32>
    %69 = arith.addf %59, %68 : vector<2x16x16xf32>
    %c17 = arith.constant 17 : index
    %70 = memref.load %arg3[%c17] : memref<252xf32, #tpu.memory_space<smem>>
    %71 = vector.broadcast %70 : f32 to vector<2x16x16xf32>
    %72 = arith.mulf %65, %71 : vector<2x16x16xf32>
    %73 = arith.addf %63, %72 : vector<2x16x16xf32>
    %c0_48 = arith.constant 0 : index
    %c0_49 = arith.constant 0 : index
    %c1_50 = arith.constant 1 : index
    %c2_51 = arith.constant 2 : index
    %74 = vector.load %arg8[%c0_48, %c0_49, %c1_50, %c2_51] : memref<4x2x18x18xf32, #tpu.memory_space<vmem>>, vector<1x2x16x16xf32>
    %75 = vector.shape_cast %74 : vector<1x2x16x16xf32> to vector<2x16x16xf32>
    %c20 = arith.constant 20 : index
    %76 = memref.load %arg3[%c20] : memref<252xf32, #tpu.memory_space<smem>>
    %77 = vector.broadcast %76 : f32 to vector<2x16x16xf32>
    %78 = arith.mulf %75, %77 : vector<2x16x16xf32>
    %79 = arith.addf %69, %78 : vector<2x16x16xf32>
    %c21 = arith.constant 21 : index
    %80 = memref.load %arg3[%c21] : memref<252xf32, #tpu.memory_space<smem>>
    %81 = vector.broadcast %80 : f32 to vector<2x16x16xf32>
    %82 = arith.mulf %75, %81 : vector<2x16x16xf32>
    %83 = arith.addf %73, %82 : vector<2x16x16xf32>
    %c0_52 = arith.constant 0 : index
    %c0_53 = arith.constant 0 : index
    %c2_54 = arith.constant 2 : index
    %c0_55 = arith.constant 0 : index
    %84 = vector.load %arg8[%c0_52, %c0_53, %c2_54, %c0_55] : memref<4x2x18x18xf32, #tpu.memory_space<vmem>>, vector<1x2x16x16xf32>
    %85 = vector.shape_cast %84 : vector<1x2x16x16xf32> to vector<2x16x16xf32>
    %c24 = arith.constant 24 : index
    %86 = memref.load %arg3[%c24] : memref<252xf32, #tpu.memory_space<smem>>
    %87 = vector.broadcast %86 : f32 to vector<2x16x16xf32>
    %88 = arith.mulf %85, %87 : vector<2x16x16xf32>
    %89 = arith.addf %79, %88 : vector<2x16x16xf32>
    %c25 = arith.constant 25 : index
    %90 = memref.load %arg3[%c25] : memref<252xf32, #tpu.memory_space<smem>>
    %91 = vector.broadcast %90 : f32 to vector<2x16x16xf32>
    %92 = arith.mulf %85, %91 : vector<2x16x16xf32>
    %93 = arith.addf %83, %92 : vector<2x16x16xf32>
    %c0_56 = arith.constant 0 : index
    %c0_57 = arith.constant 0 : index
    %c2_58 = arith.constant 2 : index
    %c1_59 = arith.constant 1 : index
    %94 = vector.load %arg8[%c0_56, %c0_57, %c2_58, %c1_59] : memref<4x2x18x18xf32, #tpu.memory_space<vmem>>, vector<1x2x16x16xf32>
    %95 = vector.shape_cast %94 : vector<1x2x16x16xf32> to vector<2x16x16xf32>
    %c28 = arith.constant 28 : index
    %96 = memref.load %arg3[%c28] : memref<252xf32, #tpu.memory_space<smem>>
    %97 = vector.broadcast %96 : f32 to vector<2x16x16xf32>
    %98 = arith.mulf %95, %97 : vector<2x16x16xf32>
    %99 = arith.addf %89, %98 : vector<2x16x16xf32>
    %c29 = arith.constant 29 : index
    %100 = memref.load %arg3[%c29] : memref<252xf32, #tpu.memory_space<smem>>
    %101 = vector.broadcast %100 : f32 to vector<2x16x16xf32>
    %102 = arith.mulf %95, %101 : vector<2x16x16xf32>
    %103 = arith.addf %93, %102 : vector<2x16x16xf32>
    %c0_60 = arith.constant 0 : index
    %c0_61 = arith.constant 0 : index
    %c2_62 = arith.constant 2 : index
    %c2_63 = arith.constant 2 : index
    %104 = vector.load %arg8[%c0_60, %c0_61, %c2_62, %c2_63] : memref<4x2x18x18xf32, #tpu.memory_space<vmem>>, vector<1x2x16x16xf32>
    %105 = vector.shape_cast %104 : vector<1x2x16x16xf32> to vector<2x16x16xf32>
    %c32 = arith.constant 32 : index
    %106 = memref.load %arg3[%c32] : memref<252xf32, #tpu.memory_space<smem>>
    %107 = vector.broadcast %106 : f32 to vector<2x16x16xf32>
    %108 = arith.mulf %105, %107 : vector<2x16x16xf32>
    %109 = arith.addf %99, %108 : vector<2x16x16xf32>
    %c33 = arith.constant 33 : index
    %110 = memref.load %arg3[%c33] : memref<252xf32, #tpu.memory_space<smem>>
    %111 = vector.broadcast %110 : f32 to vector<2x16x16xf32>
    %112 = arith.mulf %105, %111 : vector<2x16x16xf32>
    %113 = arith.addf %103, %112 : vector<2x16x16xf32>
    %c1_64 = arith.constant 1 : index
    %c0_65 = arith.constant 0 : index
    %c0_66 = arith.constant 0 : index
    %c0_67 = arith.constant 0 : index
    %114 = vector.load %arg8[%c1_64, %c0_65, %c0_66, %c0_67] : memref<4x2x18x18xf32, #tpu.memory_space<vmem>>, vector<1x2x16x16xf32>
    %115 = vector.shape_cast %114 : vector<1x2x16x16xf32> to vector<2x16x16xf32>
    %c2_68 = arith.constant 2 : index
    %116 = memref.load %arg3[%c2_68] : memref<252xf32, #tpu.memory_space<smem>>
    %117 = vector.broadcast %116 : f32 to vector<2x16x16xf32>
    %118 = arith.mulf %115, %117 : vector<2x16x16xf32>
    %119 = arith.addf %109, %118 : vector<2x16x16xf32>
    %c3_69 = arith.constant 3 : index
    %120 = memref.load %arg3[%c3_69] : memref<252xf32, #tpu.memory_space<smem>>
    %121 = vector.broadcast %120 : f32 to vector<2x16x16xf32>
    %122 = arith.mulf %115, %121 : vector<2x16x16xf32>
    %123 = arith.addf %113, %122 : vector<2x16x16xf32>
    %c1_70 = arith.constant 1 : index
    %c0_71 = arith.constant 0 : index
    %c0_72 = arith.constant 0 : index
    %c1_73 = arith.constant 1 : index
    %124 = vector.load %arg8[%c1_70, %c0_71, %c0_72, %c1_73] : memref<4x2x18x18xf32, #tpu.memory_space<vmem>>, vector<1x2x16x16xf32>
    %125 = vector.shape_cast %124 : vector<1x2x16x16xf32> to vector<2x16x16xf32>
    %c6 = arith.constant 6 : index
    %126 = memref.load %arg3[%c6] : memref<252xf32, #tpu.memory_space<smem>>
    %127 = vector.broadcast %126 : f32 to vector<2x16x16xf32>
    %128 = arith.mulf %125, %127 : vector<2x16x16xf32>
    %129 = arith.addf %119, %128 : vector<2x16x16xf32>
    %c7 = arith.constant 7 : index
    %130 = memref.load %arg3[%c7] : memref<252xf32, #tpu.memory_space<smem>>
    %131 = vector.broadcast %130 : f32 to vector<2x16x16xf32>
    %132 = arith.mulf %125, %131 : vector<2x16x16xf32>
    %133 = arith.addf %123, %132 : vector<2x16x16xf32>
    %c1_74 = arith.constant 1 : index
    %c0_75 = arith.constant 0 : index
    %c0_76 = arith.constant 0 : index
    %c2_77 = arith.constant 2 : index
    %134 = vector.load %arg8[%c1_74, %c0_75, %c0_76, %c2_77] : memref<4x2x18x18xf32, #tpu.memory_space<vmem>>, vector<1x2x16x16xf32>
    %135 = vector.shape_cast %134 : vector<1x2x16x16xf32> to vector<2x16x16xf32>
    %c10 = arith.constant 10 : index
    %136 = memref.load %arg3[%c10] : memref<252xf32, #tpu.memory_space<smem>>
    %137 = vector.broadcast %136 : f32 to vector<2x16x16xf32>
    %138 = arith.mulf %135, %137 : vector<2x16x16xf32>
    %139 = arith.addf %129, %138 : vector<2x16x16xf32>
    %c11 = arith.constant 11 : index
    %140 = memref.load %arg3[%c11] : memref<252xf32, #tpu.memory_space<smem>>
    %141 = vector.broadcast %140 : f32 to vector<2x16x16xf32>
    %142 = arith.mulf %135, %141 : vector<2x16x16xf32>
    %143 = arith.addf %133, %142 : vector<2x16x16xf32>
    %c1_78 = arith.constant 1 : index
    %c0_79 = arith.constant 0 : index
    %c1_80 = arith.constant 1 : index
    %c0_81 = arith.constant 0 : index
    %144 = vector.load %arg8[%c1_78, %c0_79, %c1_80, %c0_81] : memref<4x2x18x18xf32, #tpu.memory_space<vmem>>, vector<1x2x16x16xf32>
    %145 = vector.shape_cast %144 : vector<1x2x16x16xf32> to vector<2x16x16xf32>
    %c14 = arith.constant 14 : index
    %146 = memref.load %arg3[%c14] : memref<252xf32, #tpu.memory_space<smem>>
    %147 = vector.broadcast %146 : f32 to vector<2x16x16xf32>
    %148 = arith.mulf %145, %147 : vector<2x16x16xf32>
    %149 = arith.addf %139, %148 : vector<2x16x16xf32>
    %c15 = arith.constant 15 : index
    %150 = memref.load %arg3[%c15] : memref<252xf32, #tpu.memory_space<smem>>
    %151 = vector.broadcast %150 : f32 to vector<2x16x16xf32>
    %152 = arith.mulf %145, %151 : vector<2x16x16xf32>
    %153 = arith.addf %143, %152 : vector<2x16x16xf32>
    %c1_82 = arith.constant 1 : index
    %c0_83 = arith.constant 0 : index
    %c1_84 = arith.constant 1 : index
    %c1_85 = arith.constant 1 : index
    %154 = vector.load %arg8[%c1_82, %c0_83, %c1_84, %c1_85] : memref<4x2x18x18xf32, #tpu.memory_space<vmem>>, vector<1x2x16x16xf32>
    %155 = vector.shape_cast %154 : vector<1x2x16x16xf32> to vector<2x16x16xf32>
    %c18 = arith.constant 18 : index
    %156 = memref.load %arg3[%c18] : memref<252xf32, #tpu.memory_space<smem>>
    %157 = vector.broadcast %156 : f32 to vector<2x16x16xf32>
    %158 = arith.mulf %155, %157 : vector<2x16x16xf32>
    %159 = arith.addf %149, %158 : vector<2x16x16xf32>
    %c19 = arith.constant 19 : index
    %160 = memref.load %arg3[%c19] : memref<252xf32, #tpu.memory_space<smem>>
    %161 = vector.broadcast %160 : f32 to vector<2x16x16xf32>
    %162 = arith.mulf %155, %161 : vector<2x16x16xf32>
    %163 = arith.addf %153, %162 : vector<2x16x16xf32>
    %c1_86 = arith.constant 1 : index
    %c0_87 = arith.constant 0 : index
    %c1_88 = arith.constant 1 : index
    %c2_89 = arith.constant 2 : index
    %164 = vector.load %arg8[%c1_86, %c0_87, %c1_88, %c2_89] : memref<4x2x18x18xf32, #tpu.memory_space<vmem>>, vector<1x2x16x16xf32>
    %165 = vector.shape_cast %164 : vector<1x2x16x16xf32> to vector<2x16x16xf32>
    %c22 = arith.constant 22 : index
    %166 = memref.load %arg3[%c22] : memref<252xf32, #tpu.memory_space<smem>>
    %167 = vector.broadcast %166 : f32 to vector<2x16x16xf32>
    %168 = arith.mulf %165, %167 : vector<2x16x16xf32>
    %169 = arith.addf %159, %168 : vector<2x16x16xf32>
    %c23 = arith.constant 23 : index
    %170 = memref.load %arg3[%c23] : memref<252xf32, #tpu.memory_space<smem>>
    %171 = vector.broadcast %170 : f32 to vector<2x16x16xf32>
    %172 = arith.mulf %165, %171 : vector<2x16x16xf32>
    %173 = arith.addf %163, %172 : vector<2x16x16xf32>
    %c1_90 = arith.constant 1 : index
    %c0_91 = arith.constant 0 : index
    %c2_92 = arith.constant 2 : index
    %c0_93 = arith.constant 0 : index
    %174 = vector.load %arg8[%c1_90, %c0_91, %c2_92, %c0_93] : memref<4x2x18x18xf32, #tpu.memory_space<vmem>>, vector<1x2x16x16xf32>
    %175 = vector.shape_cast %174 : vector<1x2x16x16xf32> to vector<2x16x16xf32>
    %c26 = arith.constant 26 : index
    %176 = memref.load %arg3[%c26] : memref<252xf32, #tpu.memory_space<smem>>
    %177 = vector.broadcast %176 : f32 to vector<2x16x16xf32>
    %178 = arith.mulf %175, %177 : vector<2x16x16xf32>
    %179 = arith.addf %169, %178 : vector<2x16x16xf32>
    %c27 = arith.constant 27 : index
    %180 = memref.load %arg3[%c27] : memref<252xf32, #tpu.memory_space<smem>>
    %181 = vector.broadcast %180 : f32 to vector<2x16x16xf32>
    %182 = arith.mulf %175, %181 : vector<2x16x16xf32>
    %183 = arith.addf %173, %182 : vector<2x16x16xf32>
    %c1_94 = arith.constant 1 : index
    %c0_95 = arith.constant 0 : index
    %c2_96 = arith.constant 2 : index
    %c1_97 = arith.constant 1 : index
    %184 = vector.load %arg8[%c1_94, %c0_95, %c2_96, %c1_97] : memref<4x2x18x18xf32, #tpu.memory_space<vmem>>, vector<1x2x16x16xf32>
    %185 = vector.shape_cast %184 : vector<1x2x16x16xf32> to vector<2x16x16xf32>
    %c30 = arith.constant 30 : index
    %186 = memref.load %arg3[%c30] : memref<252xf32, #tpu.memory_space<smem>>
    %187 = vector.broadcast %186 : f32 to vector<2x16x16xf32>
    %188 = arith.mulf %185, %187 : vector<2x16x16xf32>
    %189 = arith.addf %179, %188 : vector<2x16x16xf32>
    %c31 = arith.constant 31 : index
    %190 = memref.load %arg3[%c31] : memref<252xf32, #tpu.memory_space<smem>>
    %191 = vector.broadcast %190 : f32 to vector<2x16x16xf32>
    %192 = arith.mulf %185, %191 : vector<2x16x16xf32>
    %193 = arith.addf %183, %192 : vector<2x16x16xf32>
    %c1_98 = arith.constant 1 : index
    %c0_99 = arith.constant 0 : index
    %c2_100 = arith.constant 2 : index
    %c2_101 = arith.constant 2 : index
    %194 = vector.load %arg8[%c1_98, %c0_99, %c2_100, %c2_101] : memref<4x2x18x18xf32, #tpu.memory_space<vmem>>, vector<1x2x16x16xf32>
    %195 = vector.shape_cast %194 : vector<1x2x16x16xf32> to vector<2x16x16xf32>
    %c34 = arith.constant 34 : index
    %196 = memref.load %arg3[%c34] : memref<252xf32, #tpu.memory_space<smem>>
    %197 = vector.broadcast %196 : f32 to vector<2x16x16xf32>
    %198 = arith.mulf %195, %197 : vector<2x16x16xf32>
    %199 = arith.addf %189, %198 : vector<2x16x16xf32>
    %c35 = arith.constant 35 : index
    %200 = memref.load %arg3[%c35] : memref<252xf32, #tpu.memory_space<smem>>
    %201 = vector.broadcast %200 : f32 to vector<2x16x16xf32>
    %202 = arith.mulf %195, %201 : vector<2x16x16xf32>
    %203 = arith.addf %193, %202 : vector<2x16x16xf32>
    %cst_102 = arith.constant dense<0.000000e+00> : vector<2x16xf32>
    %204 = vector.multi_reduction <add>, %199, %cst_102 [2] : vector<2x16x16xf32> to vector<2x16xf32>
    %205 = vector.shape_cast %204 : vector<2x16xf32> to vector<2x16x1xf32>
    %cst_103 = arith.constant dense<0.000000e+00> : vector<2x1xf32>
    %206 = vector.multi_reduction <add>, %205, %cst_103 [1] : vector<2x16x1xf32> to vector<2x1xf32>
    %207 = vector.shape_cast %206 : vector<2x1xf32> to vector<2x1x1xf32>
    %cst_104 = arith.constant 3.906250e-03 : f32
    %208 = vector.broadcast %cst_104 : f32 to vector<2x1x1xf32>
    %209 = arith.mulf %207, %208 : vector<2x1x1xf32>
    %210 = arith.mulf %199, %199 : vector<2x16x16xf32>
    %cst_105 = arith.constant dense<0.000000e+00> : vector<2x16xf32>
    %211 = vector.multi_reduction <add>, %210, %cst_105 [2] : vector<2x16x16xf32> to vector<2x16xf32>
    %212 = vector.shape_cast %211 : vector<2x16xf32> to vector<2x16x1xf32>
    %cst_106 = arith.constant dense<0.000000e+00> : vector<2x1xf32>
    %213 = vector.multi_reduction <add>, %212, %cst_106 [1] : vector<2x16x1xf32> to vector<2x1xf32>
    %214 = vector.shape_cast %213 : vector<2x1xf32> to vector<2x1x1xf32>
    %cst_107 = arith.constant 3.906250e-03 : f32
    %215 = vector.broadcast %cst_107 : f32 to vector<2x1x1xf32>
    %216 = arith.mulf %214, %215 : vector<2x1x1xf32>
    %217 = arith.mulf %209, %209 : vector<2x1x1xf32>
    %218 = arith.subf %216, %217 : vector<2x1x1xf32>
    %219 = vector.broadcast %209 : vector<2x1x1xf32> to vector<2x16x16xf32>
    %220 = arith.subf %199, %219 : vector<2x16x16xf32>
    %cst_108 = arith.constant 9.99999974E-6 : f32
    %221 = vector.broadcast %cst_108 : f32 to vector<2x1x1xf32>
    %222 = arith.addf %218, %221 : vector<2x1x1xf32>
    %223 = math.rsqrt %222 : vector<2x1x1xf32>
    %224 = vector.broadcast %223 : vector<2x1x1xf32> to vector<2x16x16xf32>
    %225 = arith.mulf %220, %224 : vector<2x16x16xf32>
    %c38 = arith.constant 38 : index
    %226 = memref.load %arg3[%c38] : memref<252xf32, #tpu.memory_space<smem>>
    %227 = vector.broadcast %226 : f32 to vector<2x16x16xf32>
    %228 = arith.mulf %225, %227 : vector<2x16x16xf32>
    %c39 = arith.constant 39 : index
    %229 = memref.load %arg3[%c39] : memref<252xf32, #tpu.memory_space<smem>>
    %230 = vector.broadcast %229 : f32 to vector<2x16x16xf32>
    %231 = arith.addf %228, %230 : vector<2x16x16xf32>
    %cst_109 = arith.constant 0.000000e+00 : f32
    %232 = vector.broadcast %cst_109 : f32 to vector<2x16x16xf32>
    %233 = arith.cmpf ogt, %231, %232 : vector<2x16x16xf32>
    %cst_110 = arith.constant 1.000000e-01 : f32
    %234 = vector.broadcast %cst_110 : f32 to vector<2x16x16xf32>
    %235 = arith.mulf %234, %231 : vector<2x16x16xf32>
    %236 = arith.select %233, %231, %235 : vector<2x16x16xi1>, vector<2x16x16xf32>
    %cst_111 = arith.constant 0.000000e+00 : f32
    %237 = vector.broadcast %cst_111 : f32 to vector<2x16x16xf32>
    %238 = arith.cmpf ogt, %203, %237 : vector<2x16x16xf32>
    %cst_112 = arith.constant 1.000000e-01 : f32
    %239 = vector.broadcast %cst_112 : f32 to vector<2x16x16xf32>
    %240 = arith.mulf %239, %203 : vector<2x16x16xf32>
    %241 = arith.select %238, %203, %240 : vector<2x16x16xi1>, vector<2x16x16xf32>
    %c2_113 = arith.constant 2 : index
    %c0_114 = arith.constant 0 : index
    %c1_115 = arith.constant 1 : index
    %c1_116 = arith.constant 1 : index
    %242 = vector.load %arg8[%c2_113, %c0_114, %c1_115, %c1_116] : memref<4x2x18x18xf32, #tpu.memory_space<vmem>>, vector<1x2x16x16xf32>
    %243 = vector.shape_cast %242 : vector<1x2x16x16xf32> to vector<2x16x16xf32>
    %244 = vector.shape_cast %236 : vector<2x16x16xf32> to vector<1x2x16x16xf32>
    tpu.vector_store %arg8[%c2_113, %c0_114, %c1_115, %c1_116], %244 {strides = array<i32>} : memref<4x2x18x18xf32, #tpu.memory_space<vmem>>, vector<1x2x16x16xf32>,
    %c3_117 = arith.constant 3 : index
    %c0_118 = arith.constant 0 : index
    %c1_119 = arith.constant 1 : index
    %c1_120 = arith.constant 1 : index
    %245 = vector.load %arg8[%c3_117, %c0_118, %c1_119, %c1_120] : memref<4x2x18x18xf32, #tpu.memory_space<vmem>>, vector<1x2x16x16xf32>
    %246 = vector.shape_cast %245 : vector<1x2x16x16xf32> to vector<2x16x16xf32>
    %247 = vector.shape_cast %241 : vector<2x16x16xf32> to vector<1x2x16x16xf32>
    tpu.vector_store %arg8[%c3_117, %c0_118, %c1_119, %c1_120], %247 {strides = array<i32>} : memref<4x2x18x18xf32, #tpu.memory_space<vmem>>, vector<1x2x16x16xf32>,
    %cst_121 = arith.constant 0.000000e+00 : f32
    %248 = vector.broadcast %cst_121 : f32 to vector<2x16x16xf32>
    %c76 = arith.constant 76 : index
    %249 = memref.load %arg3[%c76] : memref<252xf32, #tpu.memory_space<smem>>
    %250 = vector.broadcast %249 : f32 to vector<2x16x16xf32>
    %251 = arith.addf %248, %250 : vector<2x16x16xf32>
    %cst_122 = arith.constant 0.000000e+00 : f32
    %252 = vector.broadcast %cst_122 : f32 to vector<2x16x16xf32>
    %c77 = arith.constant 77 : index
    %253 = memref.load %arg3[%c77] : memref<252xf32, #tpu.memory_space<smem>>
    %254 = vector.broadcast %253 : f32 to vector<2x16x16xf32>
    %255 = arith.addf %252, %254 : vector<2x16x16xf32>
    %c2_123 = arith.constant 2 : index
    %c0_124 = arith.constant 0 : index
    %c0_125 = arith.constant 0 : index
    %c0_126 = arith.constant 0 : index
    %256 = vector.load %arg8[%c2_123, %c0_124, %c0_125, %c0_126] : memref<4x2x18x18xf32, #tpu.memory_space<vmem>>, vector<1x2x16x16xf32>
    %257 = vector.shape_cast %256 : vector<1x2x16x16xf32> to vector<2x16x16xf32>
    %c40 = arith.constant 40 : index
    %258 = memref.load %arg3[%c40] : memref<252xf32, #tpu.memory_space<smem>>
    %259 = vector.broadcast %258 : f32 to vector<2x16x16xf32>
    %260 = arith.mulf %257, %259 : vector<2x16x16xf32>
    %261 = arith.addf %251, %260 : vector<2x16x16xf32>
    %c41 = arith.constant 41 : index
    %262 = memref.load %arg3[%c41] : memref<252xf32, #tpu.memory_space<smem>>
    %263 = vector.broadcast %262 : f32 to vector<2x16x16xf32>
    %264 = arith.mulf %257, %263 : vector<2x16x16xf32>
    %265 = arith.addf %255, %264 : vector<2x16x16xf32>
    %c2_127 = arith.constant 2 : index
    %c0_128 = arith.constant 0 : index
    %c0_129 = arith.constant 0 : index
    %c1_130 = arith.constant 1 : index
    %266 = vector.load %arg8[%c2_127, %c0_128, %c0_129, %c1_130] : memref<4x2x18x18xf32, #tpu.memory_space<vmem>>, vector<1x2x16x16xf32>
    %267 = vector.shape_cast %266 : vector<1x2x16x16xf32> to vector<2x16x16xf32>
    %c44 = arith.constant 44 : index
    %268 = memref.load %arg3[%c44] : memref<252xf32, #tpu.memory_space<smem>>
    %269 = vector.broadcast %268 : f32 to vector<2x16x16xf32>
    %270 = arith.mulf %267, %269 : vector<2x16x16xf32>
    %271 = arith.addf %261, %270 : vector<2x16x16xf32>
    %c45 = arith.constant 45 : index
    %272 = memref.load %arg3[%c45] : memref<252xf32, #tpu.memory_space<smem>>
    %273 = vector.broadcast %272 : f32 to vector<2x16x16xf32>
    %274 = arith.mulf %267, %273 : vector<2x16x16xf32>
    %275 = arith.addf %265, %274 : vector<2x16x16xf32>
    %c2_131 = arith.constant 2 : index
    %c0_132 = arith.constant 0 : index
    %c0_133 = arith.constant 0 : index
    %c2_134 = arith.constant 2 : index
    %276 = vector.load %arg8[%c2_131, %c0_132, %c0_133, %c2_134] : memref<4x2x18x18xf32, #tpu.memory_space<vmem>>, vector<1x2x16x16xf32>
    %277 = vector.shape_cast %276 : vector<1x2x16x16xf32> to vector<2x16x16xf32>
    %c48 = arith.constant 48 : index
    %278 = memref.load %arg3[%c48] : memref<252xf32, #tpu.memory_space<smem>>
    %279 = vector.broadcast %278 : f32 to vector<2x16x16xf32>
    %280 = arith.mulf %277, %279 : vector<2x16x16xf32>
    %281 = arith.addf %271, %280 : vector<2x16x16xf32>
    %c49 = arith.constant 49 : index
    %282 = memref.load %arg3[%c49] : memref<252xf32, #tpu.memory_space<smem>>
    %283 = vector.broadcast %282 : f32 to vector<2x16x16xf32>
    %284 = arith.mulf %277, %283 : vector<2x16x16xf32>
    %285 = arith.addf %275, %284 : vector<2x16x16xf32>
    %c2_135 = arith.constant 2 : index
    %c0_136 = arith.constant 0 : index
    %c1_137 = arith.constant 1 : index
    %c0_138 = arith.constant 0 : index
    %286 = vector.load %arg8[%c2_135, %c0_136, %c1_137, %c0_138] : memref<4x2x18x18xf32, #tpu.memory_space<vmem>>, vector<1x2x16x16xf32>
    %287 = vector.shape_cast %286 : vector<1x2x16x16xf32> to vector<2x16x16xf32>
    %c52 = arith.constant 52 : index
    %288 = memref.load %arg3[%c52] : memref<252xf32, #tpu.memory_space<smem>>
    %289 = vector.broadcast %288 : f32 to vector<2x16x16xf32>
    %290 = arith.mulf %287, %289 : vector<2x16x16xf32>
    %291 = arith.addf %281, %290 : vector<2x16x16xf32>
    %c53 = arith.constant 53 : index
    %292 = memref.load %arg3[%c53] : memref<252xf32, #tpu.memory_space<smem>>
    %293 = vector.broadcast %292 : f32 to vector<2x16x16xf32>
    %294 = arith.mulf %287, %293 : vector<2x16x16xf32>
    %295 = arith.addf %285, %294 : vector<2x16x16xf32>
    %c2_139 = arith.constant 2 : index
    %c0_140 = arith.constant 0 : index
    %c1_141 = arith.constant 1 : index
    %c1_142 = arith.constant 1 : index
    %296 = vector.load %arg8[%c2_139, %c0_140, %c1_141, %c1_142] : memref<4x2x18x18xf32, #tpu.memory_space<vmem>>, vector<1x2x16x16xf32>
    %297 = vector.shape_cast %296 : vector<1x2x16x16xf32> to vector<2x16x16xf32>
    %c56 = arith.constant 56 : index
    %298 = memref.load %arg3[%c56] : memref<252xf32, #tpu.memory_space<smem>>
    %299 = vector.broadcast %298 : f32 to vector<2x16x16xf32>
    %300 = arith.mulf %297, %299 : vector<2x16x16xf32>
    %301 = arith.addf %291, %300 : vector<2x16x16xf32>
    %c57 = arith.constant 57 : index
    %302 = memref.load %arg3[%c57] : memref<252xf32, #tpu.memory_space<smem>>
    %303 = vector.broadcast %302 : f32 to vector<2x16x16xf32>
    %304 = arith.mulf %297, %303 : vector<2x16x16xf32>
    %305 = arith.addf %295, %304 : vector<2x16x16xf32>
    %c2_143 = arith.constant 2 : index
    %c0_144 = arith.constant 0 : index
    %c1_145 = arith.constant 1 : index
    %c2_146 = arith.constant 2 : index
    %306 = vector.load %arg8[%c2_143, %c0_144, %c1_145, %c2_146] : memref<4x2x18x18xf32, #tpu.memory_space<vmem>>, vector<1x2x16x16xf32>
    %307 = vector.shape_cast %306 : vector<1x2x16x16xf32> to vector<2x16x16xf32>
    %c60 = arith.constant 60 : index
    %308 = memref.load %arg3[%c60] : memref<252xf32, #tpu.memory_space<smem>>
    %309 = vector.broadcast %308 : f32 to vector<2x16x16xf32>
    %310 = arith.mulf %307, %309 : vector<2x16x16xf32>
    %311 = arith.addf %301, %310 : vector<2x16x16xf32>
    %c61 = arith.constant 61 : index
    %312 = memref.load %arg3[%c61] : memref<252xf32, #tpu.memory_space<smem>>
    %313 = vector.broadcast %312 : f32 to vector<2x16x16xf32>
    %314 = arith.mulf %307, %313 : vector<2x16x16xf32>
    %315 = arith.addf %305, %314 : vector<2x16x16xf32>
    %c2_147 = arith.constant 2 : index
    %c0_148 = arith.constant 0 : index
    %c2_149 = arith.constant 2 : index
    %c0_150 = arith.constant 0 : index
    %316 = vector.load %arg8[%c2_147, %c0_148, %c2_149, %c0_150] : memref<4x2x18x18xf32, #tpu.memory_space<vmem>>, vector<1x2x16x16xf32>
    %317 = vector.shape_cast %316 : vector<1x2x16x16xf32> to vector<2x16x16xf32>
    %c64 = arith.constant 64 : index
    %318 = memref.load %arg3[%c64] : memref<252xf32, #tpu.memory_space<smem>>
    %319 = vector.broadcast %318 : f32 to vector<2x16x16xf32>
    %320 = arith.mulf %317, %319 : vector<2x16x16xf32>
    %321 = arith.addf %311, %320 : vector<2x16x16xf32>
    %c65 = arith.constant 65 : index
    %322 = memref.load %arg3[%c65] : memref<252xf32, #tpu.memory_space<smem>>
    %323 = vector.broadcast %322 : f32 to vector<2x16x16xf32>
    %324 = arith.mulf %317, %323 : vector<2x16x16xf32>
    %325 = arith.addf %315, %324 : vector<2x16x16xf32>
    %c2_151 = arith.constant 2 : index
    %c0_152 = arith.constant 0 : index
    %c2_153 = arith.constant 2 : index
    %c1_154 = arith.constant 1 : index
    %326 = vector.load %arg8[%c2_151, %c0_152, %c2_153, %c1_154] : memref<4x2x18x18xf32, #tpu.memory_space<vmem>>, vector<1x2x16x16xf32>
    %327 = vector.shape_cast %326 : vector<1x2x16x16xf32> to vector<2x16x16xf32>
    %c68 = arith.constant 68 : index
    %328 = memref.load %arg3[%c68] : memref<252xf32, #tpu.memory_space<smem>>
    %329 = vector.broadcast %328 : f32 to vector<2x16x16xf32>
    %330 = arith.mulf %327, %329 : vector<2x16x16xf32>
    %331 = arith.addf %321, %330 : vector<2x16x16xf32>
    %c69 = arith.constant 69 : index
    %332 = memref.load %arg3[%c69] : memref<252xf32, #tpu.memory_space<smem>>
    %333 = vector.broadcast %332 : f32 to vector<2x16x16xf32>
    %334 = arith.mulf %327, %333 : vector<2x16x16xf32>
    %335 = arith.addf %325, %334 : vector<2x16x16xf32>
    %c2_155 = arith.constant 2 : index
    %c0_156 = arith.constant 0 : index
    %c2_157 = arith.constant 2 : index
    %c2_158 = arith.constant 2 : index
    %336 = vector.load %arg8[%c2_155, %c0_156, %c2_157, %c2_158] : memref<4x2x18x18xf32, #tpu.memory_space<vmem>>, vector<1x2x16x16xf32>
    %337 = vector.shape_cast %336 : vector<1x2x16x16xf32> to vector<2x16x16xf32>
    %c72 = arith.constant 72 : index
    %338 = memref.load %arg3[%c72] : memref<252xf32, #tpu.memory_space<smem>>
    %339 = vector.broadcast %338 : f32 to vector<2x16x16xf32>
    %340 = arith.mulf %337, %339 : vector<2x16x16xf32>
    %341 = arith.addf %331, %340 : vector<2x16x16xf32>
    %c73 = arith.constant 73 : index
    %342 = memref.load %arg3[%c73] : memref<252xf32, #tpu.memory_space<smem>>
    %343 = vector.broadcast %342 : f32 to vector<2x16x16xf32>
    %344 = arith.mulf %337, %343 : vector<2x16x16xf32>
    %345 = arith.addf %335, %344 : vector<2x16x16xf32>
    %c3_159 = arith.constant 3 : index
    %c0_160 = arith.constant 0 : index
    %c0_161 = arith.constant 0 : index
    %c0_162 = arith.constant 0 : index
    %346 = vector.load %arg8[%c3_159, %c0_160, %c0_161, %c0_162] : memref<4x2x18x18xf32, #tpu.memory_space<vmem>>, vector<1x2x16x16xf32>
    %347 = vector.shape_cast %346 : vector<1x2x16x16xf32> to vector<2x16x16xf32>
    %c42 = arith.constant 42 : index
    %348 = memref.load %arg3[%c42] : memref<252xf32, #tpu.memory_space<smem>>
    %349 = vector.broadcast %348 : f32 to vector<2x16x16xf32>
    %350 = arith.mulf %347, %349 : vector<2x16x16xf32>
    %351 = arith.addf %341, %350 : vector<2x16x16xf32>
    %c43 = arith.constant 43 : index
    %352 = memref.load %arg3[%c43] : memref<252xf32, #tpu.memory_space<smem>>
    %353 = vector.broadcast %352 : f32 to vector<2x16x16xf32>
    %354 = arith.mulf %347, %353 : vector<2x16x16xf32>
    %355 = arith.addf %345, %354 : vector<2x16x16xf32>
    %c3_163 = arith.constant 3 : index
    %c0_164 = arith.constant 0 : index
    %c0_165 = arith.constant 0 : index
    %c1_166 = arith.constant 1 : index
    %356 = vector.load %arg8[%c3_163, %c0_164, %c0_165, %c1_166] : memref<4x2x18x18xf32, #tpu.memory_space<vmem>>, vector<1x2x16x16xf32>
    %357 = vector.shape_cast %356 : vector<1x2x16x16xf32> to vector<2x16x16xf32>
    %c46 = arith.constant 46 : index
    %358 = memref.load %arg3[%c46] : memref<252xf32, #tpu.memory_space<smem>>
    %359 = vector.broadcast %358 : f32 to vector<2x16x16xf32>
    %360 = arith.mulf %357, %359 : vector<2x16x16xf32>
    %361 = arith.addf %351, %360 : vector<2x16x16xf32>
    %c47 = arith.constant 47 : index
    %362 = memref.load %arg3[%c47] : memref<252xf32, #tpu.memory_space<smem>>
    %363 = vector.broadcast %362 : f32 to vector<2x16x16xf32>
    %364 = arith.mulf %357, %363 : vector<2x16x16xf32>
    %365 = arith.addf %355, %364 : vector<2x16x16xf32>
    %c3_167 = arith.constant 3 : index
    %c0_168 = arith.constant 0 : index
    %c0_169 = arith.constant 0 : index
    %c2_170 = arith.constant 2 : index
    %366 = vector.load %arg8[%c3_167, %c0_168, %c0_169, %c2_170] : memref<4x2x18x18xf32, #tpu.memory_space<vmem>>, vector<1x2x16x16xf32>
    %367 = vector.shape_cast %366 : vector<1x2x16x16xf32> to vector<2x16x16xf32>
    %c50 = arith.constant 50 : index
    %368 = memref.load %arg3[%c50] : memref<252xf32, #tpu.memory_space<smem>>
    %369 = vector.broadcast %368 : f32 to vector<2x16x16xf32>
    %370 = arith.mulf %367, %369 : vector<2x16x16xf32>
    %371 = arith.addf %361, %370 : vector<2x16x16xf32>
    %c51 = arith.constant 51 : index
    %372 = memref.load %arg3[%c51] : memref<252xf32, #tpu.memory_space<smem>>
    %373 = vector.broadcast %372 : f32 to vector<2x16x16xf32>
    %374 = arith.mulf %367, %373 : vector<2x16x16xf32>
    %375 = arith.addf %365, %374 : vector<2x16x16xf32>
    %c3_171 = arith.constant 3 : index
    %c0_172 = arith.constant 0 : index
    %c1_173 = arith.constant 1 : index
    %c0_174 = arith.constant 0 : index
    %376 = vector.load %arg8[%c3_171, %c0_172, %c1_173, %c0_174] : memref<4x2x18x18xf32, #tpu.memory_space<vmem>>, vector<1x2x16x16xf32>
    %377 = vector.shape_cast %376 : vector<1x2x16x16xf32> to vector<2x16x16xf32>
    %c54 = arith.constant 54 : index
    %378 = memref.load %arg3[%c54] : memref<252xf32, #tpu.memory_space<smem>>
    %379 = vector.broadcast %378 : f32 to vector<2x16x16xf32>
    %380 = arith.mulf %377, %379 : vector<2x16x16xf32>
    %381 = arith.addf %371, %380 : vector<2x16x16xf32>
    %c55 = arith.constant 55 : index
    %382 = memref.load %arg3[%c55] : memref<252xf32, #tpu.memory_space<smem>>
    %383 = vector.broadcast %382 : f32 to vector<2x16x16xf32>
    %384 = arith.mulf %377, %383 : vector<2x16x16xf32>
    %385 = arith.addf %375, %384 : vector<2x16x16xf32>
    %c3_175 = arith.constant 3 : index
    %c0_176 = arith.constant 0 : index
    %c1_177 = arith.constant 1 : index
    %c1_178 = arith.constant 1 : index
    %386 = vector.load %arg8[%c3_175, %c0_176, %c1_177, %c1_178] : memref<4x2x18x18xf32, #tpu.memory_space<vmem>>, vector<1x2x16x16xf32>
    %387 = vector.shape_cast %386 : vector<1x2x16x16xf32> to vector<2x16x16xf32>
    %c58 = arith.constant 58 : index
    %388 = memref.load %arg3[%c58] : memref<252xf32, #tpu.memory_space<smem>>
    %389 = vector.broadcast %388 : f32 to vector<2x16x16xf32>
    %390 = arith.mulf %387, %389 : vector<2x16x16xf32>
    %391 = arith.addf %381, %390 : vector<2x16x16xf32>
    %c59 = arith.constant 59 : index
    %392 = memref.load %arg3[%c59] : memref<252xf32, #tpu.memory_space<smem>>
    %393 = vector.broadcast %392 : f32 to vector<2x16x16xf32>
    %394 = arith.mulf %387, %393 : vector<2x16x16xf32>
    %395 = arith.addf %385, %394 : vector<2x16x16xf32>
    %c3_179 = arith.constant 3 : index
    %c0_180 = arith.constant 0 : index
    %c1_181 = arith.constant 1 : index
    %c2_182 = arith.constant 2 : index
    %396 = vector.load %arg8[%c3_179, %c0_180, %c1_181, %c2_182] : memref<4x2x18x18xf32, #tpu.memory_space<vmem>>, vector<1x2x16x16xf32>
    %397 = vector.shape_cast %396 : vector<1x2x16x16xf32> to vector<2x16x16xf32>
    %c62 = arith.constant 62 : index
    %398 = memref.load %arg3[%c62] : memref<252xf32, #tpu.memory_space<smem>>
    %399 = vector.broadcast %398 : f32 to vector<2x16x16xf32>
    %400 = arith.mulf %397, %399 : vector<2x16x16xf32>
    %401 = arith.addf %391, %400 : vector<2x16x16xf32>
    %c63 = arith.constant 63 : index
    %402 = memref.load %arg3[%c63] : memref<252xf32, #tpu.memory_space<smem>>
    %403 = vector.broadcast %402 : f32 to vector<2x16x16xf32>
    %404 = arith.mulf %397, %403 : vector<2x16x16xf32>
    %405 = arith.addf %395, %404 : vector<2x16x16xf32>
    %c3_183 = arith.constant 3 : index
    %c0_184 = arith.constant 0 : index
    %c2_185 = arith.constant 2 : index
    %c0_186 = arith.constant 0 : index
    %406 = vector.load %arg8[%c3_183, %c0_184, %c2_185, %c0_186] : memref<4x2x18x18xf32, #tpu.memory_space<vmem>>, vector<1x2x16x16xf32>
    %407 = vector.shape_cast %406 : vector<1x2x16x16xf32> to vector<2x16x16xf32>
    %c66 = arith.constant 66 : index
    %408 = memref.load %arg3[%c66] : memref<252xf32, #tpu.memory_space<smem>>
    %409 = vector.broadcast %408 : f32 to vector<2x16x16xf32>
    %410 = arith.mulf %407, %409 : vector<2x16x16xf32>
    %411 = arith.addf %401, %410 : vector<2x16x16xf32>
    %c67 = arith.constant 67 : index
    %412 = memref.load %arg3[%c67] : memref<252xf32, #tpu.memory_space<smem>>
    %413 = vector.broadcast %412 : f32 to vector<2x16x16xf32>
    %414 = arith.mulf %407, %413 : vector<2x16x16xf32>
    %415 = arith.addf %405, %414 : vector<2x16x16xf32>
    %c3_187 = arith.constant 3 : index
    %c0_188 = arith.constant 0 : index
    %c2_189 = arith.constant 2 : index
    %c1_190 = arith.constant 1 : index
    %416 = vector.load %arg8[%c3_187, %c0_188, %c2_189, %c1_190] : memref<4x2x18x18xf32, #tpu.memory_space<vmem>>, vector<1x2x16x16xf32>
    %417 = vector.shape_cast %416 : vector<1x2x16x16xf32> to vector<2x16x16xf32>
    %c70 = arith.constant 70 : index
    %418 = memref.load %arg3[%c70] : memref<252xf32, #tpu.memory_space<smem>>
    %419 = vector.broadcast %418 : f32 to vector<2x16x16xf32>
    %420 = arith.mulf %417, %419 : vector<2x16x16xf32>
    %421 = arith.addf %411, %420 : vector<2x16x16xf32>
    %c71 = arith.constant 71 : index
    %422 = memref.load %arg3[%c71] : memref<252xf32, #tpu.memory_space<smem>>
    %423 = vector.broadcast %422 : f32 to vector<2x16x16xf32>
    %424 = arith.mulf %417, %423 : vector<2x16x16xf32>
    %425 = arith.addf %415, %424 : vector<2x16x16xf32>
    %c3_191 = arith.constant 3 : index
    %c0_192 = arith.constant 0 : index
    %c2_193 = arith.constant 2 : index
    %c2_194 = arith.constant 2 : index
    %426 = vector.load %arg8[%c3_191, %c0_192, %c2_193, %c2_194] : memref<4x2x18x18xf32, #tpu.memory_space<vmem>>, vector<1x2x16x16xf32>
    %427 = vector.shape_cast %426 : vector<1x2x16x16xf32> to vector<2x16x16xf32>
    %c74 = arith.constant 74 : index
    %428 = memref.load %arg3[%c74] : memref<252xf32, #tpu.memory_space<smem>>
    %429 = vector.broadcast %428 : f32 to vector<2x16x16xf32>
    %430 = arith.mulf %427, %429 : vector<2x16x16xf32>
    %431 = arith.addf %421, %430 : vector<2x16x16xf32>
    %c75 = arith.constant 75 : index
    %432 = memref.load %arg3[%c75] : memref<252xf32, #tpu.memory_space<smem>>
    %433 = vector.broadcast %432 : f32 to vector<2x16x16xf32>
    %434 = arith.mulf %427, %433 : vector<2x16x16xf32>
    %435 = arith.addf %425, %434 : vector<2x16x16xf32>
    %cst_195 = arith.constant 0.000000e+00 : f32
    %436 = vector.broadcast %cst_195 : f32 to vector<2x16x16xf32>
    %c82 = arith.constant 82 : index
    %437 = memref.load %arg3[%c82] : memref<252xf32, #tpu.memory_space<smem>>
    %438 = vector.broadcast %437 : f32 to vector<2x16x16xf32>
    %439 = arith.addf %436, %438 : vector<2x16x16xf32>
    %c78 = arith.constant 78 : index
    %440 = memref.load %arg3[%c78] : memref<252xf32, #tpu.memory_space<smem>>
    %441 = vector.broadcast %440 : f32 to vector<2x16x16xf32>
    %442 = arith.mulf %7, %441 : vector<2x16x16xf32>
    %443 = arith.addf %439, %442 : vector<2x16x16xf32>
    %c80 = arith.constant 80 : index
    %444 = memref.load %arg3[%c80] : memref<252xf32, #tpu.memory_space<smem>>
    %445 = vector.broadcast %444 : f32 to vector<2x16x16xf32>
    %446 = arith.mulf %9, %445 : vector<2x16x16xf32>
    %447 = arith.addf %443, %446 : vector<2x16x16xf32>
    %cst_196 = arith.constant 0.000000e+00 : f32
    %448 = vector.broadcast %cst_196 : f32 to vector<2x16x16xf32>
    %449 = arith.cmpf ogt, %431, %448 : vector<2x16x16xf32>
    %cst_197 = arith.constant 1.000000e-01 : f32
    %450 = vector.broadcast %cst_197 : f32 to vector<2x16x16xf32>
    %451 = arith.mulf %450, %431 : vector<2x16x16xf32>
    %452 = arith.select %449, %431, %451 : vector<2x16x16xi1>, vector<2x16x16xf32>
    %453 = arith.addf %452, %447 : vector<2x16x16xf32>
    %cst_198 = arith.constant 0.000000e+00 : f32
    %454 = vector.broadcast %cst_198 : f32 to vector<2x16x16xf32>
    %c83 = arith.constant 83 : index
    %455 = memref.load %arg3[%c83] : memref<252xf32, #tpu.memory_space<smem>>
    %456 = vector.broadcast %455 : f32 to vector<2x16x16xf32>
    %457 = arith.addf %454, %456 : vector<2x16x16xf32>
    %c79 = arith.constant 79 : index
    %458 = memref.load %arg3[%c79] : memref<252xf32, #tpu.memory_space<smem>>
    %459 = vector.broadcast %458 : f32 to vector<2x16x16xf32>
    %460 = arith.mulf %7, %459 : vector<2x16x16xf32>
    %461 = arith.addf %457, %460 : vector<2x16x16xf32>
    %c81 = arith.constant 81 : index
    %462 = memref.load %arg3[%c81] : memref<252xf32, #tpu.memory_space<smem>>
    %463 = vector.broadcast %462 : f32 to vector<2x16x16xf32>
    %464 = arith.mulf %9, %463 : vector<2x16x16xf32>
    %465 = arith.addf %461, %464 : vector<2x16x16xf32>
    %cst_199 = arith.constant 0.000000e+00 : f32
    %466 = vector.broadcast %cst_199 : f32 to vector<2x16x16xf32>
    %467 = arith.cmpf ogt, %435, %466 : vector<2x16x16xf32>
    %cst_200 = arith.constant 1.000000e-01 : f32
    %468 = vector.broadcast %cst_200 : f32 to vector<2x16x16xf32>
    %469 = arith.mulf %468, %435 : vector<2x16x16xf32>
    %470 = arith.select %467, %435, %469 : vector<2x16x16xi1>, vector<2x16x16xf32>
    %471 = arith.addf %470, %465 : vector<2x16x16xf32>
    %472 = arith.addf %3, %453 : vector<2x16x16xf32>
    %473 = arith.addf %5, %471 : vector<2x16x16xf32>
    %c0_201 = arith.constant 0 : index
    %c0_202 = arith.constant 0 : index
    %c1_203 = arith.constant 1 : index
    %c1_204 = arith.constant 1 : index
    %474 = vector.load %arg8[%c0_201, %c0_202, %c1_203, %c1_204] : memref<4x2x18x18xf32, #tpu.memory_space<vmem>>, vector<1x2x16x16xf32>
    %475 = vector.shape_cast %474 : vector<1x2x16x16xf32> to vector<2x16x16xf32>
    %476 = vector.shape_cast %472 : vector<2x16x16xf32> to vector<1x2x16x16xf32>
    tpu.vector_store %arg8[%c0_201, %c0_202, %c1_203, %c1_204], %476 {strides = array<i32>} : memref<4x2x18x18xf32, #tpu.memory_space<vmem>>, vector<1x2x16x16xf32>,
    %c1_205 = arith.constant 1 : index
    %c0_206 = arith.constant 0 : index
    %c1_207 = arith.constant 1 : index
    %c1_208 = arith.constant 1 : index
    %477 = vector.load %arg8[%c1_205, %c0_206, %c1_207, %c1_208] : memref<4x2x18x18xf32, #tpu.memory_space<vmem>>, vector<1x2x16x16xf32>
    %478 = vector.shape_cast %477 : vector<1x2x16x16xf32> to vector<2x16x16xf32>
    %479 = vector.shape_cast %473 : vector<2x16x16xf32> to vector<1x2x16x16xf32>
    tpu.vector_store %arg8[%c1_205, %c0_206, %c1_207, %c1_208], %479 {strides = array<i32>} : memref<4x2x18x18xf32, #tpu.memory_space<vmem>>, vector<1x2x16x16xf32>,
    %cst_209 = arith.constant 0.000000e+00 : f32
    %480 = vector.broadcast %cst_209 : f32 to vector<2x16x16xf32>
    %c120 = arith.constant 120 : index
    %481 = memref.load %arg3[%c120] : memref<252xf32, #tpu.memory_space<smem>>
    %482 = vector.broadcast %481 : f32 to vector<2x16x16xf32>
    %483 = arith.addf %480, %482 : vector<2x16x16xf32>
    %cst_210 = arith.constant 0.000000e+00 : f32
    %484 = vector.broadcast %cst_210 : f32 to vector<2x16x16xf32>
    %c121 = arith.constant 121 : index
    %485 = memref.load %arg3[%c121] : memref<252xf32, #tpu.memory_space<smem>>
    %486 = vector.broadcast %485 : f32 to vector<2x16x16xf32>
    %487 = arith.addf %484, %486 : vector<2x16x16xf32>
    %c0_211 = arith.constant 0 : index
    %c0_212 = arith.constant 0 : index
    %c0_213 = arith.constant 0 : index
    %c0_214 = arith.constant 0 : index
    %488 = vector.load %arg8[%c0_211, %c0_212, %c0_213, %c0_214] : memref<4x2x18x18xf32, #tpu.memory_space<vmem>>, vector<1x2x16x16xf32>
    %489 = vector.shape_cast %488 : vector<1x2x16x16xf32> to vector<2x16x16xf32>
    %c84 = arith.constant 84 : index
    %490 = memref.load %arg3[%c84] : memref<252xf32, #tpu.memory_space<smem>>
    %491 = vector.broadcast %490 : f32 to vector<2x16x16xf32>
    %492 = arith.mulf %489, %491 : vector<2x16x16xf32>
    %493 = arith.addf %483, %492 : vector<2x16x16xf32>
    %c85 = arith.constant 85 : index
    %494 = memref.load %arg3[%c85] : memref<252xf32, #tpu.memory_space<smem>>
    %495 = vector.broadcast %494 : f32 to vector<2x16x16xf32>
    %496 = arith.mulf %489, %495 : vector<2x16x16xf32>
    %497 = arith.addf %487, %496 : vector<2x16x16xf32>
    %c0_215 = arith.constant 0 : index
    %c0_216 = arith.constant 0 : index
    %c0_217 = arith.constant 0 : index
    %c1_218 = arith.constant 1 : index
    %498 = vector.load %arg8[%c0_215, %c0_216, %c0_217, %c1_218] : memref<4x2x18x18xf32, #tpu.memory_space<vmem>>, vector<1x2x16x16xf32>
    %499 = vector.shape_cast %498 : vector<1x2x16x16xf32> to vector<2x16x16xf32>
    %c88 = arith.constant 88 : index
    %500 = memref.load %arg3[%c88] : memref<252xf32, #tpu.memory_space<smem>>
    %501 = vector.broadcast %500 : f32 to vector<2x16x16xf32>
    %502 = arith.mulf %499, %501 : vector<2x16x16xf32>
    %503 = arith.addf %493, %502 : vector<2x16x16xf32>
    %c89 = arith.constant 89 : index
    %504 = memref.load %arg3[%c89] : memref<252xf32, #tpu.memory_space<smem>>
    %505 = vector.broadcast %504 : f32 to vector<2x16x16xf32>
    %506 = arith.mulf %499, %505 : vector<2x16x16xf32>
    %507 = arith.addf %497, %506 : vector<2x16x16xf32>
    %c0_219 = arith.constant 0 : index
    %c0_220 = arith.constant 0 : index
    %c0_221 = arith.constant 0 : index
    %c2_222 = arith.constant 2 : index
    %508 = vector.load %arg8[%c0_219, %c0_220, %c0_221, %c2_222] : memref<4x2x18x18xf32, #tpu.memory_space<vmem>>, vector<1x2x16x16xf32>
    %509 = vector.shape_cast %508 : vector<1x2x16x16xf32> to vector<2x16x16xf32>
    %c92 = arith.constant 92 : index
    %510 = memref.load %arg3[%c92] : memref<252xf32, #tpu.memory_space<smem>>
    %511 = vector.broadcast %510 : f32 to vector<2x16x16xf32>
    %512 = arith.mulf %509, %511 : vector<2x16x16xf32>
    %513 = arith.addf %503, %512 : vector<2x16x16xf32>
    %c93 = arith.constant 93 : index
    %514 = memref.load %arg3[%c93] : memref<252xf32, #tpu.memory_space<smem>>
    %515 = vector.broadcast %514 : f32 to vector<2x16x16xf32>
    %516 = arith.mulf %509, %515 : vector<2x16x16xf32>
    %517 = arith.addf %507, %516 : vector<2x16x16xf32>
    %c0_223 = arith.constant 0 : index
    %c0_224 = arith.constant 0 : index
    %c1_225 = arith.constant 1 : index
    %c0_226 = arith.constant 0 : index
    %518 = vector.load %arg8[%c0_223, %c0_224, %c1_225, %c0_226] : memref<4x2x18x18xf32, #tpu.memory_space<vmem>>, vector<1x2x16x16xf32>
    %519 = vector.shape_cast %518 : vector<1x2x16x16xf32> to vector<2x16x16xf32>
    %c96 = arith.constant 96 : index
    %520 = memref.load %arg3[%c96] : memref<252xf32, #tpu.memory_space<smem>>
    %521 = vector.broadcast %520 : f32 to vector<2x16x16xf32>
    %522 = arith.mulf %519, %521 : vector<2x16x16xf32>
    %523 = arith.addf %513, %522 : vector<2x16x16xf32>
    %c97 = arith.constant 97 : index
    %524 = memref.load %arg3[%c97] : memref<252xf32, #tpu.memory_space<smem>>
    %525 = vector.broadcast %524 : f32 to vector<2x16x16xf32>
    %526 = arith.mulf %519, %525 : vector<2x16x16xf32>
    %527 = arith.addf %517, %526 : vector<2x16x16xf32>
    %c0_227 = arith.constant 0 : index
    %c0_228 = arith.constant 0 : index
    %c1_229 = arith.constant 1 : index
    %c1_230 = arith.constant 1 : index
    %528 = vector.load %arg8[%c0_227, %c0_228, %c1_229, %c1_230] : memref<4x2x18x18xf32, #tpu.memory_space<vmem>>, vector<1x2x16x16xf32>
    %529 = vector.shape_cast %528 : vector<1x2x16x16xf32> to vector<2x16x16xf32>
    %c100 = arith.constant 100 : index
    %530 = memref.load %arg3[%c100] : memref<252xf32, #tpu.memory_space<smem>>
    %531 = vector.broadcast %530 : f32 to vector<2x16x16xf32>
    %532 = arith.mulf %529, %531 : vector<2x16x16xf32>
    %533 = arith.addf %523, %532 : vector<2x16x16xf32>
    %c101 = arith.constant 101 : index
    %534 = memref.load %arg3[%c101] : memref<252xf32, #tpu.memory_space<smem>>
    %535 = vector.broadcast %534 : f32 to vector<2x16x16xf32>
    %536 = arith.mulf %529, %535 : vector<2x16x16xf32>
    %537 = arith.addf %527, %536 : vector<2x16x16xf32>
    %c0_231 = arith.constant 0 : index
    %c0_232 = arith.constant 0 : index
    %c1_233 = arith.constant 1 : index
    %c2_234 = arith.constant 2 : index
    %538 = vector.load %arg8[%c0_231, %c0_232, %c1_233, %c2_234] : memref<4x2x18x18xf32, #tpu.memory_space<vmem>>, vector<1x2x16x16xf32>
    %539 = vector.shape_cast %538 : vector<1x2x16x16xf32> to vector<2x16x16xf32>
    %c104 = arith.constant 104 : index
    %540 = memref.load %arg3[%c104] : memref<252xf32, #tpu.memory_space<smem>>
    %541 = vector.broadcast %540 : f32 to vector<2x16x16xf32>
    %542 = arith.mulf %539, %541 : vector<2x16x16xf32>
    %543 = arith.addf %533, %542 : vector<2x16x16xf32>
    %c105 = arith.constant 105 : index
    %544 = memref.load %arg3[%c105] : memref<252xf32, #tpu.memory_space<smem>>
    %545 = vector.broadcast %544 : f32 to vector<2x16x16xf32>
    %546 = arith.mulf %539, %545 : vector<2x16x16xf32>
    %547 = arith.addf %537, %546 : vector<2x16x16xf32>
    %c0_235 = arith.constant 0 : index
    %c0_236 = arith.constant 0 : index
    %c2_237 = arith.constant 2 : index
    %c0_238 = arith.constant 0 : index
    %548 = vector.load %arg8[%c0_235, %c0_236, %c2_237, %c0_238] : memref<4x2x18x18xf32, #tpu.memory_space<vmem>>, vector<1x2x16x16xf32>
    %549 = vector.shape_cast %548 : vector<1x2x16x16xf32> to vector<2x16x16xf32>
    %c108 = arith.constant 108 : index
    %550 = memref.load %arg3[%c108] : memref<252xf32, #tpu.memory_space<smem>>
    %551 = vector.broadcast %550 : f32 to vector<2x16x16xf32>
    %552 = arith.mulf %549, %551 : vector<2x16x16xf32>
    %553 = arith.addf %543, %552 : vector<2x16x16xf32>
    %c109 = arith.constant 109 : index
    %554 = memref.load %arg3[%c109] : memref<252xf32, #tpu.memory_space<smem>>
    %555 = vector.broadcast %554 : f32 to vector<2x16x16xf32>
    %556 = arith.mulf %549, %555 : vector<2x16x16xf32>
    %557 = arith.addf %547, %556 : vector<2x16x16xf32>
    %c0_239 = arith.constant 0 : index
    %c0_240 = arith.constant 0 : index
    %c2_241 = arith.constant 2 : index
    %c1_242 = arith.constant 1 : index
    %558 = vector.load %arg8[%c0_239, %c0_240, %c2_241, %c1_242] : memref<4x2x18x18xf32, #tpu.memory_space<vmem>>, vector<1x2x16x16xf32>
    %559 = vector.shape_cast %558 : vector<1x2x16x16xf32> to vector<2x16x16xf32>
    %c112 = arith.constant 112 : index
    %560 = memref.load %arg3[%c112] : memref<252xf32, #tpu.memory_space<smem>>
    %561 = vector.broadcast %560 : f32 to vector<2x16x16xf32>
    %562 = arith.mulf %559, %561 : vector<2x16x16xf32>
    %563 = arith.addf %553, %562 : vector<2x16x16xf32>
    %c113 = arith.constant 113 : index
    %564 = memref.load %arg3[%c113] : memref<252xf32, #tpu.memory_space<smem>>
    %565 = vector.broadcast %564 : f32 to vector<2x16x16xf32>
    %566 = arith.mulf %559, %565 : vector<2x16x16xf32>
    %567 = arith.addf %557, %566 : vector<2x16x16xf32>
    %c0_243 = arith.constant 0 : index
    %c0_244 = arith.constant 0 : index
    %c2_245 = arith.constant 2 : index
    %c2_246 = arith.constant 2 : index
    %568 = vector.load %arg8[%c0_243, %c0_244, %c2_245, %c2_246] : memref<4x2x18x18xf32, #tpu.memory_space<vmem>>, vector<1x2x16x16xf32>
    %569 = vector.shape_cast %568 : vector<1x2x16x16xf32> to vector<2x16x16xf32>
    %c116 = arith.constant 116 : index
    %570 = memref.load %arg3[%c116] : memref<252xf32, #tpu.memory_space<smem>>
    %571 = vector.broadcast %570 : f32 to vector<2x16x16xf32>
    %572 = arith.mulf %569, %571 : vector<2x16x16xf32>
    %573 = arith.addf %563, %572 : vector<2x16x16xf32>
    %c117 = arith.constant 117 : index
    %574 = memref.load %arg3[%c117] : memref<252xf32, #tpu.memory_space<smem>>
    %575 = vector.broadcast %574 : f32 to vector<2x16x16xf32>
    %576 = arith.mulf %569, %575 : vector<2x16x16xf32>
    %577 = arith.addf %567, %576 : vector<2x16x16xf32>
    %c1_247 = arith.constant 1 : index
    %c0_248 = arith.constant 0 : index
    %c0_249 = arith.constant 0 : index
    %c0_250 = arith.constant 0 : index
    %578 = vector.load %arg8[%c1_247, %c0_248, %c0_249, %c0_250] : memref<4x2x18x18xf32, #tpu.memory_space<vmem>>, vector<1x2x16x16xf32>
    %579 = vector.shape_cast %578 : vector<1x2x16x16xf32> to vector<2x16x16xf32>
    %c86 = arith.constant 86 : index
    %580 = memref.load %arg3[%c86] : memref<252xf32, #tpu.memory_space<smem>>
    %581 = vector.broadcast %580 : f32 to vector<2x16x16xf32>
    %582 = arith.mulf %579, %581 : vector<2x16x16xf32>
    %583 = arith.addf %573, %582 : vector<2x16x16xf32>
    %c87 = arith.constant 87 : index
    %584 = memref.load %arg3[%c87] : memref<252xf32, #tpu.memory_space<smem>>
    %585 = vector.broadcast %584 : f32 to vector<2x16x16xf32>
    %586 = arith.mulf %579, %585 : vector<2x16x16xf32>
    %587 = arith.addf %577, %586 : vector<2x16x16xf32>
    %c1_251 = arith.constant 1 : index
    %c0_252 = arith.constant 0 : index
    %c0_253 = arith.constant 0 : index
    %c1_254 = arith.constant 1 : index
    %588 = vector.load %arg8[%c1_251, %c0_252, %c0_253, %c1_254] : memref<4x2x18x18xf32, #tpu.memory_space<vmem>>, vector<1x2x16x16xf32>
    %589 = vector.shape_cast %588 : vector<1x2x16x16xf32> to vector<2x16x16xf32>
    %c90 = arith.constant 90 : index
    %590 = memref.load %arg3[%c90] : memref<252xf32, #tpu.memory_space<smem>>
    %591 = vector.broadcast %590 : f32 to vector<2x16x16xf32>
    %592 = arith.mulf %589, %591 : vector<2x16x16xf32>
    %593 = arith.addf %583, %592 : vector<2x16x16xf32>
    %c91 = arith.constant 91 : index
    %594 = memref.load %arg3[%c91] : memref<252xf32, #tpu.memory_space<smem>>
    %595 = vector.broadcast %594 : f32 to vector<2x16x16xf32>
    %596 = arith.mulf %589, %595 : vector<2x16x16xf32>
    %597 = arith.addf %587, %596 : vector<2x16x16xf32>
    %c1_255 = arith.constant 1 : index
    %c0_256 = arith.constant 0 : index
    %c0_257 = arith.constant 0 : index
    %c2_258 = arith.constant 2 : index
    %598 = vector.load %arg8[%c1_255, %c0_256, %c0_257, %c2_258] : memref<4x2x18x18xf32, #tpu.memory_space<vmem>>, vector<1x2x16x16xf32>
    %599 = vector.shape_cast %598 : vector<1x2x16x16xf32> to vector<2x16x16xf32>
    %c94 = arith.constant 94 : index
    %600 = memref.load %arg3[%c94] : memref<252xf32, #tpu.memory_space<smem>>
    %601 = vector.broadcast %600 : f32 to vector<2x16x16xf32>
    %602 = arith.mulf %599, %601 : vector<2x16x16xf32>
    %603 = arith.addf %593, %602 : vector<2x16x16xf32>
    %c95 = arith.constant 95 : index
    %604 = memref.load %arg3[%c95] : memref<252xf32, #tpu.memory_space<smem>>
    %605 = vector.broadcast %604 : f32 to vector<2x16x16xf32>
    %606 = arith.mulf %599, %605 : vector<2x16x16xf32>
    %607 = arith.addf %597, %606 : vector<2x16x16xf32>
    %c1_259 = arith.constant 1 : index
    %c0_260 = arith.constant 0 : index
    %c1_261 = arith.constant 1 : index
    %c0_262 = arith.constant 0 : index
    %608 = vector.load %arg8[%c1_259, %c0_260, %c1_261, %c0_262] : memref<4x2x18x18xf32, #tpu.memory_space<vmem>>, vector<1x2x16x16xf32>
    %609 = vector.shape_cast %608 : vector<1x2x16x16xf32> to vector<2x16x16xf32>
    %c98 = arith.constant 98 : index
    %610 = memref.load %arg3[%c98] : memref<252xf32, #tpu.memory_space<smem>>
    %611 = vector.broadcast %610 : f32 to vector<2x16x16xf32>
    %612 = arith.mulf %609, %611 : vector<2x16x16xf32>
    %613 = arith.addf %603, %612 : vector<2x16x16xf32>
    %c99 = arith.constant 99 : index
    %614 = memref.load %arg3[%c99] : memref<252xf32, #tpu.memory_space<smem>>
    %615 = vector.broadcast %614 : f32 to vector<2x16x16xf32>
    %616 = arith.mulf %609, %615 : vector<2x16x16xf32>
    %617 = arith.addf %607, %616 : vector<2x16x16xf32>
    %c1_263 = arith.constant 1 : index
    %c0_264 = arith.constant 0 : index
    %c1_265 = arith.constant 1 : index
    %c1_266 = arith.constant 1 : index
    %618 = vector.load %arg8[%c1_263, %c0_264, %c1_265, %c1_266] : memref<4x2x18x18xf32, #tpu.memory_space<vmem>>, vector<1x2x16x16xf32>
    %619 = vector.shape_cast %618 : vector<1x2x16x16xf32> to vector<2x16x16xf32>
    %c102 = arith.constant 102 : index
    %620 = memref.load %arg3[%c102] : memref<252xf32, #tpu.memory_space<smem>>
    %621 = vector.broadcast %620 : f32 to vector<2x16x16xf32>
    %622 = arith.mulf %619, %621 : vector<2x16x16xf32>
    %623 = arith.addf %613, %622 : vector<2x16x16xf32>
    %c103 = arith.constant 103 : index
    %624 = memref.load %arg3[%c103] : memref<252xf32, #tpu.memory_space<smem>>
    %625 = vector.broadcast %624 : f32 to vector<2x16x16xf32>
    %626 = arith.mulf %619, %625 : vector<2x16x16xf32>
    %627 = arith.addf %617, %626 : vector<2x16x16xf32>
    %c1_267 = arith.constant 1 : index
    %c0_268 = arith.constant 0 : index
    %c1_269 = arith.constant 1 : index
    %c2_270 = arith.constant 2 : index
    %628 = vector.load %arg8[%c1_267, %c0_268, %c1_269, %c2_270] : memref<4x2x18x18xf32, #tpu.memory_space<vmem>>, vector<1x2x16x16xf32>
    %629 = vector.shape_cast %628 : vector<1x2x16x16xf32> to vector<2x16x16xf32>
    %c106 = arith.constant 106 : index
    %630 = memref.load %arg3[%c106] : memref<252xf32, #tpu.memory_space<smem>>
    %631 = vector.broadcast %630 : f32 to vector<2x16x16xf32>
    %632 = arith.mulf %629, %631 : vector<2x16x16xf32>
    %633 = arith.addf %623, %632 : vector<2x16x16xf32>
    %c107 = arith.constant 107 : index
    %634 = memref.load %arg3[%c107] : memref<252xf32, #tpu.memory_space<smem>>
    %635 = vector.broadcast %634 : f32 to vector<2x16x16xf32>
    %636 = arith.mulf %629, %635 : vector<2x16x16xf32>
    %637 = arith.addf %627, %636 : vector<2x16x16xf32>
    %c1_271 = arith.constant 1 : index
    %c0_272 = arith.constant 0 : index
    %c2_273 = arith.constant 2 : index
    %c0_274 = arith.constant 0 : index
    %638 = vector.load %arg8[%c1_271, %c0_272, %c2_273, %c0_274] : memref<4x2x18x18xf32, #tpu.memory_space<vmem>>, vector<1x2x16x16xf32>
    %639 = vector.shape_cast %638 : vector<1x2x16x16xf32> to vector<2x16x16xf32>
    %c110 = arith.constant 110 : index
    %640 = memref.load %arg3[%c110] : memref<252xf32, #tpu.memory_space<smem>>
    %641 = vector.broadcast %640 : f32 to vector<2x16x16xf32>
    %642 = arith.mulf %639, %641 : vector<2x16x16xf32>
    %643 = arith.addf %633, %642 : vector<2x16x16xf32>
    %c111 = arith.constant 111 : index
    %644 = memref.load %arg3[%c111] : memref<252xf32, #tpu.memory_space<smem>>
    %645 = vector.broadcast %644 : f32 to vector<2x16x16xf32>
    %646 = arith.mulf %639, %645 : vector<2x16x16xf32>
    %647 = arith.addf %637, %646 : vector<2x16x16xf32>
    %c1_275 = arith.constant 1 : index
    %c0_276 = arith.constant 0 : index
    %c2_277 = arith.constant 2 : index
    %c1_278 = arith.constant 1 : index
    %648 = vector.load %arg8[%c1_275, %c0_276, %c2_277, %c1_278] : memref<4x2x18x18xf32, #tpu.memory_space<vmem>>, vector<1x2x16x16xf32>
    %649 = vector.shape_cast %648 : vector<1x2x16x16xf32> to vector<2x16x16xf32>
    %c114 = arith.constant 114 : index
    %650 = memref.load %arg3[%c114] : memref<252xf32, #tpu.memory_space<smem>>
    %651 = vector.broadcast %650 : f32 to vector<2x16x16xf32>
    %652 = arith.mulf %649, %651 : vector<2x16x16xf32>
    %653 = arith.addf %643, %652 : vector<2x16x16xf32>
    %c115 = arith.constant 115 : index
    %654 = memref.load %arg3[%c115] : memref<252xf32, #tpu.memory_space<smem>>
    %655 = vector.broadcast %654 : f32 to vector<2x16x16xf32>
    %656 = arith.mulf %649, %655 : vector<2x16x16xf32>
    %657 = arith.addf %647, %656 : vector<2x16x16xf32>
    %c1_279 = arith.constant 1 : index
    %c0_280 = arith.constant 0 : index
    %c2_281 = arith.constant 2 : index
    %c2_282 = arith.constant 2 : index
    %658 = vector.load %arg8[%c1_279, %c0_280, %c2_281, %c2_282] : memref<4x2x18x18xf32, #tpu.memory_space<vmem>>, vector<1x2x16x16xf32>
    %659 = vector.shape_cast %658 : vector<1x2x16x16xf32> to vector<2x16x16xf32>
    %c118 = arith.constant 118 : index
    %660 = memref.load %arg3[%c118] : memref<252xf32, #tpu.memory_space<smem>>
    %661 = vector.broadcast %660 : f32 to vector<2x16x16xf32>
    %662 = arith.mulf %659, %661 : vector<2x16x16xf32>
    %663 = arith.addf %653, %662 : vector<2x16x16xf32>
    %c119 = arith.constant 119 : index
    %664 = memref.load %arg3[%c119] : memref<252xf32, #tpu.memory_space<smem>>
    %665 = vector.broadcast %664 : f32 to vector<2x16x16xf32>
    %666 = arith.mulf %659, %665 : vector<2x16x16xf32>
    %667 = arith.addf %657, %666 : vector<2x16x16xf32>
    %cst_283 = arith.constant dense<0.000000e+00> : vector<2x16xf32>
    %668 = vector.multi_reduction <add>, %663, %cst_283 [2] : vector<2x16x16xf32> to vector<2x16xf32>
    %669 = vector.shape_cast %668 : vector<2x16xf32> to vector<2x16x1xf32>
    %cst_284 = arith.constant dense<0.000000e+00> : vector<2x1xf32>
    %670 = vector.multi_reduction <add>, %669, %cst_284 [1] : vector<2x16x1xf32> to vector<2x1xf32>
    %671 = vector.shape_cast %670 : vector<2x1xf32> to vector<2x1x1xf32>
    %cst_285 = arith.constant 3.906250e-03 : f32
    %672 = vector.broadcast %cst_285 : f32 to vector<2x1x1xf32>
    %673 = arith.mulf %671, %672 : vector<2x1x1xf32>
    %674 = arith.mulf %663, %663 : vector<2x16x16xf32>
    %cst_286 = arith.constant dense<0.000000e+00> : vector<2x16xf32>
    %675 = vector.multi_reduction <add>, %674, %cst_286 [2] : vector<2x16x16xf32> to vector<2x16xf32>
    %676 = vector.shape_cast %675 : vector<2x16xf32> to vector<2x16x1xf32>
    %cst_287 = arith.constant dense<0.000000e+00> : vector<2x1xf32>
    %677 = vector.multi_reduction <add>, %676, %cst_287 [1] : vector<2x16x1xf32> to vector<2x1xf32>
    %678 = vector.shape_cast %677 : vector<2x1xf32> to vector<2x1x1xf32>
    %cst_288 = arith.constant 3.906250e-03 : f32
    %679 = vector.broadcast %cst_288 : f32 to vector<2x1x1xf32>
    %680 = arith.mulf %678, %679 : vector<2x1x1xf32>
    %681 = arith.mulf %673, %673 : vector<2x1x1xf32>
    %682 = arith.subf %680, %681 : vector<2x1x1xf32>
    %683 = vector.broadcast %673 : vector<2x1x1xf32> to vector<2x16x16xf32>
    %684 = arith.subf %663, %683 : vector<2x16x16xf32>
    %cst_289 = arith.constant 9.99999974E-6 : f32
    %685 = vector.broadcast %cst_289 : f32 to vector<2x1x1xf32>
    %686 = arith.addf %682, %685 : vector<2x1x1xf32>
    %687 = math.rsqrt %686 : vector<2x1x1xf32>
    %688 = vector.broadcast %687 : vector<2x1x1xf32> to vector<2x16x16xf32>
    %689 = arith.mulf %684, %688 : vector<2x16x16xf32>
    %c122 = arith.constant 122 : index
    %690 = memref.load %arg3[%c122] : memref<252xf32, #tpu.memory_space<smem>>
    %691 = vector.broadcast %690 : f32 to vector<2x16x16xf32>
    %692 = arith.mulf %689, %691 : vector<2x16x16xf32>
    %c123 = arith.constant 123 : index
    %693 = memref.load %arg3[%c123] : memref<252xf32, #tpu.memory_space<smem>>
    %694 = vector.broadcast %693 : f32 to vector<2x16x16xf32>
    %695 = arith.addf %692, %694 : vector<2x16x16xf32>
    %cst_290 = arith.constant 0.000000e+00 : f32
    %696 = vector.broadcast %cst_290 : f32 to vector<2x16x16xf32>
    %697 = arith.cmpf ogt, %695, %696 : vector<2x16x16xf32>
    %cst_291 = arith.constant 1.000000e-01 : f32
    %698 = vector.broadcast %cst_291 : f32 to vector<2x16x16xf32>
    %699 = arith.mulf %698, %695 : vector<2x16x16xf32>
    %700 = arith.select %697, %695, %699 : vector<2x16x16xi1>, vector<2x16x16xf32>
    %cst_292 = arith.constant 0.000000e+00 : f32
    %701 = vector.broadcast %cst_292 : f32 to vector<2x16x16xf32>
    %702 = arith.cmpf ogt, %667, %701 : vector<2x16x16xf32>
    %cst_293 = arith.constant 1.000000e-01 : f32
    %703 = vector.broadcast %cst_293 : f32 to vector<2x16x16xf32>
    %704 = arith.mulf %703, %667 : vector<2x16x16xf32>
    %705 = arith.select %702, %667, %704 : vector<2x16x16xi1>, vector<2x16x16xf32>
    %c2_294 = arith.constant 2 : index
    %c0_295 = arith.constant 0 : index
    %c1_296 = arith.constant 1 : index
    %c1_297 = arith.constant 1 : index
    %706 = vector.load %arg8[%c2_294, %c0_295, %c1_296, %c1_297] : memref<4x2x18x18xf32, #tpu.memory_space<vmem>>, vector<1x2x16x16xf32>
    %707 = vector.shape_cast %706 : vector<1x2x16x16xf32> to vector<2x16x16xf32>
    %708 = vector.shape_cast %700 : vector<2x16x16xf32> to vector<1x2x16x16xf32>
    tpu.vector_store %arg8[%c2_294, %c0_295, %c1_296, %c1_297], %708 {strides = array<i32>} : memref<4x2x18x18xf32, #tpu.memory_space<vmem>>, vector<1x2x16x16xf32>,
    %c3_298 = arith.constant 3 : index
    %c0_299 = arith.constant 0 : index
    %c1_300 = arith.constant 1 : index
    %c1_301 = arith.constant 1 : index
    %709 = vector.load %arg8[%c3_298, %c0_299, %c1_300, %c1_301] : memref<4x2x18x18xf32, #tpu.memory_space<vmem>>, vector<1x2x16x16xf32>
    %710 = vector.shape_cast %709 : vector<1x2x16x16xf32> to vector<2x16x16xf32>
    %711 = vector.shape_cast %705 : vector<2x16x16xf32> to vector<1x2x16x16xf32>
    tpu.vector_store %arg8[%c3_298, %c0_299, %c1_300, %c1_301], %711 {strides = array<i32>} : memref<4x2x18x18xf32, #tpu.memory_space<vmem>>, vector<1x2x16x16xf32>,
    %cst_302 = arith.constant 0.000000e+00 : f32
    %712 = vector.broadcast %cst_302 : f32 to vector<2x16x16xf32>
    %c160 = arith.constant 160 : index
    %713 = memref.load %arg3[%c160] : memref<252xf32, #tpu.memory_space<smem>>
    %714 = vector.broadcast %713 : f32 to vector<2x16x16xf32>
    %715 = arith.addf %712, %714 : vector<2x16x16xf32>
    %cst_303 = arith.constant 0.000000e+00 : f32
    %716 = vector.broadcast %cst_303 : f32 to vector<2x16x16xf32>
    %c161 = arith.constant 161 : index
    %717 = memref.load %arg3[%c161] : memref<252xf32, #tpu.memory_space<smem>>
    %718 = vector.broadcast %717 : f32 to vector<2x16x16xf32>
    %719 = arith.addf %716, %718 : vector<2x16x16xf32>
    %c2_304 = arith.constant 2 : index
    %c0_305 = arith.constant 0 : index
    %c0_306 = arith.constant 0 : index
    %c0_307 = arith.constant 0 : index
    %720 = vector.load %arg8[%c2_304, %c0_305, %c0_306, %c0_307] : memref<4x2x18x18xf32, #tpu.memory_space<vmem>>, vector<1x2x16x16xf32>
    %721 = vector.shape_cast %720 : vector<1x2x16x16xf32> to vector<2x16x16xf32>
    %c124 = arith.constant 124 : index
    %722 = memref.load %arg3[%c124] : memref<252xf32, #tpu.memory_space<smem>>
    %723 = vector.broadcast %722 : f32 to vector<2x16x16xf32>
    %724 = arith.mulf %721, %723 : vector<2x16x16xf32>
    %725 = arith.addf %715, %724 : vector<2x16x16xf32>
    %c125 = arith.constant 125 : index
    %726 = memref.load %arg3[%c125] : memref<252xf32, #tpu.memory_space<smem>>
    %727 = vector.broadcast %726 : f32 to vector<2x16x16xf32>
    %728 = arith.mulf %721, %727 : vector<2x16x16xf32>
    %729 = arith.addf %719, %728 : vector<2x16x16xf32>
    %c2_308 = arith.constant 2 : index
    %c0_309 = arith.constant 0 : index
    %c0_310 = arith.constant 0 : index
    %c1_311 = arith.constant 1 : index
    %730 = vector.load %arg8[%c2_308, %c0_309, %c0_310, %c1_311] : memref<4x2x18x18xf32, #tpu.memory_space<vmem>>, vector<1x2x16x16xf32>
    %731 = vector.shape_cast %730 : vector<1x2x16x16xf32> to vector<2x16x16xf32>
    %c128 = arith.constant 128 : index
    %732 = memref.load %arg3[%c128] : memref<252xf32, #tpu.memory_space<smem>>
    %733 = vector.broadcast %732 : f32 to vector<2x16x16xf32>
    %734 = arith.mulf %731, %733 : vector<2x16x16xf32>
    %735 = arith.addf %725, %734 : vector<2x16x16xf32>
    %c129 = arith.constant 129 : index
    %736 = memref.load %arg3[%c129] : memref<252xf32, #tpu.memory_space<smem>>
    %737 = vector.broadcast %736 : f32 to vector<2x16x16xf32>
    %738 = arith.mulf %731, %737 : vector<2x16x16xf32>
    %739 = arith.addf %729, %738 : vector<2x16x16xf32>
    %c2_312 = arith.constant 2 : index
    %c0_313 = arith.constant 0 : index
    %c0_314 = arith.constant 0 : index
    %c2_315 = arith.constant 2 : index
    %740 = vector.load %arg8[%c2_312, %c0_313, %c0_314, %c2_315] : memref<4x2x18x18xf32, #tpu.memory_space<vmem>>, vector<1x2x16x16xf32>
    %741 = vector.shape_cast %740 : vector<1x2x16x16xf32> to vector<2x16x16xf32>
    %c132 = arith.constant 132 : index
    %742 = memref.load %arg3[%c132] : memref<252xf32, #tpu.memory_space<smem>>
    %743 = vector.broadcast %742 : f32 to vector<2x16x16xf32>
    %744 = arith.mulf %741, %743 : vector<2x16x16xf32>
    %745 = arith.addf %735, %744 : vector<2x16x16xf32>
    %c133 = arith.constant 133 : index
    %746 = memref.load %arg3[%c133] : memref<252xf32, #tpu.memory_space<smem>>
    %747 = vector.broadcast %746 : f32 to vector<2x16x16xf32>
    %748 = arith.mulf %741, %747 : vector<2x16x16xf32>
    %749 = arith.addf %739, %748 : vector<2x16x16xf32>
    %c2_316 = arith.constant 2 : index
    %c0_317 = arith.constant 0 : index
    %c1_318 = arith.constant 1 : index
    %c0_319 = arith.constant 0 : index
    %750 = vector.load %arg8[%c2_316, %c0_317, %c1_318, %c0_319] : memref<4x2x18x18xf32, #tpu.memory_space<vmem>>, vector<1x2x16x16xf32>
    %751 = vector.shape_cast %750 : vector<1x2x16x16xf32> to vector<2x16x16xf32>
    %c136 = arith.constant 136 : index
    %752 = memref.load %arg3[%c136] : memref<252xf32, #tpu.memory_space<smem>>
    %753 = vector.broadcast %752 : f32 to vector<2x16x16xf32>
    %754 = arith.mulf %751, %753 : vector<2x16x16xf32>
    %755 = arith.addf %745, %754 : vector<2x16x16xf32>
    %c137 = arith.constant 137 : index
    %756 = memref.load %arg3[%c137] : memref<252xf32, #tpu.memory_space<smem>>
    %757 = vector.broadcast %756 : f32 to vector<2x16x16xf32>
    %758 = arith.mulf %751, %757 : vector<2x16x16xf32>
    %759 = arith.addf %749, %758 : vector<2x16x16xf32>
    %c2_320 = arith.constant 2 : index
    %c0_321 = arith.constant 0 : index
    %c1_322 = arith.constant 1 : index
    %c1_323 = arith.constant 1 : index
    %760 = vector.load %arg8[%c2_320, %c0_321, %c1_322, %c1_323] : memref<4x2x18x18xf32, #tpu.memory_space<vmem>>, vector<1x2x16x16xf32>
    %761 = vector.shape_cast %760 : vector<1x2x16x16xf32> to vector<2x16x16xf32>
    %c140 = arith.constant 140 : index
    %762 = memref.load %arg3[%c140] : memref<252xf32, #tpu.memory_space<smem>>
    %763 = vector.broadcast %762 : f32 to vector<2x16x16xf32>
    %764 = arith.mulf %761, %763 : vector<2x16x16xf32>
    %765 = arith.addf %755, %764 : vector<2x16x16xf32>
    %c141 = arith.constant 141 : index
    %766 = memref.load %arg3[%c141] : memref<252xf32, #tpu.memory_space<smem>>
    %767 = vector.broadcast %766 : f32 to vector<2x16x16xf32>
    %768 = arith.mulf %761, %767 : vector<2x16x16xf32>
    %769 = arith.addf %759, %768 : vector<2x16x16xf32>
    %c2_324 = arith.constant 2 : index
    %c0_325 = arith.constant 0 : index
    %c1_326 = arith.constant 1 : index
    %c2_327 = arith.constant 2 : index
    %770 = vector.load %arg8[%c2_324, %c0_325, %c1_326, %c2_327] : memref<4x2x18x18xf32, #tpu.memory_space<vmem>>, vector<1x2x16x16xf32>
    %771 = vector.shape_cast %770 : vector<1x2x16x16xf32> to vector<2x16x16xf32>
    %c144 = arith.constant 144 : index
    %772 = memref.load %arg3[%c144] : memref<252xf32, #tpu.memory_space<smem>>
    %773 = vector.broadcast %772 : f32 to vector<2x16x16xf32>
    %774 = arith.mulf %771, %773 : vector<2x16x16xf32>
    %775 = arith.addf %765, %774 : vector<2x16x16xf32>
    %c145 = arith.constant 145 : index
    %776 = memref.load %arg3[%c145] : memref<252xf32, #tpu.memory_space<smem>>
    %777 = vector.broadcast %776 : f32 to vector<2x16x16xf32>
    %778 = arith.mulf %771, %777 : vector<2x16x16xf32>
    %779 = arith.addf %769, %778 : vector<2x16x16xf32>
    %c2_328 = arith.constant 2 : index
    %c0_329 = arith.constant 0 : index
    %c2_330 = arith.constant 2 : index
    %c0_331 = arith.constant 0 : index
    %780 = vector.load %arg8[%c2_328, %c0_329, %c2_330, %c0_331] : memref<4x2x18x18xf32, #tpu.memory_space<vmem>>, vector<1x2x16x16xf32>
    %781 = vector.shape_cast %780 : vector<1x2x16x16xf32> to vector<2x16x16xf32>
    %c148 = arith.constant 148 : index
    %782 = memref.load %arg3[%c148] : memref<252xf32, #tpu.memory_space<smem>>
    %783 = vector.broadcast %782 : f32 to vector<2x16x16xf32>
    %784 = arith.mulf %781, %783 : vector<2x16x16xf32>
    %785 = arith.addf %775, %784 : vector<2x16x16xf32>
    %c149 = arith.constant 149 : index
    %786 = memref.load %arg3[%c149] : memref<252xf32, #tpu.memory_space<smem>>
    %787 = vector.broadcast %786 : f32 to vector<2x16x16xf32>
    %788 = arith.mulf %781, %787 : vector<2x16x16xf32>
    %789 = arith.addf %779, %788 : vector<2x16x16xf32>
    %c2_332 = arith.constant 2 : index
    %c0_333 = arith.constant 0 : index
    %c2_334 = arith.constant 2 : index
    %c1_335 = arith.constant 1 : index
    %790 = vector.load %arg8[%c2_332, %c0_333, %c2_334, %c1_335] : memref<4x2x18x18xf32, #tpu.memory_space<vmem>>, vector<1x2x16x16xf32>
    %791 = vector.shape_cast %790 : vector<1x2x16x16xf32> to vector<2x16x16xf32>
    %c152 = arith.constant 152 : index
    %792 = memref.load %arg3[%c152] : memref<252xf32, #tpu.memory_space<smem>>
    %793 = vector.broadcast %792 : f32 to vector<2x16x16xf32>
    %794 = arith.mulf %791, %793 : vector<2x16x16xf32>
    %795 = arith.addf %785, %794 : vector<2x16x16xf32>
    %c153 = arith.constant 153 : index
    %796 = memref.load %arg3[%c153] : memref<252xf32, #tpu.memory_space<smem>>
    %797 = vector.broadcast %796 : f32 to vector<2x16x16xf32>
    %798 = arith.mulf %791, %797 : vector<2x16x16xf32>
    %799 = arith.addf %789, %798 : vector<2x16x16xf32>
    %c2_336 = arith.constant 2 : index
    %c0_337 = arith.constant 0 : index
    %c2_338 = arith.constant 2 : index
    %c2_339 = arith.constant 2 : index
    %800 = vector.load %arg8[%c2_336, %c0_337, %c2_338, %c2_339] : memref<4x2x18x18xf32, #tpu.memory_space<vmem>>, vector<1x2x16x16xf32>
    %801 = vector.shape_cast %800 : vector<1x2x16x16xf32> to vector<2x16x16xf32>
    %c156 = arith.constant 156 : index
    %802 = memref.load %arg3[%c156] : memref<252xf32, #tpu.memory_space<smem>>
    %803 = vector.broadcast %802 : f32 to vector<2x16x16xf32>
    %804 = arith.mulf %801, %803 : vector<2x16x16xf32>
    %805 = arith.addf %795, %804 : vector<2x16x16xf32>
    %c157 = arith.constant 157 : index
    %806 = memref.load %arg3[%c157] : memref<252xf32, #tpu.memory_space<smem>>
    %807 = vector.broadcast %806 : f32 to vector<2x16x16xf32>
    %808 = arith.mulf %801, %807 : vector<2x16x16xf32>
    %809 = arith.addf %799, %808 : vector<2x16x16xf32>
    %c3_340 = arith.constant 3 : index
    %c0_341 = arith.constant 0 : index
    %c0_342 = arith.constant 0 : index
    %c0_343 = arith.constant 0 : index
    %810 = vector.load %arg8[%c3_340, %c0_341, %c0_342, %c0_343] : memref<4x2x18x18xf32, #tpu.memory_space<vmem>>, vector<1x2x16x16xf32>
    %811 = vector.shape_cast %810 : vector<1x2x16x16xf32> to vector<2x16x16xf32>
    %c126 = arith.constant 126 : index
    %812 = memref.load %arg3[%c126] : memref<252xf32, #tpu.memory_space<smem>>
    %813 = vector.broadcast %812 : f32 to vector<2x16x16xf32>
    %814 = arith.mulf %811, %813 : vector<2x16x16xf32>
    %815 = arith.addf %805, %814 : vector<2x16x16xf32>
    %c127 = arith.constant 127 : index
    %816 = memref.load %arg3[%c127] : memref<252xf32, #tpu.memory_space<smem>>
    %817 = vector.broadcast %816 : f32 to vector<2x16x16xf32>
    %818 = arith.mulf %811, %817 : vector<2x16x16xf32>
    %819 = arith.addf %809, %818 : vector<2x16x16xf32>
    %c3_344 = arith.constant 3 : index
    %c0_345 = arith.constant 0 : index
    %c0_346 = arith.constant 0 : index
    %c1_347 = arith.constant 1 : index
    %820 = vector.load %arg8[%c3_344, %c0_345, %c0_346, %c1_347] : memref<4x2x18x18xf32, #tpu.memory_space<vmem>>, vector<1x2x16x16xf32>
    %821 = vector.shape_cast %820 : vector<1x2x16x16xf32> to vector<2x16x16xf32>
    %c130 = arith.constant 130 : index
    %822 = memref.load %arg3[%c130] : memref<252xf32, #tpu.memory_space<smem>>
    %823 = vector.broadcast %822 : f32 to vector<2x16x16xf32>
    %824 = arith.mulf %821, %823 : vector<2x16x16xf32>
    %825 = arith.addf %815, %824 : vector<2x16x16xf32>
    %c131 = arith.constant 131 : index
    %826 = memref.load %arg3[%c131] : memref<252xf32, #tpu.memory_space<smem>>
    %827 = vector.broadcast %826 : f32 to vector<2x16x16xf32>
    %828 = arith.mulf %821, %827 : vector<2x16x16xf32>
    %829 = arith.addf %819, %828 : vector<2x16x16xf32>
    %c3_348 = arith.constant 3 : index
    %c0_349 = arith.constant 0 : index
    %c0_350 = arith.constant 0 : index
    %c2_351 = arith.constant 2 : index
    %830 = vector.load %arg8[%c3_348, %c0_349, %c0_350, %c2_351] : memref<4x2x18x18xf32, #tpu.memory_space<vmem>>, vector<1x2x16x16xf32>
    %831 = vector.shape_cast %830 : vector<1x2x16x16xf32> to vector<2x16x16xf32>
    %c134 = arith.constant 134 : index
    %832 = memref.load %arg3[%c134] : memref<252xf32, #tpu.memory_space<smem>>
    %833 = vector.broadcast %832 : f32 to vector<2x16x16xf32>
    %834 = arith.mulf %831, %833 : vector<2x16x16xf32>
    %835 = arith.addf %825, %834 : vector<2x16x16xf32>
    %c135 = arith.constant 135 : index
    %836 = memref.load %arg3[%c135] : memref<252xf32, #tpu.memory_space<smem>>
    %837 = vector.broadcast %836 : f32 to vector<2x16x16xf32>
    %838 = arith.mulf %831, %837 : vector<2x16x16xf32>
    %839 = arith.addf %829, %838 : vector<2x16x16xf32>
    %c3_352 = arith.constant 3 : index
    %c0_353 = arith.constant 0 : index
    %c1_354 = arith.constant 1 : index
    %c0_355 = arith.constant 0 : index
    %840 = vector.load %arg8[%c3_352, %c0_353, %c1_354, %c0_355] : memref<4x2x18x18xf32, #tpu.memory_space<vmem>>, vector<1x2x16x16xf32>
    %841 = vector.shape_cast %840 : vector<1x2x16x16xf32> to vector<2x16x16xf32>
    %c138 = arith.constant 138 : index
    %842 = memref.load %arg3[%c138] : memref<252xf32, #tpu.memory_space<smem>>
    %843 = vector.broadcast %842 : f32 to vector<2x16x16xf32>
    %844 = arith.mulf %841, %843 : vector<2x16x16xf32>
    %845 = arith.addf %835, %844 : vector<2x16x16xf32>
    %c139 = arith.constant 139 : index
    %846 = memref.load %arg3[%c139] : memref<252xf32, #tpu.memory_space<smem>>
    %847 = vector.broadcast %846 : f32 to vector<2x16x16xf32>
    %848 = arith.mulf %841, %847 : vector<2x16x16xf32>
    %849 = arith.addf %839, %848 : vector<2x16x16xf32>
    %c3_356 = arith.constant 3 : index
    %c0_357 = arith.constant 0 : index
    %c1_358 = arith.constant 1 : index
    %c1_359 = arith.constant 1 : index
    %850 = vector.load %arg8[%c3_356, %c0_357, %c1_358, %c1_359] : memref<4x2x18x18xf32, #tpu.memory_space<vmem>>, vector<1x2x16x16xf32>
    %851 = vector.shape_cast %850 : vector<1x2x16x16xf32> to vector<2x16x16xf32>
    %c142 = arith.constant 142 : index
    %852 = memref.load %arg3[%c142] : memref<252xf32, #tpu.memory_space<smem>>
    %853 = vector.broadcast %852 : f32 to vector<2x16x16xf32>
    %854 = arith.mulf %851, %853 : vector<2x16x16xf32>
    %855 = arith.addf %845, %854 : vector<2x16x16xf32>
    %c143 = arith.constant 143 : index
    %856 = memref.load %arg3[%c143] : memref<252xf32, #tpu.memory_space<smem>>
    %857 = vector.broadcast %856 : f32 to vector<2x16x16xf32>
    %858 = arith.mulf %851, %857 : vector<2x16x16xf32>
    %859 = arith.addf %849, %858 : vector<2x16x16xf32>
    %c3_360 = arith.constant 3 : index
    %c0_361 = arith.constant 0 : index
    %c1_362 = arith.constant 1 : index
    %c2_363 = arith.constant 2 : index
    %860 = vector.load %arg8[%c3_360, %c0_361, %c1_362, %c2_363] : memref<4x2x18x18xf32, #tpu.memory_space<vmem>>, vector<1x2x16x16xf32>
    %861 = vector.shape_cast %860 : vector<1x2x16x16xf32> to vector<2x16x16xf32>
    %c146 = arith.constant 146 : index
    %862 = memref.load %arg3[%c146] : memref<252xf32, #tpu.memory_space<smem>>
    %863 = vector.broadcast %862 : f32 to vector<2x16x16xf32>
    %864 = arith.mulf %861, %863 : vector<2x16x16xf32>
    %865 = arith.addf %855, %864 : vector<2x16x16xf32>
    %c147 = arith.constant 147 : index
    %866 = memref.load %arg3[%c147] : memref<252xf32, #tpu.memory_space<smem>>
    %867 = vector.broadcast %866 : f32 to vector<2x16x16xf32>
    %868 = arith.mulf %861, %867 : vector<2x16x16xf32>
    %869 = arith.addf %859, %868 : vector<2x16x16xf32>
    %c3_364 = arith.constant 3 : index
    %c0_365 = arith.constant 0 : index
    %c2_366 = arith.constant 2 : index
    %c0_367 = arith.constant 0 : index
    %870 = vector.load %arg8[%c3_364, %c0_365, %c2_366, %c0_367] : memref<4x2x18x18xf32, #tpu.memory_space<vmem>>, vector<1x2x16x16xf32>
    %871 = vector.shape_cast %870 : vector<1x2x16x16xf32> to vector<2x16x16xf32>
    %c150 = arith.constant 150 : index
    %872 = memref.load %arg3[%c150] : memref<252xf32, #tpu.memory_space<smem>>
    %873 = vector.broadcast %872 : f32 to vector<2x16x16xf32>
    %874 = arith.mulf %871, %873 : vector<2x16x16xf32>
    %875 = arith.addf %865, %874 : vector<2x16x16xf32>
    %c151 = arith.constant 151 : index
    %876 = memref.load %arg3[%c151] : memref<252xf32, #tpu.memory_space<smem>>
    %877 = vector.broadcast %876 : f32 to vector<2x16x16xf32>
    %878 = arith.mulf %871, %877 : vector<2x16x16xf32>
    %879 = arith.addf %869, %878 : vector<2x16x16xf32>
    %c3_368 = arith.constant 3 : index
    %c0_369 = arith.constant 0 : index
    %c2_370 = arith.constant 2 : index
    %c1_371 = arith.constant 1 : index
    %880 = vector.load %arg8[%c3_368, %c0_369, %c2_370, %c1_371] : memref<4x2x18x18xf32, #tpu.memory_space<vmem>>, vector<1x2x16x16xf32>
    %881 = vector.shape_cast %880 : vector<1x2x16x16xf32> to vector<2x16x16xf32>
    %c154 = arith.constant 154 : index
    %882 = memref.load %arg3[%c154] : memref<252xf32, #tpu.memory_space<smem>>
    %883 = vector.broadcast %882 : f32 to vector<2x16x16xf32>
    %884 = arith.mulf %881, %883 : vector<2x16x16xf32>
    %885 = arith.addf %875, %884 : vector<2x16x16xf32>
    %c155 = arith.constant 155 : index
    %886 = memref.load %arg3[%c155] : memref<252xf32, #tpu.memory_space<smem>>
    %887 = vector.broadcast %886 : f32 to vector<2x16x16xf32>
    %888 = arith.mulf %881, %887 : vector<2x16x16xf32>
    %889 = arith.addf %879, %888 : vector<2x16x16xf32>
    %c3_372 = arith.constant 3 : index
    %c0_373 = arith.constant 0 : index
    %c2_374 = arith.constant 2 : index
    %c2_375 = arith.constant 2 : index
    %890 = vector.load %arg8[%c3_372, %c0_373, %c2_374, %c2_375] : memref<4x2x18x18xf32, #tpu.memory_space<vmem>>, vector<1x2x16x16xf32>
    %891 = vector.shape_cast %890 : vector<1x2x16x16xf32> to vector<2x16x16xf32>
    %c158 = arith.constant 158 : index
    %892 = memref.load %arg3[%c158] : memref<252xf32, #tpu.memory_space<smem>>
    %893 = vector.broadcast %892 : f32 to vector<2x16x16xf32>
    %894 = arith.mulf %891, %893 : vector<2x16x16xf32>
    %895 = arith.addf %885, %894 : vector<2x16x16xf32>
    %c159 = arith.constant 159 : index
    %896 = memref.load %arg3[%c159] : memref<252xf32, #tpu.memory_space<smem>>
    %897 = vector.broadcast %896 : f32 to vector<2x16x16xf32>
    %898 = arith.mulf %891, %897 : vector<2x16x16xf32>
    %899 = arith.addf %889, %898 : vector<2x16x16xf32>
    %cst_376 = arith.constant 0.000000e+00 : f32
    %900 = vector.broadcast %cst_376 : f32 to vector<2x16x16xf32>
    %c166 = arith.constant 166 : index
    %901 = memref.load %arg3[%c166] : memref<252xf32, #tpu.memory_space<smem>>
    %902 = vector.broadcast %901 : f32 to vector<2x16x16xf32>
    %903 = arith.addf %900, %902 : vector<2x16x16xf32>
    %c162 = arith.constant 162 : index
    %904 = memref.load %arg3[%c162] : memref<252xf32, #tpu.memory_space<smem>>
    %905 = vector.broadcast %904 : f32 to vector<2x16x16xf32>
    %906 = arith.mulf %472, %905 : vector<2x16x16xf32>
    %907 = arith.addf %903, %906 : vector<2x16x16xf32>
    %c164 = arith.constant 164 : index
    %908 = memref.load %arg3[%c164] : memref<252xf32, #tpu.memory_space<smem>>
    %909 = vector.broadcast %908 : f32 to vector<2x16x16xf32>
    %910 = arith.mulf %473, %909 : vector<2x16x16xf32>
    %911 = arith.addf %907, %910 : vector<2x16x16xf32>
    %cst_377 = arith.constant 0.000000e+00 : f32
    %912 = vector.broadcast %cst_377 : f32 to vector<2x16x16xf32>
    %913 = arith.cmpf ogt, %895, %912 : vector<2x16x16xf32>
    %cst_378 = arith.constant 1.000000e-01 : f32
    %914 = vector.broadcast %cst_378 : f32 to vector<2x16x16xf32>
    %915 = arith.mulf %914, %895 : vector<2x16x16xf32>
    %916 = arith.select %913, %895, %915 : vector<2x16x16xi1>, vector<2x16x16xf32>
    %917 = arith.addf %916, %911 : vector<2x16x16xf32>
    %cst_379 = arith.constant 0.000000e+00 : f32
    %918 = vector.broadcast %cst_379 : f32 to vector<2x16x16xf32>
    %c167 = arith.constant 167 : index
    %919 = memref.load %arg3[%c167] : memref<252xf32, #tpu.memory_space<smem>>
    %920 = vector.broadcast %919 : f32 to vector<2x16x16xf32>
    %921 = arith.addf %918, %920 : vector<2x16x16xf32>
    %c163 = arith.constant 163 : index
    %922 = memref.load %arg3[%c163] : memref<252xf32, #tpu.memory_space<smem>>
    %923 = vector.broadcast %922 : f32 to vector<2x16x16xf32>
    %924 = arith.mulf %472, %923 : vector<2x16x16xf32>
    %925 = arith.addf %921, %924 : vector<2x16x16xf32>
    %c165 = arith.constant 165 : index
    %926 = memref.load %arg3[%c165] : memref<252xf32, #tpu.memory_space<smem>>
    %927 = vector.broadcast %926 : f32 to vector<2x16x16xf32>
    %928 = arith.mulf %473, %927 : vector<2x16x16xf32>
    %929 = arith.addf %925, %928 : vector<2x16x16xf32>
    %cst_380 = arith.constant 0.000000e+00 : f32
    %930 = vector.broadcast %cst_380 : f32 to vector<2x16x16xf32>
    %931 = arith.cmpf ogt, %899, %930 : vector<2x16x16xf32>
    %cst_381 = arith.constant 1.000000e-01 : f32
    %932 = vector.broadcast %cst_381 : f32 to vector<2x16x16xf32>
    %933 = arith.mulf %932, %899 : vector<2x16x16xf32>
    %934 = arith.select %931, %899, %933 : vector<2x16x16xi1>, vector<2x16x16xf32>
    %935 = arith.addf %934, %929 : vector<2x16x16xf32>
    %c0_382 = arith.constant 0 : index
    %c0_383 = arith.constant 0 : index
    %c1_384 = arith.constant 1 : index
    %c1_385 = arith.constant 1 : index
    %936 = vector.load %arg8[%c0_382, %c0_383, %c1_384, %c1_385] : memref<4x2x18x18xf32, #tpu.memory_space<vmem>>, vector<1x2x16x16xf32>
    %937 = vector.shape_cast %936 : vector<1x2x16x16xf32> to vector<2x16x16xf32>
    %938 = vector.shape_cast %472 : vector<2x16x16xf32> to vector<1x2x16x16xf32>
    tpu.vector_store %arg8[%c0_382, %c0_383, %c1_384, %c1_385], %938 {strides = array<i32>} : memref<4x2x18x18xf32, #tpu.memory_space<vmem>>, vector<1x2x16x16xf32>,
    %c1_386 = arith.constant 1 : index
    %c0_387 = arith.constant 0 : index
    %c1_388 = arith.constant 1 : index
    %c1_389 = arith.constant 1 : index
    %939 = vector.load %arg8[%c1_386, %c0_387, %c1_388, %c1_389] : memref<4x2x18x18xf32, #tpu.memory_space<vmem>>, vector<1x2x16x16xf32>
    %940 = vector.shape_cast %939 : vector<1x2x16x16xf32> to vector<2x16x16xf32>
    %941 = vector.shape_cast %473 : vector<2x16x16xf32> to vector<1x2x16x16xf32>
    tpu.vector_store %arg8[%c1_386, %c0_387, %c1_388, %c1_389], %941 {strides = array<i32>} : memref<4x2x18x18xf32, #tpu.memory_space<vmem>>, vector<1x2x16x16xf32>,
    %cst_390 = arith.constant 0.000000e+00 : f32
    %942 = vector.broadcast %cst_390 : f32 to vector<2x16x16xf32>
    %c204 = arith.constant 204 : index
    %943 = memref.load %arg3[%c204] : memref<252xf32, #tpu.memory_space<smem>>
    %944 = vector.broadcast %943 : f32 to vector<2x16x16xf32>
    %945 = arith.addf %942, %944 : vector<2x16x16xf32>
    %cst_391 = arith.constant 0.000000e+00 : f32
    %946 = vector.broadcast %cst_391 : f32 to vector<2x16x16xf32>
    %c205 = arith.constant 205 : index
    %947 = memref.load %arg3[%c205] : memref<252xf32, #tpu.memory_space<smem>>
    %948 = vector.broadcast %947 : f32 to vector<2x16x16xf32>
    %949 = arith.addf %946, %948 : vector<2x16x16xf32>
    %c0_392 = arith.constant 0 : index
    %c0_393 = arith.constant 0 : index
    %c0_394 = arith.constant 0 : index
    %c0_395 = arith.constant 0 : index
    %950 = vector.load %arg8[%c0_392, %c0_393, %c0_394, %c0_395] : memref<4x2x18x18xf32, #tpu.memory_space<vmem>>, vector<1x2x16x16xf32>
    %951 = vector.shape_cast %950 : vector<1x2x16x16xf32> to vector<2x16x16xf32>
    %c168 = arith.constant 168 : index
    %952 = memref.load %arg3[%c168] : memref<252xf32, #tpu.memory_space<smem>>
    %953 = vector.broadcast %952 : f32 to vector<2x16x16xf32>
    %954 = arith.mulf %951, %953 : vector<2x16x16xf32>
    %955 = arith.addf %945, %954 : vector<2x16x16xf32>
    %c169 = arith.constant 169 : index
    %956 = memref.load %arg3[%c169] : memref<252xf32, #tpu.memory_space<smem>>
    %957 = vector.broadcast %956 : f32 to vector<2x16x16xf32>
    %958 = arith.mulf %951, %957 : vector<2x16x16xf32>
    %959 = arith.addf %949, %958 : vector<2x16x16xf32>
    %c0_396 = arith.constant 0 : index
    %c0_397 = arith.constant 0 : index
    %c0_398 = arith.constant 0 : index
    %c1_399 = arith.constant 1 : index
    %960 = vector.load %arg8[%c0_396, %c0_397, %c0_398, %c1_399] : memref<4x2x18x18xf32, #tpu.memory_space<vmem>>, vector<1x2x16x16xf32>
    %961 = vector.shape_cast %960 : vector<1x2x16x16xf32> to vector<2x16x16xf32>
    %c172 = arith.constant 172 : index
    %962 = memref.load %arg3[%c172] : memref<252xf32, #tpu.memory_space<smem>>
    %963 = vector.broadcast %962 : f32 to vector<2x16x16xf32>
    %964 = arith.mulf %961, %963 : vector<2x16x16xf32>
    %965 = arith.addf %955, %964 : vector<2x16x16xf32>
    %c173 = arith.constant 173 : index
    %966 = memref.load %arg3[%c173] : memref<252xf32, #tpu.memory_space<smem>>
    %967 = vector.broadcast %966 : f32 to vector<2x16x16xf32>
    %968 = arith.mulf %961, %967 : vector<2x16x16xf32>
    %969 = arith.addf %959, %968 : vector<2x16x16xf32>
    %c0_400 = arith.constant 0 : index
    %c0_401 = arith.constant 0 : index
    %c0_402 = arith.constant 0 : index
    %c2_403 = arith.constant 2 : index
    %970 = vector.load %arg8[%c0_400, %c0_401, %c0_402, %c2_403] : memref<4x2x18x18xf32, #tpu.memory_space<vmem>>, vector<1x2x16x16xf32>
    %971 = vector.shape_cast %970 : vector<1x2x16x16xf32> to vector<2x16x16xf32>
    %c176 = arith.constant 176 : index
    %972 = memref.load %arg3[%c176] : memref<252xf32, #tpu.memory_space<smem>>
    %973 = vector.broadcast %972 : f32 to vector<2x16x16xf32>
    %974 = arith.mulf %971, %973 : vector<2x16x16xf32>
    %975 = arith.addf %965, %974 : vector<2x16x16xf32>
    %c177 = arith.constant 177 : index
    %976 = memref.load %arg3[%c177] : memref<252xf32, #tpu.memory_space<smem>>
    %977 = vector.broadcast %976 : f32 to vector<2x16x16xf32>
    %978 = arith.mulf %971, %977 : vector<2x16x16xf32>
    %979 = arith.addf %969, %978 : vector<2x16x16xf32>
    %c0_404 = arith.constant 0 : index
    %c0_405 = arith.constant 0 : index
    %c1_406 = arith.constant 1 : index
    %c0_407 = arith.constant 0 : index
    %980 = vector.load %arg8[%c0_404, %c0_405, %c1_406, %c0_407] : memref<4x2x18x18xf32, #tpu.memory_space<vmem>>, vector<1x2x16x16xf32>
    %981 = vector.shape_cast %980 : vector<1x2x16x16xf32> to vector<2x16x16xf32>
    %c180 = arith.constant 180 : index
    %982 = memref.load %arg3[%c180] : memref<252xf32, #tpu.memory_space<smem>>
    %983 = vector.broadcast %982 : f32 to vector<2x16x16xf32>
    %984 = arith.mulf %981, %983 : vector<2x16x16xf32>
    %985 = arith.addf %975, %984 : vector<2x16x16xf32>
    %c181 = arith.constant 181 : index
    %986 = memref.load %arg3[%c181] : memref<252xf32, #tpu.memory_space<smem>>
    %987 = vector.broadcast %986 : f32 to vector<2x16x16xf32>
    %988 = arith.mulf %981, %987 : vector<2x16x16xf32>
    %989 = arith.addf %979, %988 : vector<2x16x16xf32>
    %c0_408 = arith.constant 0 : index
    %c0_409 = arith.constant 0 : index
    %c1_410 = arith.constant 1 : index
    %c1_411 = arith.constant 1 : index
    %990 = vector.load %arg8[%c0_408, %c0_409, %c1_410, %c1_411] : memref<4x2x18x18xf32, #tpu.memory_space<vmem>>, vector<1x2x16x16xf32>
    %991 = vector.shape_cast %990 : vector<1x2x16x16xf32> to vector<2x16x16xf32>
    %c184 = arith.constant 184 : index
    %992 = memref.load %arg3[%c184] : memref<252xf32, #tpu.memory_space<smem>>
    %993 = vector.broadcast %992 : f32 to vector<2x16x16xf32>
    %994 = arith.mulf %991, %993 : vector<2x16x16xf32>
    %995 = arith.addf %985, %994 : vector<2x16x16xf32>
    %c185 = arith.constant 185 : index
    %996 = memref.load %arg3[%c185] : memref<252xf32, #tpu.memory_space<smem>>
    %997 = vector.broadcast %996 : f32 to vector<2x16x16xf32>
    %998 = arith.mulf %991, %997 : vector<2x16x16xf32>
    %999 = arith.addf %989, %998 : vector<2x16x16xf32>
    %c0_412 = arith.constant 0 : index
    %c0_413 = arith.constant 0 : index
    %c1_414 = arith.constant 1 : index
    %c2_415 = arith.constant 2 : index
    %1000 = vector.load %arg8[%c0_412, %c0_413, %c1_414, %c2_415] : memref<4x2x18x18xf32, #tpu.memory_space<vmem>>, vector<1x2x16x16xf32>
    %1001 = vector.shape_cast %1000 : vector<1x2x16x16xf32> to vector<2x16x16xf32>
    %c188 = arith.constant 188 : index
    %1002 = memref.load %arg3[%c188] : memref<252xf32, #tpu.memory_space<smem>>
    %1003 = vector.broadcast %1002 : f32 to vector<2x16x16xf32>
    %1004 = arith.mulf %1001, %1003 : vector<2x16x16xf32>
    %1005 = arith.addf %995, %1004 : vector<2x16x16xf32>
    %c189 = arith.constant 189 : index
    %1006 = memref.load %arg3[%c189] : memref<252xf32, #tpu.memory_space<smem>>
    %1007 = vector.broadcast %1006 : f32 to vector<2x16x16xf32>
    %1008 = arith.mulf %1001, %1007 : vector<2x16x16xf32>
    %1009 = arith.addf %999, %1008 : vector<2x16x16xf32>
    %c0_416 = arith.constant 0 : index
    %c0_417 = arith.constant 0 : index
    %c2_418 = arith.constant 2 : index
    %c0_419 = arith.constant 0 : index
    %1010 = vector.load %arg8[%c0_416, %c0_417, %c2_418, %c0_419] : memref<4x2x18x18xf32, #tpu.memory_space<vmem>>, vector<1x2x16x16xf32>
    %1011 = vector.shape_cast %1010 : vector<1x2x16x16xf32> to vector<2x16x16xf32>
    %c192 = arith.constant 192 : index
    %1012 = memref.load %arg3[%c192] : memref<252xf32, #tpu.memory_space<smem>>
    %1013 = vector.broadcast %1012 : f32 to vector<2x16x16xf32>
    %1014 = arith.mulf %1011, %1013 : vector<2x16x16xf32>
    %1015 = arith.addf %1005, %1014 : vector<2x16x16xf32>
    %c193 = arith.constant 193 : index
    %1016 = memref.load %arg3[%c193] : memref<252xf32, #tpu.memory_space<smem>>
    %1017 = vector.broadcast %1016 : f32 to vector<2x16x16xf32>
    %1018 = arith.mulf %1011, %1017 : vector<2x16x16xf32>
    %1019 = arith.addf %1009, %1018 : vector<2x16x16xf32>
    %c0_420 = arith.constant 0 : index
    %c0_421 = arith.constant 0 : index
    %c2_422 = arith.constant 2 : index
    %c1_423 = arith.constant 1 : index
    %1020 = vector.load %arg8[%c0_420, %c0_421, %c2_422, %c1_423] : memref<4x2x18x18xf32, #tpu.memory_space<vmem>>, vector<1x2x16x16xf32>
    %1021 = vector.shape_cast %1020 : vector<1x2x16x16xf32> to vector<2x16x16xf32>
    %c196 = arith.constant 196 : index
    %1022 = memref.load %arg3[%c196] : memref<252xf32, #tpu.memory_space<smem>>
    %1023 = vector.broadcast %1022 : f32 to vector<2x16x16xf32>
    %1024 = arith.mulf %1021, %1023 : vector<2x16x16xf32>
    %1025 = arith.addf %1015, %1024 : vector<2x16x16xf32>
    %c197 = arith.constant 197 : index
    %1026 = memref.load %arg3[%c197] : memref<252xf32, #tpu.memory_space<smem>>
    %1027 = vector.broadcast %1026 : f32 to vector<2x16x16xf32>
    %1028 = arith.mulf %1021, %1027 : vector<2x16x16xf32>
    %1029 = arith.addf %1019, %1028 : vector<2x16x16xf32>
    %c0_424 = arith.constant 0 : index
    %c0_425 = arith.constant 0 : index
    %c2_426 = arith.constant 2 : index
    %c2_427 = arith.constant 2 : index
    %1030 = vector.load %arg8[%c0_424, %c0_425, %c2_426, %c2_427] : memref<4x2x18x18xf32, #tpu.memory_space<vmem>>, vector<1x2x16x16xf32>
    %1031 = vector.shape_cast %1030 : vector<1x2x16x16xf32> to vector<2x16x16xf32>
    %c200 = arith.constant 200 : index
    %1032 = memref.load %arg3[%c200] : memref<252xf32, #tpu.memory_space<smem>>
    %1033 = vector.broadcast %1032 : f32 to vector<2x16x16xf32>
    %1034 = arith.mulf %1031, %1033 : vector<2x16x16xf32>
    %1035 = arith.addf %1025, %1034 : vector<2x16x16xf32>
    %c201 = arith.constant 201 : index
    %1036 = memref.load %arg3[%c201] : memref<252xf32, #tpu.memory_space<smem>>
    %1037 = vector.broadcast %1036 : f32 to vector<2x16x16xf32>
    %1038 = arith.mulf %1031, %1037 : vector<2x16x16xf32>
    %1039 = arith.addf %1029, %1038 : vector<2x16x16xf32>
    %c1_428 = arith.constant 1 : index
    %c0_429 = arith.constant 0 : index
    %c0_430 = arith.constant 0 : index
    %c0_431 = arith.constant 0 : index
    %1040 = vector.load %arg8[%c1_428, %c0_429, %c0_430, %c0_431] : memref<4x2x18x18xf32, #tpu.memory_space<vmem>>, vector<1x2x16x16xf32>
    %1041 = vector.shape_cast %1040 : vector<1x2x16x16xf32> to vector<2x16x16xf32>
    %c170 = arith.constant 170 : index
    %1042 = memref.load %arg3[%c170] : memref<252xf32, #tpu.memory_space<smem>>
    %1043 = vector.broadcast %1042 : f32 to vector<2x16x16xf32>
    %1044 = arith.mulf %1041, %1043 : vector<2x16x16xf32>
    %1045 = arith.addf %1035, %1044 : vector<2x16x16xf32>
    %c171 = arith.constant 171 : index
    %1046 = memref.load %arg3[%c171] : memref<252xf32, #tpu.memory_space<smem>>
    %1047 = vector.broadcast %1046 : f32 to vector<2x16x16xf32>
    %1048 = arith.mulf %1041, %1047 : vector<2x16x16xf32>
    %1049 = arith.addf %1039, %1048 : vector<2x16x16xf32>
    %c1_432 = arith.constant 1 : index
    %c0_433 = arith.constant 0 : index
    %c0_434 = arith.constant 0 : index
    %c1_435 = arith.constant 1 : index
    %1050 = vector.load %arg8[%c1_432, %c0_433, %c0_434, %c1_435] : memref<4x2x18x18xf32, #tpu.memory_space<vmem>>, vector<1x2x16x16xf32>
    %1051 = vector.shape_cast %1050 : vector<1x2x16x16xf32> to vector<2x16x16xf32>
    %c174 = arith.constant 174 : index
    %1052 = memref.load %arg3[%c174] : memref<252xf32, #tpu.memory_space<smem>>
    %1053 = vector.broadcast %1052 : f32 to vector<2x16x16xf32>
    %1054 = arith.mulf %1051, %1053 : vector<2x16x16xf32>
    %1055 = arith.addf %1045, %1054 : vector<2x16x16xf32>
    %c175 = arith.constant 175 : index
    %1056 = memref.load %arg3[%c175] : memref<252xf32, #tpu.memory_space<smem>>
    %1057 = vector.broadcast %1056 : f32 to vector<2x16x16xf32>
    %1058 = arith.mulf %1051, %1057 : vector<2x16x16xf32>
    %1059 = arith.addf %1049, %1058 : vector<2x16x16xf32>
    %c1_436 = arith.constant 1 : index
    %c0_437 = arith.constant 0 : index
    %c0_438 = arith.constant 0 : index
    %c2_439 = arith.constant 2 : index
    %1060 = vector.load %arg8[%c1_436, %c0_437, %c0_438, %c2_439] : memref<4x2x18x18xf32, #tpu.memory_space<vmem>>, vector<1x2x16x16xf32>
    %1061 = vector.shape_cast %1060 : vector<1x2x16x16xf32> to vector<2x16x16xf32>
    %c178 = arith.constant 178 : index
    %1062 = memref.load %arg3[%c178] : memref<252xf32, #tpu.memory_space<smem>>
    %1063 = vector.broadcast %1062 : f32 to vector<2x16x16xf32>
    %1064 = arith.mulf %1061, %1063 : vector<2x16x16xf32>
    %1065 = arith.addf %1055, %1064 : vector<2x16x16xf32>
    %c179 = arith.constant 179 : index
    %1066 = memref.load %arg3[%c179] : memref<252xf32, #tpu.memory_space<smem>>
    %1067 = vector.broadcast %1066 : f32 to vector<2x16x16xf32>
    %1068 = arith.mulf %1061, %1067 : vector<2x16x16xf32>
    %1069 = arith.addf %1059, %1068 : vector<2x16x16xf32>
    %c1_440 = arith.constant 1 : index
    %c0_441 = arith.constant 0 : index
    %c1_442 = arith.constant 1 : index
    %c0_443 = arith.constant 0 : index
    %1070 = vector.load %arg8[%c1_440, %c0_441, %c1_442, %c0_443] : memref<4x2x18x18xf32, #tpu.memory_space<vmem>>, vector<1x2x16x16xf32>
    %1071 = vector.shape_cast %1070 : vector<1x2x16x16xf32> to vector<2x16x16xf32>
    %c182 = arith.constant 182 : index
    %1072 = memref.load %arg3[%c182] : memref<252xf32, #tpu.memory_space<smem>>
    %1073 = vector.broadcast %1072 : f32 to vector<2x16x16xf32>
    %1074 = arith.mulf %1071, %1073 : vector<2x16x16xf32>
    %1075 = arith.addf %1065, %1074 : vector<2x16x16xf32>
    %c183 = arith.constant 183 : index
    %1076 = memref.load %arg3[%c183] : memref<252xf32, #tpu.memory_space<smem>>
    %1077 = vector.broadcast %1076 : f32 to vector<2x16x16xf32>
    %1078 = arith.mulf %1071, %1077 : vector<2x16x16xf32>
    %1079 = arith.addf %1069, %1078 : vector<2x16x16xf32>
    %c1_444 = arith.constant 1 : index
    %c0_445 = arith.constant 0 : index
    %c1_446 = arith.constant 1 : index
    %c1_447 = arith.constant 1 : index
    %1080 = vector.load %arg8[%c1_444, %c0_445, %c1_446, %c1_447] : memref<4x2x18x18xf32, #tpu.memory_space<vmem>>, vector<1x2x16x16xf32>
    %1081 = vector.shape_cast %1080 : vector<1x2x16x16xf32> to vector<2x16x16xf32>
    %c186 = arith.constant 186 : index
    %1082 = memref.load %arg3[%c186] : memref<252xf32, #tpu.memory_space<smem>>
    %1083 = vector.broadcast %1082 : f32 to vector<2x16x16xf32>
    %1084 = arith.mulf %1081, %1083 : vector<2x16x16xf32>
    %1085 = arith.addf %1075, %1084 : vector<2x16x16xf32>
    %c187 = arith.constant 187 : index
    %1086 = memref.load %arg3[%c187] : memref<252xf32, #tpu.memory_space<smem>>
    %1087 = vector.broadcast %1086 : f32 to vector<2x16x16xf32>
    %1088 = arith.mulf %1081, %1087 : vector<2x16x16xf32>
    %1089 = arith.addf %1079, %1088 : vector<2x16x16xf32>
    %c1_448 = arith.constant 1 : index
    %c0_449 = arith.constant 0 : index
    %c1_450 = arith.constant 1 : index
    %c2_451 = arith.constant 2 : index
    %1090 = vector.load %arg8[%c1_448, %c0_449, %c1_450, %c2_451] : memref<4x2x18x18xf32, #tpu.memory_space<vmem>>, vector<1x2x16x16xf32>
    %1091 = vector.shape_cast %1090 : vector<1x2x16x16xf32> to vector<2x16x16xf32>
    %c190 = arith.constant 190 : index
    %1092 = memref.load %arg3[%c190] : memref<252xf32, #tpu.memory_space<smem>>
    %1093 = vector.broadcast %1092 : f32 to vector<2x16x16xf32>
    %1094 = arith.mulf %1091, %1093 : vector<2x16x16xf32>
    %1095 = arith.addf %1085, %1094 : vector<2x16x16xf32>
    %c191 = arith.constant 191 : index
    %1096 = memref.load %arg3[%c191] : memref<252xf32, #tpu.memory_space<smem>>
    %1097 = vector.broadcast %1096 : f32 to vector<2x16x16xf32>
    %1098 = arith.mulf %1091, %1097 : vector<2x16x16xf32>
    %1099 = arith.addf %1089, %1098 : vector<2x16x16xf32>
    %c1_452 = arith.constant 1 : index
    %c0_453 = arith.constant 0 : index
    %c2_454 = arith.constant 2 : index
    %c0_455 = arith.constant 0 : index
    %1100 = vector.load %arg8[%c1_452, %c0_453, %c2_454, %c0_455] : memref<4x2x18x18xf32, #tpu.memory_space<vmem>>, vector<1x2x16x16xf32>
    %1101 = vector.shape_cast %1100 : vector<1x2x16x16xf32> to vector<2x16x16xf32>
    %c194 = arith.constant 194 : index
    %1102 = memref.load %arg3[%c194] : memref<252xf32, #tpu.memory_space<smem>>
    %1103 = vector.broadcast %1102 : f32 to vector<2x16x16xf32>
    %1104 = arith.mulf %1101, %1103 : vector<2x16x16xf32>
    %1105 = arith.addf %1095, %1104 : vector<2x16x16xf32>
    %c195 = arith.constant 195 : index
    %1106 = memref.load %arg3[%c195] : memref<252xf32, #tpu.memory_space<smem>>
    %1107 = vector.broadcast %1106 : f32 to vector<2x16x16xf32>
    %1108 = arith.mulf %1101, %1107 : vector<2x16x16xf32>
    %1109 = arith.addf %1099, %1108 : vector<2x16x16xf32>
    %c1_456 = arith.constant 1 : index
    %c0_457 = arith.constant 0 : index
    %c2_458 = arith.constant 2 : index
    %c1_459 = arith.constant 1 : index
    %1110 = vector.load %arg8[%c1_456, %c0_457, %c2_458, %c1_459] : memref<4x2x18x18xf32, #tpu.memory_space<vmem>>, vector<1x2x16x16xf32>
    %1111 = vector.shape_cast %1110 : vector<1x2x16x16xf32> to vector<2x16x16xf32>
    %c198 = arith.constant 198 : index
    %1112 = memref.load %arg3[%c198] : memref<252xf32, #tpu.memory_space<smem>>
    %1113 = vector.broadcast %1112 : f32 to vector<2x16x16xf32>
    %1114 = arith.mulf %1111, %1113 : vector<2x16x16xf32>
    %1115 = arith.addf %1105, %1114 : vector<2x16x16xf32>
    %c199 = arith.constant 199 : index
    %1116 = memref.load %arg3[%c199] : memref<252xf32, #tpu.memory_space<smem>>
    %1117 = vector.broadcast %1116 : f32 to vector<2x16x16xf32>
    %1118 = arith.mulf %1111, %1117 : vector<2x16x16xf32>
    %1119 = arith.addf %1109, %1118 : vector<2x16x16xf32>
    %c1_460 = arith.constant 1 : index
    %c0_461 = arith.constant 0 : index
    %c2_462 = arith.constant 2 : index
    %c2_463 = arith.constant 2 : index
    %1120 = vector.load %arg8[%c1_460, %c0_461, %c2_462, %c2_463] : memref<4x2x18x18xf32, #tpu.memory_space<vmem>>, vector<1x2x16x16xf32>
    %1121 = vector.shape_cast %1120 : vector<1x2x16x16xf32> to vector<2x16x16xf32>
    %c202 = arith.constant 202 : index
    %1122 = memref.load %arg3[%c202] : memref<252xf32, #tpu.memory_space<smem>>
    %1123 = vector.broadcast %1122 : f32 to vector<2x16x16xf32>
    %1124 = arith.mulf %1121, %1123 : vector<2x16x16xf32>
    %1125 = arith.addf %1115, %1124 : vector<2x16x16xf32>
    %c203 = arith.constant 203 : index
    %1126 = memref.load %arg3[%c203] : memref<252xf32, #tpu.memory_space<smem>>
    %1127 = vector.broadcast %1126 : f32 to vector<2x16x16xf32>
    %1128 = arith.mulf %1121, %1127 : vector<2x16x16xf32>
    %1129 = arith.addf %1119, %1128 : vector<2x16x16xf32>
    %cst_464 = arith.constant dense<0.000000e+00> : vector<2x16xf32>
    %1130 = vector.multi_reduction <add>, %1125, %cst_464 [2] : vector<2x16x16xf32> to vector<2x16xf32>
    %1131 = vector.shape_cast %1130 : vector<2x16xf32> to vector<2x16x1xf32>
    %cst_465 = arith.constant dense<0.000000e+00> : vector<2x1xf32>
    %1132 = vector.multi_reduction <add>, %1131, %cst_465 [1] : vector<2x16x1xf32> to vector<2x1xf32>
    %1133 = vector.shape_cast %1132 : vector<2x1xf32> to vector<2x1x1xf32>
    %cst_466 = arith.constant 3.906250e-03 : f32
    %1134 = vector.broadcast %cst_466 : f32 to vector<2x1x1xf32>
    %1135 = arith.mulf %1133, %1134 : vector<2x1x1xf32>
    %1136 = arith.mulf %1125, %1125 : vector<2x16x16xf32>
    %cst_467 = arith.constant dense<0.000000e+00> : vector<2x16xf32>
    %1137 = vector.multi_reduction <add>, %1136, %cst_467 [2] : vector<2x16x16xf32> to vector<2x16xf32>
    %1138 = vector.shape_cast %1137 : vector<2x16xf32> to vector<2x16x1xf32>
    %cst_468 = arith.constant dense<0.000000e+00> : vector<2x1xf32>
    %1139 = vector.multi_reduction <add>, %1138, %cst_468 [1] : vector<2x16x1xf32> to vector<2x1xf32>
    %1140 = vector.shape_cast %1139 : vector<2x1xf32> to vector<2x1x1xf32>
    %cst_469 = arith.constant 3.906250e-03 : f32
    %1141 = vector.broadcast %cst_469 : f32 to vector<2x1x1xf32>
    %1142 = arith.mulf %1140, %1141 : vector<2x1x1xf32>
    %1143 = arith.mulf %1135, %1135 : vector<2x1x1xf32>
    %1144 = arith.subf %1142, %1143 : vector<2x1x1xf32>
    %1145 = vector.broadcast %1135 : vector<2x1x1xf32> to vector<2x16x16xf32>
    %1146 = arith.subf %1125, %1145 : vector<2x16x16xf32>
    %cst_470 = arith.constant 9.99999974E-6 : f32
    %1147 = vector.broadcast %cst_470 : f32 to vector<2x1x1xf32>
    %1148 = arith.addf %1144, %1147 : vector<2x1x1xf32>
    %1149 = math.rsqrt %1148 : vector<2x1x1xf32>
    %1150 = vector.broadcast %1149 : vector<2x1x1xf32> to vector<2x16x16xf32>
    %1151 = arith.mulf %1146, %1150 : vector<2x16x16xf32>
    %c206 = arith.constant 206 : index
    %1152 = memref.load %arg3[%c206] : memref<252xf32, #tpu.memory_space<smem>>
    %1153 = vector.broadcast %1152 : f32 to vector<2x16x16xf32>
    %1154 = arith.mulf %1151, %1153 : vector<2x16x16xf32>
    %c207 = arith.constant 207 : index
    %1155 = memref.load %arg3[%c207] : memref<252xf32, #tpu.memory_space<smem>>
    %1156 = vector.broadcast %1155 : f32 to vector<2x16x16xf32>
    %1157 = arith.addf %1154, %1156 : vector<2x16x16xf32>
    %cst_471 = arith.constant 0.000000e+00 : f32
    %1158 = vector.broadcast %cst_471 : f32 to vector<2x16x16xf32>
    %1159 = arith.cmpf ogt, %1157, %1158 : vector<2x16x16xf32>
    %cst_472 = arith.constant 1.000000e-01 : f32
    %1160 = vector.broadcast %cst_472 : f32 to vector<2x16x16xf32>
    %1161 = arith.mulf %1160, %1157 : vector<2x16x16xf32>
    %1162 = arith.select %1159, %1157, %1161 : vector<2x16x16xi1>, vector<2x16x16xf32>
    %cst_473 = arith.constant 0.000000e+00 : f32
    %1163 = vector.broadcast %cst_473 : f32 to vector<2x16x16xf32>
    %1164 = arith.cmpf ogt, %1129, %1163 : vector<2x16x16xf32>
    %cst_474 = arith.constant 1.000000e-01 : f32
    %1165 = vector.broadcast %cst_474 : f32 to vector<2x16x16xf32>
    %1166 = arith.mulf %1165, %1129 : vector<2x16x16xf32>
    %1167 = arith.select %1164, %1129, %1166 : vector<2x16x16xi1>, vector<2x16x16xf32>
    %c2_475 = arith.constant 2 : index
    %c0_476 = arith.constant 0 : index
    %c1_477 = arith.constant 1 : index
    %c1_478 = arith.constant 1 : index
    %1168 = vector.load %arg8[%c2_475, %c0_476, %c1_477, %c1_478] : memref<4x2x18x18xf32, #tpu.memory_space<vmem>>, vector<1x2x16x16xf32>
    %1169 = vector.shape_cast %1168 : vector<1x2x16x16xf32> to vector<2x16x16xf32>
    %1170 = vector.shape_cast %1162 : vector<2x16x16xf32> to vector<1x2x16x16xf32>
    tpu.vector_store %arg8[%c2_475, %c0_476, %c1_477, %c1_478], %1170 {strides = array<i32>} : memref<4x2x18x18xf32, #tpu.memory_space<vmem>>, vector<1x2x16x16xf32>,
    %c3_479 = arith.constant 3 : index
    %c0_480 = arith.constant 0 : index
    %c1_481 = arith.constant 1 : index
    %c1_482 = arith.constant 1 : index
    %1171 = vector.load %arg8[%c3_479, %c0_480, %c1_481, %c1_482] : memref<4x2x18x18xf32, #tpu.memory_space<vmem>>, vector<1x2x16x16xf32>
    %1172 = vector.shape_cast %1171 : vector<1x2x16x16xf32> to vector<2x16x16xf32>
    %1173 = vector.shape_cast %1167 : vector<2x16x16xf32> to vector<1x2x16x16xf32>
    tpu.vector_store %arg8[%c3_479, %c0_480, %c1_481, %c1_482], %1173 {strides = array<i32>} : memref<4x2x18x18xf32, #tpu.memory_space<vmem>>, vector<1x2x16x16xf32>,
    %cst_483 = arith.constant 0.000000e+00 : f32
    %1174 = vector.broadcast %cst_483 : f32 to vector<2x16x16xf32>
    %c244 = arith.constant 244 : index
    %1175 = memref.load %arg3[%c244] : memref<252xf32, #tpu.memory_space<smem>>
    %1176 = vector.broadcast %1175 : f32 to vector<2x16x16xf32>
    %1177 = arith.addf %1174, %1176 : vector<2x16x16xf32>
    %cst_484 = arith.constant 0.000000e+00 : f32
    %1178 = vector.broadcast %cst_484 : f32 to vector<2x16x16xf32>
    %c245 = arith.constant 245 : index
    %1179 = memref.load %arg3[%c245] : memref<252xf32, #tpu.memory_space<smem>>
    %1180 = vector.broadcast %1179 : f32 to vector<2x16x16xf32>
    %1181 = arith.addf %1178, %1180 : vector<2x16x16xf32>
    %c2_485 = arith.constant 2 : index
    %c0_486 = arith.constant 0 : index
    %c0_487 = arith.constant 0 : index
    %c0_488 = arith.constant 0 : index
    %1182 = vector.load %arg8[%c2_485, %c0_486, %c0_487, %c0_488] : memref<4x2x18x18xf32, #tpu.memory_space<vmem>>, vector<1x2x16x16xf32>
    %1183 = vector.shape_cast %1182 : vector<1x2x16x16xf32> to vector<2x16x16xf32>
    %c208 = arith.constant 208 : index
    %1184 = memref.load %arg3[%c208] : memref<252xf32, #tpu.memory_space<smem>>
    %1185 = vector.broadcast %1184 : f32 to vector<2x16x16xf32>
    %1186 = arith.mulf %1183, %1185 : vector<2x16x16xf32>
    %1187 = arith.addf %1177, %1186 : vector<2x16x16xf32>
    %c209 = arith.constant 209 : index
    %1188 = memref.load %arg3[%c209] : memref<252xf32, #tpu.memory_space<smem>>
    %1189 = vector.broadcast %1188 : f32 to vector<2x16x16xf32>
    %1190 = arith.mulf %1183, %1189 : vector<2x16x16xf32>
    %1191 = arith.addf %1181, %1190 : vector<2x16x16xf32>
    %c2_489 = arith.constant 2 : index
    %c0_490 = arith.constant 0 : index
    %c0_491 = arith.constant 0 : index
    %c1_492 = arith.constant 1 : index
    %1192 = vector.load %arg8[%c2_489, %c0_490, %c0_491, %c1_492] : memref<4x2x18x18xf32, #tpu.memory_space<vmem>>, vector<1x2x16x16xf32>
    %1193 = vector.shape_cast %1192 : vector<1x2x16x16xf32> to vector<2x16x16xf32>
    %c212 = arith.constant 212 : index
    %1194 = memref.load %arg3[%c212] : memref<252xf32, #tpu.memory_space<smem>>
    %1195 = vector.broadcast %1194 : f32 to vector<2x16x16xf32>
    %1196 = arith.mulf %1193, %1195 : vector<2x16x16xf32>
    %1197 = arith.addf %1187, %1196 : vector<2x16x16xf32>
    %c213 = arith.constant 213 : index
    %1198 = memref.load %arg3[%c213] : memref<252xf32, #tpu.memory_space<smem>>
    %1199 = vector.broadcast %1198 : f32 to vector<2x16x16xf32>
    %1200 = arith.mulf %1193, %1199 : vector<2x16x16xf32>
    %1201 = arith.addf %1191, %1200 : vector<2x16x16xf32>
    %c2_493 = arith.constant 2 : index
    %c0_494 = arith.constant 0 : index
    %c0_495 = arith.constant 0 : index
    %c2_496 = arith.constant 2 : index
    %1202 = vector.load %arg8[%c2_493, %c0_494, %c0_495, %c2_496] : memref<4x2x18x18xf32, #tpu.memory_space<vmem>>, vector<1x2x16x16xf32>
    %1203 = vector.shape_cast %1202 : vector<1x2x16x16xf32> to vector<2x16x16xf32>
    %c216 = arith.constant 216 : index
    %1204 = memref.load %arg3[%c216] : memref<252xf32, #tpu.memory_space<smem>>
    %1205 = vector.broadcast %1204 : f32 to vector<2x16x16xf32>
    %1206 = arith.mulf %1203, %1205 : vector<2x16x16xf32>
    %1207 = arith.addf %1197, %1206 : vector<2x16x16xf32>
    %c217 = arith.constant 217 : index
    %1208 = memref.load %arg3[%c217] : memref<252xf32, #tpu.memory_space<smem>>
    %1209 = vector.broadcast %1208 : f32 to vector<2x16x16xf32>
    %1210 = arith.mulf %1203, %1209 : vector<2x16x16xf32>
    %1211 = arith.addf %1201, %1210 : vector<2x16x16xf32>
    %c2_497 = arith.constant 2 : index
    %c0_498 = arith.constant 0 : index
    %c1_499 = arith.constant 1 : index
    %c0_500 = arith.constant 0 : index
    %1212 = vector.load %arg8[%c2_497, %c0_498, %c1_499, %c0_500] : memref<4x2x18x18xf32, #tpu.memory_space<vmem>>, vector<1x2x16x16xf32>
    %1213 = vector.shape_cast %1212 : vector<1x2x16x16xf32> to vector<2x16x16xf32>
    %c220 = arith.constant 220 : index
    %1214 = memref.load %arg3[%c220] : memref<252xf32, #tpu.memory_space<smem>>
    %1215 = vector.broadcast %1214 : f32 to vector<2x16x16xf32>
    %1216 = arith.mulf %1213, %1215 : vector<2x16x16xf32>
    %1217 = arith.addf %1207, %1216 : vector<2x16x16xf32>
    %c221 = arith.constant 221 : index
    %1218 = memref.load %arg3[%c221] : memref<252xf32, #tpu.memory_space<smem>>
    %1219 = vector.broadcast %1218 : f32 to vector<2x16x16xf32>
    %1220 = arith.mulf %1213, %1219 : vector<2x16x16xf32>
    %1221 = arith.addf %1211, %1220 : vector<2x16x16xf32>
    %c2_501 = arith.constant 2 : index
    %c0_502 = arith.constant 0 : index
    %c1_503 = arith.constant 1 : index
    %c1_504 = arith.constant 1 : index
    %1222 = vector.load %arg8[%c2_501, %c0_502, %c1_503, %c1_504] : memref<4x2x18x18xf32, #tpu.memory_space<vmem>>, vector<1x2x16x16xf32>
    %1223 = vector.shape_cast %1222 : vector<1x2x16x16xf32> to vector<2x16x16xf32>
    %c224 = arith.constant 224 : index
    %1224 = memref.load %arg3[%c224] : memref<252xf32, #tpu.memory_space<smem>>
    %1225 = vector.broadcast %1224 : f32 to vector<2x16x16xf32>
    %1226 = arith.mulf %1223, %1225 : vector<2x16x16xf32>
    %1227 = arith.addf %1217, %1226 : vector<2x16x16xf32>
    %c225 = arith.constant 225 : index
    %1228 = memref.load %arg3[%c225] : memref<252xf32, #tpu.memory_space<smem>>
    %1229 = vector.broadcast %1228 : f32 to vector<2x16x16xf32>
    %1230 = arith.mulf %1223, %1229 : vector<2x16x16xf32>
    %1231 = arith.addf %1221, %1230 : vector<2x16x16xf32>
    %c2_505 = arith.constant 2 : index
    %c0_506 = arith.constant 0 : index
    %c1_507 = arith.constant 1 : index
    %c2_508 = arith.constant 2 : index
    %1232 = vector.load %arg8[%c2_505, %c0_506, %c1_507, %c2_508] : memref<4x2x18x18xf32, #tpu.memory_space<vmem>>, vector<1x2x16x16xf32>
    %1233 = vector.shape_cast %1232 : vector<1x2x16x16xf32> to vector<2x16x16xf32>
    %c228 = arith.constant 228 : index
    %1234 = memref.load %arg3[%c228] : memref<252xf32, #tpu.memory_space<smem>>
    %1235 = vector.broadcast %1234 : f32 to vector<2x16x16xf32>
    %1236 = arith.mulf %1233, %1235 : vector<2x16x16xf32>
    %1237 = arith.addf %1227, %1236 : vector<2x16x16xf32>
    %c229 = arith.constant 229 : index
    %1238 = memref.load %arg3[%c229] : memref<252xf32, #tpu.memory_space<smem>>
    %1239 = vector.broadcast %1238 : f32 to vector<2x16x16xf32>
    %1240 = arith.mulf %1233, %1239 : vector<2x16x16xf32>
    %1241 = arith.addf %1231, %1240 : vector<2x16x16xf32>
    %c2_509 = arith.constant 2 : index
    %c0_510 = arith.constant 0 : index
    %c2_511 = arith.constant 2 : index
    %c0_512 = arith.constant 0 : index
    %1242 = vector.load %arg8[%c2_509, %c0_510, %c2_511, %c0_512] : memref<4x2x18x18xf32, #tpu.memory_space<vmem>>, vector<1x2x16x16xf32>
    %1243 = vector.shape_cast %1242 : vector<1x2x16x16xf32> to vector<2x16x16xf32>
    %c232 = arith.constant 232 : index
    %1244 = memref.load %arg3[%c232] : memref<252xf32, #tpu.memory_space<smem>>
    %1245 = vector.broadcast %1244 : f32 to vector<2x16x16xf32>
    %1246 = arith.mulf %1243, %1245 : vector<2x16x16xf32>
    %1247 = arith.addf %1237, %1246 : vector<2x16x16xf32>
    %c233 = arith.constant 233 : index
    %1248 = memref.load %arg3[%c233] : memref<252xf32, #tpu.memory_space<smem>>
    %1249 = vector.broadcast %1248 : f32 to vector<2x16x16xf32>
    %1250 = arith.mulf %1243, %1249 : vector<2x16x16xf32>
    %1251 = arith.addf %1241, %1250 : vector<2x16x16xf32>
    %c2_513 = arith.constant 2 : index
    %c0_514 = arith.constant 0 : index
    %c2_515 = arith.constant 2 : index
    %c1_516 = arith.constant 1 : index
    %1252 = vector.load %arg8[%c2_513, %c0_514, %c2_515, %c1_516] : memref<4x2x18x18xf32, #tpu.memory_space<vmem>>, vector<1x2x16x16xf32>
    %1253 = vector.shape_cast %1252 : vector<1x2x16x16xf32> to vector<2x16x16xf32>
    %c236 = arith.constant 236 : index
    %1254 = memref.load %arg3[%c236] : memref<252xf32, #tpu.memory_space<smem>>
    %1255 = vector.broadcast %1254 : f32 to vector<2x16x16xf32>
    %1256 = arith.mulf %1253, %1255 : vector<2x16x16xf32>
    %1257 = arith.addf %1247, %1256 : vector<2x16x16xf32>
    %c237 = arith.constant 237 : index
    %1258 = memref.load %arg3[%c237] : memref<252xf32, #tpu.memory_space<smem>>
    %1259 = vector.broadcast %1258 : f32 to vector<2x16x16xf32>
    %1260 = arith.mulf %1253, %1259 : vector<2x16x16xf32>
    %1261 = arith.addf %1251, %1260 : vector<2x16x16xf32>
    %c2_517 = arith.constant 2 : index
    %c0_518 = arith.constant 0 : index
    %c2_519 = arith.constant 2 : index
    %c2_520 = arith.constant 2 : index
    %1262 = vector.load %arg8[%c2_517, %c0_518, %c2_519, %c2_520] : memref<4x2x18x18xf32, #tpu.memory_space<vmem>>, vector<1x2x16x16xf32>
    %1263 = vector.shape_cast %1262 : vector<1x2x16x16xf32> to vector<2x16x16xf32>
    %c240 = arith.constant 240 : index
    %1264 = memref.load %arg3[%c240] : memref<252xf32, #tpu.memory_space<smem>>
    %1265 = vector.broadcast %1264 : f32 to vector<2x16x16xf32>
    %1266 = arith.mulf %1263, %1265 : vector<2x16x16xf32>
    %1267 = arith.addf %1257, %1266 : vector<2x16x16xf32>
    %c241 = arith.constant 241 : index
    %1268 = memref.load %arg3[%c241] : memref<252xf32, #tpu.memory_space<smem>>
    %1269 = vector.broadcast %1268 : f32 to vector<2x16x16xf32>
    %1270 = arith.mulf %1263, %1269 : vector<2x16x16xf32>
    %1271 = arith.addf %1261, %1270 : vector<2x16x16xf32>
    %c3_521 = arith.constant 3 : index
    %c0_522 = arith.constant 0 : index
    %c0_523 = arith.constant 0 : index
    %c0_524 = arith.constant 0 : index
    %1272 = vector.load %arg8[%c3_521, %c0_522, %c0_523, %c0_524] : memref<4x2x18x18xf32, #tpu.memory_space<vmem>>, vector<1x2x16x16xf32>
    %1273 = vector.shape_cast %1272 : vector<1x2x16x16xf32> to vector<2x16x16xf32>
    %c210 = arith.constant 210 : index
    %1274 = memref.load %arg3[%c210] : memref<252xf32, #tpu.memory_space<smem>>
    %1275 = vector.broadcast %1274 : f32 to vector<2x16x16xf32>
    %1276 = arith.mulf %1273, %1275 : vector<2x16x16xf32>
    %1277 = arith.addf %1267, %1276 : vector<2x16x16xf32>
    %c211 = arith.constant 211 : index
    %1278 = memref.load %arg3[%c211] : memref<252xf32, #tpu.memory_space<smem>>
    %1279 = vector.broadcast %1278 : f32 to vector<2x16x16xf32>
    %1280 = arith.mulf %1273, %1279 : vector<2x16x16xf32>
    %1281 = arith.addf %1271, %1280 : vector<2x16x16xf32>
    %c3_525 = arith.constant 3 : index
    %c0_526 = arith.constant 0 : index
    %c0_527 = arith.constant 0 : index
    %c1_528 = arith.constant 1 : index
    %1282 = vector.load %arg8[%c3_525, %c0_526, %c0_527, %c1_528] : memref<4x2x18x18xf32, #tpu.memory_space<vmem>>, vector<1x2x16x16xf32>
    %1283 = vector.shape_cast %1282 : vector<1x2x16x16xf32> to vector<2x16x16xf32>
    %c214 = arith.constant 214 : index
    %1284 = memref.load %arg3[%c214] : memref<252xf32, #tpu.memory_space<smem>>
    %1285 = vector.broadcast %1284 : f32 to vector<2x16x16xf32>
    %1286 = arith.mulf %1283, %1285 : vector<2x16x16xf32>
    %1287 = arith.addf %1277, %1286 : vector<2x16x16xf32>
    %c215 = arith.constant 215 : index
    %1288 = memref.load %arg3[%c215] : memref<252xf32, #tpu.memory_space<smem>>
    %1289 = vector.broadcast %1288 : f32 to vector<2x16x16xf32>
    %1290 = arith.mulf %1283, %1289 : vector<2x16x16xf32>
    %1291 = arith.addf %1281, %1290 : vector<2x16x16xf32>
    %c3_529 = arith.constant 3 : index
    %c0_530 = arith.constant 0 : index
    %c0_531 = arith.constant 0 : index
    %c2_532 = arith.constant 2 : index
    %1292 = vector.load %arg8[%c3_529, %c0_530, %c0_531, %c2_532] : memref<4x2x18x18xf32, #tpu.memory_space<vmem>>, vector<1x2x16x16xf32>
    %1293 = vector.shape_cast %1292 : vector<1x2x16x16xf32> to vector<2x16x16xf32>
    %c218 = arith.constant 218 : index
    %1294 = memref.load %arg3[%c218] : memref<252xf32, #tpu.memory_space<smem>>
    %1295 = vector.broadcast %1294 : f32 to vector<2x16x16xf32>
    %1296 = arith.mulf %1293, %1295 : vector<2x16x16xf32>
    %1297 = arith.addf %1287, %1296 : vector<2x16x16xf32>
    %c219 = arith.constant 219 : index
    %1298 = memref.load %arg3[%c219] : memref<252xf32, #tpu.memory_space<smem>>
    %1299 = vector.broadcast %1298 : f32 to vector<2x16x16xf32>
    %1300 = arith.mulf %1293, %1299 : vector<2x16x16xf32>
    %1301 = arith.addf %1291, %1300 : vector<2x16x16xf32>
    %c3_533 = arith.constant 3 : index
    %c0_534 = arith.constant 0 : index
    %c1_535 = arith.constant 1 : index
    %c0_536 = arith.constant 0 : index
    %1302 = vector.load %arg8[%c3_533, %c0_534, %c1_535, %c0_536] : memref<4x2x18x18xf32, #tpu.memory_space<vmem>>, vector<1x2x16x16xf32>
    %1303 = vector.shape_cast %1302 : vector<1x2x16x16xf32> to vector<2x16x16xf32>
    %c222 = arith.constant 222 : index
    %1304 = memref.load %arg3[%c222] : memref<252xf32, #tpu.memory_space<smem>>
    %1305 = vector.broadcast %1304 : f32 to vector<2x16x16xf32>
    %1306 = arith.mulf %1303, %1305 : vector<2x16x16xf32>
    %1307 = arith.addf %1297, %1306 : vector<2x16x16xf32>
    %c223 = arith.constant 223 : index
    %1308 = memref.load %arg3[%c223] : memref<252xf32, #tpu.memory_space<smem>>
    %1309 = vector.broadcast %1308 : f32 to vector<2x16x16xf32>
    %1310 = arith.mulf %1303, %1309 : vector<2x16x16xf32>
    %1311 = arith.addf %1301, %1310 : vector<2x16x16xf32>
    %c3_537 = arith.constant 3 : index
    %c0_538 = arith.constant 0 : index
    %c1_539 = arith.constant 1 : index
    %c1_540 = arith.constant 1 : index
    %1312 = vector.load %arg8[%c3_537, %c0_538, %c1_539, %c1_540] : memref<4x2x18x18xf32, #tpu.memory_space<vmem>>, vector<1x2x16x16xf32>
    %1313 = vector.shape_cast %1312 : vector<1x2x16x16xf32> to vector<2x16x16xf32>
    %c226 = arith.constant 226 : index
    %1314 = memref.load %arg3[%c226] : memref<252xf32, #tpu.memory_space<smem>>
    %1315 = vector.broadcast %1314 : f32 to vector<2x16x16xf32>
    %1316 = arith.mulf %1313, %1315 : vector<2x16x16xf32>
    %1317 = arith.addf %1307, %1316 : vector<2x16x16xf32>
    %c227 = arith.constant 227 : index
    %1318 = memref.load %arg3[%c227] : memref<252xf32, #tpu.memory_space<smem>>
    %1319 = vector.broadcast %1318 : f32 to vector<2x16x16xf32>
    %1320 = arith.mulf %1313, %1319 : vector<2x16x16xf32>
    %1321 = arith.addf %1311, %1320 : vector<2x16x16xf32>
    %c3_541 = arith.constant 3 : index
    %c0_542 = arith.constant 0 : index
    %c1_543 = arith.constant 1 : index
    %c2_544 = arith.constant 2 : index
    %1322 = vector.load %arg8[%c3_541, %c0_542, %c1_543, %c2_544] : memref<4x2x18x18xf32, #tpu.memory_space<vmem>>, vector<1x2x16x16xf32>
    %1323 = vector.shape_cast %1322 : vector<1x2x16x16xf32> to vector<2x16x16xf32>
    %c230 = arith.constant 230 : index
    %1324 = memref.load %arg3[%c230] : memref<252xf32, #tpu.memory_space<smem>>
    %1325 = vector.broadcast %1324 : f32 to vector<2x16x16xf32>
    %1326 = arith.mulf %1323, %1325 : vector<2x16x16xf32>
    %1327 = arith.addf %1317, %1326 : vector<2x16x16xf32>
    %c231 = arith.constant 231 : index
    %1328 = memref.load %arg3[%c231] : memref<252xf32, #tpu.memory_space<smem>>
    %1329 = vector.broadcast %1328 : f32 to vector<2x16x16xf32>
    %1330 = arith.mulf %1323, %1329 : vector<2x16x16xf32>
    %1331 = arith.addf %1321, %1330 : vector<2x16x16xf32>
    %c3_545 = arith.constant 3 : index
    %c0_546 = arith.constant 0 : index
    %c2_547 = arith.constant 2 : index
    %c0_548 = arith.constant 0 : index
    %1332 = vector.load %arg8[%c3_545, %c0_546, %c2_547, %c0_548] : memref<4x2x18x18xf32, #tpu.memory_space<vmem>>, vector<1x2x16x16xf32>
    %1333 = vector.shape_cast %1332 : vector<1x2x16x16xf32> to vector<2x16x16xf32>
    %c234 = arith.constant 234 : index
    %1334 = memref.load %arg3[%c234] : memref<252xf32, #tpu.memory_space<smem>>
    %1335 = vector.broadcast %1334 : f32 to vector<2x16x16xf32>
    %1336 = arith.mulf %1333, %1335 : vector<2x16x16xf32>
    %1337 = arith.addf %1327, %1336 : vector<2x16x16xf32>
    %c235 = arith.constant 235 : index
    %1338 = memref.load %arg3[%c235] : memref<252xf32, #tpu.memory_space<smem>>
    %1339 = vector.broadcast %1338 : f32 to vector<2x16x16xf32>
    %1340 = arith.mulf %1333, %1339 : vector<2x16x16xf32>
    %1341 = arith.addf %1331, %1340 : vector<2x16x16xf32>
    %c3_549 = arith.constant 3 : index
    %c0_550 = arith.constant 0 : index
    %c2_551 = arith.constant 2 : index
    %c1_552 = arith.constant 1 : index
    %1342 = vector.load %arg8[%c3_549, %c0_550, %c2_551, %c1_552] : memref<4x2x18x18xf32, #tpu.memory_space<vmem>>, vector<1x2x16x16xf32>
    %1343 = vector.shape_cast %1342 : vector<1x2x16x16xf32> to vector<2x16x16xf32>
    %c238 = arith.constant 238 : index
    %1344 = memref.load %arg3[%c238] : memref<252xf32, #tpu.memory_space<smem>>
    %1345 = vector.broadcast %1344 : f32 to vector<2x16x16xf32>
    %1346 = arith.mulf %1343, %1345 : vector<2x16x16xf32>
    %1347 = arith.addf %1337, %1346 : vector<2x16x16xf32>
    %c239 = arith.constant 239 : index
    %1348 = memref.load %arg3[%c239] : memref<252xf32, #tpu.memory_space<smem>>
    %1349 = vector.broadcast %1348 : f32 to vector<2x16x16xf32>
    %1350 = arith.mulf %1343, %1349 : vector<2x16x16xf32>
    %1351 = arith.addf %1341, %1350 : vector<2x16x16xf32>
    %c3_553 = arith.constant 3 : index
    %c0_554 = arith.constant 0 : index
    %c2_555 = arith.constant 2 : index
    %c2_556 = arith.constant 2 : index
    %1352 = vector.load %arg8[%c3_553, %c0_554, %c2_555, %c2_556] : memref<4x2x18x18xf32, #tpu.memory_space<vmem>>, vector<1x2x16x16xf32>
    %1353 = vector.shape_cast %1352 : vector<1x2x16x16xf32> to vector<2x16x16xf32>
    %c242 = arith.constant 242 : index
    %1354 = memref.load %arg3[%c242] : memref<252xf32, #tpu.memory_space<smem>>
    %1355 = vector.broadcast %1354 : f32 to vector<2x16x16xf32>
    %1356 = arith.mulf %1353, %1355 : vector<2x16x16xf32>
    %1357 = arith.addf %1347, %1356 : vector<2x16x16xf32>
    %c243 = arith.constant 243 : index
    %1358 = memref.load %arg3[%c243] : memref<252xf32, #tpu.memory_space<smem>>
    %1359 = vector.broadcast %1358 : f32 to vector<2x16x16xf32>
    %1360 = arith.mulf %1353, %1359 : vector<2x16x16xf32>
    %1361 = arith.addf %1351, %1360 : vector<2x16x16xf32>
    %cst_557 = arith.constant 0.000000e+00 : f32
    %1362 = vector.broadcast %cst_557 : f32 to vector<2x16x16xf32>
    %c250 = arith.constant 250 : index
    %1363 = memref.load %arg3[%c250] : memref<252xf32, #tpu.memory_space<smem>>
    %1364 = vector.broadcast %1363 : f32 to vector<2x16x16xf32>
    %1365 = arith.addf %1362, %1364 : vector<2x16x16xf32>
    %c246 = arith.constant 246 : index
    %1366 = memref.load %arg3[%c246] : memref<252xf32, #tpu.memory_space<smem>>
    %1367 = vector.broadcast %1366 : f32 to vector<2x16x16xf32>
    %1368 = arith.mulf %472, %1367 : vector<2x16x16xf32>
    %1369 = arith.addf %1365, %1368 : vector<2x16x16xf32>
    %c248 = arith.constant 248 : index
    %1370 = memref.load %arg3[%c248] : memref<252xf32, #tpu.memory_space<smem>>
    %1371 = vector.broadcast %1370 : f32 to vector<2x16x16xf32>
    %1372 = arith.mulf %473, %1371 : vector<2x16x16xf32>
    %1373 = arith.addf %1369, %1372 : vector<2x16x16xf32>
    %cst_558 = arith.constant 0.000000e+00 : f32
    %1374 = vector.broadcast %cst_558 : f32 to vector<2x16x16xf32>
    %1375 = arith.cmpf ogt, %1357, %1374 : vector<2x16x16xf32>
    %cst_559 = arith.constant 1.000000e-01 : f32
    %1376 = vector.broadcast %cst_559 : f32 to vector<2x16x16xf32>
    %1377 = arith.mulf %1376, %1357 : vector<2x16x16xf32>
    %1378 = arith.select %1375, %1357, %1377 : vector<2x16x16xi1>, vector<2x16x16xf32>
    %1379 = arith.addf %1378, %1373 : vector<2x16x16xf32>
    %cst_560 = arith.constant 0.000000e+00 : f32
    %1380 = vector.broadcast %cst_560 : f32 to vector<2x16x16xf32>
    %c251 = arith.constant 251 : index
    %1381 = memref.load %arg3[%c251] : memref<252xf32, #tpu.memory_space<smem>>
    %1382 = vector.broadcast %1381 : f32 to vector<2x16x16xf32>
    %1383 = arith.addf %1380, %1382 : vector<2x16x16xf32>
    %c247 = arith.constant 247 : index
    %1384 = memref.load %arg3[%c247] : memref<252xf32, #tpu.memory_space<smem>>
    %1385 = vector.broadcast %1384 : f32 to vector<2x16x16xf32>
    %1386 = arith.mulf %472, %1385 : vector<2x16x16xf32>
    %1387 = arith.addf %1383, %1386 : vector<2x16x16xf32>
    %c249 = arith.constant 249 : index
    %1388 = memref.load %arg3[%c249] : memref<252xf32, #tpu.memory_space<smem>>
    %1389 = vector.broadcast %1388 : f32 to vector<2x16x16xf32>
    %1390 = arith.mulf %473, %1389 : vector<2x16x16xf32>
    %1391 = arith.addf %1387, %1390 : vector<2x16x16xf32>
    %cst_561 = arith.constant 0.000000e+00 : f32
    %1392 = vector.broadcast %cst_561 : f32 to vector<2x16x16xf32>
    %1393 = arith.cmpf ogt, %1361, %1392 : vector<2x16x16xf32>
    %cst_562 = arith.constant 1.000000e-01 : f32
    %1394 = vector.broadcast %cst_562 : f32 to vector<2x16x16xf32>
    %1395 = arith.mulf %1394, %1361 : vector<2x16x16xf32>
    %1396 = arith.select %1393, %1361, %1395 : vector<2x16x16xi1>, vector<2x16x16xf32>
    %1397 = arith.addf %1396, %1391 : vector<2x16x16xf32>
    %1398 = arith.addf %3, %472 : vector<2x16x16xf32>
    %c0_563 = arith.constant 0 : index
    %c0_564 = arith.constant 0 : index
    %c0_565 = arith.constant 0 : index
    %c0_566 = arith.constant 0 : index
    %1399 = vector.load %arg5[%c0_563, %c0_564, %c0_565, %c0_566] : memref<4x2x16x16xf32, #tpu.memory_space<vmem>>, vector<1x2x16x16xf32>
    %1400 = vector.shape_cast %1399 : vector<1x2x16x16xf32> to vector<2x16x16xf32>
    %1401 = vector.shape_cast %1398 : vector<2x16x16xf32> to vector<1x2x16x16xf32>
    tpu.vector_store %arg5[%c0_563, %c0_564, %c0_565, %c0_566], %1401 {strides = array<i32>} : memref<4x2x16x16xf32, #tpu.memory_space<vmem>>, vector<1x2x16x16xf32>,
    %1402 = arith.addf %5, %473 : vector<2x16x16xf32>
    %c1_567 = arith.constant 1 : index
    %c0_568 = arith.constant 0 : index
    %c0_569 = arith.constant 0 : index
    %c0_570 = arith.constant 0 : index
    %1403 = vector.load %arg5[%c1_567, %c0_568, %c0_569, %c0_570] : memref<4x2x16x16xf32, #tpu.memory_space<vmem>>, vector<1x2x16x16xf32>
    %1404 = vector.shape_cast %1403 : vector<1x2x16x16xf32> to vector<2x16x16xf32>
    %1405 = vector.shape_cast %1402 : vector<2x16x16xf32> to vector<1x2x16x16xf32>
    tpu.vector_store %arg5[%c1_567, %c0_568, %c0_569, %c0_570], %1405 {strides = array<i32>} : memref<4x2x16x16xf32, #tpu.memory_space<vmem>>, vector<1x2x16x16xf32>,
    %cst_571 = arith.constant 0.000000e+00 : f32
    %1406 = vector.broadcast %cst_571 : f32 to vector<2x16x16xf32>
    %1407 = arith.subf %1406, %917 : vector<2x16x16xf32>
    %1408 = math.exp %1407 : vector<2x16x16xf32>
    %cst_572 = arith.constant 1.000000e+00 : f32
    %1409 = vector.broadcast %cst_572 : f32 to vector<2x16x16xf32>
    %1410 = arith.addf %1409, %1408 : vector<2x16x16xf32>
    %cst_573 = arith.constant 1.000000e+00 : f32
    %1411 = vector.broadcast %cst_573 : f32 to vector<2x16x16xf32>
    %1412 = arith.divf %1411, %1410 : vector<2x16x16xf32>
    %cst_574 = arith.constant 2.000000e+00 : f32
    %1413 = vector.broadcast %cst_574 : f32 to vector<2x16x16xf32>
    %1414 = arith.mulf %1412, %1413 : vector<2x16x16xf32>
    %cst_575 = arith.constant 1.000000e+00 : f32
    %1415 = vector.broadcast %cst_575 : f32 to vector<2x16x16xf32>
    %1416 = arith.subf %1414, %1415 : vector<2x16x16xf32>
    %cst_576 = arith.constant 8.000000e-01 : f32
    %1417 = vector.broadcast %cst_576 : f32 to vector<2x16x16xf32>
    %1418 = arith.mulf %1417, %1416 : vector<2x16x16xf32>
    %1419 = math.exp %1418 : vector<2x16x16xf32>
    %1420 = arith.mulf %7, %1419 : vector<2x16x16xf32>
    %1421 = arith.addf %1420, %1379 : vector<2x16x16xf32>
    %1422 = arith.addf %7, %1421 : vector<2x16x16xf32>
    %c2_577 = arith.constant 2 : index
    %c0_578 = arith.constant 0 : index
    %c0_579 = arith.constant 0 : index
    %c0_580 = arith.constant 0 : index
    %1423 = vector.load %arg5[%c2_577, %c0_578, %c0_579, %c0_580] : memref<4x2x16x16xf32, #tpu.memory_space<vmem>>, vector<1x2x16x16xf32>
    %1424 = vector.shape_cast %1423 : vector<1x2x16x16xf32> to vector<2x16x16xf32>
    %1425 = vector.shape_cast %1422 : vector<2x16x16xf32> to vector<1x2x16x16xf32>
    tpu.vector_store %arg5[%c2_577, %c0_578, %c0_579, %c0_580], %1425 {strides = array<i32>} : memref<4x2x16x16xf32, #tpu.memory_space<vmem>>, vector<1x2x16x16xf32>,
    %cst_581 = arith.constant 0.000000e+00 : f32
    %1426 = vector.broadcast %cst_581 : f32 to vector<2x16x16xf32>
    %1427 = arith.subf %1426, %935 : vector<2x16x16xf32>
    %1428 = math.exp %1427 : vector<2x16x16xf32>
    %cst_582 = arith.constant 1.000000e+00 : f32
    %1429 = vector.broadcast %cst_582 : f32 to vector<2x16x16xf32>
    %1430 = arith.addf %1429, %1428 : vector<2x16x16xf32>
    %cst_583 = arith.constant 1.000000e+00 : f32
    %1431 = vector.broadcast %cst_583 : f32 to vector<2x16x16xf32>
    %1432 = arith.divf %1431, %1430 : vector<2x16x16xf32>
    %cst_584 = arith.constant 2.000000e+00 : f32
    %1433 = vector.broadcast %cst_584 : f32 to vector<2x16x16xf32>
    %1434 = arith.mulf %1432, %1433 : vector<2x16x16xf32>
    %cst_585 = arith.constant 1.000000e+00 : f32
    %1435 = vector.broadcast %cst_585 : f32 to vector<2x16x16xf32>
    %1436 = arith.subf %1434, %1435 : vector<2x16x16xf32>
    %cst_586 = arith.constant 8.000000e-01 : f32
    %1437 = vector.broadcast %cst_586 : f32 to vector<2x16x16xf32>
    %1438 = arith.mulf %1437, %1436 : vector<2x16x16xf32>
    %1439 = math.exp %1438 : vector<2x16x16xf32>
    %1440 = arith.mulf %9, %1439 : vector<2x16x16xf32>
    %1441 = arith.addf %1440, %1397 : vector<2x16x16xf32>
    %1442 = arith.addf %9, %1441 : vector<2x16x16xf32>
    %c3_587 = arith.constant 3 : index
    %c0_588 = arith.constant 0 : index
    %c0_589 = arith.constant 0 : index
    %c0_590 = arith.constant 0 : index
    %1443 = vector.load %arg5[%c3_587, %c0_588, %c0_589, %c0_590] : memref<4x2x16x16xf32, #tpu.memory_space<vmem>>, vector<1x2x16x16xf32>
    %1444 = vector.shape_cast %1443 : vector<1x2x16x16xf32> to vector<2x16x16xf32>
    %1445 = vector.shape_cast %1442 : vector<2x16x16xf32> to vector<1x2x16x16xf32>
    tpu.vector_store %arg5[%c3_587, %c0_588, %c0_589, %c0_590], %1445 {strides = array<i32>} : memref<4x2x16x16xf32, #tpu.memory_space<vmem>>, vector<1x2x16x16xf32>,
    %c0_591 = arith.constant 0 : index
    %c0_592 = arith.constant 0 : index
    %c0_593 = arith.constant 0 : index
    %1446 = vector.load %arg1[%c0_591, %c0_592, %c0_593] : memref<4x2x144xf32, #tpu.memory_space<vmem>>, vector<1x2x144xf32>
    %1447 = vector.shape_cast %1446 : vector<1x2x144xf32> to vector<2x144xf32>
    %c1_594 = arith.constant 1 : index
    %c0_595 = arith.constant 0 : index
    %c0_596 = arith.constant 0 : index
    %1448 = vector.load %arg1[%c1_594, %c0_595, %c0_596] : memref<4x2x144xf32, #tpu.memory_space<vmem>>, vector<1x2x144xf32>
    %1449 = vector.shape_cast %1448 : vector<1x2x144xf32> to vector<2x144xf32>
    %c2_597 = arith.constant 2 : index
    %c0_598 = arith.constant 0 : index
    %c0_599 = arith.constant 0 : index
    %1450 = vector.load %arg1[%c2_597, %c0_598, %c0_599] : memref<4x2x144xf32, #tpu.memory_space<vmem>>, vector<1x2x144xf32>
    %1451 = vector.shape_cast %1450 : vector<1x2x144xf32> to vector<2x144xf32>
    %c3_600 = arith.constant 3 : index
    %c0_601 = arith.constant 0 : index
    %c0_602 = arith.constant 0 : index
    %1452 = vector.load %arg1[%c3_600, %c0_601, %c0_602] : memref<4x2x144xf32, #tpu.memory_space<vmem>>, vector<1x2x144xf32>
    %1453 = vector.shape_cast %1452 : vector<1x2x144xf32> to vector<2x144xf32>
    %c0_603 = arith.constant 0 : index
    %c0_604 = arith.constant 0 : index
    %c0_605 = arith.constant 0 : index
    %1454 = vector.load %arg2[%c0_603, %c0_604, %c0_605] : memref<4x2x144xf32, #tpu.memory_space<vmem>>, vector<1x2x144xf32>
    %1455 = vector.shape_cast %1454 : vector<1x2x144xf32> to vector<2x144xf32>
    %c1_606 = arith.constant 1 : index
    %c0_607 = arith.constant 0 : index
    %c0_608 = arith.constant 0 : index
    %1456 = vector.load %arg2[%c1_606, %c0_607, %c0_608] : memref<4x2x144xf32, #tpu.memory_space<vmem>>, vector<1x2x144xf32>
    %1457 = vector.shape_cast %1456 : vector<1x2x144xf32> to vector<2x144xf32>
    %c2_609 = arith.constant 2 : index
    %c0_610 = arith.constant 0 : index
    %c0_611 = arith.constant 0 : index
    %1458 = vector.load %arg2[%c2_609, %c0_610, %c0_611] : memref<4x2x144xf32, #tpu.memory_space<vmem>>, vector<1x2x144xf32>
    %1459 = vector.shape_cast %1458 : vector<1x2x144xf32> to vector<2x144xf32>
    %c3_612 = arith.constant 3 : index
    %c0_613 = arith.constant 0 : index
    %c0_614 = arith.constant 0 : index
    %1460 = vector.load %arg2[%c3_612, %c0_613, %c0_614] : memref<4x2x144xf32, #tpu.memory_space<vmem>>, vector<1x2x144xf32>
    %1461 = vector.shape_cast %1460 : vector<1x2x144xf32> to vector<2x144xf32>
    %cst_615 = arith.constant 0.000000e+00 : f32
    %1462 = vector.broadcast %cst_615 : f32 to vector<2x144xf32>
    %c16_616 = arith.constant 16 : index
    %1463 = memref.load %arg4[%c16_616] : memref<80xf32, #tpu.memory_space<smem>>
    %1464 = vector.broadcast %1463 : f32 to vector<2x144xf32>
    %1465 = arith.addf %1462, %1464 : vector<2x144xf32>
    %c0_617 = arith.constant 0 : index
    %1466 = memref.load %arg4[%c0_617] : memref<80xf32, #tpu.memory_space<smem>>
    %1467 = vector.broadcast %1466 : f32 to vector<2x144xf32>
    %1468 = arith.mulf %1447, %1467 : vector<2x144xf32>
    %1469 = arith.addf %1465, %1468 : vector<2x144xf32>
    %c4_618 = arith.constant 4 : index
    %1470 = memref.load %arg4[%c4_618] : memref<80xf32, #tpu.memory_space<smem>>
    %1471 = vector.broadcast %1470 : f32 to vector<2x144xf32>
    %1472 = arith.mulf %1449, %1471 : vector<2x144xf32>
    %1473 = arith.addf %1469, %1472 : vector<2x144xf32>
    %c8_619 = arith.constant 8 : index
    %1474 = memref.load %arg4[%c8_619] : memref<80xf32, #tpu.memory_space<smem>>
    %1475 = vector.broadcast %1474 : f32 to vector<2x144xf32>
    %1476 = arith.mulf %1451, %1475 : vector<2x144xf32>
    %1477 = arith.addf %1473, %1476 : vector<2x144xf32>
    %c12_620 = arith.constant 12 : index
    %1478 = memref.load %arg4[%c12_620] : memref<80xf32, #tpu.memory_space<smem>>
    %1479 = vector.broadcast %1478 : f32 to vector<2x144xf32>
    %1480 = arith.mulf %1453, %1479 : vector<2x144xf32>
    %1481 = arith.addf %1477, %1480 : vector<2x144xf32>
    %cst_621 = arith.constant 0.000000e+00 : f32
    %1482 = vector.broadcast %cst_621 : f32 to vector<2x144xf32>
    %c17_622 = arith.constant 17 : index
    %1483 = memref.load %arg4[%c17_622] : memref<80xf32, #tpu.memory_space<smem>>
    %1484 = vector.broadcast %1483 : f32 to vector<2x144xf32>
    %1485 = arith.addf %1482, %1484 : vector<2x144xf32>
    %c1_623 = arith.constant 1 : index
    %1486 = memref.load %arg4[%c1_623] : memref<80xf32, #tpu.memory_space<smem>>
    %1487 = vector.broadcast %1486 : f32 to vector<2x144xf32>
    %1488 = arith.mulf %1447, %1487 : vector<2x144xf32>
    %1489 = arith.addf %1485, %1488 : vector<2x144xf32>
    %c5_624 = arith.constant 5 : index
    %1490 = memref.load %arg4[%c5_624] : memref<80xf32, #tpu.memory_space<smem>>
    %1491 = vector.broadcast %1490 : f32 to vector<2x144xf32>
    %1492 = arith.mulf %1449, %1491 : vector<2x144xf32>
    %1493 = arith.addf %1489, %1492 : vector<2x144xf32>
    %c9_625 = arith.constant 9 : index
    %1494 = memref.load %arg4[%c9_625] : memref<80xf32, #tpu.memory_space<smem>>
    %1495 = vector.broadcast %1494 : f32 to vector<2x144xf32>
    %1496 = arith.mulf %1451, %1495 : vector<2x144xf32>
    %1497 = arith.addf %1493, %1496 : vector<2x144xf32>
    %c13_626 = arith.constant 13 : index
    %1498 = memref.load %arg4[%c13_626] : memref<80xf32, #tpu.memory_space<smem>>
    %1499 = vector.broadcast %1498 : f32 to vector<2x144xf32>
    %1500 = arith.mulf %1453, %1499 : vector<2x144xf32>
    %1501 = arith.addf %1497, %1500 : vector<2x144xf32>
    %cst_627 = arith.constant 0.000000e+00 : f32
    %1502 = vector.broadcast %cst_627 : f32 to vector<2x144xf32>
    %c18_628 = arith.constant 18 : index
    %1503 = memref.load %arg4[%c18_628] : memref<80xf32, #tpu.memory_space<smem>>
    %1504 = vector.broadcast %1503 : f32 to vector<2x144xf32>
    %1505 = arith.addf %1502, %1504 : vector<2x144xf32>
    %c2_629 = arith.constant 2 : index
    %1506 = memref.load %arg4[%c2_629] : memref<80xf32, #tpu.memory_space<smem>>
    %1507 = vector.broadcast %1506 : f32 to vector<2x144xf32>
    %1508 = arith.mulf %1447, %1507 : vector<2x144xf32>
    %1509 = arith.addf %1505, %1508 : vector<2x144xf32>
    %c6_630 = arith.constant 6 : index
    %1510 = memref.load %arg4[%c6_630] : memref<80xf32, #tpu.memory_space<smem>>
    %1511 = vector.broadcast %1510 : f32 to vector<2x144xf32>
    %1512 = arith.mulf %1449, %1511 : vector<2x144xf32>
    %1513 = arith.addf %1509, %1512 : vector<2x144xf32>
    %c10_631 = arith.constant 10 : index
    %1514 = memref.load %arg4[%c10_631] : memref<80xf32, #tpu.memory_space<smem>>
    %1515 = vector.broadcast %1514 : f32 to vector<2x144xf32>
    %1516 = arith.mulf %1451, %1515 : vector<2x144xf32>
    %1517 = arith.addf %1513, %1516 : vector<2x144xf32>
    %c14_632 = arith.constant 14 : index
    %1518 = memref.load %arg4[%c14_632] : memref<80xf32, #tpu.memory_space<smem>>
    %1519 = vector.broadcast %1518 : f32 to vector<2x144xf32>
    %1520 = arith.mulf %1453, %1519 : vector<2x144xf32>
    %1521 = arith.addf %1517, %1520 : vector<2x144xf32>
    %cst_633 = arith.constant 0.000000e+00 : f32
    %1522 = vector.broadcast %cst_633 : f32 to vector<2x144xf32>
    %c19_634 = arith.constant 19 : index
    %1523 = memref.load %arg4[%c19_634] : memref<80xf32, #tpu.memory_space<smem>>
    %1524 = vector.broadcast %1523 : f32 to vector<2x144xf32>
    %1525 = arith.addf %1522, %1524 : vector<2x144xf32>
    %c3_635 = arith.constant 3 : index
    %1526 = memref.load %arg4[%c3_635] : memref<80xf32, #tpu.memory_space<smem>>
    %1527 = vector.broadcast %1526 : f32 to vector<2x144xf32>
    %1528 = arith.mulf %1447, %1527 : vector<2x144xf32>
    %1529 = arith.addf %1525, %1528 : vector<2x144xf32>
    %c7_636 = arith.constant 7 : index
    %1530 = memref.load %arg4[%c7_636] : memref<80xf32, #tpu.memory_space<smem>>
    %1531 = vector.broadcast %1530 : f32 to vector<2x144xf32>
    %1532 = arith.mulf %1449, %1531 : vector<2x144xf32>
    %1533 = arith.addf %1529, %1532 : vector<2x144xf32>
    %c11_637 = arith.constant 11 : index
    %1534 = memref.load %arg4[%c11_637] : memref<80xf32, #tpu.memory_space<smem>>
    %1535 = vector.broadcast %1534 : f32 to vector<2x144xf32>
    %1536 = arith.mulf %1451, %1535 : vector<2x144xf32>
    %1537 = arith.addf %1533, %1536 : vector<2x144xf32>
    %c15_638 = arith.constant 15 : index
    %1538 = memref.load %arg4[%c15_638] : memref<80xf32, #tpu.memory_space<smem>>
    %1539 = vector.broadcast %1538 : f32 to vector<2x144xf32>
    %1540 = arith.mulf %1453, %1539 : vector<2x144xf32>
    %1541 = arith.addf %1537, %1540 : vector<2x144xf32>
    %cst_639 = arith.constant 0.000000e+00 : f32
    %1542 = vector.broadcast %cst_639 : f32 to vector<2x144xf32>
    %1543 = arith.cmpf ogt, %1481, %1542 : vector<2x144xf32>
    %cst_640 = arith.constant 1.000000e-01 : f32
    %1544 = vector.broadcast %cst_640 : f32 to vector<2x144xf32>
    %1545 = arith.mulf %1544, %1481 : vector<2x144xf32>
    %1546 = arith.select %1543, %1481, %1545 : vector<2x144xi1>, vector<2x144xf32>
    %cst_641 = arith.constant 0.000000e+00 : f32
    %1547 = vector.broadcast %cst_641 : f32 to vector<2x144xf32>
    %1548 = arith.cmpf ogt, %1501, %1547 : vector<2x144xf32>
    %cst_642 = arith.constant 1.000000e-01 : f32
    %1549 = vector.broadcast %cst_642 : f32 to vector<2x144xf32>
    %1550 = arith.mulf %1549, %1501 : vector<2x144xf32>
    %1551 = arith.select %1548, %1501, %1550 : vector<2x144xi1>, vector<2x144xf32>
    %cst_643 = arith.constant 0.000000e+00 : f32
    %1552 = vector.broadcast %cst_643 : f32 to vector<2x144xf32>
    %1553 = arith.cmpf ogt, %1521, %1552 : vector<2x144xf32>
    %cst_644 = arith.constant 1.000000e-01 : f32
    %1554 = vector.broadcast %cst_644 : f32 to vector<2x144xf32>
    %1555 = arith.mulf %1554, %1521 : vector<2x144xf32>
    %1556 = arith.select %1553, %1521, %1555 : vector<2x144xi1>, vector<2x144xf32>
    %cst_645 = arith.constant 0.000000e+00 : f32
    %1557 = vector.broadcast %cst_645 : f32 to vector<2x144xf32>
    %1558 = arith.cmpf ogt, %1541, %1557 : vector<2x144xf32>
    %cst_646 = arith.constant 1.000000e-01 : f32
    %1559 = vector.broadcast %cst_646 : f32 to vector<2x144xf32>
    %1560 = arith.mulf %1559, %1541 : vector<2x144xf32>
    %1561 = arith.select %1558, %1541, %1560 : vector<2x144xi1>, vector<2x144xf32>
    %cst_647 = arith.constant 0.000000e+00 : f32
    %1562 = vector.broadcast %cst_647 : f32 to vector<2x144xf32>
    %c36_648 = arith.constant 36 : index
    %1563 = memref.load %arg4[%c36_648] : memref<80xf32, #tpu.memory_space<smem>>
    %1564 = vector.broadcast %1563 : f32 to vector<2x144xf32>
    %1565 = arith.addf %1562, %1564 : vector<2x144xf32>
    %c20_649 = arith.constant 20 : index
    %1566 = memref.load %arg4[%c20_649] : memref<80xf32, #tpu.memory_space<smem>>
    %1567 = vector.broadcast %1566 : f32 to vector<2x144xf32>
    %1568 = arith.mulf %1546, %1567 : vector<2x144xf32>
    %1569 = arith.addf %1565, %1568 : vector<2x144xf32>
    %c24_650 = arith.constant 24 : index
    %1570 = memref.load %arg4[%c24_650] : memref<80xf32, #tpu.memory_space<smem>>
    %1571 = vector.broadcast %1570 : f32 to vector<2x144xf32>
    %1572 = arith.mulf %1551, %1571 : vector<2x144xf32>
    %1573 = arith.addf %1569, %1572 : vector<2x144xf32>
    %c28_651 = arith.constant 28 : index
    %1574 = memref.load %arg4[%c28_651] : memref<80xf32, #tpu.memory_space<smem>>
    %1575 = vector.broadcast %1574 : f32 to vector<2x144xf32>
    %1576 = arith.mulf %1556, %1575 : vector<2x144xf32>
    %1577 = arith.addf %1573, %1576 : vector<2x144xf32>
    %c32_652 = arith.constant 32 : index
    %1578 = memref.load %arg4[%c32_652] : memref<80xf32, #tpu.memory_space<smem>>
    %1579 = vector.broadcast %1578 : f32 to vector<2x144xf32>
    %1580 = arith.mulf %1561, %1579 : vector<2x144xf32>
    %1581 = arith.addf %1577, %1580 : vector<2x144xf32>
    %cst_653 = arith.constant 0.000000e+00 : f32
    %1582 = vector.broadcast %cst_653 : f32 to vector<2x144xf32>
    %c37_654 = arith.constant 37 : index
    %1583 = memref.load %arg4[%c37_654] : memref<80xf32, #tpu.memory_space<smem>>
    %1584 = vector.broadcast %1583 : f32 to vector<2x144xf32>
    %1585 = arith.addf %1582, %1584 : vector<2x144xf32>
    %c21_655 = arith.constant 21 : index
    %1586 = memref.load %arg4[%c21_655] : memref<80xf32, #tpu.memory_space<smem>>
    %1587 = vector.broadcast %1586 : f32 to vector<2x144xf32>
    %1588 = arith.mulf %1546, %1587 : vector<2x144xf32>
    %1589 = arith.addf %1585, %1588 : vector<2x144xf32>
    %c25_656 = arith.constant 25 : index
    %1590 = memref.load %arg4[%c25_656] : memref<80xf32, #tpu.memory_space<smem>>
    %1591 = vector.broadcast %1590 : f32 to vector<2x144xf32>
    %1592 = arith.mulf %1551, %1591 : vector<2x144xf32>
    %1593 = arith.addf %1589, %1592 : vector<2x144xf32>
    %c29_657 = arith.constant 29 : index
    %1594 = memref.load %arg4[%c29_657] : memref<80xf32, #tpu.memory_space<smem>>
    %1595 = vector.broadcast %1594 : f32 to vector<2x144xf32>
    %1596 = arith.mulf %1556, %1595 : vector<2x144xf32>
    %1597 = arith.addf %1593, %1596 : vector<2x144xf32>
    %c33_658 = arith.constant 33 : index
    %1598 = memref.load %arg4[%c33_658] : memref<80xf32, #tpu.memory_space<smem>>
    %1599 = vector.broadcast %1598 : f32 to vector<2x144xf32>
    %1600 = arith.mulf %1561, %1599 : vector<2x144xf32>
    %1601 = arith.addf %1597, %1600 : vector<2x144xf32>
    %cst_659 = arith.constant 0.000000e+00 : f32
    %1602 = vector.broadcast %cst_659 : f32 to vector<2x144xf32>
    %c38_660 = arith.constant 38 : index
    %1603 = memref.load %arg4[%c38_660] : memref<80xf32, #tpu.memory_space<smem>>
    %1604 = vector.broadcast %1603 : f32 to vector<2x144xf32>
    %1605 = arith.addf %1602, %1604 : vector<2x144xf32>
    %c22_661 = arith.constant 22 : index
    %1606 = memref.load %arg4[%c22_661] : memref<80xf32, #tpu.memory_space<smem>>
    %1607 = vector.broadcast %1606 : f32 to vector<2x144xf32>
    %1608 = arith.mulf %1546, %1607 : vector<2x144xf32>
    %1609 = arith.addf %1605, %1608 : vector<2x144xf32>
    %c26_662 = arith.constant 26 : index
    %1610 = memref.load %arg4[%c26_662] : memref<80xf32, #tpu.memory_space<smem>>
    %1611 = vector.broadcast %1610 : f32 to vector<2x144xf32>
    %1612 = arith.mulf %1551, %1611 : vector<2x144xf32>
    %1613 = arith.addf %1609, %1612 : vector<2x144xf32>
    %c30_663 = arith.constant 30 : index
    %1614 = memref.load %arg4[%c30_663] : memref<80xf32, #tpu.memory_space<smem>>
    %1615 = vector.broadcast %1614 : f32 to vector<2x144xf32>
    %1616 = arith.mulf %1556, %1615 : vector<2x144xf32>
    %1617 = arith.addf %1613, %1616 : vector<2x144xf32>
    %c34_664 = arith.constant 34 : index
    %1618 = memref.load %arg4[%c34_664] : memref<80xf32, #tpu.memory_space<smem>>
    %1619 = vector.broadcast %1618 : f32 to vector<2x144xf32>
    %1620 = arith.mulf %1561, %1619 : vector<2x144xf32>
    %1621 = arith.addf %1617, %1620 : vector<2x144xf32>
    %cst_665 = arith.constant 0.000000e+00 : f32
    %1622 = vector.broadcast %cst_665 : f32 to vector<2x144xf32>
    %c39_666 = arith.constant 39 : index
    %1623 = memref.load %arg4[%c39_666] : memref<80xf32, #tpu.memory_space<smem>>
    %1624 = vector.broadcast %1623 : f32 to vector<2x144xf32>
    %1625 = arith.addf %1622, %1624 : vector<2x144xf32>
    %c23_667 = arith.constant 23 : index
    %1626 = memref.load %arg4[%c23_667] : memref<80xf32, #tpu.memory_space<smem>>
    %1627 = vector.broadcast %1626 : f32 to vector<2x144xf32>
    %1628 = arith.mulf %1546, %1627 : vector<2x144xf32>
    %1629 = arith.addf %1625, %1628 : vector<2x144xf32>
    %c27_668 = arith.constant 27 : index
    %1630 = memref.load %arg4[%c27_668] : memref<80xf32, #tpu.memory_space<smem>>
    %1631 = vector.broadcast %1630 : f32 to vector<2x144xf32>
    %1632 = arith.mulf %1551, %1631 : vector<2x144xf32>
    %1633 = arith.addf %1629, %1632 : vector<2x144xf32>
    %c31_669 = arith.constant 31 : index
    %1634 = memref.load %arg4[%c31_669] : memref<80xf32, #tpu.memory_space<smem>>
    %1635 = vector.broadcast %1634 : f32 to vector<2x144xf32>
    %1636 = arith.mulf %1556, %1635 : vector<2x144xf32>
    %1637 = arith.addf %1633, %1636 : vector<2x144xf32>
    %c35_670 = arith.constant 35 : index
    %1638 = memref.load %arg4[%c35_670] : memref<80xf32, #tpu.memory_space<smem>>
    %1639 = vector.broadcast %1638 : f32 to vector<2x144xf32>
    %1640 = arith.mulf %1561, %1639 : vector<2x144xf32>
    %1641 = arith.addf %1637, %1640 : vector<2x144xf32>
    %cst_671 = arith.constant 0.000000e+00 : f32
    %1642 = vector.broadcast %cst_671 : f32 to vector<2x144xf32>
    %c56_672 = arith.constant 56 : index
    %1643 = memref.load %arg4[%c56_672] : memref<80xf32, #tpu.memory_space<smem>>
    %1644 = vector.broadcast %1643 : f32 to vector<2x144xf32>
    %1645 = arith.addf %1642, %1644 : vector<2x144xf32>
    %c40_673 = arith.constant 40 : index
    %1646 = memref.load %arg4[%c40_673] : memref<80xf32, #tpu.memory_space<smem>>
    %1647 = vector.broadcast %1646 : f32 to vector<2x144xf32>
    %1648 = arith.mulf %1455, %1647 : vector<2x144xf32>
    %1649 = arith.addf %1645, %1648 : vector<2x144xf32>
    %c44_674 = arith.constant 44 : index
    %1650 = memref.load %arg4[%c44_674] : memref<80xf32, #tpu.memory_space<smem>>
    %1651 = vector.broadcast %1650 : f32 to vector<2x144xf32>
    %1652 = arith.mulf %1457, %1651 : vector<2x144xf32>
    %1653 = arith.addf %1649, %1652 : vector<2x144xf32>
    %c48_675 = arith.constant 48 : index
    %1654 = memref.load %arg4[%c48_675] : memref<80xf32, #tpu.memory_space<smem>>
    %1655 = vector.broadcast %1654 : f32 to vector<2x144xf32>
    %1656 = arith.mulf %1459, %1655 : vector<2x144xf32>
    %1657 = arith.addf %1653, %1656 : vector<2x144xf32>
    %c52_676 = arith.constant 52 : index
    %1658 = memref.load %arg4[%c52_676] : memref<80xf32, #tpu.memory_space<smem>>
    %1659 = vector.broadcast %1658 : f32 to vector<2x144xf32>
    %1660 = arith.mulf %1461, %1659 : vector<2x144xf32>
    %1661 = arith.addf %1657, %1660 : vector<2x144xf32>
    %cst_677 = arith.constant 0.000000e+00 : f32
    %1662 = vector.broadcast %cst_677 : f32 to vector<2x144xf32>
    %c57_678 = arith.constant 57 : index
    %1663 = memref.load %arg4[%c57_678] : memref<80xf32, #tpu.memory_space<smem>>
    %1664 = vector.broadcast %1663 : f32 to vector<2x144xf32>
    %1665 = arith.addf %1662, %1664 : vector<2x144xf32>
    %c41_679 = arith.constant 41 : index
    %1666 = memref.load %arg4[%c41_679] : memref<80xf32, #tpu.memory_space<smem>>
    %1667 = vector.broadcast %1666 : f32 to vector<2x144xf32>
    %1668 = arith.mulf %1455, %1667 : vector<2x144xf32>
    %1669 = arith.addf %1665, %1668 : vector<2x144xf32>
    %c45_680 = arith.constant 45 : index
    %1670 = memref.load %arg4[%c45_680] : memref<80xf32, #tpu.memory_space<smem>>
    %1671 = vector.broadcast %1670 : f32 to vector<2x144xf32>
    %1672 = arith.mulf %1457, %1671 : vector<2x144xf32>
    %1673 = arith.addf %1669, %1672 : vector<2x144xf32>
    %c49_681 = arith.constant 49 : index
    %1674 = memref.load %arg4[%c49_681] : memref<80xf32, #tpu.memory_space<smem>>
    %1675 = vector.broadcast %1674 : f32 to vector<2x144xf32>
    %1676 = arith.mulf %1459, %1675 : vector<2x144xf32>
    %1677 = arith.addf %1673, %1676 : vector<2x144xf32>
    %c53_682 = arith.constant 53 : index
    %1678 = memref.load %arg4[%c53_682] : memref<80xf32, #tpu.memory_space<smem>>
    %1679 = vector.broadcast %1678 : f32 to vector<2x144xf32>
    %1680 = arith.mulf %1461, %1679 : vector<2x144xf32>
    %1681 = arith.addf %1677, %1680 : vector<2x144xf32>
    %cst_683 = arith.constant 0.000000e+00 : f32
    %1682 = vector.broadcast %cst_683 : f32 to vector<2x144xf32>
    %c58_684 = arith.constant 58 : index
    %1683 = memref.load %arg4[%c58_684] : memref<80xf32, #tpu.memory_space<smem>>
    %1684 = vector.broadcast %1683 : f32 to vector<2x144xf32>
    %1685 = arith.addf %1682, %1684 : vector<2x144xf32>
    %c42_685 = arith.constant 42 : index
    %1686 = memref.load %arg4[%c42_685] : memref<80xf32, #tpu.memory_space<smem>>
    %1687 = vector.broadcast %1686 : f32 to vector<2x144xf32>
    %1688 = arith.mulf %1455, %1687 : vector<2x144xf32>
    %1689 = arith.addf %1685, %1688 : vector<2x144xf32>
    %c46_686 = arith.constant 46 : index
    %1690 = memref.load %arg4[%c46_686] : memref<80xf32, #tpu.memory_space<smem>>
    %1691 = vector.broadcast %1690 : f32 to vector<2x144xf32>
    %1692 = arith.mulf %1457, %1691 : vector<2x144xf32>
    %1693 = arith.addf %1689, %1692 : vector<2x144xf32>
    %c50_687 = arith.constant 50 : index
    %1694 = memref.load %arg4[%c50_687] : memref<80xf32, #tpu.memory_space<smem>>
    %1695 = vector.broadcast %1694 : f32 to vector<2x144xf32>
    %1696 = arith.mulf %1459, %1695 : vector<2x144xf32>
    %1697 = arith.addf %1693, %1696 : vector<2x144xf32>
    %c54_688 = arith.constant 54 : index
    %1698 = memref.load %arg4[%c54_688] : memref<80xf32, #tpu.memory_space<smem>>
    %1699 = vector.broadcast %1698 : f32 to vector<2x144xf32>
    %1700 = arith.mulf %1461, %1699 : vector<2x144xf32>
    %1701 = arith.addf %1697, %1700 : vector<2x144xf32>
    %cst_689 = arith.constant 0.000000e+00 : f32
    %1702 = vector.broadcast %cst_689 : f32 to vector<2x144xf32>
    %c59_690 = arith.constant 59 : index
    %1703 = memref.load %arg4[%c59_690] : memref<80xf32, #tpu.memory_space<smem>>
    %1704 = vector.broadcast %1703 : f32 to vector<2x144xf32>
    %1705 = arith.addf %1702, %1704 : vector<2x144xf32>
    %c43_691 = arith.constant 43 : index
    %1706 = memref.load %arg4[%c43_691] : memref<80xf32, #tpu.memory_space<smem>>
    %1707 = vector.broadcast %1706 : f32 to vector<2x144xf32>
    %1708 = arith.mulf %1455, %1707 : vector<2x144xf32>
    %1709 = arith.addf %1705, %1708 : vector<2x144xf32>
    %c47_692 = arith.constant 47 : index
    %1710 = memref.load %arg4[%c47_692] : memref<80xf32, #tpu.memory_space<smem>>
    %1711 = vector.broadcast %1710 : f32 to vector<2x144xf32>
    %1712 = arith.mulf %1457, %1711 : vector<2x144xf32>
    %1713 = arith.addf %1709, %1712 : vector<2x144xf32>
    %c51_693 = arith.constant 51 : index
    %1714 = memref.load %arg4[%c51_693] : memref<80xf32, #tpu.memory_space<smem>>
    %1715 = vector.broadcast %1714 : f32 to vector<2x144xf32>
    %1716 = arith.mulf %1459, %1715 : vector<2x144xf32>
    %1717 = arith.addf %1713, %1716 : vector<2x144xf32>
    %c55_694 = arith.constant 55 : index
    %1718 = memref.load %arg4[%c55_694] : memref<80xf32, #tpu.memory_space<smem>>
    %1719 = vector.broadcast %1718 : f32 to vector<2x144xf32>
    %1720 = arith.mulf %1461, %1719 : vector<2x144xf32>
    %1721 = arith.addf %1717, %1720 : vector<2x144xf32>
    %cst_695 = arith.constant 0.000000e+00 : f32
    %1722 = vector.broadcast %cst_695 : f32 to vector<2x144xf32>
    %1723 = arith.cmpf ogt, %1661, %1722 : vector<2x144xf32>
    %cst_696 = arith.constant 1.000000e-01 : f32
    %1724 = vector.broadcast %cst_696 : f32 to vector<2x144xf32>
    %1725 = arith.mulf %1724, %1661 : vector<2x144xf32>
    %1726 = arith.select %1723, %1661, %1725 : vector<2x144xi1>, vector<2x144xf32>
    %cst_697 = arith.constant 0.000000e+00 : f32
    %1727 = vector.broadcast %cst_697 : f32 to vector<2x144xf32>
    %1728 = arith.cmpf ogt, %1681, %1727 : vector<2x144xf32>
    %cst_698 = arith.constant 1.000000e-01 : f32
    %1729 = vector.broadcast %cst_698 : f32 to vector<2x144xf32>
    %1730 = arith.mulf %1729, %1681 : vector<2x144xf32>
    %1731 = arith.select %1728, %1681, %1730 : vector<2x144xi1>, vector<2x144xf32>
    %cst_699 = arith.constant 0.000000e+00 : f32
    %1732 = vector.broadcast %cst_699 : f32 to vector<2x144xf32>
    %1733 = arith.cmpf ogt, %1701, %1732 : vector<2x144xf32>
    %cst_700 = arith.constant 1.000000e-01 : f32
    %1734 = vector.broadcast %cst_700 : f32 to vector<2x144xf32>
    %1735 = arith.mulf %1734, %1701 : vector<2x144xf32>
    %1736 = arith.select %1733, %1701, %1735 : vector<2x144xi1>, vector<2x144xf32>
    %cst_701 = arith.constant 0.000000e+00 : f32
    %1737 = vector.broadcast %cst_701 : f32 to vector<2x144xf32>
    %1738 = arith.cmpf ogt, %1721, %1737 : vector<2x144xf32>
    %cst_702 = arith.constant 1.000000e-01 : f32
    %1739 = vector.broadcast %cst_702 : f32 to vector<2x144xf32>
    %1740 = arith.mulf %1739, %1721 : vector<2x144xf32>
    %1741 = arith.select %1738, %1721, %1740 : vector<2x144xi1>, vector<2x144xf32>
    %cst_703 = arith.constant 0.000000e+00 : f32
    %1742 = vector.broadcast %cst_703 : f32 to vector<2x144xf32>
    %c76_704 = arith.constant 76 : index
    %1743 = memref.load %arg4[%c76_704] : memref<80xf32, #tpu.memory_space<smem>>
    %1744 = vector.broadcast %1743 : f32 to vector<2x144xf32>
    %1745 = arith.addf %1742, %1744 : vector<2x144xf32>
    %c60_705 = arith.constant 60 : index
    %1746 = memref.load %arg4[%c60_705] : memref<80xf32, #tpu.memory_space<smem>>
    %1747 = vector.broadcast %1746 : f32 to vector<2x144xf32>
    %1748 = arith.mulf %1726, %1747 : vector<2x144xf32>
    %1749 = arith.addf %1745, %1748 : vector<2x144xf32>
    %c64_706 = arith.constant 64 : index
    %1750 = memref.load %arg4[%c64_706] : memref<80xf32, #tpu.memory_space<smem>>
    %1751 = vector.broadcast %1750 : f32 to vector<2x144xf32>
    %1752 = arith.mulf %1731, %1751 : vector<2x144xf32>
    %1753 = arith.addf %1749, %1752 : vector<2x144xf32>
    %c68_707 = arith.constant 68 : index
    %1754 = memref.load %arg4[%c68_707] : memref<80xf32, #tpu.memory_space<smem>>
    %1755 = vector.broadcast %1754 : f32 to vector<2x144xf32>
    %1756 = arith.mulf %1736, %1755 : vector<2x144xf32>
    %1757 = arith.addf %1753, %1756 : vector<2x144xf32>
    %c72_708 = arith.constant 72 : index
    %1758 = memref.load %arg4[%c72_708] : memref<80xf32, #tpu.memory_space<smem>>
    %1759 = vector.broadcast %1758 : f32 to vector<2x144xf32>
    %1760 = arith.mulf %1741, %1759 : vector<2x144xf32>
    %1761 = arith.addf %1757, %1760 : vector<2x144xf32>
    %cst_709 = arith.constant 0.000000e+00 : f32
    %1762 = vector.broadcast %cst_709 : f32 to vector<2x144xf32>
    %c77_710 = arith.constant 77 : index
    %1763 = memref.load %arg4[%c77_710] : memref<80xf32, #tpu.memory_space<smem>>
    %1764 = vector.broadcast %1763 : f32 to vector<2x144xf32>
    %1765 = arith.addf %1762, %1764 : vector<2x144xf32>
    %c61_711 = arith.constant 61 : index
    %1766 = memref.load %arg4[%c61_711] : memref<80xf32, #tpu.memory_space<smem>>
    %1767 = vector.broadcast %1766 : f32 to vector<2x144xf32>
    %1768 = arith.mulf %1726, %1767 : vector<2x144xf32>
    %1769 = arith.addf %1765, %1768 : vector<2x144xf32>
    %c65_712 = arith.constant 65 : index
    %1770 = memref.load %arg4[%c65_712] : memref<80xf32, #tpu.memory_space<smem>>
    %1771 = vector.broadcast %1770 : f32 to vector<2x144xf32>
    %1772 = arith.mulf %1731, %1771 : vector<2x144xf32>
    %1773 = arith.addf %1769, %1772 : vector<2x144xf32>
    %c69_713 = arith.constant 69 : index
    %1774 = memref.load %arg4[%c69_713] : memref<80xf32, #tpu.memory_space<smem>>
    %1775 = vector.broadcast %1774 : f32 to vector<2x144xf32>
    %1776 = arith.mulf %1736, %1775 : vector<2x144xf32>
    %1777 = arith.addf %1773, %1776 : vector<2x144xf32>
    %c73_714 = arith.constant 73 : index
    %1778 = memref.load %arg4[%c73_714] : memref<80xf32, #tpu.memory_space<smem>>
    %1779 = vector.broadcast %1778 : f32 to vector<2x144xf32>
    %1780 = arith.mulf %1741, %1779 : vector<2x144xf32>
    %1781 = arith.addf %1777, %1780 : vector<2x144xf32>
    %cst_715 = arith.constant 0.000000e+00 : f32
    %1782 = vector.broadcast %cst_715 : f32 to vector<2x144xf32>
    %c78_716 = arith.constant 78 : index
    %1783 = memref.load %arg4[%c78_716] : memref<80xf32, #tpu.memory_space<smem>>
    %1784 = vector.broadcast %1783 : f32 to vector<2x144xf32>
    %1785 = arith.addf %1782, %1784 : vector<2x144xf32>
    %c62_717 = arith.constant 62 : index
    %1786 = memref.load %arg4[%c62_717] : memref<80xf32, #tpu.memory_space<smem>>
    %1787 = vector.broadcast %1786 : f32 to vector<2x144xf32>
    %1788 = arith.mulf %1726, %1787 : vector<2x144xf32>
    %1789 = arith.addf %1785, %1788 : vector<2x144xf32>
    %c66_718 = arith.constant 66 : index
    %1790 = memref.load %arg4[%c66_718] : memref<80xf32, #tpu.memory_space<smem>>
    %1791 = vector.broadcast %1790 : f32 to vector<2x144xf32>
    %1792 = arith.mulf %1731, %1791 : vector<2x144xf32>
    %1793 = arith.addf %1789, %1792 : vector<2x144xf32>
    %c70_719 = arith.constant 70 : index
    %1794 = memref.load %arg4[%c70_719] : memref<80xf32, #tpu.memory_space<smem>>
    %1795 = vector.broadcast %1794 : f32 to vector<2x144xf32>
    %1796 = arith.mulf %1736, %1795 : vector<2x144xf32>
    %1797 = arith.addf %1793, %1796 : vector<2x144xf32>
    %c74_720 = arith.constant 74 : index
    %1798 = memref.load %arg4[%c74_720] : memref<80xf32, #tpu.memory_space<smem>>
    %1799 = vector.broadcast %1798 : f32 to vector<2x144xf32>
    %1800 = arith.mulf %1741, %1799 : vector<2x144xf32>
    %1801 = arith.addf %1797, %1800 : vector<2x144xf32>
    %cst_721 = arith.constant 0.000000e+00 : f32
    %1802 = vector.broadcast %cst_721 : f32 to vector<2x144xf32>
    %c79_722 = arith.constant 79 : index
    %1803 = memref.load %arg4[%c79_722] : memref<80xf32, #tpu.memory_space<smem>>
    %1804 = vector.broadcast %1803 : f32 to vector<2x144xf32>
    %1805 = arith.addf %1802, %1804 : vector<2x144xf32>
    %c63_723 = arith.constant 63 : index
    %1806 = memref.load %arg4[%c63_723] : memref<80xf32, #tpu.memory_space<smem>>
    %1807 = vector.broadcast %1806 : f32 to vector<2x144xf32>
    %1808 = arith.mulf %1726, %1807 : vector<2x144xf32>
    %1809 = arith.addf %1805, %1808 : vector<2x144xf32>
    %c67_724 = arith.constant 67 : index
    %1810 = memref.load %arg4[%c67_724] : memref<80xf32, #tpu.memory_space<smem>>
    %1811 = vector.broadcast %1810 : f32 to vector<2x144xf32>
    %1812 = arith.mulf %1731, %1811 : vector<2x144xf32>
    %1813 = arith.addf %1809, %1812 : vector<2x144xf32>
    %c71_725 = arith.constant 71 : index
    %1814 = memref.load %arg4[%c71_725] : memref<80xf32, #tpu.memory_space<smem>>
    %1815 = vector.broadcast %1814 : f32 to vector<2x144xf32>
    %1816 = arith.mulf %1736, %1815 : vector<2x144xf32>
    %1817 = arith.addf %1813, %1816 : vector<2x144xf32>
    %c75_726 = arith.constant 75 : index
    %1818 = memref.load %arg4[%c75_726] : memref<80xf32, #tpu.memory_space<smem>>
    %1819 = vector.broadcast %1818 : f32 to vector<2x144xf32>
    %1820 = arith.mulf %1741, %1819 : vector<2x144xf32>
    %1821 = arith.addf %1817, %1820 : vector<2x144xf32>
    %1822 = math.cos %1761 : vector<2x144xf32>
    %1823 = arith.mulf %1581, %1822 : vector<2x144xf32>
    %c0_727 = arith.constant 0 : index
    %c0_728 = arith.constant 0 : index
    %c0_729 = arith.constant 0 : index
    %1824 = vector.load %arg6[%c0_727, %c0_728, %c0_729] : memref<4x2x144xf32, #tpu.memory_space<vmem>>, vector<1x2x144xf32>
    %1825 = vector.shape_cast %1824 : vector<1x2x144xf32> to vector<2x144xf32>
    %1826 = vector.shape_cast %1823 : vector<2x144xf32> to vector<1x2x144xf32>
    tpu.vector_store %arg6[%c0_727, %c0_728, %c0_729], %1826 {strides = array<i32>} : memref<4x2x144xf32, #tpu.memory_space<vmem>>, vector<1x2x144xf32>,
    %1827 = math.sin %1761 : vector<2x144xf32>
    %1828 = arith.mulf %1581, %1827 : vector<2x144xf32>
    %c0_730 = arith.constant 0 : index
    %c0_731 = arith.constant 0 : index
    %c0_732 = arith.constant 0 : index
    %1829 = vector.load %arg7[%c0_730, %c0_731, %c0_732] : memref<4x2x144xf32, #tpu.memory_space<vmem>>, vector<1x2x144xf32>
    %1830 = vector.shape_cast %1829 : vector<1x2x144xf32> to vector<2x144xf32>
    %1831 = vector.shape_cast %1828 : vector<2x144xf32> to vector<1x2x144xf32>
    tpu.vector_store %arg7[%c0_730, %c0_731, %c0_732], %1831 {strides = array<i32>} : memref<4x2x144xf32, #tpu.memory_space<vmem>>, vector<1x2x144xf32>,
    %1832 = math.cos %1781 : vector<2x144xf32>
    %1833 = arith.mulf %1601, %1832 : vector<2x144xf32>
    %c1_733 = arith.constant 1 : index
    %c0_734 = arith.constant 0 : index
    %c0_735 = arith.constant 0 : index
    %1834 = vector.load %arg6[%c1_733, %c0_734, %c0_735] : memref<4x2x144xf32, #tpu.memory_space<vmem>>, vector<1x2x144xf32>
    %1835 = vector.shape_cast %1834 : vector<1x2x144xf32> to vector<2x144xf32>
    %1836 = vector.shape_cast %1833 : vector<2x144xf32> to vector<1x2x144xf32>
    tpu.vector_store %arg6[%c1_733, %c0_734, %c0_735], %1836 {strides = array<i32>} : memref<4x2x144xf32, #tpu.memory_space<vmem>>, vector<1x2x144xf32>,
    %1837 = math.sin %1781 : vector<2x144xf32>
    %1838 = arith.mulf %1601, %1837 : vector<2x144xf32>
    %c1_736 = arith.constant 1 : index
    %c0_737 = arith.constant 0 : index
    %c0_738 = arith.constant 0 : index
    %1839 = vector.load %arg7[%c1_736, %c0_737, %c0_738] : memref<4x2x144xf32, #tpu.memory_space<vmem>>, vector<1x2x144xf32>
    %1840 = vector.shape_cast %1839 : vector<1x2x144xf32> to vector<2x144xf32>
    %1841 = vector.shape_cast %1838 : vector<2x144xf32> to vector<1x2x144xf32>
    tpu.vector_store %arg7[%c1_736, %c0_737, %c0_738], %1841 {strides = array<i32>} : memref<4x2x144xf32, #tpu.memory_space<vmem>>, vector<1x2x144xf32>,
    %1842 = math.cos %1801 : vector<2x144xf32>
    %1843 = arith.mulf %1621, %1842 : vector<2x144xf32>
    %c2_739 = arith.constant 2 : index
    %c0_740 = arith.constant 0 : index
    %c0_741 = arith.constant 0 : index
    %1844 = vector.load %arg6[%c2_739, %c0_740, %c0_741] : memref<4x2x144xf32, #tpu.memory_space<vmem>>, vector<1x2x144xf32>
    %1845 = vector.shape_cast %1844 : vector<1x2x144xf32> to vector<2x144xf32>
    %1846 = vector.shape_cast %1843 : vector<2x144xf32> to vector<1x2x144xf32>
    tpu.vector_store %arg6[%c2_739, %c0_740, %c0_741], %1846 {strides = array<i32>} : memref<4x2x144xf32, #tpu.memory_space<vmem>>, vector<1x2x144xf32>,
    %1847 = math.sin %1801 : vector<2x144xf32>
    %1848 = arith.mulf %1621, %1847 : vector<2x144xf32>
    %c2_742 = arith.constant 2 : index
    %c0_743 = arith.constant 0 : index
    %c0_744 = arith.constant 0 : index
    %1849 = vector.load %arg7[%c2_742, %c0_743, %c0_744] : memref<4x2x144xf32, #tpu.memory_space<vmem>>, vector<1x2x144xf32>
    %1850 = vector.shape_cast %1849 : vector<1x2x144xf32> to vector<2x144xf32>
    %1851 = vector.shape_cast %1848 : vector<2x144xf32> to vector<1x2x144xf32>
    tpu.vector_store %arg7[%c2_742, %c0_743, %c0_744], %1851 {strides = array<i32>} : memref<4x2x144xf32, #tpu.memory_space<vmem>>, vector<1x2x144xf32>,
    %1852 = math.cos %1821 : vector<2x144xf32>
    %1853 = arith.mulf %1641, %1852 : vector<2x144xf32>
    %c3_745 = arith.constant 3 : index
    %c0_746 = arith.constant 0 : index
    %c0_747 = arith.constant 0 : index
    %1854 = vector.load %arg6[%c3_745, %c0_746, %c0_747] : memref<4x2x144xf32, #tpu.memory_space<vmem>>, vector<1x2x144xf32>
    %1855 = vector.shape_cast %1854 : vector<1x2x144xf32> to vector<2x144xf32>
    %1856 = vector.shape_cast %1853 : vector<2x144xf32> to vector<1x2x144xf32>
    tpu.vector_store %arg6[%c3_745, %c0_746, %c0_747], %1856 {strides = array<i32>} : memref<4x2x144xf32, #tpu.memory_space<vmem>>, vector<1x2x144xf32>,
    %1857 = math.sin %1821 : vector<2x144xf32>
    %1858 = arith.mulf %1641, %1857 : vector<2x144xf32>
    %c3_748 = arith.constant 3 : index
    %c0_749 = arith.constant 0 : index
    %c0_750 = arith.constant 0 : index
    %1859 = vector.load %arg7[%c3_748, %c0_749, %c0_750] : memref<4x2x144xf32, #tpu.memory_space<vmem>>, vector<1x2x144xf32>
    %1860 = vector.shape_cast %1859 : vector<1x2x144xf32> to vector<2x144xf32>
    %1861 = vector.shape_cast %1858 : vector<2x144xf32> to vector<1x2x144xf32>
    tpu.vector_store %arg7[%c3_748, %c0_749, %c0_750], %1861 {strides = array<i32>} : memref<4x2x144xf32, #tpu.memory_space<vmem>>, vector<1x2x144xf32>,
    return
  }
}

module attributes {stable_mosaic.version = 11 : i64} {
  func.func @kernel(%arg0: memref<4x2x256xf32, #tpu.memory_space<vmem>>, %arg1: memref<4x2x256xf32, #tpu.memory_space<vmem>>, %arg2: memref<4x2x256xf32, #tpu.memory_space<vmem>>, %arg3: memref<36xf32, #tpu.memory_space<smem>>, %arg4: memref<4x2x256xf32, #tpu.memory_space<vmem>>) attributes {dimension_semantics = [], scalar_prefetch = 0 : i64, scratch_operands = 0 : i64, tpu.core_type = #tpu.core_type<tc>} {
    %c0 = arith.constant 0 : index
    %c0_0 = arith.constant 0 : index
    %c0_1 = arith.constant 0 : index
    %0 = vector.load %arg0[%c0, %c0_0, %c0_1] : memref<4x2x256xf32, #tpu.memory_space<vmem>>, vector<1x2x256xf32>
    %1 = vector.shape_cast %0 : vector<1x2x256xf32> to vector<2x256xf32>
    %c1 = arith.constant 1 : index
    %c0_2 = arith.constant 0 : index
    %c0_3 = arith.constant 0 : index
    %2 = vector.load %arg0[%c1, %c0_2, %c0_3] : memref<4x2x256xf32, #tpu.memory_space<vmem>>, vector<1x2x256xf32>
    %3 = vector.shape_cast %2 : vector<1x2x256xf32> to vector<2x256xf32>
    %c2 = arith.constant 2 : index
    %c0_4 = arith.constant 0 : index
    %c0_5 = arith.constant 0 : index
    %4 = vector.load %arg0[%c2, %c0_4, %c0_5] : memref<4x2x256xf32, #tpu.memory_space<vmem>>, vector<1x2x256xf32>
    %5 = vector.shape_cast %4 : vector<1x2x256xf32> to vector<2x256xf32>
    %c3 = arith.constant 3 : index
    %c0_6 = arith.constant 0 : index
    %c0_7 = arith.constant 0 : index
    %6 = vector.load %arg0[%c3, %c0_6, %c0_7] : memref<4x2x256xf32, #tpu.memory_space<vmem>>, vector<1x2x256xf32>
    %7 = vector.shape_cast %6 : vector<1x2x256xf32> to vector<2x256xf32>
    %c0_8 = arith.constant 0 : index
    %c0_9 = arith.constant 0 : index
    %c0_10 = arith.constant 0 : index
    %8 = vector.load %arg1[%c0_8, %c0_9, %c0_10] : memref<4x2x256xf32, #tpu.memory_space<vmem>>, vector<1x2x256xf32>
    %9 = vector.shape_cast %8 : vector<1x2x256xf32> to vector<2x256xf32>
    %c1_11 = arith.constant 1 : index
    %c0_12 = arith.constant 0 : index
    %c0_13 = arith.constant 0 : index
    %10 = vector.load %arg1[%c1_11, %c0_12, %c0_13] : memref<4x2x256xf32, #tpu.memory_space<vmem>>, vector<1x2x256xf32>
    %11 = vector.shape_cast %10 : vector<1x2x256xf32> to vector<2x256xf32>
    %c2_14 = arith.constant 2 : index
    %c0_15 = arith.constant 0 : index
    %c0_16 = arith.constant 0 : index
    %12 = vector.load %arg1[%c2_14, %c0_15, %c0_16] : memref<4x2x256xf32, #tpu.memory_space<vmem>>, vector<1x2x256xf32>
    %13 = vector.shape_cast %12 : vector<1x2x256xf32> to vector<2x256xf32>
    %c3_17 = arith.constant 3 : index
    %c0_18 = arith.constant 0 : index
    %c0_19 = arith.constant 0 : index
    %14 = vector.load %arg1[%c3_17, %c0_18, %c0_19] : memref<4x2x256xf32, #tpu.memory_space<vmem>>, vector<1x2x256xf32>
    %15 = vector.shape_cast %14 : vector<1x2x256xf32> to vector<2x256xf32>
    %c0_20 = arith.constant 0 : index
    %c0_21 = arith.constant 0 : index
    %c0_22 = arith.constant 0 : index
    %16 = vector.load %arg2[%c0_20, %c0_21, %c0_22] : memref<4x2x256xf32, #tpu.memory_space<vmem>>, vector<1x2x256xf32>
    %17 = vector.shape_cast %16 : vector<1x2x256xf32> to vector<2x256xf32>
    %c32 = arith.constant 32 : index
    %18 = memref.load %arg3[%c32] : memref<36xf32, #tpu.memory_space<smem>>
    %19 = vector.broadcast %18 : f32 to vector<2x256xf32>
    %20 = arith.addf %17, %19 : vector<2x256xf32>
    %c0_23 = arith.constant 0 : index
    %21 = memref.load %arg3[%c0_23] : memref<36xf32, #tpu.memory_space<smem>>
    %22 = vector.broadcast %21 : f32 to vector<2x256xf32>
    %23 = arith.mulf %1, %22 : vector<2x256xf32>
    %24 = arith.addf %20, %23 : vector<2x256xf32>
    %c16 = arith.constant 16 : index
    %25 = memref.load %arg3[%c16] : memref<36xf32, #tpu.memory_space<smem>>
    %26 = vector.broadcast %25 : f32 to vector<2x256xf32>
    %27 = arith.mulf %9, %26 : vector<2x256xf32>
    %28 = arith.addf %24, %27 : vector<2x256xf32>
    %c4 = arith.constant 4 : index
    %29 = memref.load %arg3[%c4] : memref<36xf32, #tpu.memory_space<smem>>
    %30 = vector.broadcast %29 : f32 to vector<2x256xf32>
    %31 = arith.mulf %3, %30 : vector<2x256xf32>
    %32 = arith.addf %28, %31 : vector<2x256xf32>
    %c20 = arith.constant 20 : index
    %33 = memref.load %arg3[%c20] : memref<36xf32, #tpu.memory_space<smem>>
    %34 = vector.broadcast %33 : f32 to vector<2x256xf32>
    %35 = arith.mulf %11, %34 : vector<2x256xf32>
    %36 = arith.addf %32, %35 : vector<2x256xf32>
    %c8 = arith.constant 8 : index
    %37 = memref.load %arg3[%c8] : memref<36xf32, #tpu.memory_space<smem>>
    %38 = vector.broadcast %37 : f32 to vector<2x256xf32>
    %39 = arith.mulf %5, %38 : vector<2x256xf32>
    %40 = arith.addf %36, %39 : vector<2x256xf32>
    %c24 = arith.constant 24 : index
    %41 = memref.load %arg3[%c24] : memref<36xf32, #tpu.memory_space<smem>>
    %42 = vector.broadcast %41 : f32 to vector<2x256xf32>
    %43 = arith.mulf %13, %42 : vector<2x256xf32>
    %44 = arith.addf %40, %43 : vector<2x256xf32>
    %c12 = arith.constant 12 : index
    %45 = memref.load %arg3[%c12] : memref<36xf32, #tpu.memory_space<smem>>
    %46 = vector.broadcast %45 : f32 to vector<2x256xf32>
    %47 = arith.mulf %7, %46 : vector<2x256xf32>
    %48 = arith.addf %44, %47 : vector<2x256xf32>
    %c28 = arith.constant 28 : index
    %49 = memref.load %arg3[%c28] : memref<36xf32, #tpu.memory_space<smem>>
    %50 = vector.broadcast %49 : f32 to vector<2x256xf32>
    %51 = arith.mulf %15, %50 : vector<2x256xf32>
    %52 = arith.addf %48, %51 : vector<2x256xf32>
    %c0_24 = arith.constant 0 : index
    %c0_25 = arith.constant 0 : index
    %c0_26 = arith.constant 0 : index
    %53 = vector.load %arg4[%c0_24, %c0_25, %c0_26] : memref<4x2x256xf32, #tpu.memory_space<vmem>>, vector<1x2x256xf32>
    %54 = vector.shape_cast %53 : vector<1x2x256xf32> to vector<2x256xf32>
    %55 = vector.shape_cast %52 : vector<2x256xf32> to vector<1x2x256xf32>
    tpu.vector_store %arg4[%c0_24, %c0_25, %c0_26], %55 {strides = array<i32>} : memref<4x2x256xf32, #tpu.memory_space<vmem>>, vector<1x2x256xf32>,
    %c1_27 = arith.constant 1 : index
    %c0_28 = arith.constant 0 : index
    %c0_29 = arith.constant 0 : index
    %56 = vector.load %arg2[%c1_27, %c0_28, %c0_29] : memref<4x2x256xf32, #tpu.memory_space<vmem>>, vector<1x2x256xf32>
    %57 = vector.shape_cast %56 : vector<1x2x256xf32> to vector<2x256xf32>
    %c33 = arith.constant 33 : index
    %58 = memref.load %arg3[%c33] : memref<36xf32, #tpu.memory_space<smem>>
    %59 = vector.broadcast %58 : f32 to vector<2x256xf32>
    %60 = arith.addf %57, %59 : vector<2x256xf32>
    %c1_30 = arith.constant 1 : index
    %61 = memref.load %arg3[%c1_30] : memref<36xf32, #tpu.memory_space<smem>>
    %62 = vector.broadcast %61 : f32 to vector<2x256xf32>
    %63 = arith.mulf %1, %62 : vector<2x256xf32>
    %64 = arith.addf %60, %63 : vector<2x256xf32>
    %c17 = arith.constant 17 : index
    %65 = memref.load %arg3[%c17] : memref<36xf32, #tpu.memory_space<smem>>
    %66 = vector.broadcast %65 : f32 to vector<2x256xf32>
    %67 = arith.mulf %9, %66 : vector<2x256xf32>
    %68 = arith.addf %64, %67 : vector<2x256xf32>
    %c5 = arith.constant 5 : index
    %69 = memref.load %arg3[%c5] : memref<36xf32, #tpu.memory_space<smem>>
    %70 = vector.broadcast %69 : f32 to vector<2x256xf32>
    %71 = arith.mulf %3, %70 : vector<2x256xf32>
    %72 = arith.addf %68, %71 : vector<2x256xf32>
    %c21 = arith.constant 21 : index
    %73 = memref.load %arg3[%c21] : memref<36xf32, #tpu.memory_space<smem>>
    %74 = vector.broadcast %73 : f32 to vector<2x256xf32>
    %75 = arith.mulf %11, %74 : vector<2x256xf32>
    %76 = arith.addf %72, %75 : vector<2x256xf32>
    %c9 = arith.constant 9 : index
    %77 = memref.load %arg3[%c9] : memref<36xf32, #tpu.memory_space<smem>>
    %78 = vector.broadcast %77 : f32 to vector<2x256xf32>
    %79 = arith.mulf %5, %78 : vector<2x256xf32>
    %80 = arith.addf %76, %79 : vector<2x256xf32>
    %c25 = arith.constant 25 : index
    %81 = memref.load %arg3[%c25] : memref<36xf32, #tpu.memory_space<smem>>
    %82 = vector.broadcast %81 : f32 to vector<2x256xf32>
    %83 = arith.mulf %13, %82 : vector<2x256xf32>
    %84 = arith.addf %80, %83 : vector<2x256xf32>
    %c13 = arith.constant 13 : index
    %85 = memref.load %arg3[%c13] : memref<36xf32, #tpu.memory_space<smem>>
    %86 = vector.broadcast %85 : f32 to vector<2x256xf32>
    %87 = arith.mulf %7, %86 : vector<2x256xf32>
    %88 = arith.addf %84, %87 : vector<2x256xf32>
    %c29 = arith.constant 29 : index
    %89 = memref.load %arg3[%c29] : memref<36xf32, #tpu.memory_space<smem>>
    %90 = vector.broadcast %89 : f32 to vector<2x256xf32>
    %91 = arith.mulf %15, %90 : vector<2x256xf32>
    %92 = arith.addf %88, %91 : vector<2x256xf32>
    %c1_31 = arith.constant 1 : index
    %c0_32 = arith.constant 0 : index
    %c0_33 = arith.constant 0 : index
    %93 = vector.load %arg4[%c1_31, %c0_32, %c0_33] : memref<4x2x256xf32, #tpu.memory_space<vmem>>, vector<1x2x256xf32>
    %94 = vector.shape_cast %93 : vector<1x2x256xf32> to vector<2x256xf32>
    %95 = vector.shape_cast %92 : vector<2x256xf32> to vector<1x2x256xf32>
    tpu.vector_store %arg4[%c1_31, %c0_32, %c0_33], %95 {strides = array<i32>} : memref<4x2x256xf32, #tpu.memory_space<vmem>>, vector<1x2x256xf32>,
    %c2_34 = arith.constant 2 : index
    %c0_35 = arith.constant 0 : index
    %c0_36 = arith.constant 0 : index
    %96 = vector.load %arg2[%c2_34, %c0_35, %c0_36] : memref<4x2x256xf32, #tpu.memory_space<vmem>>, vector<1x2x256xf32>
    %97 = vector.shape_cast %96 : vector<1x2x256xf32> to vector<2x256xf32>
    %c34 = arith.constant 34 : index
    %98 = memref.load %arg3[%c34] : memref<36xf32, #tpu.memory_space<smem>>
    %99 = vector.broadcast %98 : f32 to vector<2x256xf32>
    %100 = arith.addf %97, %99 : vector<2x256xf32>
    %c2_37 = arith.constant 2 : index
    %101 = memref.load %arg3[%c2_37] : memref<36xf32, #tpu.memory_space<smem>>
    %102 = vector.broadcast %101 : f32 to vector<2x256xf32>
    %103 = arith.mulf %1, %102 : vector<2x256xf32>
    %104 = arith.addf %100, %103 : vector<2x256xf32>
    %c18 = arith.constant 18 : index
    %105 = memref.load %arg3[%c18] : memref<36xf32, #tpu.memory_space<smem>>
    %106 = vector.broadcast %105 : f32 to vector<2x256xf32>
    %107 = arith.mulf %9, %106 : vector<2x256xf32>
    %108 = arith.addf %104, %107 : vector<2x256xf32>
    %c6 = arith.constant 6 : index
    %109 = memref.load %arg3[%c6] : memref<36xf32, #tpu.memory_space<smem>>
    %110 = vector.broadcast %109 : f32 to vector<2x256xf32>
    %111 = arith.mulf %3, %110 : vector<2x256xf32>
    %112 = arith.addf %108, %111 : vector<2x256xf32>
    %c22 = arith.constant 22 : index
    %113 = memref.load %arg3[%c22] : memref<36xf32, #tpu.memory_space<smem>>
    %114 = vector.broadcast %113 : f32 to vector<2x256xf32>
    %115 = arith.mulf %11, %114 : vector<2x256xf32>
    %116 = arith.addf %112, %115 : vector<2x256xf32>
    %c10 = arith.constant 10 : index
    %117 = memref.load %arg3[%c10] : memref<36xf32, #tpu.memory_space<smem>>
    %118 = vector.broadcast %117 : f32 to vector<2x256xf32>
    %119 = arith.mulf %5, %118 : vector<2x256xf32>
    %120 = arith.addf %116, %119 : vector<2x256xf32>
    %c26 = arith.constant 26 : index
    %121 = memref.load %arg3[%c26] : memref<36xf32, #tpu.memory_space<smem>>
    %122 = vector.broadcast %121 : f32 to vector<2x256xf32>
    %123 = arith.mulf %13, %122 : vector<2x256xf32>
    %124 = arith.addf %120, %123 : vector<2x256xf32>
    %c14 = arith.constant 14 : index
    %125 = memref.load %arg3[%c14] : memref<36xf32, #tpu.memory_space<smem>>
    %126 = vector.broadcast %125 : f32 to vector<2x256xf32>
    %127 = arith.mulf %7, %126 : vector<2x256xf32>
    %128 = arith.addf %124, %127 : vector<2x256xf32>
    %c30 = arith.constant 30 : index
    %129 = memref.load %arg3[%c30] : memref<36xf32, #tpu.memory_space<smem>>
    %130 = vector.broadcast %129 : f32 to vector<2x256xf32>
    %131 = arith.mulf %15, %130 : vector<2x256xf32>
    %132 = arith.addf %128, %131 : vector<2x256xf32>
    %c2_38 = arith.constant 2 : index
    %c0_39 = arith.constant 0 : index
    %c0_40 = arith.constant 0 : index
    %133 = vector.load %arg4[%c2_38, %c0_39, %c0_40] : memref<4x2x256xf32, #tpu.memory_space<vmem>>, vector<1x2x256xf32>
    %134 = vector.shape_cast %133 : vector<1x2x256xf32> to vector<2x256xf32>
    %135 = vector.shape_cast %132 : vector<2x256xf32> to vector<1x2x256xf32>
    tpu.vector_store %arg4[%c2_38, %c0_39, %c0_40], %135 {strides = array<i32>} : memref<4x2x256xf32, #tpu.memory_space<vmem>>, vector<1x2x256xf32>,
    %c3_41 = arith.constant 3 : index
    %c0_42 = arith.constant 0 : index
    %c0_43 = arith.constant 0 : index
    %136 = vector.load %arg2[%c3_41, %c0_42, %c0_43] : memref<4x2x256xf32, #tpu.memory_space<vmem>>, vector<1x2x256xf32>
    %137 = vector.shape_cast %136 : vector<1x2x256xf32> to vector<2x256xf32>
    %c35 = arith.constant 35 : index
    %138 = memref.load %arg3[%c35] : memref<36xf32, #tpu.memory_space<smem>>
    %139 = vector.broadcast %138 : f32 to vector<2x256xf32>
    %140 = arith.addf %137, %139 : vector<2x256xf32>
    %c3_44 = arith.constant 3 : index
    %141 = memref.load %arg3[%c3_44] : memref<36xf32, #tpu.memory_space<smem>>
    %142 = vector.broadcast %141 : f32 to vector<2x256xf32>
    %143 = arith.mulf %1, %142 : vector<2x256xf32>
    %144 = arith.addf %140, %143 : vector<2x256xf32>
    %c19 = arith.constant 19 : index
    %145 = memref.load %arg3[%c19] : memref<36xf32, #tpu.memory_space<smem>>
    %146 = vector.broadcast %145 : f32 to vector<2x256xf32>
    %147 = arith.mulf %9, %146 : vector<2x256xf32>
    %148 = arith.addf %144, %147 : vector<2x256xf32>
    %c7 = arith.constant 7 : index
    %149 = memref.load %arg3[%c7] : memref<36xf32, #tpu.memory_space<smem>>
    %150 = vector.broadcast %149 : f32 to vector<2x256xf32>
    %151 = arith.mulf %3, %150 : vector<2x256xf32>
    %152 = arith.addf %148, %151 : vector<2x256xf32>
    %c23 = arith.constant 23 : index
    %153 = memref.load %arg3[%c23] : memref<36xf32, #tpu.memory_space<smem>>
    %154 = vector.broadcast %153 : f32 to vector<2x256xf32>
    %155 = arith.mulf %11, %154 : vector<2x256xf32>
    %156 = arith.addf %152, %155 : vector<2x256xf32>
    %c11 = arith.constant 11 : index
    %157 = memref.load %arg3[%c11] : memref<36xf32, #tpu.memory_space<smem>>
    %158 = vector.broadcast %157 : f32 to vector<2x256xf32>
    %159 = arith.mulf %5, %158 : vector<2x256xf32>
    %160 = arith.addf %156, %159 : vector<2x256xf32>
    %c27 = arith.constant 27 : index
    %161 = memref.load %arg3[%c27] : memref<36xf32, #tpu.memory_space<smem>>
    %162 = vector.broadcast %161 : f32 to vector<2x256xf32>
    %163 = arith.mulf %13, %162 : vector<2x256xf32>
    %164 = arith.addf %160, %163 : vector<2x256xf32>
    %c15 = arith.constant 15 : index
    %165 = memref.load %arg3[%c15] : memref<36xf32, #tpu.memory_space<smem>>
    %166 = vector.broadcast %165 : f32 to vector<2x256xf32>
    %167 = arith.mulf %7, %166 : vector<2x256xf32>
    %168 = arith.addf %164, %167 : vector<2x256xf32>
    %c31 = arith.constant 31 : index
    %169 = memref.load %arg3[%c31] : memref<36xf32, #tpu.memory_space<smem>>
    %170 = vector.broadcast %169 : f32 to vector<2x256xf32>
    %171 = arith.mulf %15, %170 : vector<2x256xf32>
    %172 = arith.addf %168, %171 : vector<2x256xf32>
    %c3_45 = arith.constant 3 : index
    %c0_46 = arith.constant 0 : index
    %c0_47 = arith.constant 0 : index
    %173 = vector.load %arg4[%c3_45, %c0_46, %c0_47] : memref<4x2x256xf32, #tpu.memory_space<vmem>>, vector<1x2x256xf32>
    %174 = vector.shape_cast %173 : vector<1x2x256xf32> to vector<2x256xf32>
    %175 = vector.shape_cast %172 : vector<2x256xf32> to vector<1x2x256xf32>
    tpu.vector_store %arg4[%c3_45, %c0_46, %c0_47], %175 {strides = array<i32>} : memref<4x2x256xf32, #tpu.memory_space<vmem>>, vector<1x2x256xf32>,
    return
  }
}

</mosaic_0001>

<llo_original>
// kernel: reverse.0
$region0: #{reverse.0}
  %s0 = inlined_call_operand.vmem [shape: f32[4,2,16,7], index: 0, kind: input, shape index: {}]
  %s1 = inlined_call_operand.vmem [shape: f32[4,2,16,7], index: 1, kind: output, shape index: {}]
  $region1: #{reverse.0} parent=0
    #allocation0 [shape = 'u8[65536]{0}', space=vmem, size = 0x10000, scoped, tag = 'operand span for operand 0']
    #allocation1 [shape = 'u8[32768]{0}', space=vmem, size = 0x8000, scoped, tag = 'operand span for operand 1']
    %s2 = scalar_lea.vmem [#allocation0], 8
    // Predicated region
    $region2: #{reverse.0} parent=1 // pred_check
      _
    $region3: #{reverse.0} parent=1 // pred_check_branch
      %4 = sbr.rel (0) target = $region5
    $region4: #{reverse.0} parent=1 // pred_region
      // Predicated region
      $region6: #{reverse.0} parent=4 // pred_check
        _
      $region7: #{reverse.0} parent=4 // pred_check_branch
        %6 = sbr.rel (0) target = $region9
      $region8: #{reverse.0} parent=4 // pred_region
        // Predicated region
        $region21: #{reverse.0} parent=8 // pred_check
          _
        $region22: #{reverse.0} parent=8 // pred_check_branch
          %35 = sbr.rel (0) target = $region24
        $region23: #{reverse.0} parent=8 // pred_region
          loop: start=0, step=1, limit=1
          $region25: #{reverse.0} parent=23 // loop_pre_header
            _
          $region26: #{reverse.0} parent=23 // loop_header
            %s37 = sphi 0, %s41
            %p38 = scmp.ge.s32.totalorder %s37, 1
            %s42 = sphi %s0, %s0
            %s43 = sphi %s2, %s2
          $region27: #{reverse.0} parent=23 // loop_header_branch
            %40 = sbr.rel (%p38) target = $region31
          $region28: #{reverse.0} parent=23 // loop_body
            %v44 = vld [vmem:[%s42] sm:$0xff]
            %45 = vst [vmem:[%s43] sm:$0xff] %v44
            %v46 = vld [vmem:[%s42 + $0x8] sm:$0xff]
            %47 = vst [vmem:[%s43 + $0x10] sm:$0xff] %v46
            %v48 = vld [vmem:[%s42 + $0x10] sm:$0xff]
            %49 = vst [vmem:[%s43 + $0x20] sm:$0xff] %v48
            %v50 = vld [vmem:[%s42 + $0x18] sm:$0xff]
            %51 = vst [vmem:[%s43 + $0x30] sm:$0xff] %v50
            %v52 = vld [vmem:[%s42 + $0x20] sm:$0xff]
            %53 = vst [vmem:[%s43 + $0x40] sm:$0xff] %v52
            %v54 = vld [vmem:[%s42 + $0x28] sm:$0xff]
            %55 = vst [vmem:[%s43 + $0x50] sm:$0xff] %v54
            %v56 = vld [vmem:[%s42 + $0x30] sm:$0xff]
            %57 = vst [vmem:[%s43 + $0x60] sm:$0xff] %v56
            %v58 = vld [vmem:[%s42 + $0x38] sm:$0xff]
            %59 = vst [vmem:[%s43 + $0x70] sm:$0xff] %v58
          $region29: #{reverse.0} parent=23 // loop_footer
            %s41 = sadd.s32 1, %s37
          $region30: #{reverse.0} parent=23 // loop_footer_branch
            %36 = sbr.rel target = $region26
          $region31: #{reverse.0} parent=23 // loop_exit
            _
        $region24: #{reverse.0} parent=8 // pred_fallthru
          _
        // Predicated region
        $region32: #{reverse.0} parent=8 // pred_check
          _
        $region33: #{reverse.0} parent=8 // pred_check_branch
          %61 = sbr.rel target = $region35
        $region34: #{reverse.0} parent=8 // pred_region
          _
        $region35: #{reverse.0} parent=8 // pred_fallthru
          _
      $region9: #{reverse.0} parent=4 // pred_fallthru
        _
      // Predicated region
      $region10: #{reverse.0} parent=4 // pred_check
        _
      $region11: #{reverse.0} parent=4 // pred_check_branch
        %8 = sbr.rel target = $region13
      $region12: #{reverse.0} parent=4 // pred_region
        loop: start=0, step=1, limit=1
        $region14: #{reverse.0} parent=12 // loop_pre_header
          _
        $region15: #{reverse.0} parent=12 // loop_header
          %s11 = sphi 0, %s15
          %p12 = scmp.ge.s32.totalorder %s11, 1
          %s16 = sphi %s0, %s0
          %s17 = sphi %s2, %s2
        $region16: #{reverse.0} parent=12 // loop_header_branch
          %14 = sbr.rel (%p12) target = $region20
        $region17: #{reverse.0} parent=12 // loop_body
          %v18 = vld [vmem:[%s16] sm:$0xff]
          %19 = vst [vmem:[%s17] sm:$0xff] %v18
          %v20 = vld [vmem:[%s16 + $0x8] sm:$0xff]
          %21 = vst [vmem:[%s17 + $0x10] sm:$0xff] %v20
          %v22 = vld [vmem:[%s16 + $0x10] sm:$0xff]
          %23 = vst [vmem:[%s17 + $0x20] sm:$0xff] %v22
          %v24 = vld [vmem:[%s16 + $0x18] sm:$0xff]
          %25 = vst [vmem:[%s17 + $0x30] sm:$0xff] %v24
          %v26 = vld [vmem:[%s16 + $0x20] sm:$0xff]
          %27 = vst [vmem:[%s17 + $0x40] sm:$0xff] %v26
          %v28 = vld [vmem:[%s16 + $0x28] sm:$0xff]
          %29 = vst [vmem:[%s17 + $0x50] sm:$0xff] %v28
          %v30 = vld [vmem:[%s16 + $0x30] sm:$0xff]
          %31 = vst [vmem:[%s17 + $0x60] sm:$0xff] %v30
          %v32 = vld [vmem:[%s16 + $0x38] sm:$0xff]
          %33 = vst [vmem:[%s17 + $0x70] sm:$0xff] %v32
        $region18: #{reverse.0} parent=12 // loop_footer
          %s15 = sadd.s32 1, %s11
        $region19: #{reverse.0} parent=12 // loop_footer_branch
          %10 = sbr.rel target = $region15
        $region20: #{reverse.0} parent=12 // loop_exit
          _
      $region13: #{reverse.0} parent=4 // pred_fallthru
        _
    $region5: #{reverse.0} parent=1 // pred_fallthru
      _
    %62 = vnop
    %s63 = scalar_lea.vmem [#allocation0], 7
    %v64 = vld [vmem:[%s63] ss:$-1 sm:$0xff]
    %v65 = vrot.slane %v64, 1
    %66 = vst [vmem:[#allocation1] sm:$0xff] %v65
    %s67 = scalar_lea.vmem [#allocation0], 8
    %s68 = scalar_lea.vmem %s67, 7 [#allocation0]
    %v69 = vld [vmem:[%s68] ss:$-1 sm:$0xff]
    %v70 = vrot.slane %v69, 1
    %v71 = vlaneseq
    %v72 = vshrl.u32 %v71, 7
    %vm73 = vcmp.lt.s32.totalorder %v72, 7
    %74 = vst.msk [vmem:[#allocation1] sm:$0xff] %vm73, %v70
    %s75 = scalar_lea.vmem [#allocation1], 8
    %s76 = scalar_lea.vmem [#allocation0], 16
    %s77 = scalar_lea.vmem %s76, 7 [#allocation0]
    %v78 = vld [vmem:[%s77] ss:$-1 sm:$0xff]
    %v79 = vrot.slane %v78, 1
    %80 = vst [vmem:[%s75] sm:$0xff] %v79
    %s81 = scalar_lea.vmem %s76, 8 [#allocation0]
    %s82 = scalar_lea.vmem %s81, 7 [#allocation0]
    %v83 = vld [vmem:[%s82] ss:$-1 sm:$0xff]
    %v84 = vrot.slane %v83, 1
    %v85 = vlaneseq
    %v86 = vshrl.u32 %v85, 7
    %vm87 = vcmp.lt.s32.totalorder %v86, 7
    %88 = vst.msk [vmem:[%s75] sm:$0xff] %vm87, %v84
    %s89 = scalar_lea.vmem [#allocation1], 16
    %s90 = scalar_lea.vmem [#allocation0], 32
    %s91 = scalar_lea.vmem %s90, 7 [#allocation0]
    %v92 = vld [vmem:[%s91] ss:$-1 sm:$0xff]
    %v93 = vrot.slane %v92, 1
    %94 = vst [vmem:[%s89] sm:$0xff] %v93
    %s95 = scalar_lea.vmem %s90, 8 [#allocation0]
    %s96 = scalar_lea.vmem %s95, 7 [#allocation0]
    %v97 = vld [vmem:[%s96] ss:$-1 sm:$0xff]
    %v98 = vrot.slane %v97, 1
    %v99 = vlaneseq
    %v100 = vshrl.u32 %v99, 7
    %vm101 = vcmp.lt.s32.totalorder %v100, 7
    %102 = vst.msk [vmem:[%s89] sm:$0xff] %vm101, %v98
    %s103 = scalar_lea.vmem [#allocation1], 24
    %s104 = scalar_lea.vmem [#allocation0], 48
    %s105 = scalar_lea.vmem %s104, 7 [#allocation0]
    %v106 = vld [vmem:[%s105] ss:$-1 sm:$0xff]
    %v107 = vrot.slane %v106, 1
    %108 = vst [vmem:[%s103] sm:$0xff] %v107
    %s109 = scalar_lea.vmem %s104, 8 [#allocation0]
    %s110 = scalar_lea.vmem %s109, 7 [#allocation0]
    %v111 = vld [vmem:[%s110] ss:$-1 sm:$0xff]
    %v112 = vrot.slane %v111, 1
    %v113 = vlaneseq
    %v114 = vshrl.u32 %v113, 7
    %vm115 = vcmp.lt.s32.totalorder %v114, 7
    %116 = vst.msk [vmem:[%s103] sm:$0xff] %vm115, %v112
    %s117 = scalar_lea.vmem [#allocation1], 32
    %s118 = scalar_lea.vmem [#allocation0], 64
    %s119 = scalar_lea.vmem %s118, 7 [#allocation0]
    %v120 = vld [vmem:[%s119] ss:$-1 sm:$0xff]
    %v121 = vrot.slane %v120, 1
    %122 = vst [vmem:[%s117] sm:$0xff] %v121
    %s123 = scalar_lea.vmem %s118, 8 [#allocation0]
    %s124 = scalar_lea.vmem %s123, 7 [#allocation0]
    %v125 = vld [vmem:[%s124] ss:$-1 sm:$0xff]
    %v126 = vrot.slane %v125, 1
    %v127 = vlaneseq
    %v128 = vshrl.u32 %v127, 7
    %vm129 = vcmp.lt.s32.totalorder %v128, 7
    %130 = vst.msk [vmem:[%s117] sm:$0xff] %vm129, %v126
    %s131 = scalar_lea.vmem [#allocation1], 40
    %s132 = scalar_lea.vmem [#allocation0], 80
    %s133 = scalar_lea.vmem %s132, 7 [#allocation0]
    %v134 = vld [vmem:[%s133] ss:$-1 sm:$0xff]
    %v135 = vrot.slane %v134, 1
    %136 = vst [vmem:[%s131] sm:$0xff] %v135
    %s137 = scalar_lea.vmem %s132, 8 [#allocation0]
    %s138 = scalar_lea.vmem %s137, 7 [#allocation0]
    %v139 = vld [vmem:[%s138] ss:$-1 sm:$0xff]
    %v140 = vrot.slane %v139, 1
    %v141 = vlaneseq
    %v142 = vshrl.u32 %v141, 7
    %vm143 = vcmp.lt.s32.totalorder %v142, 7
    %144 = vst.msk [vmem:[%s131] sm:$0xff] %vm143, %v140
    %s145 = scalar_lea.vmem [#allocation1], 48
    %s146 = scalar_lea.vmem [#allocation0], 96
    %s147 = scalar_lea.vmem %s146, 7 [#allocation0]
    %v148 = vld [vmem:[%s147] ss:$-1 sm:$0xff]
    %v149 = vrot.slane %v148, 1
    %150 = vst [vmem:[%s145] sm:$0xff] %v149
    %s151 = scalar_lea.vmem %s146, 8 [#allocation0]
    %s152 = scalar_lea.vmem %s151, 7 [#allocation0]
    %v153 = vld [vmem:[%s152] ss:$-1 sm:$0xff]
    %v154 = vrot.slane %v153, 1
    %v155 = vlaneseq
    %v156 = vshrl.u32 %v155, 7
    %vm157 = vcmp.lt.s32.totalorder %v156, 7
    %158 = vst.msk [vmem:[%s145] sm:$0xff] %vm157, %v154
    %s159 = scalar_lea.vmem [#allocation1], 56
    %s160 = scalar_lea.vmem [#allocation0], 112
    %s161 = scalar_lea.vmem %s160, 7 [#allocation0]
    %v162 = vld [vmem:[%s161] ss:$-1 sm:$0xff]
    %v163 = vrot.slane %v162, 1
    %164 = vst [vmem:[%s159] sm:$0xff] %v163
    %s165 = scalar_lea.vmem %s160, 8 [#allocation0]
    %s166 = scalar_lea.vmem %s165, 7 [#allocation0]
    %v167 = vld [vmem:[%s166] ss:$-1 sm:$0xff]
    %v168 = vrot.slane %v167, 1
    %v169 = vlaneseq
    %v170 = vshrl.u32 %v169, 7
    %vm171 = vcmp.lt.s32.totalorder %v170, 7
    %172 = vst.msk [vmem:[%s159] sm:$0xff] %vm171, %v168
    // Predicated region
    $region36: #{reverse.0} parent=1 // pred_check
      _
    $region37: #{reverse.0} parent=1 // pred_check_branch
      %174 = sbr.rel (0) target = $region39
    $region38: #{reverse.0} parent=1 // pred_region
      // Predicated region
      $region40: #{reverse.0} parent=38 // pred_check
        _
      $region41: #{reverse.0} parent=38 // pred_check_branch
        %176 = sbr.rel (0) target = $region43
      $region42: #{reverse.0} parent=38 // pred_region
        // Predicated region
        $region55: #{reverse.0} parent=42 // pred_check
          _
        $region56: #{reverse.0} parent=42 // pred_check_branch
          %205 = sbr.rel (0) target = $region58
        $region57: #{reverse.0} parent=42 // pred_region
          loop: start=0, step=1, limit=1
          $region59: #{reverse.0} parent=57 // loop_pre_header
            _
          $region60: #{reverse.0} parent=57 // loop_header
            %s207 = sphi 0, %s211
            %p208 = scmp.ge.s32.totalorder %s207, 1
            %s212 = sphi [#allocation1], [#allocation1]
            %s213 = sphi %s1, %s1
          $region61: #{reverse.0} parent=57 // loop_header_branch
            %210 = sbr.rel (%p208) target = $region65
          $region62: #{reverse.0} parent=57 // loop_body
            %v214 = vld [vmem:[%s212] sm:$0xff]
            %215 = vst [vmem:[%s213] sm:$0xff] %v214
            %v216 = vld [vmem:[%s212 + $0x8] sm:$0xff]
            %217 = vst [vmem:[%s213 + $0x8] sm:$0xff] %v216
            %v218 = vld [vmem:[%s212 + $0x10] sm:$0xff]
            %219 = vst [vmem:[%s213 + $0x10] sm:$0xff] %v218
            %v220 = vld [vmem:[%s212 + $0x18] sm:$0xff]
            %221 = vst [vmem:[%s213 + $0x18] sm:$0xff] %v220
            %v222 = vld [vmem:[%s212 + $0x20] sm:$0xff]
            %223 = vst [vmem:[%s213 + $0x20] sm:$0xff] %v222
            %v224 = vld [vmem:[%s212 + $0x28] sm:$0xff]
            %225 = vst [vmem:[%s213 + $0x28] sm:$0xff] %v224
            %v226 = vld [vmem:[%s212 + $0x30] sm:$0xff]
            %227 = vst [vmem:[%s213 + $0x30] sm:$0xff] %v226
            %v228 = vld [vmem:[%s212 + $0x38] sm:$0xff]
            %229 = vst [vmem:[%s213 + $0x38] sm:$0xff] %v228
          $region63: #{reverse.0} parent=57 // loop_footer
            %s211 = sadd.s32 1, %s207
          $region64: #{reverse.0} parent=57 // loop_footer_branch
            %206 = sbr.rel target = $region60
          $region65: #{reverse.0} parent=57 // loop_exit
            _
        $region58: #{reverse.0} parent=42 // pred_fallthru
          _
        // Predicated region
        $region66: #{reverse.0} parent=42 // pred_check
          _
        $region67: #{reverse.0} parent=42 // pred_check_branch
          %231 = sbr.rel target = $region69
        $region68: #{reverse.0} parent=42 // pred_region
          _
        $region69: #{reverse.0} parent=42 // pred_fallthru
          _
      $region43: #{reverse.0} parent=38 // pred_fallthru
        _
      // Predicated region
      $region44: #{reverse.0} parent=38 // pred_check
        _
      $region45: #{reverse.0} parent=38 // pred_check_branch
        %178 = sbr.rel target = $region47
      $region46: #{reverse.0} parent=38 // pred_region
        loop: start=0, step=1, limit=1
        $region48: #{reverse.0} parent=46 // loop_pre_header
          _
        $region49: #{reverse.0} parent=46 // loop_header
          %s181 = sphi 0, %s185
          %p182 = scmp.ge.s32.totalorder %s181, 1
          %s186 = sphi [#allocation1], [#allocation1]
          %s187 = sphi %s1, %s1
        $region50: #{reverse.0} parent=46 // loop_header_branch
          %184 = sbr.rel (%p182) target = $region54
        $region51: #{reverse.0} parent=46 // loop_body
          %v188 = vld [vmem:[%s186] sm:$0xff]
          %189 = vst [vmem:[%s187] sm:$0xff] %v188
          %v190 = vld [vmem:[%s186 + $0x8] sm:$0xff]
          %191 = vst [vmem:[%s187 + $0x8] sm:$0xff] %v190
          %v192 = vld [vmem:[%s186 + $0x10] sm:$0xff]
          %193 = vst [vmem:[%s187 + $0x10] sm:$0xff] %v192
          %v194 = vld [vmem:[%s186 + $0x18] sm:$0xff]
          %195 = vst [vmem:[%s187 + $0x18] sm:$0xff] %v194
          %v196 = vld [vmem:[%s186 + $0x20] sm:$0xff]
          %197 = vst [vmem:[%s187 + $0x20] sm:$0xff] %v196
          %v198 = vld [vmem:[%s186 + $0x28] sm:$0xff]
          %199 = vst [vmem:[%s187 + $0x28] sm:$0xff] %v198
          %v200 = vld [vmem:[%s186 + $0x30] sm:$0xff]
          %201 = vst [vmem:[%s187 + $0x30] sm:$0xff] %v200
          %v202 = vld [vmem:[%s186 + $0x38] sm:$0xff]
          %203 = vst [vmem:[%s187 + $0x38] sm:$0xff] %v202
        $region52: #{reverse.0} parent=46 // loop_footer
          %s185 = sadd.s32 1, %s181
        $region53: #{reverse.0} parent=46 // loop_footer_branch
          %180 = sbr.rel target = $region49
        $region54: #{reverse.0} parent=46 // loop_exit
          _
      $region47: #{reverse.0} parent=38 // pred_fallthru
        _
    $region39: #{reverse.0} parent=1 // pred_fallthru
      _
    %232 = vnop

// kernel: process_block.3
$region0: #{process_block.3}
  #allocation0 [shape = 'u32[]', space=smem, size = 0x4, offset = 0x4, fixed_abs, tag = 'smem constant byte address 0x4 - core index']
  #allocation1 [shape = 'u32[144,128]{1,0:T(1,128)}', space=vmem, size = 0x12000, scoped, tag = 'internal scratch']
  %s0 = inlined_call_operand.vmem [shape: f32[4,2,256], index: 0, kind: input, shape index: {}]
  %s1 = inlined_call_operand.vmem [shape: f32[4,2,256], index: 1, kind: input, shape index: {}]
  %s2 = inlined_call_operand.vmem [shape: f32[4,2,256], index: 2, kind: input, shape index: {}]
  %s3 = inlined_call_operand.vmem [shape: f32[36], index: 3, kind: input, shape index: {}]
  %s4 = inlined_call_operand.vmem [shape: f32[4,2,256], index: 4, kind: output, shape index: {}]
  %s5 = sld [smem:[#allocation0]]
  $region30: #{process_block.3} parent=0
    _
  %s7 = ssub.s32 1, %s5
  %s8 = scalar_select 0, %s7, %s5
  $region1: #{process_block.3} parent=0
    #allocation2 [shape = 'u8[512]{0}', space=smem, size = 0x200, scoped, tag = 'input window, operand 3, single buffered']
    #allocation3 [shape = 's32[1]{0}', space=sflag, size = 0x4, scoped, tag = 'scoped memory for process_block.3']
    %9 = vsyncpa [#allocation3], 0
    // Predicated region
    $region2: #{process_block.3} parent=1 // pred_check
      _
    $region3: #{process_block.3} parent=1 // pred_check_branch
      %11 = sbr.rel (0) target = $region5
    $region4: #{process_block.3} parent=1 // pred_region
      _
    $region5: #{process_block.3} parent=1 // pred_fallthru
      _
    // Predicated region
    $region6: #{process_block.3} parent=1 // pred_check
      _
    $region7: #{process_block.3} parent=1 // pred_check_branch
      %13 = sbr.rel (0) target = $region9
    $region8: #{process_block.3} parent=1 // pred_region
      _
    $region9: #{process_block.3} parent=1 // pred_fallthru
      _
    // Predicated region
    $region10: #{process_block.3} parent=1 // pred_check
      _
    $region11: #{process_block.3} parent=1 // pred_check_branch
      %15 = sbr.rel (0) target = $region13
    $region12: #{process_block.3} parent=1 // pred_region
      _
    $region13: #{process_block.3} parent=1 // pred_fallthru
      _
    // Predicated region
    $region14: #{process_block.3} parent=1 // pred_check
      _
    $region15: #{process_block.3} parent=1 // pred_check_branch
      %17 = sbr.rel (0) target = $region17
    $region16: #{process_block.3} parent=1 // pred_region
      %s19 = ssub.s32 16, 16
      %20 = vsyncadd [#allocation3], %s19
      %s22 = sshll.u32 %s3, 4
      %s23 = int_to_ptr.vmem [resolvable:$true] %s22
      %25 = dma.vmem_to_smem %s23, 16, [#allocation2], [#allocation3]
    $region17: #{process_block.3} parent=1 // pred_fallthru
      _
    // Predicated region
    $region18: #{process_block.3} parent=1 // pred_check
      _
    $region19: #{process_block.3} parent=1 // pred_check_branch
      %27 = sbr.rel (0) target = $region21
    $region20: #{process_block.3} parent=1 // pred_region
      %28 = dma.done [#allocation3], 16
    $region21: #{process_block.3} parent=1 // pred_fallthru
      _
    %29 = sfence
    %v30 = vld [vmem:[%s0] sm:$0xf]
    %s31 = scalar_lea.vmem %s0, 4
    %v32 = vld [vmem:[%s31] sm:$0xf]
    %s33 = scalar_lea.vmem %s0, 8
    %v34 = vld [vmem:[%s33] sm:$0xf]
    %s35 = scalar_lea.vmem %s0, 12
    %v36 = vld [vmem:[%s35] sm:$0xf]
    %v37 = vld [vmem:[%s1] sm:$0xf]
    %s38 = scalar_lea.vmem %s1, 4
    %v39 = vld [vmem:[%s38] sm:$0xf]
    %s40 = scalar_lea.vmem %s1, 8
    %v41 = vld [vmem:[%s40] sm:$0xf]
    %s42 = scalar_lea.vmem %s1, 12
    %v43 = vld [vmem:[%s42] sm:$0xf]
    %v44 = vld [vmem:[%s2] sm:$0xf]
    %s45 = sld [smem:[#allocation2 + $0x20]]
    %v46 = vstv %s45
    %v47 = vadd.f32 %v44, %v46
    %s48 = sld [smem:[#allocation2]]
    %v49 = vstv %s48
    %v50 = vmul.f32 %v30, %v49
    %v51 = vadd.f32 %v47, %v50
    %s52 = sld [smem:[#allocation2 + $0x10]]
    %v53 = vstv %s52
    %v54 = vmul.f32 %v37, %v53
    %v55 = vadd.f32 %v51, %v54
    %s56 = sld [smem:[#allocation2 + $0x4]]
    %v57 = vstv %s56
    %v58 = vmul.f32 %v32, %v57
    %v59 = vadd.f32 %v55, %v58
    %s60 = sld [smem:[#allocation2 + $0x14]]
    %v61 = vstv %s60
    %v62 = vmul.f32 %v39, %v61
    %v63 = vadd.f32 %v59, %v62
    %s64 = sld [smem:[#allocation2 + $0x8]]
    %v65 = vstv %s64
    %v66 = vmul.f32 %v34, %v65
    %v67 = vadd.f32 %v63, %v66
    %s68 = sld [smem:[#allocation2 + $0x18]]
    %v69 = vstv %s68
    %v70 = vmul.f32 %v41, %v69
    %v71 = vadd.f32 %v67, %v70
    %s72 = sld [smem:[#allocation2 + $0xc]]
    %v73 = vstv %s72
    %v74 = vmul.f32 %v36, %v73
    %v75 = vadd.f32 %v71, %v74
    %s76 = sld [smem:[#allocation2 + $0x1c]]
    %v77 = vstv %s76
    %v78 = vmul.f32 %v43, %v77
    %v79 = vadd.f32 %v75, %v78
    %80 = vst [vmem:[%s4] sm:$0xf] %v79
    %s81 = scalar_lea.vmem %s2, 4
    %v82 = vld [vmem:[%s81] sm:$0xf]
    %s83 = sld [smem:[#allocation2 + $0x21]]
    %v84 = vstv %s83
    %v85 = vadd.f32 %v82, %v84
    %s86 = sld [smem:[#allocation2 + $0x1]]
    %v87 = vstv %s86
    %v88 = vmul.f32 %v30, %v87
    %v89 = vadd.f32 %v85, %v88
    %s90 = sld [smem:[#allocation2 + $0x11]]
    %v91 = vstv %s90
    %v92 = vmul.f32 %v37, %v91
    %v93 = vadd.f32 %v89, %v92
    %s94 = sld [smem:[#allocation2 + $0x5]]
    %v95 = vstv %s94
    %v96 = vmul.f32 %v32, %v95
    %v97 = vadd.f32 %v93, %v96
    %s98 = sld [smem:[#allocation2 + $0x15]]
    %v99 = vstv %s98
    %v100 = vmul.f32 %v39, %v99
    %v101 = vadd.f32 %v97, %v100
    %s102 = sld [smem:[#allocation2 + $0x9]]
    %v103 = vstv %s102
    %v104 = vmul.f32 %v34, %v103
    %v105 = vadd.f32 %v101, %v104
    %s106 = sld [smem:[#allocation2 + $0x19]]
    %v107 = vstv %s106
    %v108 = vmul.f32 %v41, %v107
    %v109 = vadd.f32 %v105, %v108
    %s110 = sld [smem:[#allocation2 + $0xd]]
    %v111 = vstv %s110
    %v112 = vmul.f32 %v36, %v111
    %v113 = vadd.f32 %v109, %v112
    %s114 = sld [smem:[#allocation2 + $0x1d]]
    %v115 = vstv %s114
    %v116 = vmul.f32 %v43, %v115
    %v117 = vadd.f32 %v113, %v116
    %s118 = scalar_lea.vmem %s4, 4
    %119 = vst [vmem:[%s118] sm:$0xf] %v117
    %s120 = scalar_lea.vmem %s2, 8
    %v121 = vld [vmem:[%s120] sm:$0xf]
    %s122 = sld [smem:[#allocation2 + $0x22]]
    %v123 = vstv %s122
    %v124 = vadd.f32 %v121, %v123
    %s125 = sld [smem:[#allocation2 + $0x2]]
    %v126 = vstv %s125
    %v127 = vmul.f32 %v30, %v126
    %v128 = vadd.f32 %v124, %v127
    %s129 = sld [smem:[#allocation2 + $0x12]]
    %v130 = vstv %s129
    %v131 = vmul.f32 %v37, %v130
    %v132 = vadd.f32 %v128, %v131
    %s133 = sld [smem:[#allocation2 + $0x6]]
    %v134 = vstv %s133
    %v135 = vmul.f32 %v32, %v134
    %v136 = vadd.f32 %v132, %v135
    %s137 = sld [smem:[#allocation2 + $0x16]]
    %v138 = vstv %s137
    %v139 = vmul.f32 %v39, %v138
    %v140 = vadd.f32 %v136, %v139
    %s141 = sld [smem:[#allocation2 + $0xa]]
    %v142 = vstv %s141
    %v143 = vmul.f32 %v34, %v142
    %v144 = vadd.f32 %v140, %v143
    %s145 = sld [smem:[#allocation2 + $0x1a]]
    %v146 = vstv %s145
    %v147 = vmul.f32 %v41, %v146
    %v148 = vadd.f32 %v144, %v147
    %s149 = sld [smem:[#allocation2 + $0xe]]
    %v150 = vstv %s149
    %v151 = vmul.f32 %v36, %v150
    %v152 = vadd.f32 %v148, %v151
    %s153 = sld [smem:[#allocation2 + $0x1e]]
    %v154 = vstv %s153
    %v155 = vmul.f32 %v43, %v154
    %v156 = vadd.f32 %v152, %v155
    %s157 = scalar_lea.vmem %s4, 8
    %158 = vst [vmem:[%s157] sm:$0xf] %v156
    %s159 = scalar_lea.vmem %s2, 12
    %v160 = vld [vmem:[%s159] sm:$0xf]
    %s161 = sld [smem:[#allocation2 + $0x23]]
    %v162 = vstv %s161
    %v163 = vadd.f32 %v160, %v162
    %s164 = sld [smem:[#allocation2 + $0x3]]
    %v165 = vstv %s164
    %v166 = vmul.f32 %v30, %v165
    %v167 = vadd.f32 %v163, %v166
    %s168 = sld [smem:[#allocation2 + $0x13]]
    %v169 = vstv %s168
    %v170 = vmul.f32 %v37, %v169
    %v171 = vadd.f32 %v167, %v170
    %s172 = sld [smem:[#allocation2 + $0x7]]
    %v173 = vstv %s172
    %v174 = vmul.f32 %v32, %v173
    %v175 = vadd.f32 %v171, %v174
    %s176 = sld [smem:[#allocation2 + $0x17]]
    %v177 = vstv %s176
    %v178 = vmul.f32 %v39, %v177
    %v179 = vadd.f32 %v175, %v178
    %s180 = sld [smem:[#allocation2 + $0xb]]
    %v181 = vstv %s180
    %v182 = vmul.f32 %v34, %v181
    %v183 = vadd.f32 %v179, %v182
    %s184 = sld [smem:[#allocation2 + $0x1b]]
    %v185 = vstv %s184
    %v186 = vmul.f32 %v41, %v185
    %v187 = vadd.f32 %v183, %v186
    %s188 = sld [smem:[#allocation2 + $0xf]]
    %v189 = vstv %s188
    %v190 = vmul.f32 %v36, %v189
    %v191 = vadd.f32 %v187, %v190
    %s192 = sld [smem:[#allocation2 + $0x1f]]
    %v193 = vstv %s192
    %v194 = vmul.f32 %v43, %v193
    %v195 = vadd.f32 %v191, %v194
    %s196 = scalar_lea.vmem %s4, 12
    %197 = vst [vmem:[%s196] sm:$0xf] %v195
    // Predicated region
    $region22: #{process_block.3} parent=1 // pred_check
      _
    $region23: #{process_block.3} parent=1 // pred_check_branch
      %199 = sbr.rel (0) target = $region25
    $region24: #{process_block.3} parent=1 // pred_region
      _
    $region25: #{process_block.3} parent=1 // pred_fallthru
      _
    // Predicated region
    $region26: #{process_block.3} parent=1 // pred_check
      _
    $region27: #{process_block.3} parent=1 // pred_check_branch
      %201 = sbr.rel (0) target = $region29
    $region28: #{process_block.3} parent=1 // pred_region
      _
    $region29: #{process_block.3} parent=1 // pred_fallthru
      _
    %202 = vsyncpa [#allocation3], 1

// kernel: process_block.2
$region0: #{process_block.2}
  #allocation0 [shape = 'u32[]', space=smem, size = 0x4, offset = 0x4, fixed_abs, tag = 'smem constant byte address 0x4 - core index']
  #allocation1 [shape = 'u32[144,128]{1,0:T(1,128)}', space=vmem, size = 0x12000, scoped, tag = 'internal scratch']
  #allocation2 [shape = 'f32[4,2,18,18]{3,2,1,0:T(8,128)}', space=vmem, size = 0x18000, scoped, tag = 'scratch operand']
  %s0 = inlined_call_operand.vmem [shape: f32[4,2,16,16], index: 0, kind: input, shape index: {}]
  %s1 = inlined_call_operand.vmem [shape: f32[4,2,144], index: 1, kind: input, shape index: {}]
  %s2 = inlined_call_operand.vmem [shape: f32[4,2,144], index: 2, kind: input, shape index: {}]
  %s3 = inlined_call_operand.vmem [shape: f32[252], index: 3, kind: input, shape index: {}]
  %s4 = inlined_call_operand.vmem [shape: f32[80], index: 4, kind: input, shape index: {}]
  %s5 = inlined_call_operand.vmem [shape: f32[4,2,16,16], index: 5, kind: output, shape index: {0}]
  %s6 = inlined_call_operand.vmem [shape: f32[4,2,144], index: 6, kind: output, shape index: {1}]
  %s7 = inlined_call_operand.vmem [shape: f32[4,2,144], index: 7, kind: output, shape index: {2}]
  %8 = xla_tuple %s5, %s6, %s7
  %s9 = sld [smem:[#allocation0]]
  $region54: #{process_block.2} parent=0
    _
  %s11 = ssub.s32 1, %s9
  %s12 = scalar_select 0, %s11, %s9
  $region1: #{process_block.2} parent=0
    #allocation3 [shape = 'u8[1024]{0}', space=smem, size = 0x400, scoped, tag = 'input window, operand 3, single buffered']
    #allocation4 [shape = 's32[1]{0}', space=sflag, size = 0x4, scoped, tag = 'scoped memory for process_block.2']
    #allocation5 [shape = 'u8[512]{0}', space=smem, size = 0x200, scoped, tag = 'input window, operand 4, single buffered']
    #allocation6 [shape = 's32[1]{0}', space=sflag, size = 0x4, scoped, tag = 'scoped memory for process_block.2']
    %13 = vsyncpa [#allocation4], 0
    %14 = vsyncpa [#allocation6], 0
    // Predicated region
    $region2: #{process_block.2} parent=1 // pred_check
      _
    $region3: #{process_block.2} parent=1 // pred_check_branch
      %16 = sbr.rel (0) target = $region5
    $region4: #{process_block.2} parent=1 // pred_region
      _
    $region5: #{process_block.2} parent=1 // pred_fallthru
      _
    // Predicated region
    $region6: #{process_block.2} parent=1 // pred_check
      _
    $region7: #{process_block.2} parent=1 // pred_check_branch
      %18 = sbr.rel (0) target = $region9
    $region8: #{process_block.2} parent=1 // pred_region
      _
    $region9: #{process_block.2} parent=1 // pred_fallthru
      _
    // Predicated region
    $region10: #{process_block.2} parent=1 // pred_check
      _
    $region11: #{process_block.2} parent=1 // pred_check_branch
      %20 = sbr.rel (0) target = $region13
    $region12: #{process_block.2} parent=1 // pred_region
      _
    $region13: #{process_block.2} parent=1 // pred_fallthru
      _
    // Predicated region
    $region14: #{process_block.2} parent=1 // pred_check
      _
    $region15: #{process_block.2} parent=1 // pred_check_branch
      %22 = sbr.rel (0) target = $region17
    $region16: #{process_block.2} parent=1 // pred_region
      %s24 = ssub.s32 32, 32
      %25 = vsyncadd [#allocation4], %s24
      %s27 = sshll.u32 %s3, 4
      %s28 = int_to_ptr.vmem [resolvable:$true] %s27
      %30 = dma.vmem_to_smem %s28, 32, [#allocation3], [#allocation4]
    $region17: #{process_block.2} parent=1 // pred_fallthru
      _
    // Predicated region
    $region18: #{process_block.2} parent=1 // pred_check
      _
    $region19: #{process_block.2} parent=1 // pred_check_branch
      %32 = sbr.rel (0) target = $region21
    $region20: #{process_block.2} parent=1 // pred_region
      %s34 = ssub.s32 16, 16
      %35 = vsyncadd [#allocation6], %s34
      %s37 = sshll.u32 %s4, 4
      %s38 = int_to_ptr.vmem [resolvable:$true] %s37
      %40 = dma.vmem_to_smem %s38, 16, [#allocation5], [#allocation6]
    $region21: #{process_block.2} parent=1 // pred_fallthru
      _
    // Predicated region
    $region22: #{process_block.2} parent=1 // pred_check
      _
    $region23: #{process_block.2} parent=1 // pred_check_branch
      %42 = sbr.rel (0) target = $region25
    $region24: #{process_block.2} parent=1 // pred_region
      %43 = dma.done [#allocation4], 32
    $region25: #{process_block.2} parent=1 // pred_fallthru
      _
    // Predicated region
    $region26: #{process_block.2} parent=1 // pred_check
      _
    $region27: #{process_block.2} parent=1 // pred_check_branch
      %45 = sbr.rel (0) target = $region29
    $region28: #{process_block.2} parent=1 // pred_region
      %46 = dma.done [#allocation6], 16
    $region29: #{process_block.2} parent=1 // pred_fallthru
      _
    %47 = sfence
    %vm48 = vcmask 146432
    %49 = vst.msk [vmem:[#allocation2] sm:$0xff] %vm48, 0.0
    %50 = vst.msk [vmem:[#allocation2 + $0x8] sm:$0xff] %vm48, 0.0
    %vm51 = vcmask 140288
    %52 = vst.msk [vmem:[#allocation2 + $0x10] sm:$0x3] %vm51, 0.0
    %53 = vst.msk [vmem:[#allocation2 + $0x18] sm:$0xff] %vm48, 0.0
    %54 = vst.msk [vmem:[#allocation2 + $0x20] sm:$0xff] %vm48, 0.0
    %55 = vst.msk [vmem:[#allocation2 + $0x28] sm:$0x3] %vm51, 0.0
    %56 = vst.msk [vmem:[#allocation2 + $0x30] sm:$0xff] %vm48, 0.0
    %57 = vst.msk [vmem:[#allocation2 + $0x38] sm:$0xff] %vm48, 0.0
    %58 = vst.msk [vmem:[#allocation2 + $0x40] sm:$0x3] %vm51, 0.0
    %59 = vst.msk [vmem:[#allocation2 + $0x48] sm:$0xff] %vm48, 0.0
    %60 = vst.msk [vmem:[#allocation2 + $0x50] sm:$0xff] %vm48, 0.0
    %61 = vst.msk [vmem:[#allocation2 + $0x58] sm:$0x3] %vm51, 0.0
    %62 = vst.msk [vmem:[#allocation2 + $0x60] sm:$0xff] %vm48, 0.0
    %63 = vst.msk [vmem:[#allocation2 + $0x68] sm:$0xff] %vm48, 0.0
    %64 = vst.msk [vmem:[#allocation2 + $0x70] sm:$0x3] %vm51, 0.0
    %65 = vst.msk [vmem:[#allocation2 + $0x78] sm:$0xff] %vm48, 0.0
    %66 = vst.msk [vmem:[#allocation2 + $0x80] sm:$0xff] %vm48, 0.0
    %67 = vst.msk [vmem:[#allocation2 + $0x88] sm:$0x3] %vm51, 0.0
    %68 = vst.msk [vmem:[#allocation2 + $0x90] sm:$0xff] %vm48, 0.0
    %69 = vst.msk [vmem:[#allocation2 + $0x98] sm:$0xff] %vm48, 0.0
    %70 = vst.msk [vmem:[#allocation2 + $0xa0] sm:$0x3] %vm51, 0.0
    %71 = vst.msk [vmem:[#allocation2 + $0xa8] sm:$0xff] %vm48, 0.0
    %72 = vst.msk [vmem:[#allocation2 + $0xb0] sm:$0xff] %vm48, 0.0
    %73 = vst.msk [vmem:[#allocation2 + $0xb8] sm:$0x3] %vm51, 0.0
    %v74 = vld [vmem:[%s0] sm:$0xff]
    %v75 = vld [vmem:[%s0 + $0x8] sm:$0xff]
    %v76 = vld [vmem:[%s0 + $0x10] sm:$0xff]
    %v77 = vld [vmem:[%s0 + $0x18] sm:$0xff]
    %s78 = scalar_lea.vmem %s0, 32
    %v79 = vld [vmem:[%s78] sm:$0xff]
    %v80 = vld [vmem:[%s78 + $0x8] sm:$0xff]
    %v81 = vld [vmem:[%s78 + $0x10] sm:$0xff]
    %v82 = vld [vmem:[%s78 + $0x18] sm:$0xff]
    %s83 = scalar_lea.vmem %s0, 64
    %v84 = vld [vmem:[%s83] sm:$0xff]
    %v85 = vld [vmem:[%s83 + $0x8] sm:$0xff]
    %v86 = vld [vmem:[%s83 + $0x10] sm:$0xff]
    %v87 = vld [vmem:[%s83 + $0x18] sm:$0xff]
    %s88 = scalar_lea.vmem %s0, 96
    %v89 = vld [vmem:[%s88] sm:$0xff]
    %v90 = vld [vmem:[%s88 + $0x8] sm:$0xff]
    %v91 = vld [vmem:[%s88 + $0x10] sm:$0xff]
    %v92 = vld [vmem:[%s88 + $0x18] sm:$0xff]
    %97 = vrot.lane.b32.xlu0 %v84, 1
    %v98 = vpop.permute.xlu0 %97
    %99 = vrot.lane.b32.xlu0 %v85, 1
    %v100 = vpop.permute.xlu0 %99
    %101 = vrot.lane.b32.xlu0 %v86, 1
    %v102 = vpop.permute.xlu0 %101
    %103 = vrot.lane.b32.xlu0 %v87, 1
    %v104 = vpop.permute.xlu0 %103
    %vm109 = vcmask 138248
    %110 = vst.msk [vmem:[#allocation2 + $0x1] sm:$0xff] %vm109, %v98
    %111 = vst.msk [vmem:[#allocation2 + $0x9] sm:$0xff] %vm109, %v100
    %112 = vst.msk [vmem:[#allocation2 + $0x19] sm:$0xff] %vm109, %v102
    %113 = vst.msk [vmem:[#allocation2 + $0x21] sm:$0xff] %vm109, %v104
    %118 = vrot.lane.b32.xlu0 %v89, 1
    %v119 = vpop.permute.xlu0 %118
    %120 = vrot.lane.b32.xlu0 %v90, 1
    %v121 = vpop.permute.xlu0 %120
    %122 = vrot.lane.b32.xlu0 %v91, 1
    %v123 = vpop.permute.xlu0 %122
    %124 = vrot.lane.b32.xlu0 %v92, 1
    %v125 = vpop.permute.xlu0 %124
    %s130 = scalar_lea.vmem [#allocation2], 48
    %131 = vst.msk [vmem:[%s130 + $0x1] sm:$0xff] %vm109, %v119
    %132 = vst.msk [vmem:[%s130 + $0x9] sm:$0xff] %vm109, %v121
    %133 = vst.msk [vmem:[%s130 + $0x19] sm:$0xff] %vm109, %v123
    %134 = vst.msk [vmem:[%s130 + $0x21] sm:$0xff] %vm109, %v125
    %s135 = sld [smem:[#allocation3 + $0x24]]
    %v136 = vstv %s135
    %v137 = vadd.f32 %v136, 0.0
    %s138 = sld [smem:[#allocation3 + $0x25]]
    %v139 = vstv %s138
    %v140 = vadd.f32 %v139, 0.0
    %v141 = vld [vmem:[#allocation2] sm:$0xff]
    %v142 = vld [vmem:[#allocation2 + $0x8] sm:$0xff]
    %v143 = vld [vmem:[#allocation2 + $0x18] sm:$0xff]
    %v144 = vld [vmem:[#allocation2 + $0x20] sm:$0xff]
    %s145 = sld [smem:[#allocation3]]
    %v146 = vstv %s145
    %v147 = vmul.f32 %v141, %v146
    %v148 = vmul.f32 %v142, %v146
    %v149 = vmul.f32 %v143, %v146
    %v150 = vmul.f32 %v144, %v146
    %v151 = vadd.f32 %v137, %v147
    %v152 = vadd.f32 %v137, %v148
    %v153 = vadd.f32 %v137, %v149
    %v154 = vadd.f32 %v137, %v150
    %s155 = sld [smem:[#allocation3 + $0x1]]
    %v156 = vstv %s155
    %v157 = vmul.f32 %v141, %v156
    %v158 = vmul.f32 %v142, %v156
    %v159 = vmul.f32 %v143, %v156
    %v160 = vmul.f32 %v144, %v156
    %v161 = vadd.f32 %v140, %v157
    %v162 = vadd.f32 %v140, %v158
    %v163 = vadd.f32 %v140, %v159
    %v164 = vadd.f32 %v140, %v160
    %s165 = sld [smem:[#allocation3 + $0x4]]
    %v166 = vstv %s165
    %v167 = vmul.f32 %v141, %v166
    %v168 = vmul.f32 %v142, %v166
    %v169 = vmul.f32 %v143, %v166
    %v170 = vmul.f32 %v144, %v166
    %175 = vrot.lane.b32.xlu0 %v167, 127
    %v176 = vpop.permute.xlu0 %175
    %177 = vrot.lane.b32.xlu0 %v168, 127
    %v178 = vpop.permute.xlu0 %177
    %179 = vrot.lane.b32.xlu0 %v169, 127
    %v180 = vpop.permute.xlu0 %179
    %181 = vrot.lane.b32.xlu0 %v170, 127
    %v182 = vpop.permute.xlu0 %181
    %v187 = vadd.f32 %v151, %v176
    %v188 = vadd.f32 %v152, %v178
    %v189 = vadd.f32 %v153, %v180
    %v190 = vadd.f32 %v154, %v182
    %s191 = sld [smem:[#allocation3 + $0x5]]
    %v192 = vstv %s191
    %v193 = vmul.f32 %v141, %v192
    %v194 = vmul.f32 %v142, %v192
    %v195 = vmul.f32 %v143, %v192
    %v196 = vmul.f32 %v144, %v192
    %201 = vrot.lane.b32.xlu0 %v193, 127
    %v202 = vpop.permute.xlu0 %201
    %203 = vrot.lane.b32.xlu0 %v194, 127
    %v204 = vpop.permute.xlu0 %203
    %205 = vrot.lane.b32.xlu0 %v195, 127
    %v206 = vpop.permute.xlu0 %205
    %207 = vrot.lane.b32.xlu0 %v196, 127
    %v208 = vpop.permute.xlu0 %207
    %v213 = vadd.f32 %v161, %v202
    %v214 = vadd.f32 %v162, %v204
    %v215 = vadd.f32 %v163, %v206
    %v216 = vadd.f32 %v164, %v208
    %s217 = sld [smem:[#allocation3 + $0x8]]
    %v218 = vstv %s217
    %v219 = vmul.f32 %v141, %v218
    %v220 = vmul.f32 %v142, %v218
    %v221 = vmul.f32 %v143, %v218
    %v222 = vmul.f32 %v144, %v218
    %227 = vrot.lane.b32.xlu0 %v219, 126
    %v228 = vpop.permute.xlu0 %227
    %229 = vrot.lane.b32.xlu0 %v220, 126
    %v230 = vpop.permute.xlu0 %229
    %231 = vrot.lane.b32.xlu0 %v221, 126
    %v232 = vpop.permute.xlu0 %231
    %233 = vrot.lane.b32.xlu0 %v222, 126
    %v234 = vpop.permute.xlu0 %233
    %v239 = vadd.f32 %v187, %v228
    %v240 = vadd.f32 %v188, %v230
    %v241 = vadd.f32 %v189, %v232
    %v242 = vadd.f32 %v190, %v234
    %s243 = sld [smem:[#allocation3 + $0x9]]
    %v244 = vstv %s243
    %v245 = vmul.f32 %v141, %v244
    %v246 = vmul.f32 %v142, %v244
    %v247 = vmul.f32 %v143, %v244
    %v248 = vmul.f32 %v144, %v244
    %253 = vrot.lane.b32.xlu0 %v245, 126
    %v254 = vpop.permute.xlu0 %253
    %255 = vrot.lane.b32.xlu0 %v246, 126
    %v256 = vpop.permute.xlu0 %255
    %257 = vrot.lane.b32.xlu0 %v247, 126
    %v258 = vpop.permute.xlu0 %257
    %259 = vrot.lane.b32.xlu0 %v248, 126
    %v260 = vpop.permute.xlu0 %259
    %v265 = vadd.f32 %v213, %v254
    %v266 = vadd.f32 %v214, %v256
    %v267 = vadd.f32 %v215, %v258
    %v268 = vadd.f32 %v216, %v260
    %v269 = vld [vmem:[#allocation2 + $0x1] sm:$0xff]
    %v270 = vld [vmem:[#allocation2 + $0x9] sm:$0xff]
    %v271 = vld [vmem:[#allocation2 + $0x19] sm:$0xff]
    %v272 = vld [vmem:[#allocation2 + $0x21] sm:$0xff]
    %s273 = sld [smem:[#allocation3 + $0xc]]
    %v274 = vstv %s273
    %v275 = vmul.f32 %v269, %v274
    %v276 = vmul.f32 %v270, %v274
    %v277 = vmul.f32 %v271, %v274
    %v278 = vmul.f32 %v272, %v274
    %v279 = vadd.f32 %v239, %v275
    %v280 = vadd.f32 %v240, %v276
    %v281 = vadd.f32 %v241, %v277
    %v282 = vadd.f32 %v242, %v278
    %s283 = sld [smem:[#allocation3 + $0xd]]
    %v284 = vstv %s283
    %v285 = vmul.f32 %v269, %v284
    %v286 = vmul.f32 %v270, %v284
    %v287 = vmul.f32 %v271, %v284
    %v288 = vmul.f32 %v272, %v284
    %v289 = vadd.f32 %v265, %v285
    %v290 = vadd.f32 %v266, %v286
    %v291 = vadd.f32 %v267, %v287
    %v292 = vadd.f32 %v268, %v288
    %s293 = sld [smem:[#allocation3 + $0x10]]
    %v294 = vstv %s293
    %v295 = vmul.f32 %v269, %v294
    %v296 = vmul.f32 %v270, %v294
    %v297 = vmul.f32 %v271, %v294
    %v298 = vmul.f32 %v272, %v294
    %303 = vrot.lane.b32.xlu0 %v295, 127
    %v304 = vpop.permute.xlu0 %303
    %305 = vrot.lane.b32.xlu0 %v296, 127
    %v306 = vpop.permute.xlu0 %305
    %307 = vrot.lane.b32.xlu0 %v297, 127
    %v308 = vpop.permute.xlu0 %307
    %309 = vrot.lane.b32.xlu0 %v298, 127
    %v310 = vpop.permute.xlu0 %309
    %v315 = vadd.f32 %v279, %v304
    %v316 = vadd.f32 %v280, %v306
    %v317 = vadd.f32 %v281, %v308
    %v318 = vadd.f32 %v282, %v310
    %s319 = sld [smem:[#allocation3 + $0x11]]
    %v320 = vstv %s319
    %v321 = vmul.f32 %v269, %v320
    %v322 = vmul.f32 %v270, %v320
    %v323 = vmul.f32 %v271, %v320
    %v324 = vmul.f32 %v272, %v320
    %329 = vrot.lane.b32.xlu0 %v321, 127
    %v330 = vpop.permute.xlu0 %329
    %331 = vrot.lane.b32.xlu0 %v322, 127
    %v332 = vpop.permute.xlu0 %331
    %333 = vrot.lane.b32.xlu0 %v323, 127
    %v334 = vpop.permute.xlu0 %333
    %335 = vrot.lane.b32.xlu0 %v324, 127
    %v336 = vpop.permute.xlu0 %335
    %v341 = vadd.f32 %v289, %v330
    %v342 = vadd.f32 %v290, %v332
    %v343 = vadd.f32 %v291, %v334
    %v344 = vadd.f32 %v292, %v336
    %s345 = sld [smem:[#allocation3 + $0x14]]
    %v346 = vstv %s345
    %v347 = vmul.f32 %v269, %v346
    %v348 = vmul.f32 %v270, %v346
    %v349 = vmul.f32 %v271, %v346
    %v350 = vmul.f32 %v272, %v346
    %355 = vrot.lane.b32.xlu0 %v347, 126
    %v356 = vpop.permute.xlu0 %355
    %357 = vrot.lane.b32.xlu0 %v348, 126
    %v358 = vpop.permute.xlu0 %357
    %359 = vrot.lane.b32.xlu0 %v349, 126
    %v360 = vpop.permute.xlu0 %359
    %361 = vrot.lane.b32.xlu0 %v350, 126
    %v362 = vpop.permute.xlu0 %361
    %v367 = vadd.f32 %v315, %v356
    %v368 = vadd.f32 %v316, %v358
    %v369 = vadd.f32 %v317, %v360
    %v370 = vadd.f32 %v318, %v362
    %s371 = sld [smem:[#allocation3 + $0x15]]
    %v372 = vstv %s371
    %v373 = vmul.f32 %v269, %v372
    %v374 = vmul.f32 %v270, %v372
    %v375 = vmul.f32 %v271, %v372
    %v376 = vmul.f32 %v272, %v372
    %381 = vrot.lane.b32.xlu0 %v373, 126
    %v382 = vpop.permute.xlu0 %381
    %383 = vrot.lane.b32.xlu0 %v374, 126
    %v384 = vpop.permute.xlu0 %383
    %385 = vrot.lane.b32.xlu0 %v375, 126
    %v386 = vpop.permute.xlu0 %385
    %387 = vrot.lane.b32.xlu0 %v376, 126
    %v388 = vpop.permute.xlu0 %387
    %v393 = vadd.f32 %v341, %v382
    %v394 = vadd.f32 %v342, %v384
    %v395 = vadd.f32 %v343, %v386
    %v396 = vadd.f32 %v344, %v388
    %v397 = vld [vmem:[#allocation2 + $0x2] sm:$0xff]
    %v398 = vld [vmem:[#allocation2 + $0xa] sm:$0xff]
    %v399 = vld [vmem:[#allocation2 + $0x1a] sm:$0xff]
    %v400 = vld [vmem:[#allocation2 + $0x22] sm:$0xff]
    %s401 = sld [smem:[#allocation3 + $0x18]]
    %v402 = vstv %s401
    %v403 = vmul.f32 %v397, %v402
    %v404 = vmul.f32 %v398, %v402
    %v405 = vmul.f32 %v399, %v402
    %v406 = vmul.f32 %v400, %v402
    %v407 = vadd.f32 %v367, %v403
    %v408 = vadd.f32 %v368, %v404
    %v409 = vadd.f32 %v369, %v405
    %v410 = vadd.f32 %v370, %v406
    %s411 = sld [smem:[#allocation3 + $0x19]]
    %v412 = vstv %s411
    %v413 = vmul.f32 %v397, %v412
    %v414 = vmul.f32 %v398, %v412
    %v415 = vmul.f32 %v399, %v412
    %v416 = vmul.f32 %v400, %v412
    %v417 = vadd.f32 %v393, %v413
    %v418 = vadd.f32 %v394, %v414
    %v419 = vadd.f32 %v395, %v415
    %v420 = vadd.f32 %v396, %v416
    %s421 = sld [smem:[#allocation3 + $0x1c]]
    %v422 = vstv %s421
    %v423 = vmul.f32 %v397, %v422
    %v424 = vmul.f32 %v398, %v422
    %v425 = vmul.f32 %v399, %v422
    %v426 = vmul.f32 %v400, %v422
    %431 = vrot.lane.b32.xlu0 %v423, 127
    %v432 = vpop.permute.xlu0 %431
    %433 = vrot.lane.b32.xlu0 %v424, 127
    %v434 = vpop.permute.xlu0 %433
    %435 = vrot.lane.b32.xlu0 %v425, 127
    %v436 = vpop.permute.xlu0 %435
    %437 = vrot.lane.b32.xlu0 %v426, 127
    %v438 = vpop.permute.xlu0 %437
    %v443 = vadd.f32 %v407, %v432
    %v444 = vadd.f32 %v408, %v434
    %v445 = vadd.f32 %v409, %v436
    %v446 = vadd.f32 %v410, %v438
    %s447 = sld [smem:[#allocation3 + $0x1d]]
    %v448 = vstv %s447
    %v449 = vmul.f32 %v397, %v448
    %v450 = vmul.f32 %v398, %v448
    %v451 = vmul.f32 %v399, %v448
    %v452 = vmul.f32 %v400, %v448
    %457 = vrot.lane.b32.xlu0 %v449, 127
    %v458 = vpop.permute.xlu0 %457
    %459 = vrot.lane.b32.xlu0 %v450, 127
    %v460 = vpop.permute.xlu0 %459
    %461 = vrot.lane.b32.xlu0 %v451, 127
    %v462 = vpop.permute.xlu0 %461
    %463 = vrot.lane.b32.xlu0 %v452, 127
    %v464 = vpop.permute.xlu0 %463
    %v469 = vadd.f32 %v417, %v458
    %v470 = vadd.f32 %v418, %v460
    %v471 = vadd.f32 %v419, %v462
    %v472 = vadd.f32 %v420, %v464
    %s473 = sld [smem:[#allocation3 + $0x20]]
    %v474 = vstv %s473
    %v475 = vmul.f32 %v397, %v474
    %v476 = vmul.f32 %v398, %v474
    %v477 = vmul.f32 %v399, %v474
    %v478 = vmul.f32 %v400, %v474
    %483 = vrot.lane.b32.xlu0 %v475, 126
    %v484 = vpop.permute.xlu0 %483
    %485 = vrot.lane.b32.xlu0 %v476, 126
    %v486 = vpop.permute.xlu0 %485
    %487 = vrot.lane.b32.xlu0 %v477, 126
    %v488 = vpop.permute.xlu0 %487
    %489 = vrot.lane.b32.xlu0 %v478, 126
    %v490 = vpop.permute.xlu0 %489
    %v495 = vadd.f32 %v443, %v484
    %v496 = vadd.f32 %v444, %v486
    %v497 = vadd.f32 %v445, %v488
    %v498 = vadd.f32 %v446, %v490
    %s499 = sld [smem:[#allocation3 + $0x21]]
    %v500 = vstv %s499
    %v501 = vmul.f32 %v397, %v500
    %v502 = vmul.f32 %v398, %v500
    %v503 = vmul.f32 %v399, %v500
    %v504 = vmul.f32 %v400, %v500
    %509 = vrot.lane.b32.xlu0 %v501, 126
    %v510 = vpop.permute.xlu0 %509
    %511 = vrot.lane.b32.xlu0 %v502, 126
    %v512 = vpop.permute.xlu0 %511
    %513 = vrot.lane.b32.xlu0 %v503, 126
    %v514 = vpop.permute.xlu0 %513
    %515 = vrot.lane.b32.xlu0 %v504, 126
    %v516 = vpop.permute.xlu0 %515
    %v521 = vadd.f32 %v469, %v510
    %v522 = vadd.f32 %v470, %v512
    %v523 = vadd.f32 %v471, %v514
    %v524 = vadd.f32 %v472, %v516
    %v525 = vld [vmem:[%s130] sm:$0xff]
    %v526 = vld [vmem:[%s130 + $0x8] sm:$0xff]
    %v527 = vld [vmem:[%s130 + $0x18] sm:$0xff]
    %v528 = vld [vmem:[%s130 + $0x20] sm:$0xff]
    %s529 = sld [smem:[#allocation3 + $0x2]]
    %v530 = vstv %s529
    %v531 = vmul.f32 %v525, %v530
    %v532 = vmul.f32 %v526, %v530
    %v533 = vmul.f32 %v527, %v530
    %v534 = vmul.f32 %v528, %v530
    %v535 = vadd.f32 %v495, %v531
    %v536 = vadd.f32 %v496, %v532
    %v537 = vadd.f32 %v497, %v533
    %v538 = vadd.f32 %v498, %v534
    %s539 = sld [smem:[#allocation3 + $0x3]]
    %v540 = vstv %s539
    %v541 = vmul.f32 %v525, %v540
    %v542 = vmul.f32 %v526, %v540
    %v543 = vmul.f32 %v527, %v540
    %v544 = vmul.f32 %v528, %v540
    %v545 = vadd.f32 %v521, %v541
    %v546 = vadd.f32 %v522, %v542
    %v547 = vadd.f32 %v523, %v543
    %v548 = vadd.f32 %v524, %v544
    %s549 = sld [smem:[#allocation3 + $0x6]]
    %v550 = vstv %s549
    %v551 = vmul.f32 %v525, %v550
    %v552 = vmul.f32 %v526, %v550
    %v553 = vmul.f32 %v527, %v550
    %v554 = vmul.f32 %v528, %v550
    %559 = vrot.lane.b32.xlu0 %v551, 127
    %v560 = vpop.permute.xlu0 %559
    %561 = vrot.lane.b32.xlu0 %v552, 127
    %v562 = vpop.permute.xlu0 %561
    %563 = vrot.lane.b32.xlu0 %v553, 127
    %v564 = vpop.permute.xlu0 %563
    %565 = vrot.lane.b32.xlu0 %v554, 127
    %v566 = vpop.permute.xlu0 %565
    %v571 = vadd.f32 %v535, %v560
    %v572 = vadd.f32 %v536, %v562
    %v573 = vadd.f32 %v537, %v564
    %v574 = vadd.f32 %v538, %v566
    %s575 = sld [smem:[#allocation3 + $0x7]]
    %v576 = vstv %s575
    %v577 = vmul.f32 %v525, %v576
    %v578 = vmul.f32 %v526, %v576
    %v579 = vmul.f32 %v527, %v576
    %v580 = vmul.f32 %v528, %v576
    %585 = vrot.lane.b32.xlu0 %v577, 127
    %v586 = vpop.permute.xlu0 %585
    %587 = vrot.lane.b32.xlu0 %v578, 127
    %v588 = vpop.permute.xlu0 %587
    %589 = vrot.lane.b32.xlu0 %v579, 127
    %v590 = vpop.permute.xlu0 %589
    %591 = vrot.lane.b32.xlu0 %v580, 127
    %v592 = vpop.permute.xlu0 %591
    %v597 = vadd.f32 %v545, %v586
    %v598 = vadd.f32 %v546, %v588
    %v599 = vadd.f32 %v547, %v590
    %v600 = vadd.f32 %v548, %v592
    %s601 = sld [smem:[#allocation3 + $0xa]]
    %v602 = vstv %s601
    %v603 = vmul.f32 %v525, %v602
    %v604 = vmul.f32 %v526, %v602
    %v605 = vmul.f32 %v527, %v602
    %v606 = vmul.f32 %v528, %v602
    %611 = vrot.lane.b32.xlu0 %v603, 126
    %v612 = vpop.permute.xlu0 %611
    %613 = vrot.lane.b32.xlu0 %v604, 126
    %v614 = vpop.permute.xlu0 %613
    %615 = vrot.lane.b32.xlu0 %v605, 126
    %v616 = vpop.permute.xlu0 %615
    %617 = vrot.lane.b32.xlu0 %v606, 126
    %v618 = vpop.permute.xlu0 %617
    %v623 = vadd.f32 %v571, %v612
    %v624 = vadd.f32 %v572, %v614
    %v625 = vadd.f32 %v573, %v616
    %v626 = vadd.f32 %v574, %v618
    %s627 = sld [smem:[#allocation3 + $0xb]]
    %v628 = vstv %s627
    %v629 = vmul.f32 %v525, %v628
    %v630 = vmul.f32 %v526, %v628
    %v631 = vmul.f32 %v527, %v628
    %v632 = vmul.f32 %v528, %v628
    %637 = vrot.lane.b32.xlu0 %v629, 126
    %v638 = vpop.permute.xlu0 %637
    %639 = vrot.lane.b32.xlu0 %v630, 126
    %v640 = vpop.permute.xlu0 %639
    %641 = vrot.lane.b32.xlu0 %v631, 126
    %v642 = vpop.permute.xlu0 %641
    %643 = vrot.lane.b32.xlu0 %v632, 126
    %v644 = vpop.permute.xlu0 %643
    %v649 = vadd.f32 %v597, %v638
    %v650 = vadd.f32 %v598, %v640
    %v651 = vadd.f32 %v599, %v642
    %v652 = vadd.f32 %v600, %v644
    %v653 = vld [vmem:[%s130 + $0x1] sm:$0xff]
    %v654 = vld [vmem:[%s130 + $0x9] sm:$0xff]
    %v655 = vld [vmem:[%s130 + $0x19] sm:$0xff]
    %v656 = vld [vmem:[%s130 + $0x21] sm:$0xff]
    %s657 = sld [smem:[#allocation3 + $0xe]]
    %v658 = vstv %s657
    %v659 = vmul.f32 %v653, %v658
    %v660 = vmul.f32 %v654, %v658
    %v661 = vmul.f32 %v655, %v658
    %v662 = vmul.f32 %v656, %v658
    %v663 = vadd.f32 %v623, %v659
    %v664 = vadd.f32 %v624, %v660
    %v665 = vadd.f32 %v625, %v661
    %v666 = vadd.f32 %v626, %v662
    %s667 = sld [smem:[#allocation3 + $0xf]]
    %v668 = vstv %s667
    %v669 = vmul.f32 %v653, %v668
    %v670 = vmul.f32 %v654, %v668
    %v671 = vmul.f32 %v655, %v668
    %v672 = vmul.f32 %v656, %v668
    %v673 = vadd.f32 %v649, %v669
    %v674 = vadd.f32 %v650, %v670
    %v675 = vadd.f32 %v651, %v671
    %v676 = vadd.f32 %v652, %v672
    %s677 = sld [smem:[#allocation3 + $0x12]]
    %v678 = vstv %s677
    %v679 = vmul.f32 %v653, %v678
    %v680 = vmul.f32 %v654, %v678
    %v681 = vmul.f32 %v655, %v678
    %v682 = vmul.f32 %v656, %v678
    %687 = vrot.lane.b32.xlu0 %v679, 127
    %v688 = vpop.permute.xlu0 %687
    %689 = vrot.lane.b32.xlu0 %v680, 127
    %v690 = vpop.permute.xlu0 %689
    %691 = vrot.lane.b32.xlu0 %v681, 127
    %v692 = vpop.permute.xlu0 %691
    %693 = vrot.lane.b32.xlu0 %v682, 127
    %v694 = vpop.permute.xlu0 %693
    %v699 = vadd.f32 %v663, %v688
    %v700 = vadd.f32 %v664, %v690
    %v701 = vadd.f32 %v665, %v692
    %v702 = vadd.f32 %v666, %v694
    %s703 = sld [smem:[#allocation3 + $0x13]]
    %v704 = vstv %s703
    %v705 = vmul.f32 %v653, %v704
    %v706 = vmul.f32 %v654, %v704
    %v707 = vmul.f32 %v655, %v704
    %v708 = vmul.f32 %v656, %v704
    %713 = vrot.lane.b32.xlu0 %v705, 127
    %v714 = vpop.permute.xlu0 %713
    %715 = vrot.lane.b32.xlu0 %v706, 127
    %v716 = vpop.permute.xlu0 %715
    %717 = vrot.lane.b32.xlu0 %v707, 127
    %v718 = vpop.permute.xlu0 %717
    %719 = vrot.lane.b32.xlu0 %v708, 127
    %v720 = vpop.permute.xlu0 %719
    %v725 = vadd.f32 %v673, %v714
    %v726 = vadd.f32 %v674, %v716
    %v727 = vadd.f32 %v675, %v718
    %v728 = vadd.f32 %v676, %v720
    %s729 = sld [smem:[#allocation3 + $0x16]]
    %v730 = vstv %s729
    %v731 = vmul.f32 %v653, %v730
    %v732 = vmul.f32 %v654, %v730
    %v733 = vmul.f32 %v655, %v730
    %v734 = vmul.f32 %v656, %v730
    %739 = vrot.lane.b32.xlu0 %v731, 126
    %v740 = vpop.permute.xlu0 %739
    %741 = vrot.lane.b32.xlu0 %v732, 126
    %v742 = vpop.permute.xlu0 %741
    %743 = vrot.lane.b32.xlu0 %v733, 126
    %v744 = vpop.permute.xlu0 %743
    %745 = vrot.lane.b32.xlu0 %v734, 126
    %v746 = vpop.permute.xlu0 %745
    %v751 = vadd.f32 %v699, %v740
    %v752 = vadd.f32 %v700, %v742
    %v753 = vadd.f32 %v701, %v744
    %v754 = vadd.f32 %v702, %v746
    %s755 = sld [smem:[#allocation3 + $0x17]]
    %v756 = vstv %s755
    %v757 = vmul.f32 %v653, %v756
    %v758 = vmul.f32 %v654, %v756
    %v759 = vmul.f32 %v655, %v756
    %v760 = vmul.f32 %v656, %v756
    %765 = vrot.lane.b32.xlu0 %v757, 126
    %v766 = vpop.permute.xlu0 %765
    %767 = vrot.lane.b32.xlu0 %v758, 126
    %v768 = vpop.permute.xlu0 %767
    %769 = vrot.lane.b32.xlu0 %v759, 126
    %v770 = vpop.permute.xlu0 %769
    %771 = vrot.lane.b32.xlu0 %v760, 126
    %v772 = vpop.permute.xlu0 %771
    %v777 = vadd.f32 %v725, %v766
    %v778 = vadd.f32 %v726, %v768
    %v779 = vadd.f32 %v727, %v770
    %v780 = vadd.f32 %v728, %v772
    %v781 = vld [vmem:[%s130 + $0x2] sm:$0xff]
    %v782 = vld [vmem:[%s130 + $0xa] sm:$0xff]
    %v783 = vld [vmem:[%s130 + $0x1a] sm:$0xff]
    %v784 = vld [vmem:[%s130 + $0x22] sm:$0xff]
    %s785 = sld [smem:[#allocation3 + $0x1a]]
    %v786 = vstv %s785
    %v787 = vmul.f32 %v781, %v786
    %v788 = vmul.f32 %v782, %v786
    %v789 = vmul.f32 %v783, %v786
    %v790 = vmul.f32 %v784, %v786
    %v791 = vadd.f32 %v751, %v787
    %v792 = vadd.f32 %v752, %v788
    %v793 = vadd.f32 %v753, %v789
    %v794 = vadd.f32 %v754, %v790
    %s795 = sld [smem:[#allocation3 + $0x1b]]
    %v796 = vstv %s795
    %v797 = vmul.f32 %v781, %v796
    %v798 = vmul.f32 %v782, %v796
    %v799 = vmul.f32 %v783, %v796
    %v800 = vmul.f32 %v784, %v796
    %v801 = vadd.f32 %v777, %v797
    %v802 = vadd.f32 %v778, %v798
    %v803 = vadd.f32 %v779, %v799
    %v804 = vadd.f32 %v780, %v800
    %s805 = sld [smem:[#allocation3 + $0x1e]]
    %v806 = vstv %s805
    %v807 = vmul.f32 %v781, %v806
    %v808 = vmul.f32 %v782, %v806
    %v809 = vmul.f32 %v783, %v806
    %v810 = vmul.f32 %v784, %v806
    %815 = vrot.lane.b32.xlu0 %v807, 127
    %v816 = vpop.permute.xlu0 %815
    %817 = vrot.lane.b32.xlu0 %v808, 127
    %v818 = vpop.permute.xlu0 %817
    %819 = vrot.lane.b32.xlu0 %v809, 127
    %v820 = vpop.permute.xlu0 %819
    %821 = vrot.lane.b32.xlu0 %v810, 127
    %v822 = vpop.permute.xlu0 %821
    %v827 = vadd.f32 %v791, %v816
    %v828 = vadd.f32 %v792, %v818
    %v829 = vadd.f32 %v793, %v820
    %v830 = vadd.f32 %v794, %v822
    %s831 = sld [smem:[#allocation3 + $0x1f]]
    %v832 = vstv %s831
    %v833 = vmul.f32 %v781, %v832
    %v834 = vmul.f32 %v782, %v832
    %v835 = vmul.f32 %v783, %v832
    %v836 = vmul.f32 %v784, %v832
    %841 = vrot.lane.b32.xlu0 %v833, 127
    %v842 = vpop.permute.xlu0 %841
    %843 = vrot.lane.b32.xlu0 %v834, 127
    %v844 = vpop.permute.xlu0 %843
    %845 = vrot.lane.b32.xlu0 %v835, 127
    %v846 = vpop.permute.xlu0 %845
    %847 = vrot.lane.b32.xlu0 %v836, 127
    %v848 = vpop.permute.xlu0 %847
    %v853 = vadd.f32 %v801, %v842
    %v854 = vadd.f32 %v802, %v844
    %v855 = vadd.f32 %v803, %v846
    %v856 = vadd.f32 %v804, %v848
    %s857 = sld [smem:[#allocation3 + $0x22]]
    %v858 = vstv %s857
    %v859 = vmul.f32 %v781, %v858
    %v860 = vmul.f32 %v782, %v858
    %v861 = vmul.f32 %v783, %v858
    %v862 = vmul.f32 %v784, %v858
    %867 = vrot.lane.b32.xlu0 %v859, 126
    %v868 = vpop.permute.xlu0 %867
    %869 = vrot.lane.b32.xlu0 %v860, 126
    %v870 = vpop.permute.xlu0 %869
    %871 = vrot.lane.b32.xlu0 %v861, 126
    %v872 = vpop.permute.xlu0 %871
    %873 = vrot.lane.b32.xlu0 %v862, 126
    %v874 = vpop.permute.xlu0 %873
    %v879 = vadd.f32 %v827, %v868
    %v880 = vadd.f32 %v828, %v870
    %v881 = vadd.f32 %v829, %v872
    %v882 = vadd.f32 %v830, %v874
    %s883 = sld [smem:[#allocation3 + $0x23]]
    %v884 = vstv %s883
    %v885 = vmul.f32 %v781, %v884
    %v886 = vmul.f32 %v782, %v884
    %v887 = vmul.f32 %v783, %v884
    %v888 = vmul.f32 %v784, %v884
    %893 = vrot.lane.b32.xlu0 %v885, 126
    %v894 = vpop.permute.xlu0 %893
    %895 = vrot.lane.b32.xlu0 %v886, 126
    %v896 = vpop.permute.xlu0 %895
    %897 = vrot.lane.b32.xlu0 %v887, 126
    %v898 = vpop.permute.xlu0 %897
    %899 = vrot.lane.b32.xlu0 %v888, 126
    %v900 = vpop.permute.xlu0 %899
    %v905 = vadd.f32 %v853, %v894
    %v906 = vadd.f32 %v854, %v896
    %v907 = vadd.f32 %v855, %v898
    %v908 = vadd.f32 %v856, %v900
    %vm909 = vcmask 130048
    %v910 = vsel %vm909, %v879, 0.0
    %911 = vadd.xlane.f32.xlu0 %v910
    %v912 = vpop.xlane.xlu0 %911
    %v913 = vsel %vm909, %v880, 0.0
    %914 = vadd.xlane.f32.xlu0 %v913
    %v915 = vpop.xlane.xlu0 %914
    %v916 = vsel %vm909, %v881, 0.0
    %917 = vadd.xlane.f32.xlu0 %v916
    %v918 = vpop.xlane.xlu0 %917
    %v919 = vsel %vm909, %v882, 0.0
    %920 = vadd.xlane.f32.xlu0 %v919
    %v921 = vpop.xlane.xlu0 %920
    %v922 = vadd.f32 %v912, %v915
    %v923 = vrot.slane %v922, 4
    %v924 = vadd.f32 %v922, %v923
    %v925 = vrot.slane %v924, 2
    %v926 = vadd.f32 %v924, %v925
    %v927 = vrot.slane %v926, 1
    %v928 = vadd.f32 %v926, %v927
    %v929 = vadd.f32 %v918, %v921
    %v930 = vrot.slane %v929, 4
    %v931 = vadd.f32 %v929, %v930
    %v932 = vrot.slane %v931, 2
    %v933 = vadd.f32 %v931, %v932
    %v934 = vrot.slane %v933, 1
    %v935 = vadd.f32 %v933, %v934
    %v936 = vmul.f32 %v928, 0.00390625
    %v937 = vmul.f32 %v935, 0.00390625
    %v938 = vmul.f32 %v879, %v879
    %v939 = vmul.f32 %v880, %v880
    %v940 = vmul.f32 %v881, %v881
    %v941 = vmul.f32 %v882, %v882
    %v942 = vsel %vm909, %v938, 0.0
    %943 = vadd.xlane.f32.xlu0 %v942
    %v944 = vpop.xlane.xlu0 %943
    %v945 = vsel %vm909, %v939, 0.0
    %946 = vadd.xlane.f32.xlu0 %v945
    %v947 = vpop.xlane.xlu0 %946
    %v948 = vsel %vm909, %v940, 0.0
    %949 = vadd.xlane.f32.xlu0 %v948
    %v950 = vpop.xlane.xlu0 %949
    %v951 = vsel %vm909, %v941, 0.0
    %952 = vadd.xlane.f32.xlu0 %v951
    %v953 = vpop.xlane.xlu0 %952
    %v954 = vadd.f32 %v944, %v947
    %v955 = vrot.slane %v954, 4
    %v956 = vadd.f32 %v954, %v955
    %v957 = vrot.slane %v956, 2
    %v958 = vadd.f32 %v956, %v957
    %v959 = vrot.slane %v958, 1
    %v960 = vadd.f32 %v958, %v959
    %v961 = vadd.f32 %v950, %v953
    %v962 = vrot.slane %v961, 4
    %v963 = vadd.f32 %v961, %v962
    %v964 = vrot.slane %v963, 2
    %v965 = vadd.f32 %v963, %v964
    %v966 = vrot.slane %v965, 1
    %v967 = vadd.f32 %v965, %v966
    %v968 = vmul.f32 %v960, 0.00390625
    %v969 = vmul.f32 %v967, 0.00390625
    %v970 = vmul.f32 %v936, %v936
    %v971 = vmul.f32 %v937, %v937
    %v972 = vsub.f32 %v968, %v970
    %v973 = vsub.f32 %v969, %v971
    %v974 = vsub.f32 %v879, %v936
    %v975 = vsub.f32 %v880, %v936
    %v976 = vsub.f32 %v881, %v937
    %v977 = vsub.f32 %v882, %v937
    %v978 = vadd.f32 %v972, 1e-05
    %v979 = vadd.f32 %v973, 1e-05
    %v980 = vrsqrt.pop %v978
    %v981 = vrsqrt.pop %v979
    %v982 = vmul.f32 %v974, %v980
    %v983 = vmul.f32 %v975, %v980
    %v984 = vmul.f32 %v976, %v981
    %v985 = vmul.f32 %v977, %v981
    %s986 = sld [smem:[#allocation3 + $0x26]]
    %v987 = vstv %s986
    %v988 = vmul.f32 %v982, %v987
    %v989 = vmul.f32 %v983, %v987
    %v990 = vmul.f32 %v984, %v987
    %v991 = vmul.f32 %v985, %v987
    %s992 = sld [smem:[#allocation3 + $0x27]]
    %v993 = vstv %s992
    %v994 = vadd.f32 %v988, %v993
    %v995 = vadd.f32 %v989, %v993
    %v996 = vadd.f32 %v990, %v993
    %v997 = vadd.f32 %v991, %v993
    %vm998 = vcmp.gt.f32.partialorder %v994, 0.0
    %vm999 = vcmp.gt.f32.partialorder %v995, 0.0
    %vm1000 = vcmp.gt.f32.partialorder %v996, 0.0
    %vm1001 = vcmp.gt.f32.partialorder %v997, 0.0
    %v1002 = vmul.f32 %v994, 0.1
    %v1003 = vmul.f32 %v995, 0.1
    %v1004 = vmul.f32 %v996, 0.1
    %v1005 = vmul.f32 %v997, 0.1
    %v1006 = vsel %vm998, %v994, %v1002
    %v1007 = vsel %vm999, %v995, %v1003
    %v1008 = vsel %vm1000, %v996, %v1004
    %v1009 = vsel %vm1001, %v997, %v1005
    %vm1010 = vcmp.gt.f32.partialorder %v905, 0.0
    %vm1011 = vcmp.gt.f32.partialorder %v906, 0.0
    %vm1012 = vcmp.gt.f32.partialorder %v907, 0.0
    %vm1013 = vcmp.gt.f32.partialorder %v908, 0.0
    %v1014 = vmul.f32 %v905, 0.1
    %v1015 = vmul.f32 %v906, 0.1
    %v1016 = vmul.f32 %v907, 0.1
    %v1017 = vmul.f32 %v908, 0.1
    %v1018 = vsel %vm1010, %v905, %v1014
    %v1019 = vsel %vm1011, %v906, %v1015
    %v1020 = vsel %vm1012, %v907, %v1016
    %v1021 = vsel %vm1013, %v908, %v1017
    %1026 = vrot.lane.b32.xlu0 %v1006, 1
    %v1027 = vpop.permute.xlu0 %1026
    %1028 = vrot.lane.b32.xlu0 %v1007, 1
    %v1029 = vpop.permute.xlu0 %1028
    %1030 = vrot.lane.b32.xlu0 %v1008, 1
    %v1031 = vpop.permute.xlu0 %1030
    %1032 = vrot.lane.b32.xlu0 %v1009, 1
    %v1033 = vpop.permute.xlu0 %1032
    %s1038 = scalar_lea.vmem [#allocation2], 96
    %1039 = vst.msk [vmem:[%s1038 + $0x1] sm:$0xff] %vm109, %v1027
    %1040 = vst.msk [vmem:[%s1038 + $0x9] sm:$0xff] %vm109, %v1029
    %1041 = vst.msk [vmem:[%s1038 + $0x19] sm:$0xff] %vm109, %v1031
    %1042 = vst.msk [vmem:[%s1038 + $0x21] sm:$0xff] %vm109, %v1033
    %1047 = vrot.lane.b32.xlu0 %v1018, 1
    %v1048 = vpop.permute.xlu0 %1047
    %1049 = vrot.lane.b32.xlu0 %v1019, 1
    %v1050 = vpop.permute.xlu0 %1049
    %1051 = vrot.lane.b32.xlu0 %v1020, 1
    %v1052 = vpop.permute.xlu0 %1051
    %1053 = vrot.lane.b32.xlu0 %v1021, 1
    %v1054 = vpop.permute.xlu0 %1053
    %s1059 = scalar_lea.vmem [#allocation2], 144
    %1060 = vst.msk [vmem:[%s1059 + $0x1] sm:$0xff] %vm109, %v1048
    %1061 = vst.msk [vmem:[%s1059 + $0x9] sm:$0xff] %vm109, %v1050
    %1062 = vst.msk [vmem:[%s1059 + $0x19] sm:$0xff] %vm109, %v1052
    %1063 = vst.msk [vmem:[%s1059 + $0x21] sm:$0xff] %vm109, %v1054
    %s1064 = sld [smem:[#allocation3 + $0x4c]]
    %v1065 = vstv %s1064
    %v1066 = vadd.f32 %v1065, 0.0
    %s1067 = sld [smem:[#allocation3 + $0x4d]]
    %v1068 = vstv %s1067
    %v1069 = vadd.f32 %v1068, 0.0
    %v1070 = vld [vmem:[%s1038] sm:$0xff]
    %v1071 = vld [vmem:[%s1038 + $0x8] sm:$0xff]
    %v1072 = vld [vmem:[%s1038 + $0x18] sm:$0xff]
    %v1073 = vld [vmem:[%s1038 + $0x20] sm:$0xff]
    %s1074 = sld [smem:[#allocation3 + $0x28]]
    %v1075 = vstv %s1074
    %v1076 = vmul.f32 %v1070, %v1075
    %v1077 = vmul.f32 %v1071, %v1075
    %v1078 = vmul.f32 %v1072, %v1075
    %v1079 = vmul.f32 %v1073, %v1075
    %v1080 = vadd.f32 %v1066, %v1076
    %v1081 = vadd.f32 %v1066, %v1077
    %v1082 = vadd.f32 %v1066, %v1078
    %v1083 = vadd.f32 %v1066, %v1079
    %s1084 = sld [smem:[#allocation3 + $0x29]]
    %v1085 = vstv %s1084
    %v1086 = vmul.f32 %v1070, %v1085
    %v1087 = vmul.f32 %v1071, %v1085
    %v1088 = vmul.f32 %v1072, %v1085
    %v1089 = vmul.f32 %v1073, %v1085
    %v1090 = vadd.f32 %v1069, %v1086
    %v1091 = vadd.f32 %v1069, %v1087
    %v1092 = vadd.f32 %v1069, %v1088
    %v1093 = vadd.f32 %v1069, %v1089
    %s1094 = sld [smem:[#allocation3 + $0x2c]]
    %v1095 = vstv %s1094
    %v1096 = vmul.f32 %v1070, %v1095
    %v1097 = vmul.f32 %v1071, %v1095
    %v1098 = vmul.f32 %v1072, %v1095
    %v1099 = vmul.f32 %v1073, %v1095
    %1104 = vrot.lane.b32.xlu0 %v1096, 127
    %v1105 = vpop.permute.xlu0 %1104
    %1106 = vrot.lane.b32.xlu0 %v1097, 127
    %v1107 = vpop.permute.xlu0 %1106
    %1108 = vrot.lane.b32.xlu0 %v1098, 127
    %v1109 = vpop.permute.xlu0 %1108
    %1110 = vrot.lane.b32.xlu0 %v1099, 127
    %v1111 = vpop.permute.xlu0 %1110
    %v1116 = vadd.f32 %v1080, %v1105
    %v1117 = vadd.f32 %v1081, %v1107
    %v1118 = vadd.f32 %v1082, %v1109
    %v1119 = vadd.f32 %v1083, %v1111
    %s1120 = sld [smem:[#allocation3 + $0x2d]]
    %v1121 = vstv %s1120
    %v1122 = vmul.f32 %v1070, %v1121
    %v1123 = vmul.f32 %v1071, %v1121
    %v1124 = vmul.f32 %v1072, %v1121
    %v1125 = vmul.f32 %v1073, %v1121
    %1130 = vrot.lane.b32.xlu0 %v1122, 127
    %v1131 = vpop.permute.xlu0 %1130
    %1132 = vrot.lane.b32.xlu0 %v1123, 127
    %v1133 = vpop.permute.xlu0 %1132
    %1134 = vrot.lane.b32.xlu0 %v1124, 127
    %v1135 = vpop.permute.xlu0 %1134
    %1136 = vrot.lane.b32.xlu0 %v1125, 127
    %v1137 = vpop.permute.xlu0 %1136
    %v1142 = vadd.f32 %v1090, %v1131
    %v1143 = vadd.f32 %v1091, %v1133
    %v1144 = vadd.f32 %v1092, %v1135
    %v1145 = vadd.f32 %v1093, %v1137
    %s1146 = sld [smem:[#allocation3 + $0x30]]
    %v1147 = vstv %s1146
    %v1148 = vmul.f32 %v1070, %v1147
    %v1149 = vmul.f32 %v1071, %v1147
    %v1150 = vmul.f32 %v1072, %v1147
    %v1151 = vmul.f32 %v1073, %v1147
    %1156 = vrot.lane.b32.xlu0 %v1148, 126
    %v1157 = vpop.permute.xlu0 %1156
    %1158 = vrot.lane.b32.xlu0 %v1149, 126
    %v1159 = vpop.permute.xlu0 %1158
    %1160 = vrot.lane.b32.xlu0 %v1150, 126
    %v1161 = vpop.permute.xlu0 %1160
    %1162 = vrot.lane.b32.xlu0 %v1151, 126
    %v1163 = vpop.permute.xlu0 %1162
    %v1168 = vadd.f32 %v1116, %v1157
    %v1169 = vadd.f32 %v1117, %v1159
    %v1170 = vadd.f32 %v1118, %v1161
    %v1171 = vadd.f32 %v1119, %v1163
    %s1172 = sld [smem:[#allocation3 + $0x31]]
    %v1173 = vstv %s1172
    %v1174 = vmul.f32 %v1070, %v1173
    %v1175 = vmul.f32 %v1071, %v1173
    %v1176 = vmul.f32 %v1072, %v1173
    %v1177 = vmul.f32 %v1073, %v1173
    %1182 = vrot.lane.b32.xlu0 %v1174, 126
    %v1183 = vpop.permute.xlu0 %1182
    %1184 = vrot.lane.b32.xlu0 %v1175, 126
    %v1185 = vpop.permute.xlu0 %1184
    %1186 = vrot.lane.b32.xlu0 %v1176, 126
    %v1187 = vpop.permute.xlu0 %1186
    %1188 = vrot.lane.b32.xlu0 %v1177, 126
    %v1189 = vpop.permute.xlu0 %1188
    %v1194 = vadd.f32 %v1142, %v1183
    %v1195 = vadd.f32 %v1143, %v1185
    %v1196 = vadd.f32 %v1144, %v1187
    %v1197 = vadd.f32 %v1145, %v1189
    %v1198 = vld [vmem:[%s1038 + $0x1] sm:$0xff]
    %v1199 = vld [vmem:[%s1038 + $0x9] sm:$0xff]
    %v1200 = vld [vmem:[%s1038 + $0x19] sm:$0xff]
    %v1201 = vld [vmem:[%s1038 + $0x21] sm:$0xff]
    %s1202 = sld [smem:[#allocation3 + $0x34]]
    %v1203 = vstv %s1202
    %v1204 = vmul.f32 %v1198, %v1203
    %v1205 = vmul.f32 %v1199, %v1203
    %v1206 = vmul.f32 %v1200, %v1203
    %v1207 = vmul.f32 %v1201, %v1203
    %v1208 = vadd.f32 %v1168, %v1204
    %v1209 = vadd.f32 %v1169, %v1205
    %v1210 = vadd.f32 %v1170, %v1206
    %v1211 = vadd.f32 %v1171, %v1207
    %s1212 = sld [smem:[#allocation3 + $0x35]]
    %v1213 = vstv %s1212
    %v1214 = vmul.f32 %v1198, %v1213
    %v1215 = vmul.f32 %v1199, %v1213
    %v1216 = vmul.f32 %v1200, %v1213
    %v1217 = vmul.f32 %v1201, %v1213
    %v1218 = vadd.f32 %v1194, %v1214
    %v1219 = vadd.f32 %v1195, %v1215
    %v1220 = vadd.f32 %v1196, %v1216
    %v1221 = vadd.f32 %v1197, %v1217
    %s1222 = sld [smem:[#allocation3 + $0x38]]
    %v1223 = vstv %s1222
    %v1224 = vmul.f32 %v1198, %v1223
    %v1225 = vmul.f32 %v1199, %v1223
    %v1226 = vmul.f32 %v1200, %v1223
    %v1227 = vmul.f32 %v1201, %v1223
    %1232 = vrot.lane.b32.xlu0 %v1224, 127
    %v1233 = vpop.permute.xlu0 %1232
    %1234 = vrot.lane.b32.xlu0 %v1225, 127
    %v1235 = vpop.permute.xlu0 %1234
    %1236 = vrot.lane.b32.xlu0 %v1226, 127
    %v1237 = vpop.permute.xlu0 %1236
    %1238 = vrot.lane.b32.xlu0 %v1227, 127
    %v1239 = vpop.permute.xlu0 %1238
    %v1244 = vadd.f32 %v1208, %v1233
    %v1245 = vadd.f32 %v1209, %v1235
    %v1246 = vadd.f32 %v1210, %v1237
    %v1247 = vadd.f32 %v1211, %v1239
    %s1248 = sld [smem:[#allocation3 + $0x39]]
    %v1249 = vstv %s1248
    %v1250 = vmul.f32 %v1198, %v1249
    %v1251 = vmul.f32 %v1199, %v1249
    %v1252 = vmul.f32 %v1200, %v1249
    %v1253 = vmul.f32 %v1201, %v1249
    %1258 = vrot.lane.b32.xlu0 %v1250, 127
    %v1259 = vpop.permute.xlu0 %1258
    %1260 = vrot.lane.b32.xlu0 %v1251, 127
    %v1261 = vpop.permute.xlu0 %1260
    %1262 = vrot.lane.b32.xlu0 %v1252, 127
    %v1263 = vpop.permute.xlu0 %1262
    %1264 = vrot.lane.b32.xlu0 %v1253, 127
    %v1265 = vpop.permute.xlu0 %1264
    %v1270 = vadd.f32 %v1218, %v1259
    %v1271 = vadd.f32 %v1219, %v1261
    %v1272 = vadd.f32 %v1220, %v1263
    %v1273 = vadd.f32 %v1221, %v1265
    %s1274 = sld [smem:[#allocation3 + $0x3c]]
    %v1275 = vstv %s1274
    %v1276 = vmul.f32 %v1198, %v1275
    %v1277 = vmul.f32 %v1199, %v1275
    %v1278 = vmul.f32 %v1200, %v1275
    %v1279 = vmul.f32 %v1201, %v1275
    %1284 = vrot.lane.b32.xlu0 %v1276, 126
    %v1285 = vpop.permute.xlu0 %1284
    %1286 = vrot.lane.b32.xlu0 %v1277, 126
    %v1287 = vpop.permute.xlu0 %1286
    %1288 = vrot.lane.b32.xlu0 %v1278, 126
    %v1289 = vpop.permute.xlu0 %1288
    %1290 = vrot.lane.b32.xlu0 %v1279, 126
    %v1291 = vpop.permute.xlu0 %1290
    %v1296 = vadd.f32 %v1244, %v1285
    %v1297 = vadd.f32 %v1245, %v1287
    %v1298 = vadd.f32 %v1246, %v1289
    %v1299 = vadd.f32 %v1247, %v1291
    %s1300 = sld [smem:[#allocation3 + $0x3d]]
    %v1301 = vstv %s1300
    %v1302 = vmul.f32 %v1198, %v1301
    %v1303 = vmul.f32 %v1199, %v1301
    %v1304 = vmul.f32 %v1200, %v1301
    %v1305 = vmul.f32 %v1201, %v1301
    %1310 = vrot.lane.b32.xlu0 %v1302, 126
    %v1311 = vpop.permute.xlu0 %1310
    %1312 = vrot.lane.b32.xlu0 %v1303, 126
    %v1313 = vpop.permute.xlu0 %1312
    %1314 = vrot.lane.b32.xlu0 %v1304, 126
    %v1315 = vpop.permute.xlu0 %1314
    %1316 = vrot.lane.b32.xlu0 %v1305, 126
    %v1317 = vpop.permute.xlu0 %1316
    %v1322 = vadd.f32 %v1270, %v1311
    %v1323 = vadd.f32 %v1271, %v1313
    %v1324 = vadd.f32 %v1272, %v1315
    %v1325 = vadd.f32 %v1273, %v1317
    %v1326 = vld [vmem:[%s1038 + $0x2] sm:$0xff]
    %v1327 = vld [vmem:[%s1038 + $0xa] sm:$0xff]
    %v1328 = vld [vmem:[%s1038 + $0x1a] sm:$0xff]
    %v1329 = vld [vmem:[%s1038 + $0x22] sm:$0xff]
    %s1330 = sld [smem:[#allocation3 + $0x40]]
    %v1331 = vstv %s1330
    %v1332 = vmul.f32 %v1326, %v1331
    %v1333 = vmul.f32 %v1327, %v1331
    %v1334 = vmul.f32 %v1328, %v1331
    %v1335 = vmul.f32 %v1329, %v1331
    %v1336 = vadd.f32 %v1296, %v1332
    %v1337 = vadd.f32 %v1297, %v1333
    %v1338 = vadd.f32 %v1298, %v1334
    %v1339 = vadd.f32 %v1299, %v1335
    %s1340 = sld [smem:[#allocation3 + $0x41]]
    %v1341 = vstv %s1340
    %v1342 = vmul.f32 %v1326, %v1341
    %v1343 = vmul.f32 %v1327, %v1341
    %v1344 = vmul.f32 %v1328, %v1341
    %v1345 = vmul.f32 %v1329, %v1341
    %v1346 = vadd.f32 %v1322, %v1342
    %v1347 = vadd.f32 %v1323, %v1343
    %v1348 = vadd.f32 %v1324, %v1344
    %v1349 = vadd.f32 %v1325, %v1345
    %s1350 = sld [smem:[#allocation3 + $0x44]]
    %v1351 = vstv %s1350
    %v1352 = vmul.f32 %v1326, %v1351
    %v1353 = vmul.f32 %v1327, %v1351
    %v1354 = vmul.f32 %v1328, %v1351
    %v1355 = vmul.f32 %v1329, %v1351
    %1360 = vrot.lane.b32.xlu0 %v1352, 127
    %v1361 = vpop.permute.xlu0 %1360
    %1362 = vrot.lane.b32.xlu0 %v1353, 127
    %v1363 = vpop.permute.xlu0 %1362
    %1364 = vrot.lane.b32.xlu0 %v1354, 127
    %v1365 = vpop.permute.xlu0 %1364
    %1366 = vrot.lane.b32.xlu0 %v1355, 127
    %v1367 = vpop.permute.xlu0 %1366
    %v1372 = vadd.f32 %v1336, %v1361
    %v1373 = vadd.f32 %v1337, %v1363
    %v1374 = vadd.f32 %v1338, %v1365
    %v1375 = vadd.f32 %v1339, %v1367
    %s1376 = sld [smem:[#allocation3 + $0x45]]
    %v1377 = vstv %s1376
    %v1378 = vmul.f32 %v1326, %v1377
    %v1379 = vmul.f32 %v1327, %v1377
    %v1380 = vmul.f32 %v1328, %v1377
    %v1381 = vmul.f32 %v1329, %v1377
    %1386 = vrot.lane.b32.xlu0 %v1378, 127
    %v1387 = vpop.permute.xlu0 %1386
    %1388 = vrot.lane.b32.xlu0 %v1379, 127
    %v1389 = vpop.permute.xlu0 %1388
    %1390 = vrot.lane.b32.xlu0 %v1380, 127
    %v1391 = vpop.permute.xlu0 %1390
    %1392 = vrot.lane.b32.xlu0 %v1381, 127
    %v1393 = vpop.permute.xlu0 %1392
    %v1398 = vadd.f32 %v1346, %v1387
    %v1399 = vadd.f32 %v1347, %v1389
    %v1400 = vadd.f32 %v1348, %v1391
    %v1401 = vadd.f32 %v1349, %v1393
    %s1402 = sld [smem:[#allocation3 + $0x48]]
    %v1403 = vstv %s1402
    %v1404 = vmul.f32 %v1326, %v1403
    %v1405 = vmul.f32 %v1327, %v1403
    %v1406 = vmul.f32 %v1328, %v1403
    %v1407 = vmul.f32 %v1329, %v1403
    %1412 = vrot.lane.b32.xlu0 %v1404, 126
    %v1413 = vpop.permute.xlu0 %1412
    %1414 = vrot.lane.b32.xlu0 %v1405, 126
    %v1415 = vpop.permute.xlu0 %1414
    %1416 = vrot.lane.b32.xlu0 %v1406, 126
    %v1417 = vpop.permute.xlu0 %1416
    %1418 = vrot.lane.b32.xlu0 %v1407, 126
    %v1419 = vpop.permute.xlu0 %1418
    %v1424 = vadd.f32 %v1372, %v1413
    %v1425 = vadd.f32 %v1373, %v1415
    %v1426 = vadd.f32 %v1374, %v1417
    %v1427 = vadd.f32 %v1375, %v1419
    %s1428 = sld [smem:[#allocation3 + $0x49]]
    %v1429 = vstv %s1428
    %v1430 = vmul.f32 %v1326, %v1429
    %v1431 = vmul.f32 %v1327, %v1429
    %v1432 = vmul.f32 %v1328, %v1429
    %v1433 = vmul.f32 %v1329, %v1429
    %1438 = vrot.lane.b32.xlu0 %v1430, 126
    %v1439 = vpop.permute.xlu0 %1438
    %1440 = vrot.lane.b32.xlu0 %v1431, 126
    %v1441 = vpop.permute.xlu0 %1440
    %1442 = vrot.lane.b32.xlu0 %v1432, 126
    %v1443 = vpop.permute.xlu0 %1442
    %1444 = vrot.lane.b32.xlu0 %v1433, 126
    %v1445 = vpop.permute.xlu0 %1444
    %v1450 = vadd.f32 %v1398, %v1439
    %v1451 = vadd.f32 %v1399, %v1441
    %v1452 = vadd.f32 %v1400, %v1443
    %v1453 = vadd.f32 %v1401, %v1445
    %v1454 = vld [vmem:[%s1059] sm:$0xff]
    %v1455 = vld [vmem:[%s1059 + $0x8] sm:$0xff]
    %v1456 = vld [vmem:[%s1059 + $0x18] sm:$0xff]
    %v1457 = vld [vmem:[%s1059 + $0x20] sm:$0xff]
    %s1458 = sld [smem:[#allocation3 + $0x2a]]
    %v1459 = vstv %s1458
    %v1460 = vmul.f32 %v1454, %v1459
    %v1461 = vmul.f32 %v1455, %v1459
    %v1462 = vmul.f32 %v1456, %v1459
    %v1463 = vmul.f32 %v1457, %v1459
    %v1464 = vadd.f32 %v1424, %v1460
    %v1465 = vadd.f32 %v1425, %v1461
    %v1466 = vadd.f32 %v1426, %v1462
    %v1467 = vadd.f32 %v1427, %v1463
    %s1468 = sld [smem:[#allocation3 + $0x2b]]
    %v1469 = vstv %s1468
    %v1470 = vmul.f32 %v1454, %v1469
    %v1471 = vmul.f32 %v1455, %v1469
    %v1472 = vmul.f32 %v1456, %v1469
    %v1473 = vmul.f32 %v1457, %v1469
    %v1474 = vadd.f32 %v1450, %v1470
    %v1475 = vadd.f32 %v1451, %v1471
    %v1476 = vadd.f32 %v1452, %v1472
    %v1477 = vadd.f32 %v1453, %v1473
    %s1478 = sld [smem:[#allocation3 + $0x2e]]
    %v1479 = vstv %s1478
    %v1480 = vmul.f32 %v1454, %v1479
    %v1481 = vmul.f32 %v1455, %v1479
    %v1482 = vmul.f32 %v1456, %v1479
    %v1483 = vmul.f32 %v1457, %v1479
    %1488 = vrot.lane.b32.xlu0 %v1480, 127
    %v1489 = vpop.permute.xlu0 %1488
    %1490 = vrot.lane.b32.xlu0 %v1481, 127
    %v1491 = vpop.permute.xlu0 %1490
    %1492 = vrot.lane.b32.xlu0 %v1482, 127
    %v1493 = vpop.permute.xlu0 %1492
    %1494 = vrot.lane.b32.xlu0 %v1483, 127
    %v1495 = vpop.permute.xlu0 %1494
    %v1500 = vadd.f32 %v1464, %v1489
    %v1501 = vadd.f32 %v1465, %v1491
    %v1502 = vadd.f32 %v1466, %v1493
    %v1503 = vadd.f32 %v1467, %v1495
    %s1504 = sld [smem:[#allocation3 + $0x2f]]
    %v1505 = vstv %s1504
    %v1506 = vmul.f32 %v1454, %v1505
    %v1507 = vmul.f32 %v1455, %v1505
    %v1508 = vmul.f32 %v1456, %v1505
    %v1509 = vmul.f32 %v1457, %v1505
    %1514 = vrot.lane.b32.xlu0 %v1506, 127
    %v1515 = vpop.permute.xlu0 %1514
    %1516 = vrot.lane.b32.xlu0 %v1507, 127
    %v1517 = vpop.permute.xlu0 %1516
    %1518 = vrot.lane.b32.xlu0 %v1508, 127
    %v1519 = vpop.permute.xlu0 %1518
    %1520 = vrot.lane.b32.xlu0 %v1509, 127
    %v1521 = vpop.permute.xlu0 %1520
    %v1526 = vadd.f32 %v1474, %v1515
    %v1527 = vadd.f32 %v1475, %v1517
    %v1528 = vadd.f32 %v1476, %v1519
    %v1529 = vadd.f32 %v1477, %v1521
    %s1530 = sld [smem:[#allocation3 + $0x32]]
    %v1531 = vstv %s1530
    %v1532 = vmul.f32 %v1454, %v1531
    %v1533 = vmul.f32 %v1455, %v1531
    %v1534 = vmul.f32 %v1456, %v1531
    %v1535 = vmul.f32 %v1457, %v1531
    %1540 = vrot.lane.b32.xlu0 %v1532, 126
    %v1541 = vpop.permute.xlu0 %1540
    %1542 = vrot.lane.b32.xlu0 %v1533, 126
    %v1543 = vpop.permute.xlu0 %1542
    %1544 = vrot.lane.b32.xlu0 %v1534, 126
    %v1545 = vpop.permute.xlu0 %1544
    %1546 = vrot.lane.b32.xlu0 %v1535, 126
    %v1547 = vpop.permute.xlu0 %1546
    %v1552 = vadd.f32 %v1500, %v1541
    %v1553 = vadd.f32 %v1501, %v1543
    %v1554 = vadd.f32 %v1502, %v1545
    %v1555 = vadd.f32 %v1503, %v1547
    %s1556 = sld [smem:[#allocation3 + $0x33]]
    %v1557 = vstv %s1556
    %v1558 = vmul.f32 %v1454, %v1557
    %v1559 = vmul.f32 %v1455, %v1557
    %v1560 = vmul.f32 %v1456, %v1557
    %v1561 = vmul.f32 %v1457, %v1557
    %1566 = vrot.lane.b32.xlu0 %v1558, 126
    %v1567 = vpop.permute.xlu0 %1566
    %1568 = vrot.lane.b32.xlu0 %v1559, 126
    %v1569 = vpop.permute.xlu0 %1568
    %1570 = vrot.lane.b32.xlu0 %v1560, 126
    %v1571 = vpop.permute.xlu0 %1570
    %1572 = vrot.lane.b32.xlu0 %v1561, 126
    %v1573 = vpop.permute.xlu0 %1572
    %v1578 = vadd.f32 %v1526, %v1567
    %v1579 = vadd.f32 %v1527, %v1569
    %v1580 = vadd.f32 %v1528, %v1571
    %v1581 = vadd.f32 %v1529, %v1573
    %v1582 = vld [vmem:[%s1059 + $0x1] sm:$0xff]
    %v1583 = vld [vmem:[%s1059 + $0x9] sm:$0xff]
    %v1584 = vld [vmem:[%s1059 + $0x19] sm:$0xff]
    %v1585 = vld [vmem:[%s1059 + $0x21] sm:$0xff]
    %s1586 = sld [smem:[#allocation3 + $0x36]]
    %v1587 = vstv %s1586
    %v1588 = vmul.f32 %v1582, %v1587
    %v1589 = vmul.f32 %v1583, %v1587
    %v1590 = vmul.f32 %v1584, %v1587
    %v1591 = vmul.f32 %v1585, %v1587
    %v1592 = vadd.f32 %v1552, %v1588
    %v1593 = vadd.f32 %v1553, %v1589
    %v1594 = vadd.f32 %v1554, %v1590
    %v1595 = vadd.f32 %v1555, %v1591
    %s1596 = sld [smem:[#allocation3 + $0x37]]
    %v1597 = vstv %s1596
    %v1598 = vmul.f32 %v1582, %v1597
    %v1599 = vmul.f32 %v1583, %v1597
    %v1600 = vmul.f32 %v1584, %v1597
    %v1601 = vmul.f32 %v1585, %v1597
    %v1602 = vadd.f32 %v1578, %v1598
    %v1603 = vadd.f32 %v1579, %v1599
    %v1604 = vadd.f32 %v1580, %v1600
    %v1605 = vadd.f32 %v1581, %v1601
    %s1606 = sld [smem:[#allocation3 + $0x3a]]
    %v1607 = vstv %s1606
    %v1608 = vmul.f32 %v1582, %v1607
    %v1609 = vmul.f32 %v1583, %v1607
    %v1610 = vmul.f32 %v1584, %v1607
    %v1611 = vmul.f32 %v1585, %v1607
    %1616 = vrot.lane.b32.xlu0 %v1608, 127
    %v1617 = vpop.permute.xlu0 %1616
    %1618 = vrot.lane.b32.xlu0 %v1609, 127
    %v1619 = vpop.permute.xlu0 %1618
    %1620 = vrot.lane.b32.xlu0 %v1610, 127
    %v1621 = vpop.permute.xlu0 %1620
    %1622 = vrot.lane.b32.xlu0 %v1611, 127
    %v1623 = vpop.permute.xlu0 %1622
    %v1628 = vadd.f32 %v1592, %v1617
    %v1629 = vadd.f32 %v1593, %v1619
    %v1630 = vadd.f32 %v1594, %v1621
    %v1631 = vadd.f32 %v1595, %v1623
    %s1632 = sld [smem:[#allocation3 + $0x3b]]
    %v1633 = vstv %s1632
    %v1634 = vmul.f32 %v1582, %v1633
    %v1635 = vmul.f32 %v1583, %v1633
    %v1636 = vmul.f32 %v1584, %v1633
    %v1637 = vmul.f32 %v1585, %v1633
    %1642 = vrot.lane.b32.xlu0 %v1634, 127
    %v1643 = vpop.permute.xlu0 %1642
    %1644 = vrot.lane.b32.xlu0 %v1635, 127
    %v1645 = vpop.permute.xlu0 %1644
    %1646 = vrot.lane.b32.xlu0 %v1636, 127
    %v1647 = vpop.permute.xlu0 %1646
    %1648 = vrot.lane.b32.xlu0 %v1637, 127
    %v1649 = vpop.permute.xlu0 %1648
    %v1654 = vadd.f32 %v1602, %v1643
    %v1655 = vadd.f32 %v1603, %v1645
    %v1656 = vadd.f32 %v1604, %v1647
    %v1657 = vadd.f32 %v1605, %v1649
    %s1658 = sld [smem:[#allocation3 + $0x3e]]
    %v1659 = vstv %s1658
    %v1660 = vmul.f32 %v1582, %v1659
    %v1661 = vmul.f32 %v1583, %v1659
    %v1662 = vmul.f32 %v1584, %v1659
    %v1663 = vmul.f32 %v1585, %v1659
    %1668 = vrot.lane.b32.xlu0 %v1660, 126
    %v1669 = vpop.permute.xlu0 %1668
    %1670 = vrot.lane.b32.xlu0 %v1661, 126
    %v1671 = vpop.permute.xlu0 %1670
    %1672 = vrot.lane.b32.xlu0 %v1662, 126
    %v1673 = vpop.permute.xlu0 %1672
    %1674 = vrot.lane.b32.xlu0 %v1663, 126
    %v1675 = vpop.permute.xlu0 %1674
    %v1680 = vadd.f32 %v1628, %v1669
    %v1681 = vadd.f32 %v1629, %v1671
    %v1682 = vadd.f32 %v1630, %v1673
    %v1683 = vadd.f32 %v1631, %v1675
    %s1684 = sld [smem:[#allocation3 + $0x3f]]
    %v1685 = vstv %s1684
    %v1686 = vmul.f32 %v1582, %v1685
    %v1687 = vmul.f32 %v1583, %v1685
    %v1688 = vmul.f32 %v1584, %v1685
    %v1689 = vmul.f32 %v1585, %v1685
    %1694 = vrot.lane.b32.xlu0 %v1686, 126
    %v1695 = vpop.permute.xlu0 %1694
    %1696 = vrot.lane.b32.xlu0 %v1687, 126
    %v1697 = vpop.permute.xlu0 %1696
    %1698 = vrot.lane.b32.xlu0 %v1688, 126
    %v1699 = vpop.permute.xlu0 %1698
    %1700 = vrot.lane.b32.xlu0 %v1689, 126
    %v1701 = vpop.permute.xlu0 %1700
    %v1706 = vadd.f32 %v1654, %v1695
    %v1707 = vadd.f32 %v1655, %v1697
    %v1708 = vadd.f32 %v1656, %v1699
    %v1709 = vadd.f32 %v1657, %v1701
    %v1710 = vld [vmem:[%s1059 + $0x2] sm:$0xff]
    %v1711 = vld [vmem:[%s1059 + $0xa] sm:$0xff]
    %v1712 = vld [vmem:[%s1059 + $0x1a] sm:$0xff]
    %v1713 = vld [vmem:[%s1059 + $0x22] sm:$0xff]
    %s1714 = sld [smem:[#allocation3 + $0x42]]
    %v1715 = vstv %s1714
    %v1716 = vmul.f32 %v1710, %v1715
    %v1717 = vmul.f32 %v1711, %v1715
    %v1718 = vmul.f32 %v1712, %v1715
    %v1719 = vmul.f32 %v1713, %v1715
    %v1720 = vadd.f32 %v1680, %v1716
    %v1721 = vadd.f32 %v1681, %v1717
    %v1722 = vadd.f32 %v1682, %v1718
    %v1723 = vadd.f32 %v1683, %v1719
    %s1724 = sld [smem:[#allocation3 + $0x43]]
    %v1725 = vstv %s1724
    %v1726 = vmul.f32 %v1710, %v1725
    %v1727 = vmul.f32 %v1711, %v1725
    %v1728 = vmul.f32 %v1712, %v1725
    %v1729 = vmul.f32 %v1713, %v1725
    %v1730 = vadd.f32 %v1706, %v1726
    %v1731 = vadd.f32 %v1707, %v1727
    %v1732 = vadd.f32 %v1708, %v1728
    %v1733 = vadd.f32 %v1709, %v1729
    %s1734 = sld [smem:[#allocation3 + $0x46]]
    %v1735 = vstv %s1734
    %v1736 = vmul.f32 %v1710, %v1735
    %v1737 = vmul.f32 %v1711, %v1735
    %v1738 = vmul.f32 %v1712, %v1735
    %v1739 = vmul.f32 %v1713, %v1735
    %1744 = vrot.lane.b32.xlu0 %v1736, 127
    %v1745 = vpop.permute.xlu0 %1744
    %1746 = vrot.lane.b32.xlu0 %v1737, 127
    %v1747 = vpop.permute.xlu0 %1746
    %1748 = vrot.lane.b32.xlu0 %v1738, 127
    %v1749 = vpop.permute.xlu0 %1748
    %1750 = vrot.lane.b32.xlu0 %v1739, 127
    %v1751 = vpop.permute.xlu0 %1750
    %v1756 = vadd.f32 %v1720, %v1745
    %v1757 = vadd.f32 %v1721, %v1747
    %v1758 = vadd.f32 %v1722, %v1749
    %v1759 = vadd.f32 %v1723, %v1751
    %s1760 = sld [smem:[#allocation3 + $0x47]]
    %v1761 = vstv %s1760
    %v1762 = vmul.f32 %v1710, %v1761
    %v1763 = vmul.f32 %v1711, %v1761
    %v1764 = vmul.f32 %v1712, %v1761
    %v1765 = vmul.f32 %v1713, %v1761
    %1770 = vrot.lane.b32.xlu0 %v1762, 127
    %v1771 = vpop.permute.xlu0 %1770
    %1772 = vrot.lane.b32.xlu0 %v1763, 127
    %v1773 = vpop.permute.xlu0 %1772
    %1774 = vrot.lane.b32.xlu0 %v1764, 127
    %v1775 = vpop.permute.xlu0 %1774
    %1776 = vrot.lane.b32.xlu0 %v1765, 127
    %v1777 = vpop.permute.xlu0 %1776
    %v1782 = vadd.f32 %v1730, %v1771
    %v1783 = vadd.f32 %v1731, %v1773
    %v1784 = vadd.f32 %v1732, %v1775
    %v1785 = vadd.f32 %v1733, %v1777
    %s1786 = sld [smem:[#allocation3 + $0x4a]]
    %v1787 = vstv %s1786
    %v1788 = vmul.f32 %v1710, %v1787
    %v1789 = vmul.f32 %v1711, %v1787
    %v1790 = vmul.f32 %v1712, %v1787
    %v1791 = vmul.f32 %v1713, %v1787
    %1796 = vrot.lane.b32.xlu0 %v1788, 126
    %v1797 = vpop.permute.xlu0 %1796
    %1798 = vrot.lane.b32.xlu0 %v1789, 126
    %v1799 = vpop.permute.xlu0 %1798
    %1800 = vrot.lane.b32.xlu0 %v1790, 126
    %v1801 = vpop.permute.xlu0 %1800
    %1802 = vrot.lane.b32.xlu0 %v1791, 126
    %v1803 = vpop.permute.xlu0 %1802
    %v1808 = vadd.f32 %v1756, %v1797
    %v1809 = vadd.f32 %v1757, %v1799
    %v1810 = vadd.f32 %v1758, %v1801
    %v1811 = vadd.f32 %v1759, %v1803
    %s1812 = sld [smem:[#allocation3 + $0x4b]]
    %v1813 = vstv %s1812
    %v1814 = vmul.f32 %v1710, %v1813
    %v1815 = vmul.f32 %v1711, %v1813
    %v1816 = vmul.f32 %v1712, %v1813
    %v1817 = vmul.f32 %v1713, %v1813
    %1822 = vrot.lane.b32.xlu0 %v1814, 126
    %v1823 = vpop.permute.xlu0 %1822
    %1824 = vrot.lane.b32.xlu0 %v1815, 126
    %v1825 = vpop.permute.xlu0 %1824
    %1826 = vrot.lane.b32.xlu0 %v1816, 126
    %v1827 = vpop.permute.xlu0 %1826
    %1828 = vrot.lane.b32.xlu0 %v1817, 126
    %v1829 = vpop.permute.xlu0 %1828
    %v1834 = vadd.f32 %v1782, %v1823
    %v1835 = vadd.f32 %v1783, %v1825
    %v1836 = vadd.f32 %v1784, %v1827
    %v1837 = vadd.f32 %v1785, %v1829
    %s1838 = sld [smem:[#allocation3 + $0x52]]
    %v1839 = vstv %s1838
    %v1840 = vadd.f32 %v1839, 0.0
    %s1841 = sld [smem:[#allocation3 + $0x4e]]
    %v1842 = vstv %s1841
    %v1843 = vmul.f32 %v84, %v1842
    %v1844 = vmul.f32 %v85, %v1842
    %v1845 = vmul.f32 %v86, %v1842
    %v1846 = vmul.f32 %v87, %v1842
    %v1847 = vadd.f32 %v1840, %v1843
    %v1848 = vadd.f32 %v1840, %v1844
    %v1849 = vadd.f32 %v1840, %v1845
    %v1850 = vadd.f32 %v1840, %v1846
    %s1851 = sld [smem:[#allocation3 + $0x50]]
    %v1852 = vstv %s1851
    %v1853 = vmul.f32 %v89, %v1852
    %v1854 = vmul.f32 %v90, %v1852
    %v1855 = vmul.f32 %v91, %v1852
    %v1856 = vmul.f32 %v92, %v1852
    %v1857 = vadd.f32 %v1847, %v1853
    %v1858 = vadd.f32 %v1848, %v1854
    %v1859 = vadd.f32 %v1849, %v1855
    %v1860 = vadd.f32 %v1850, %v1856
    %vm1861 = vcmp.gt.f32.partialorder %v1808, 0.0
    %vm1862 = vcmp.gt.f32.partialorder %v1809, 0.0
    %vm1863 = vcmp.gt.f32.partialorder %v1810, 0.0
    %vm1864 = vcmp.gt.f32.partialorder %v1811, 0.0
    %v1865 = vmul.f32 %v1808, 0.1
    %v1866 = vmul.f32 %v1809, 0.1
    %v1867 = vmul.f32 %v1810, 0.1
    %v1868 = vmul.f32 %v1811, 0.1
    %v1869 = vsel %vm1861, %v1808, %v1865
    %v1870 = vsel %vm1862, %v1809, %v1866
    %v1871 = vsel %vm1863, %v1810, %v1867
    %v1872 = vsel %vm1864, %v1811, %v1868
    %v1873 = vadd.f32 %v1869, %v1857
    %v1874 = vadd.f32 %v1870, %v1858
    %v1875 = vadd.f32 %v1871, %v1859
    %v1876 = vadd.f32 %v1872, %v1860
    %s1877 = sld [smem:[#allocation3 + $0x53]]
    %v1878 = vstv %s1877
    %v1879 = vadd.f32 %v1878, 0.0
    %s1880 = sld [smem:[#allocation3 + $0x4f]]
    %v1881 = vstv %s1880
    %v1882 = vmul.f32 %v84, %v1881
    %v1883 = vmul.f32 %v85, %v1881
    %v1884 = vmul.f32 %v86, %v1881
    %v1885 = vmul.f32 %v87, %v1881
    %v1886 = vadd.f32 %v1879, %v1882
    %v1887 = vadd.f32 %v1879, %v1883
    %v1888 = vadd.f32 %v1879, %v1884
    %v1889 = vadd.f32 %v1879, %v1885
    %s1890 = sld [smem:[#allocation3 + $0x51]]
    %v1891 = vstv %s1890
    %v1892 = vmul.f32 %v89, %v1891
    %v1893 = vmul.f32 %v90, %v1891
    %v1894 = vmul.f32 %v91, %v1891
    %v1895 = vmul.f32 %v92, %v1891
    %v1896 = vadd.f32 %v1886, %v1892
    %v1897 = vadd.f32 %v1887, %v1893
    %v1898 = vadd.f32 %v1888, %v1894
    %v1899 = vadd.f32 %v1889, %v1895
    %vm1900 = vcmp.gt.f32.partialorder %v1834, 0.0
    %vm1901 = vcmp.gt.f32.partialorder %v1835, 0.0
    %vm1902 = vcmp.gt.f32.partialorder %v1836, 0.0
    %vm1903 = vcmp.gt.f32.partialorder %v1837, 0.0
    %v1904 = vmul.f32 %v1834, 0.1
    %v1905 = vmul.f32 %v1835, 0.1
    %v1906 = vmul.f32 %v1836, 0.1
    %v1907 = vmul.f32 %v1837, 0.1
    %v1908 = vsel %vm1900, %v1834, %v1904
    %v1909 = vsel %vm1901, %v1835, %v1905
    %v1910 = vsel %vm1902, %v1836, %v1906
    %v1911 = vsel %vm1903, %v1837, %v1907
    %v1912 = vadd.f32 %v1908, %v1896
    %v1913 = vadd.f32 %v1909, %v1897
    %v1914 = vadd.f32 %v1910, %v1898
    %v1915 = vadd.f32 %v1911, %v1899
    %v1916 = vadd.f32 %v74, %v1873
    %v1917 = vadd.f32 %v75, %v1874
    %v1918 = vadd.f32 %v76, %v1875
    %v1919 = vadd.f32 %v77, %v1876
    %v1920 = vadd.f32 %v79, %v1912
    %v1921 = vadd.f32 %v80, %v1913
    %v1922 = vadd.f32 %v81, %v1914
    %v1923 = vadd.f32 %v82, %v1915
    %1928 = vrot.lane.b32.xlu0 %v1916, 1
    %v1929 = vpop.permute.xlu0 %1928
    %1930 = vrot.lane.b32.xlu0 %v1917, 1
    %v1931 = vpop.permute.xlu0 %1930
    %1932 = vrot.lane.b32.xlu0 %v1918, 1
    %v1933 = vpop.permute.xlu0 %1932
    %1934 = vrot.lane.b32.xlu0 %v1919, 1
    %v1935 = vpop.permute.xlu0 %1934
    %1940 = vst.msk [vmem:[#allocation2 + $0x1] sm:$0xff] %vm109, %v1929
    %1941 = vst.msk [vmem:[#allocation2 + $0x9] sm:$0xff] %vm109, %v1931
    %1942 = vst.msk [vmem:[#allocation2 + $0x19] sm:$0xff] %vm109, %v1933
    %1943 = vst.msk [vmem:[#allocation2 + $0x21] sm:$0xff] %vm109, %v1935
    %1948 = vrot.lane.b32.xlu0 %v1920, 1
    %v1949 = vpop.permute.xlu0 %1948
    %1950 = vrot.lane.b32.xlu0 %v1921, 1
    %v1951 = vpop.permute.xlu0 %1950
    %1952 = vrot.lane.b32.xlu0 %v1922, 1
    %v1953 = vpop.permute.xlu0 %1952
    %1954 = vrot.lane.b32.xlu0 %v1923, 1
    %v1955 = vpop.permute.xlu0 %1954
    %1960 = vst.msk [vmem:[%s130 + $0x1] sm:$0xff] %vm109, %v1949
    %1961 = vst.msk [vmem:[%s130 + $0x9] sm:$0xff] %vm109, %v1951
    %1962 = vst.msk [vmem:[%s130 + $0x19] sm:$0xff] %vm109, %v1953
    %1963 = vst.msk [vmem:[%s130 + $0x21] sm:$0xff] %vm109, %v1955
    %s1964 = sld [smem:[#allocation3 + $0x78]]
    %v1965 = vstv %s1964
    %v1966 = vadd.f32 %v1965, 0.0
    %s1967 = sld [smem:[#allocation3 + $0x79]]
    %v1968 = vstv %s1967
    %v1969 = vadd.f32 %v1968, 0.0
    %v1970 = vld [vmem:[#allocation2] sm:$0xff]
    %v1971 = vld [vmem:[#allocation2 + $0x8] sm:$0xff]
    %v1972 = vld [vmem:[#allocation2 + $0x18] sm:$0xff]
    %v1973 = vld [vmem:[#allocation2 + $0x20] sm:$0xff]
    %s1974 = sld [smem:[#allocation3 + $0x54]]
    %v1975 = vstv %s1974
    %v1976 = vmul.f32 %v1970, %v1975
    %v1977 = vmul.f32 %v1971, %v1975
    %v1978 = vmul.f32 %v1972, %v1975
    %v1979 = vmul.f32 %v1973, %v1975
    %v1980 = vadd.f32 %v1966, %v1976
    %v1981 = vadd.f32 %v1966, %v1977
    %v1982 = vadd.f32 %v1966, %v1978
    %v1983 = vadd.f32 %v1966, %v1979
    %s1984 = sld [smem:[#allocation3 + $0x55]]
    %v1985 = vstv %s1984
    %v1986 = vmul.f32 %v1970, %v1985
    %v1987 = vmul.f32 %v1971, %v1985
    %v1988 = vmul.f32 %v1972, %v1985
    %v1989 = vmul.f32 %v1973, %v1985
    %v1990 = vadd.f32 %v1969, %v1986
    %v1991 = vadd.f32 %v1969, %v1987
    %v1992 = vadd.f32 %v1969, %v1988
    %v1993 = vadd.f32 %v1969, %v1989
    %s1994 = sld [smem:[#allocation3 + $0x58]]
    %v1995 = vstv %s1994
    %v1996 = vmul.f32 %v1970, %v1995
    %v1997 = vmul.f32 %v1971, %v1995
    %v1998 = vmul.f32 %v1972, %v1995
    %v1999 = vmul.f32 %v1973, %v1995
    %2004 = vrot.lane.b32.xlu0 %v1996, 127
    %v2005 = vpop.permute.xlu0 %2004
    %2006 = vrot.lane.b32.xlu0 %v1997, 127
    %v2007 = vpop.permute.xlu0 %2006
    %2008 = vrot.lane.b32.xlu0 %v1998, 127
    %v2009 = vpop.permute.xlu0 %2008
    %2010 = vrot.lane.b32.xlu0 %v1999, 127
    %v2011 = vpop.permute.xlu0 %2010
    %v2016 = vadd.f32 %v1980, %v2005
    %v2017 = vadd.f32 %v1981, %v2007
    %v2018 = vadd.f32 %v1982, %v2009
    %v2019 = vadd.f32 %v1983, %v2011
    %s2020 = sld [smem:[#allocation3 + $0x59]]
    %v2021 = vstv %s2020
    %v2022 = vmul.f32 %v1970, %v2021
    %v2023 = vmul.f32 %v1971, %v2021
    %v2024 = vmul.f32 %v1972, %v2021
    %v2025 = vmul.f32 %v1973, %v2021
    %2030 = vrot.lane.b32.xlu0 %v2022, 127
    %v2031 = vpop.permute.xlu0 %2030
    %2032 = vrot.lane.b32.xlu0 %v2023, 127
    %v2033 = vpop.permute.xlu0 %2032
    %2034 = vrot.lane.b32.xlu0 %v2024, 127
    %v2035 = vpop.permute.xlu0 %2034
    %2036 = vrot.lane.b32.xlu0 %v2025, 127
    %v2037 = vpop.permute.xlu0 %2036
    %v2042 = vadd.f32 %v1990, %v2031
    %v2043 = vadd.f32 %v1991, %v2033
    %v2044 = vadd.f32 %v1992, %v2035
    %v2045 = vadd.f32 %v1993, %v2037
    %s2046 = sld [smem:[#allocation3 + $0x5c]]
    %v2047 = vstv %s2046
    %v2048 = vmul.f32 %v1970, %v2047
    %v2049 = vmul.f32 %v1971, %v2047
    %v2050 = vmul.f32 %v1972, %v2047
    %v2051 = vmul.f32 %v1973, %v2047
    %2056 = vrot.lane.b32.xlu0 %v2048, 126
    %v2057 = vpop.permute.xlu0 %2056
    %2058 = vrot.lane.b32.xlu0 %v2049, 126
    %v2059 = vpop.permute.xlu0 %2058
    %2060 = vrot.lane.b32.xlu0 %v2050, 126
    %v2061 = vpop.permute.xlu0 %2060
    %2062 = vrot.lane.b32.xlu0 %v2051, 126
    %v2063 = vpop.permute.xlu0 %2062
    %v2068 = vadd.f32 %v2016, %v2057
    %v2069 = vadd.f32 %v2017, %v2059
    %v2070 = vadd.f32 %v2018, %v2061
    %v2071 = vadd.f32 %v2019, %v2063
    %s2072 = sld [smem:[#allocation3 + $0x5d]]
    %v2073 = vstv %s2072
    %v2074 = vmul.f32 %v1970, %v2073
    %v2075 = vmul.f32 %v1971, %v2073
    %v2076 = vmul.f32 %v1972, %v2073
    %v2077 = vmul.f32 %v1973, %v2073
    %2082 = vrot.lane.b32.xlu0 %v2074, 126
    %v2083 = vpop.permute.xlu0 %2082
    %2084 = vrot.lane.b32.xlu0 %v2075, 126
    %v2085 = vpop.permute.xlu0 %2084
    %2086 = vrot.lane.b32.xlu0 %v2076, 126
    %v2087 = vpop.permute.xlu0 %2086
    %2088 = vrot.lane.b32.xlu0 %v2077, 126
    %v2089 = vpop.permute.xlu0 %2088
    %v2094 = vadd.f32 %v2042, %v2083
    %v2095 = vadd.f32 %v2043, %v2085
    %v2096 = vadd.f32 %v2044, %v2087
    %v2097 = vadd.f32 %v2045, %v2089
    %v2098 = vld [vmem:[#allocation2 + $0x1] sm:$0xff]
    %v2099 = vld [vmem:[#allocation2 + $0x9] sm:$0xff]
    %v2100 = vld [vmem:[#allocation2 + $0x19] sm:$0xff]
    %v2101 = vld [vmem:[#allocation2 + $0x21] sm:$0xff]
    %s2102 = sld [smem:[#allocation3 + $0x60]]
    %v2103 = vstv %s2102
    %v2104 = vmul.f32 %v2098, %v2103
    %v2105 = vmul.f32 %v2099, %v2103
    %v2106 = vmul.f32 %v2100, %v2103
    %v2107 = vmul.f32 %v2101, %v2103
    %v2108 = vadd.f32 %v2068, %v2104
    %v2109 = vadd.f32 %v2069, %v2105
    %v2110 = vadd.f32 %v2070, %v2106
    %v2111 = vadd.f32 %v2071, %v2107
    %s2112 = sld [smem:[#allocation3 + $0x61]]
    %v2113 = vstv %s2112
    %v2114 = vmul.f32 %v2098, %v2113
    %v2115 = vmul.f32 %v2099, %v2113
    %v2116 = vmul.f32 %v2100, %v2113
    %v2117 = vmul.f32 %v2101, %v2113
    %v2118 = vadd.f32 %v2094, %v2114
    %v2119 = vadd.f32 %v2095, %v2115
    %v2120 = vadd.f32 %v2096, %v2116
    %v2121 = vadd.f32 %v2097, %v2117
    %s2122 = sld [smem:[#allocation3 + $0x64]]
    %v2123 = vstv %s2122
    %v2124 = vmul.f32 %v2098, %v2123
    %v2125 = vmul.f32 %v2099, %v2123
    %v2126 = vmul.f32 %v2100, %v2123
    %v2127 = vmul.f32 %v2101, %v2123
    %2132 = vrot.lane.b32.xlu0 %v2124, 127
    %v2133 = vpop.permute.xlu0 %2132
    %2134 = vrot.lane.b32.xlu0 %v2125, 127
    %v2135 = vpop.permute.xlu0 %2134
    %2136 = vrot.lane.b32.xlu0 %v2126, 127
    %v2137 = vpop.permute.xlu0 %2136
    %2138 = vrot.lane.b32.xlu0 %v2127, 127
    %v2139 = vpop.permute.xlu0 %2138
    %v2144 = vadd.f32 %v2108, %v2133
    %v2145 = vadd.f32 %v2109, %v2135
    %v2146 = vadd.f32 %v2110, %v2137
    %v2147 = vadd.f32 %v2111, %v2139
    %s2148 = sld [smem:[#allocation3 + $0x65]]
    %v2149 = vstv %s2148
    %v2150 = vmul.f32 %v2098, %v2149
    %v2151 = vmul.f32 %v2099, %v2149
    %v2152 = vmul.f32 %v2100, %v2149
    %v2153 = vmul.f32 %v2101, %v2149
    %2158 = vrot.lane.b32.xlu0 %v2150, 127
    %v2159 = vpop.permute.xlu0 %2158
    %2160 = vrot.lane.b32.xlu0 %v2151, 127
    %v2161 = vpop.permute.xlu0 %2160
    %2162 = vrot.lane.b32.xlu0 %v2152, 127
    %v2163 = vpop.permute.xlu0 %2162
    %2164 = vrot.lane.b32.xlu0 %v2153, 127
    %v2165 = vpop.permute.xlu0 %2164
    %v2170 = vadd.f32 %v2118, %v2159
    %v2171 = vadd.f32 %v2119, %v2161
    %v2172 = vadd.f32 %v2120, %v2163
    %v2173 = vadd.f32 %v2121, %v2165
    %s2174 = sld [smem:[#allocation3 + $0x68]]
    %v2175 = vstv %s2174
    %v2176 = vmul.f32 %v2098, %v2175
    %v2177 = vmul.f32 %v2099, %v2175
    %v2178 = vmul.f32 %v2100, %v2175
    %v2179 = vmul.f32 %v2101, %v2175
    %2184 = vrot.lane.b32.xlu0 %v2176, 126
    %v2185 = vpop.permute.xlu0 %2184
    %2186 = vrot.lane.b32.xlu0 %v2177, 126
    %v2187 = vpop.permute.xlu0 %2186
    %2188 = vrot.lane.b32.xlu0 %v2178, 126
    %v2189 = vpop.permute.xlu0 %2188
    %2190 = vrot.lane.b32.xlu0 %v2179, 126
    %v2191 = vpop.permute.xlu0 %2190
    %v2196 = vadd.f32 %v2144, %v2185
    %v2197 = vadd.f32 %v2145, %v2187
    %v2198 = vadd.f32 %v2146, %v2189
    %v2199 = vadd.f32 %v2147, %v2191
    %s2200 = sld [smem:[#allocation3 + $0x69]]
    %v2201 = vstv %s2200
    %v2202 = vmul.f32 %v2098, %v2201
    %v2203 = vmul.f32 %v2099, %v2201
    %v2204 = vmul.f32 %v2100, %v2201
    %v2205 = vmul.f32 %v2101, %v2201
    %2210 = vrot.lane.b32.xlu0 %v2202, 126
    %v2211 = vpop.permute.xlu0 %2210
    %2212 = vrot.lane.b32.xlu0 %v2203, 126
    %v2213 = vpop.permute.xlu0 %2212
    %2214 = vrot.lane.b32.xlu0 %v2204, 126
    %v2215 = vpop.permute.xlu0 %2214
    %2216 = vrot.lane.b32.xlu0 %v2205, 126
    %v2217 = vpop.permute.xlu0 %2216
    %v2222 = vadd.f32 %v2170, %v2211
    %v2223 = vadd.f32 %v2171, %v2213
    %v2224 = vadd.f32 %v2172, %v2215
    %v2225 = vadd.f32 %v2173, %v2217
    %v2226 = vld [vmem:[#allocation2 + $0x2] sm:$0xff]
    %v2227 = vld [vmem:[#allocation2 + $0xa] sm:$0xff]
    %v2228 = vld [vmem:[#allocation2 + $0x1a] sm:$0xff]
    %v2229 = vld [vmem:[#allocation2 + $0x22] sm:$0xff]
    %s2230 = sld [smem:[#allocation3 + $0x6c]]
    %v2231 = vstv %s2230
    %v2232 = vmul.f32 %v2226, %v2231
    %v2233 = vmul.f32 %v2227, %v2231
    %v2234 = vmul.f32 %v2228, %v2231
    %v2235 = vmul.f32 %v2229, %v2231
    %v2236 = vadd.f32 %v2196, %v2232
    %v2237 = vadd.f32 %v2197, %v2233
    %v2238 = vadd.f32 %v2198, %v2234
    %v2239 = vadd.f32 %v2199, %v2235
    %s2240 = sld [smem:[#allocation3 + $0x6d]]
    %v2241 = vstv %s2240
    %v2242 = vmul.f32 %v2226, %v2241
    %v2243 = vmul.f32 %v2227, %v2241
    %v2244 = vmul.f32 %v2228, %v2241
    %v2245 = vmul.f32 %v2229, %v2241
    %v2246 = vadd.f32 %v2222, %v2242
    %v2247 = vadd.f32 %v2223, %v2243
    %v2248 = vadd.f32 %v2224, %v2244
    %v2249 = vadd.f32 %v2225, %v2245
    %s2250 = sld [smem:[#allocation3 + $0x70]]
    %v2251 = vstv %s2250
    %v2252 = vmul.f32 %v2226, %v2251
    %v2253 = vmul.f32 %v2227, %v2251
    %v2254 = vmul.f32 %v2228, %v2251
    %v2255 = vmul.f32 %v2229, %v2251
    %2260 = vrot.lane.b32.xlu0 %v2252, 127
    %v2261 = vpop.permute.xlu0 %2260
    %2262 = vrot.lane.b32.xlu0 %v2253, 127
    %v2263 = vpop.permute.xlu0 %2262
    %2264 = vrot.lane.b32.xlu0 %v2254, 127
    %v2265 = vpop.permute.xlu0 %2264
    %2266 = vrot.lane.b32.xlu0 %v2255, 127
    %v2267 = vpop.permute.xlu0 %2266
    %v2272 = vadd.f32 %v2236, %v2261
    %v2273 = vadd.f32 %v2237, %v2263
    %v2274 = vadd.f32 %v2238, %v2265
    %v2275 = vadd.f32 %v2239, %v2267
    %s2276 = sld [smem:[#allocation3 + $0x71]]
    %v2277 = vstv %s2276
    %v2278 = vmul.f32 %v2226, %v2277
    %v2279 = vmul.f32 %v2227, %v2277
    %v2280 = vmul.f32 %v2228, %v2277
    %v2281 = vmul.f32 %v2229, %v2277
    %2286 = vrot.lane.b32.xlu0 %v2278, 127
    %v2287 = vpop.permute.xlu0 %2286
    %2288 = vrot.lane.b32.xlu0 %v2279, 127
    %v2289 = vpop.permute.xlu0 %2288
    %2290 = vrot.lane.b32.xlu0 %v2280, 127
    %v2291 = vpop.permute.xlu0 %2290
    %2292 = vrot.lane.b32.xlu0 %v2281, 127
    %v2293 = vpop.permute.xlu0 %2292
    %v2298 = vadd.f32 %v2246, %v2287
    %v2299 = vadd.f32 %v2247, %v2289
    %v2300 = vadd.f32 %v2248, %v2291
    %v2301 = vadd.f32 %v2249, %v2293
    %s2302 = sld [smem:[#allocation3 + $0x74]]
    %v2303 = vstv %s2302
    %v2304 = vmul.f32 %v2226, %v2303
    %v2305 = vmul.f32 %v2227, %v2303
    %v2306 = vmul.f32 %v2228, %v2303
    %v2307 = vmul.f32 %v2229, %v2303
    %2312 = vrot.lane.b32.xlu0 %v2304, 126
    %v2313 = vpop.permute.xlu0 %2312
    %2314 = vrot.lane.b32.xlu0 %v2305, 126
    %v2315 = vpop.permute.xlu0 %2314
    %2316 = vrot.lane.b32.xlu0 %v2306, 126
    %v2317 = vpop.permute.xlu0 %2316
    %2318 = vrot.lane.b32.xlu0 %v2307, 126
    %v2319 = vpop.permute.xlu0 %2318
    %v2324 = vadd.f32 %v2272, %v2313
    %v2325 = vadd.f32 %v2273, %v2315
    %v2326 = vadd.f32 %v2274, %v2317
    %v2327 = vadd.f32 %v2275, %v2319
    %s2328 = sld [smem:[#allocation3 + $0x75]]
    %v2329 = vstv %s2328
    %v2330 = vmul.f32 %v2226, %v2329
    %v2331 = vmul.f32 %v2227, %v2329
    %v2332 = vmul.f32 %v2228, %v2329
    %v2333 = vmul.f32 %v2229, %v2329
    %2338 = vrot.lane.b32.xlu0 %v2330, 126
    %v2339 = vpop.permute.xlu0 %2338
    %2340 = vrot.lane.b32.xlu0 %v2331, 126
    %v2341 = vpop.permute.xlu0 %2340
    %2342 = vrot.lane.b32.xlu0 %v2332, 126
    %v2343 = vpop.permute.xlu0 %2342
    %2344 = vrot.lane.b32.xlu0 %v2333, 126
    %v2345 = vpop.permute.xlu0 %2344
    %v2350 = vadd.f32 %v2298, %v2339
    %v2351 = vadd.f32 %v2299, %v2341
    %v2352 = vadd.f32 %v2300, %v2343
    %v2353 = vadd.f32 %v2301, %v2345
    %v2354 = vld [vmem:[%s130] sm:$0xff]
    %v2355 = vld [vmem:[%s130 + $0x8] sm:$0xff]
    %v2356 = vld [vmem:[%s130 + $0x18] sm:$0xff]
    %v2357 = vld [vmem:[%s130 + $0x20] sm:$0xff]
    %s2358 = sld [smem:[#allocation3 + $0x56]]
    %v2359 = vstv %s2358
    %v2360 = vmul.f32 %v2354, %v2359
    %v2361 = vmul.f32 %v2355, %v2359
    %v2362 = vmul.f32 %v2356, %v2359
    %v2363 = vmul.f32 %v2357, %v2359
    %v2364 = vadd.f32 %v2324, %v2360
    %v2365 = vadd.f32 %v2325, %v2361
    %v2366 = vadd.f32 %v2326, %v2362
    %v2367 = vadd.f32 %v2327, %v2363
    %s2368 = sld [smem:[#allocation3 + $0x57]]
    %v2369 = vstv %s2368
    %v2370 = vmul.f32 %v2354, %v2369
    %v2371 = vmul.f32 %v2355, %v2369
    %v2372 = vmul.f32 %v2356, %v2369
    %v2373 = vmul.f32 %v2357, %v2369
    %v2374 = vadd.f32 %v2350, %v2370
    %v2375 = vadd.f32 %v2351, %v2371
    %v2376 = vadd.f32 %v2352, %v2372
    %v2377 = vadd.f32 %v2353, %v2373
    %s2378 = sld [smem:[#allocation3 + $0x5a]]
    %v2379 = vstv %s2378
    %v2380 = vmul.f32 %v2354, %v2379
    %v2381 = vmul.f32 %v2355, %v2379
    %v2382 = vmul.f32 %v2356, %v2379
    %v2383 = vmul.f32 %v2357, %v2379
    %2388 = vrot.lane.b32.xlu0 %v2380, 127
    %v2389 = vpop.permute.xlu0 %2388
    %2390 = vrot.lane.b32.xlu0 %v2381, 127
    %v2391 = vpop.permute.xlu0 %2390
    %2392 = vrot.lane.b32.xlu0 %v2382, 127
    %v2393 = vpop.permute.xlu0 %2392
    %2394 = vrot.lane.b32.xlu0 %v2383, 127
    %v2395 = vpop.permute.xlu0 %2394
    %v2400 = vadd.f32 %v2364, %v2389
    %v2401 = vadd.f32 %v2365, %v2391
    %v2402 = vadd.f32 %v2366, %v2393
    %v2403 = vadd.f32 %v2367, %v2395
    %s2404 = sld [smem:[#allocation3 + $0x5b]]
    %v2405 = vstv %s2404
    %v2406 = vmul.f32 %v2354, %v2405
    %v2407 = vmul.f32 %v2355, %v2405
    %v2408 = vmul.f32 %v2356, %v2405
    %v2409 = vmul.f32 %v2357, %v2405
    %2414 = vrot.lane.b32.xlu0 %v2406, 127
    %v2415 = vpop.permute.xlu0 %2414
    %2416 = vrot.lane.b32.xlu0 %v2407, 127
    %v2417 = vpop.permute.xlu0 %2416
    %2418 = vrot.lane.b32.xlu0 %v2408, 127
    %v2419 = vpop.permute.xlu0 %2418
    %2420 = vrot.lane.b32.xlu0 %v2409, 127
    %v2421 = vpop.permute.xlu0 %2420
    %v2426 = vadd.f32 %v2374, %v2415
    %v2427 = vadd.f32 %v2375, %v2417
    %v2428 = vadd.f32 %v2376, %v2419
    %v2429 = vadd.f32 %v2377, %v2421
    %s2430 = sld [smem:[#allocation3 + $0x5e]]
    %v2431 = vstv %s2430
    %v2432 = vmul.f32 %v2354, %v2431
    %v2433 = vmul.f32 %v2355, %v2431
    %v2434 = vmul.f32 %v2356, %v2431
    %v2435 = vmul.f32 %v2357, %v2431
    %2440 = vrot.lane.b32.xlu0 %v2432, 126
    %v2441 = vpop.permute.xlu0 %2440
    %2442 = vrot.lane.b32.xlu0 %v2433, 126
    %v2443 = vpop.permute.xlu0 %2442
    %2444 = vrot.lane.b32.xlu0 %v2434, 126
    %v2445 = vpop.permute.xlu0 %2444
    %2446 = vrot.lane.b32.xlu0 %v2435, 126
    %v2447 = vpop.permute.xlu0 %2446
    %v2452 = vadd.f32 %v2400, %v2441
    %v2453 = vadd.f32 %v2401, %v2443
    %v2454 = vadd.f32 %v2402, %v2445
    %v2455 = vadd.f32 %v2403, %v2447
    %s2456 = sld [smem:[#allocation3 + $0x5f]]
    %v2457 = vstv %s2456
    %v2458 = vmul.f32 %v2354, %v2457
    %v2459 = vmul.f32 %v2355, %v2457
    %v2460 = vmul.f32 %v2356, %v2457
    %v2461 = vmul.f32 %v2357, %v2457
    %2466 = vrot.lane.b32.xlu0 %v2458, 126
    %v2467 = vpop.permute.xlu0 %2466
    %2468 = vrot.lane.b32.xlu0 %v2459, 126
    %v2469 = vpop.permute.xlu0 %2468
    %2470 = vrot.lane.b32.xlu0 %v2460, 126
    %v2471 = vpop.permute.xlu0 %2470
    %2472 = vrot.lane.b32.xlu0 %v2461, 126
    %v2473 = vpop.permute.xlu0 %2472
    %v2478 = vadd.f32 %v2426, %v2467
    %v2479 = vadd.f32 %v2427, %v2469
    %v2480 = vadd.f32 %v2428, %v2471
    %v2481 = vadd.f32 %v2429, %v2473
    %v2482 = vld [vmem:[%s130 + $0x1] sm:$0xff]
    %v2483 = vld [vmem:[%s130 + $0x9] sm:$0xff]
    %v2484 = vld [vmem:[%s130 + $0x19] sm:$0xff]
    %v2485 = vld [vmem:[%s130 + $0x21] sm:$0xff]
    %s2486 = sld [smem:[#allocation3 + $0x62]]
    %v2487 = vstv %s2486
    %v2488 = vmul.f32 %v2482, %v2487
    %v2489 = vmul.f32 %v2483, %v2487
    %v2490 = vmul.f32 %v2484, %v2487
    %v2491 = vmul.f32 %v2485, %v2487
    %v2492 = vadd.f32 %v2452, %v2488
    %v2493 = vadd.f32 %v2453, %v2489
    %v2494 = vadd.f32 %v2454, %v2490
    %v2495 = vadd.f32 %v2455, %v2491
    %s2496 = sld [smem:[#allocation3 + $0x63]]
    %v2497 = vstv %s2496
    %v2498 = vmul.f32 %v2482, %v2497
    %v2499 = vmul.f32 %v2483, %v2497
    %v2500 = vmul.f32 %v2484, %v2497
    %v2501 = vmul.f32 %v2485, %v2497
    %v2502 = vadd.f32 %v2478, %v2498
    %v2503 = vadd.f32 %v2479, %v2499
    %v2504 = vadd.f32 %v2480, %v2500
    %v2505 = vadd.f32 %v2481, %v2501
    %s2506 = sld [smem:[#allocation3 + $0x66]]
    %v2507 = vstv %s2506
    %v2508 = vmul.f32 %v2482, %v2507
    %v2509 = vmul.f32 %v2483, %v2507
    %v2510 = vmul.f32 %v2484, %v2507
    %v2511 = vmul.f32 %v2485, %v2507
    %2516 = vrot.lane.b32.xlu0 %v2508, 127
    %v2517 = vpop.permute.xlu0 %2516
    %2518 = vrot.lane.b32.xlu0 %v2509, 127
    %v2519 = vpop.permute.xlu0 %2518
    %2520 = vrot.lane.b32.xlu0 %v2510, 127
    %v2521 = vpop.permute.xlu0 %2520
    %2522 = vrot.lane.b32.xlu0 %v2511, 127
    %v2523 = vpop.permute.xlu0 %2522
    %v2528 = vadd.f32 %v2492, %v2517
    %v2529 = vadd.f32 %v2493, %v2519
    %v2530 = vadd.f32 %v2494, %v2521
    %v2531 = vadd.f32 %v2495, %v2523
    %s2532 = sld [smem:[#allocation3 + $0x67]]
    %v2533 = vstv %s2532
    %v2534 = vmul.f32 %v2482, %v2533
    %v2535 = vmul.f32 %v2483, %v2533
    %v2536 = vmul.f32 %v2484, %v2533
    %v2537 = vmul.f32 %v2485, %v2533
    %2542 = vrot.lane.b32.xlu0 %v2534, 127
    %v2543 = vpop.permute.xlu0 %2542
    %2544 = vrot.lane.b32.xlu0 %v2535, 127
    %v2545 = vpop.permute.xlu0 %2544
    %2546 = vrot.lane.b32.xlu0 %v2536, 127
    %v2547 = vpop.permute.xlu0 %2546
    %2548 = vrot.lane.b32.xlu0 %v2537, 127
    %v2549 = vpop.permute.xlu0 %2548
    %v2554 = vadd.f32 %v2502, %v2543
    %v2555 = vadd.f32 %v2503, %v2545
    %v2556 = vadd.f32 %v2504, %v2547
    %v2557 = vadd.f32 %v2505, %v2549
    %s2558 = sld [smem:[#allocation3 + $0x6a]]
    %v2559 = vstv %s2558
    %v2560 = vmul.f32 %v2482, %v2559
    %v2561 = vmul.f32 %v2483, %v2559
    %v2562 = vmul.f32 %v2484, %v2559
    %v2563 = vmul.f32 %v2485, %v2559
    %2568 = vrot.lane.b32.xlu0 %v2560, 126
    %v2569 = vpop.permute.xlu0 %2568
    %2570 = vrot.lane.b32.xlu0 %v2561, 126
    %v2571 = vpop.permute.xlu0 %2570
    %2572 = vrot.lane.b32.xlu0 %v2562, 126
    %v2573 = vpop.permute.xlu0 %2572
    %2574 = vrot.lane.b32.xlu0 %v2563, 126
    %v2575 = vpop.permute.xlu0 %2574
    %v2580 = vadd.f32 %v2528, %v2569
    %v2581 = vadd.f32 %v2529, %v2571
    %v2582 = vadd.f32 %v2530, %v2573
    %v2583 = vadd.f32 %v2531, %v2575
    %s2584 = sld [smem:[#allocation3 + $0x6b]]
    %v2585 = vstv %s2584
    %v2586 = vmul.f32 %v2482, %v2585
    %v2587 = vmul.f32 %v2483, %v2585
    %v2588 = vmul.f32 %v2484, %v2585
    %v2589 = vmul.f32 %v2485, %v2585
    %2594 = vrot.lane.b32.xlu0 %v2586, 126
    %v2595 = vpop.permute.xlu0 %2594
    %2596 = vrot.lane.b32.xlu0 %v2587, 126
    %v2597 = vpop.permute.xlu0 %2596
    %2598 = vrot.lane.b32.xlu0 %v2588, 126
    %v2599 = vpop.permute.xlu0 %2598
    %2600 = vrot.lane.b32.xlu0 %v2589, 126
    %v2601 = vpop.permute.xlu0 %2600
    %v2606 = vadd.f32 %v2554, %v2595
    %v2607 = vadd.f32 %v2555, %v2597
    %v2608 = vadd.f32 %v2556, %v2599
    %v2609 = vadd.f32 %v2557, %v2601
    %v2610 = vld [vmem:[%s130 + $0x2] sm:$0xff]
    %v2611 = vld [vmem:[%s130 + $0xa] sm:$0xff]
    %v2612 = vld [vmem:[%s130 + $0x1a] sm:$0xff]
    %v2613 = vld [vmem:[%s130 + $0x22] sm:$0xff]
    %s2614 = sld [smem:[#allocation3 + $0x6e]]
    %v2615 = vstv %s2614
    %v2616 = vmul.f32 %v2610, %v2615
    %v2617 = vmul.f32 %v2611, %v2615
    %v2618 = vmul.f32 %v2612, %v2615
    %v2619 = vmul.f32 %v2613, %v2615
    %v2620 = vadd.f32 %v2580, %v2616
    %v2621 = vadd.f32 %v2581, %v2617
    %v2622 = vadd.f32 %v2582, %v2618
    %v2623 = vadd.f32 %v2583, %v2619
    %s2624 = sld [smem:[#allocation3 + $0x6f]]
    %v2625 = vstv %s2624
    %v2626 = vmul.f32 %v2610, %v2625
    %v2627 = vmul.f32 %v2611, %v2625
    %v2628 = vmul.f32 %v2612, %v2625
    %v2629 = vmul.f32 %v2613, %v2625
    %v2630 = vadd.f32 %v2606, %v2626
    %v2631 = vadd.f32 %v2607, %v2627
    %v2632 = vadd.f32 %v2608, %v2628
    %v2633 = vadd.f32 %v2609, %v2629
    %s2634 = sld [smem:[#allocation3 + $0x72]]
    %v2635 = vstv %s2634
    %v2636 = vmul.f32 %v2610, %v2635
    %v2637 = vmul.f32 %v2611, %v2635
    %v2638 = vmul.f32 %v2612, %v2635
    %v2639 = vmul.f32 %v2613, %v2635
    %2644 = vrot.lane.b32.xlu0 %v2636, 127
    %v2645 = vpop.permute.xlu0 %2644
    %2646 = vrot.lane.b32.xlu0 %v2637, 127
    %v2647 = vpop.permute.xlu0 %2646
    %2648 = vrot.lane.b32.xlu0 %v2638, 127
    %v2649 = vpop.permute.xlu0 %2648
    %2650 = vrot.lane.b32.xlu0 %v2639, 127
    %v2651 = vpop.permute.xlu0 %2650
    %v2656 = vadd.f32 %v2620, %v2645
    %v2657 = vadd.f32 %v2621, %v2647
    %v2658 = vadd.f32 %v2622, %v2649
    %v2659 = vadd.f32 %v2623, %v2651
    %s2660 = sld [smem:[#allocation3 + $0x73]]
    %v2661 = vstv %s2660
    %v2662 = vmul.f32 %v2610, %v2661
    %v2663 = vmul.f32 %v2611, %v2661
    %v2664 = vmul.f32 %v2612, %v2661
    %v2665 = vmul.f32 %v2613, %v2661
    %2670 = vrot.lane.b32.xlu0 %v2662, 127
    %v2671 = vpop.permute.xlu0 %2670
    %2672 = vrot.lane.b32.xlu0 %v2663, 127
    %v2673 = vpop.permute.xlu0 %2672
    %2674 = vrot.lane.b32.xlu0 %v2664, 127
    %v2675 = vpop.permute.xlu0 %2674
    %2676 = vrot.lane.b32.xlu0 %v2665, 127
    %v2677 = vpop.permute.xlu0 %2676
    %v2682 = vadd.f32 %v2630, %v2671
    %v2683 = vadd.f32 %v2631, %v2673
    %v2684 = vadd.f32 %v2632, %v2675
    %v2685 = vadd.f32 %v2633, %v2677
    %s2686 = sld [smem:[#allocation3 + $0x76]]
    %v2687 = vstv %s2686
    %v2688 = vmul.f32 %v2610, %v2687
    %v2689 = vmul.f32 %v2611, %v2687
    %v2690 = vmul.f32 %v2612, %v2687
    %v2691 = vmul.f32 %v2613, %v2687
    %2696 = vrot.lane.b32.xlu0 %v2688, 126
    %v2697 = vpop.permute.xlu0 %2696
    %2698 = vrot.lane.b32.xlu0 %v2689, 126
    %v2699 = vpop.permute.xlu0 %2698
    %2700 = vrot.lane.b32.xlu0 %v2690, 126
    %v2701 = vpop.permute.xlu0 %2700
    %2702 = vrot.lane.b32.xlu0 %v2691, 126
    %v2703 = vpop.permute.xlu0 %2702
    %v2708 = vadd.f32 %v2656, %v2697
    %v2709 = vadd.f32 %v2657, %v2699
    %v2710 = vadd.f32 %v2658, %v2701
    %v2711 = vadd.f32 %v2659, %v2703
    %s2712 = sld [smem:[#allocation3 + $0x77]]
    %v2713 = vstv %s2712
    %v2714 = vmul.f32 %v2610, %v2713
    %v2715 = vmul.f32 %v2611, %v2713
    %v2716 = vmul.f32 %v2612, %v2713
    %v2717 = vmul.f32 %v2613, %v2713
    %2722 = vrot.lane.b32.xlu0 %v2714, 126
    %v2723 = vpop.permute.xlu0 %2722
    %2724 = vrot.lane.b32.xlu0 %v2715, 126
    %v2725 = vpop.permute.xlu0 %2724
    %2726 = vrot.lane.b32.xlu0 %v2716, 126
    %v2727 = vpop.permute.xlu0 %2726
    %2728 = vrot.lane.b32.xlu0 %v2717, 126
    %v2729 = vpop.permute.xlu0 %2728
    %v2734 = vadd.f32 %v2682, %v2723
    %v2735 = vadd.f32 %v2683, %v2725
    %v2736 = vadd.f32 %v2684, %v2727
    %v2737 = vadd.f32 %v2685, %v2729
    %v2738 = vsel %vm909, %v2708, 0.0
    %2739 = vadd.xlane.f32.xlu0 %v2738
    %v2740 = vpop.xlane.xlu0 %2739
    %v2741 = vsel %vm909, %v2709, 0.0
    %2742 = vadd.xlane.f32.xlu0 %v2741
    %v2743 = vpop.xlane.xlu0 %2742
    %v2744 = vsel %vm909, %v2710, 0.0
    %2745 = vadd.xlane.f32.xlu0 %v2744
    %v2746 = vpop.xlane.xlu0 %2745
    %v2747 = vsel %vm909, %v2711, 0.0
    %2748 = vadd.xlane.f32.xlu0 %v2747
    %v2749 = vpop.xlane.xlu0 %2748
    %v2750 = vadd.f32 %v2740, %v2743
    %v2751 = vrot.slane %v2750, 4
    %v2752 = vadd.f32 %v2750, %v2751
    %v2753 = vrot.slane %v2752, 2
    %v2754 = vadd.f32 %v2752, %v2753
    %v2755 = vrot.slane %v2754, 1
    %v2756 = vadd.f32 %v2754, %v2755
    %v2757 = vadd.f32 %v2746, %v2749
    %v2758 = vrot.slane %v2757, 4
    %v2759 = vadd.f32 %v2757, %v2758
    %v2760 = vrot.slane %v2759, 2
    %v2761 = vadd.f32 %v2759, %v2760
    %v2762 = vrot.slane %v2761, 1
    %v2763 = vadd.f32 %v2761, %v2762
    %v2764 = vmul.f32 %v2756, 0.00390625
    %v2765 = vmul.f32 %v2763, 0.00390625
    %v2766 = vmul.f32 %v2708, %v2708
    %v2767 = vmul.f32 %v2709, %v2709
    %v2768 = vmul.f32 %v2710, %v2710
    %v2769 = vmul.f32 %v2711, %v2711
    %v2770 = vsel %vm909, %v2766, 0.0
    %2771 = vadd.xlane.f32.xlu0 %v2770
    %v2772 = vpop.xlane.xlu0 %2771
    %v2773 = vsel %vm909, %v2767, 0.0
    %2774 = vadd.xlane.f32.xlu0 %v2773
    %v2775 = vpop.xlane.xlu0 %2774
    %v2776 = vsel %vm909, %v2768, 0.0
    %2777 = vadd.xlane.f32.xlu0 %v2776
    %v2778 = vpop.xlane.xlu0 %2777
    %v2779 = vsel %vm909, %v2769, 0.0
    %2780 = vadd.xlane.f32.xlu0 %v2779
    %v2781 = vpop.xlane.xlu0 %2780
    %v2782 = vadd.f32 %v2772, %v2775
    %v2783 = vrot.slane %v2782, 4
    %v2784 = vadd.f32 %v2782, %v2783
    %v2785 = vrot.slane %v2784, 2
    %v2786 = vadd.f32 %v2784, %v2785
    %v2787 = vrot.slane %v2786, 1
    %v2788 = vadd.f32 %v2786, %v2787
    %v2789 = vadd.f32 %v2778, %v2781
    %v2790 = vrot.slane %v2789, 4
    %v2791 = vadd.f32 %v2789, %v2790
    %v2792 = vrot.slane %v2791, 2
    %v2793 = vadd.f32 %v2791, %v2792
    %v2794 = vrot.slane %v2793, 1
    %v2795 = vadd.f32 %v2793, %v2794
    %v2796 = vmul.f32 %v2788, 0.00390625
    %v2797 = vmul.f32 %v2795, 0.00390625
    %v2798 = vmul.f32 %v2764, %v2764
    %v2799 = vmul.f32 %v2765, %v2765
    %v2800 = vsub.f32 %v2796, %v2798
    %v2801 = vsub.f32 %v2797, %v2799
    %v2802 = vsub.f32 %v2708, %v2764
    %v2803 = vsub.f32 %v2709, %v2764
    %v2804 = vsub.f32 %v2710, %v2765
    %v2805 = vsub.f32 %v2711, %v2765
    %v2806 = vadd.f32 %v2800, 1e-05
    %v2807 = vadd.f32 %v2801, 1e-05
    %v2808 = vrsqrt.pop %v2806
    %v2809 = vrsqrt.pop %v2807
    %v2810 = vmul.f32 %v2802, %v2808
    %v2811 = vmul.f32 %v2803, %v2808
    %v2812 = vmul.f32 %v2804, %v2809
    %v2813 = vmul.f32 %v2805, %v2809
    %s2814 = sld [smem:[#allocation3 + $0x7a]]
    %v2815 = vstv %s2814
    %v2816 = vmul.f32 %v2810, %v2815
    %v2817 = vmul.f32 %v2811, %v2815
    %v2818 = vmul.f32 %v2812, %v2815
    %v2819 = vmul.f32 %v2813, %v2815
    %s2820 = sld [smem:[#allocation3 + $0x7b]]
    %v2821 = vstv %s2820
    %v2822 = vadd.f32 %v2816, %v2821
    %v2823 = vadd.f32 %v2817, %v2821
    %v2824 = vadd.f32 %v2818, %v2821
    %v2825 = vadd.f32 %v2819, %v2821
    %vm2826 = vcmp.gt.f32.partialorder %v2822, 0.0
    %vm2827 = vcmp.gt.f32.partialorder %v2823, 0.0
    %vm2828 = vcmp.gt.f32.partialorder %v2824, 0.0
    %vm2829 = vcmp.gt.f32.partialorder %v2825, 0.0
    %v2830 = vmul.f32 %v2822, 0.1
    %v2831 = vmul.f32 %v2823, 0.1
    %v2832 = vmul.f32 %v2824, 0.1
    %v2833 = vmul.f32 %v2825, 0.1
    %v2834 = vsel %vm2826, %v2822, %v2830
    %v2835 = vsel %vm2827, %v2823, %v2831
    %v2836 = vsel %vm2828, %v2824, %v2832
    %v2837 = vsel %vm2829, %v2825, %v2833
    %vm2838 = vcmp.gt.f32.partialorder %v2734, 0.0
    %vm2839 = vcmp.gt.f32.partialorder %v2735, 0.0
    %vm2840 = vcmp.gt.f32.partialorder %v2736, 0.0
    %vm2841 = vcmp.gt.f32.partialorder %v2737, 0.0
    %v2842 = vmul.f32 %v2734, 0.1
    %v2843 = vmul.f32 %v2735, 0.1
    %v2844 = vmul.f32 %v2736, 0.1
    %v2845 = vmul.f32 %v2737, 0.1
    %v2846 = vsel %vm2838, %v2734, %v2842
    %v2847 = vsel %vm2839, %v2735, %v2843
    %v2848 = vsel %vm2840, %v2736, %v2844
    %v2849 = vsel %vm2841, %v2737, %v2845
    %2854 = vrot.lane.b32.xlu0 %v2834, 1
    %v2855 = vpop.permute.xlu0 %2854
    %2856 = vrot.lane.b32.xlu0 %v2835, 1
    %v2857 = vpop.permute.xlu0 %2856
    %2858 = vrot.lane.b32.xlu0 %v2836, 1
    %v2859 = vpop.permute.xlu0 %2858
    %2860 = vrot.lane.b32.xlu0 %v2837, 1
    %v2861 = vpop.permute.xlu0 %2860
    %2866 = vst.msk [vmem:[%s1038 + $0x1] sm:$0xff] %vm109, %v2855
    %2867 = vst.msk [vmem:[%s1038 + $0x9] sm:$0xff] %vm109, %v2857
    %2868 = vst.msk [vmem:[%s1038 + $0x19] sm:$0xff] %vm109, %v2859
    %2869 = vst.msk [vmem:[%s1038 + $0x21] sm:$0xff] %vm109, %v2861
    %2874 = vrot.lane.b32.xlu0 %v2846, 1
    %v2875 = vpop.permute.xlu0 %2874
    %2876 = vrot.lane.b32.xlu0 %v2847, 1
    %v2877 = vpop.permute.xlu0 %2876
    %2878 = vrot.lane.b32.xlu0 %v2848, 1
    %v2879 = vpop.permute.xlu0 %2878
    %2880 = vrot.lane.b32.xlu0 %v2849, 1
    %v2881 = vpop.permute.xlu0 %2880
    %2886 = vst.msk [vmem:[%s1059 + $0x1] sm:$0xff] %vm109, %v2875
    %2887 = vst.msk [vmem:[%s1059 + $0x9] sm:$0xff] %vm109, %v2877
    %2888 = vst.msk [vmem:[%s1059 + $0x19] sm:$0xff] %vm109, %v2879
    %2889 = vst.msk [vmem:[%s1059 + $0x21] sm:$0xff] %vm109, %v2881
    %s2890 = sld [smem:[#allocation3 + $0xa0]]
    %v2891 = vstv %s2890
    %v2892 = vadd.f32 %v2891, 0.0
    %s2893 = sld [smem:[#allocation3 + $0xa1]]
    %v2894 = vstv %s2893
    %v2895 = vadd.f32 %v2894, 0.0
    %v2896 = vld [vmem:[%s1038] sm:$0xff]
    %v2897 = vld [vmem:[%s1038 + $0x8] sm:$0xff]
    %v2898 = vld [vmem:[%s1038 + $0x18] sm:$0xff]
    %v2899 = vld [vmem:[%s1038 + $0x20] sm:$0xff]
    %s2900 = sld [smem:[#allocation3 + $0x7c]]
    %v2901 = vstv %s2900
    %v2902 = vmul.f32 %v2896, %v2901
    %v2903 = vmul.f32 %v2897, %v2901
    %v2904 = vmul.f32 %v2898, %v2901
    %v2905 = vmul.f32 %v2899, %v2901
    %v2906 = vadd.f32 %v2892, %v2902
    %v2907 = vadd.f32 %v2892, %v2903
    %v2908 = vadd.f32 %v2892, %v2904
    %v2909 = vadd.f32 %v2892, %v2905
    %s2910 = sld [smem:[#allocation3 + $0x7d]]
    %v2911 = vstv %s2910
    %v2912 = vmul.f32 %v2896, %v2911
    %v2913 = vmul.f32 %v2897, %v2911
    %v2914 = vmul.f32 %v2898, %v2911
    %v2915 = vmul.f32 %v2899, %v2911
    %v2916 = vadd.f32 %v2895, %v2912
    %v2917 = vadd.f32 %v2895, %v2913
    %v2918 = vadd.f32 %v2895, %v2914
    %v2919 = vadd.f32 %v2895, %v2915
    %s2920 = sld [smem:[#allocation3 + $0x80]]
    %v2921 = vstv %s2920
    %v2922 = vmul.f32 %v2896, %v2921
    %v2923 = vmul.f32 %v2897, %v2921
    %v2924 = vmul.f32 %v2898, %v2921
    %v2925 = vmul.f32 %v2899, %v2921
    %2930 = vrot.lane.b32.xlu0 %v2922, 127
    %v2931 = vpop.permute.xlu0 %2930
    %2932 = vrot.lane.b32.xlu0 %v2923, 127
    %v2933 = vpop.permute.xlu0 %2932
    %2934 = vrot.lane.b32.xlu0 %v2924, 127
    %v2935 = vpop.permute.xlu0 %2934
    %2936 = vrot.lane.b32.xlu0 %v2925, 127
    %v2937 = vpop.permute.xlu0 %2936
    %v2942 = vadd.f32 %v2906, %v2931
    %v2943 = vadd.f32 %v2907, %v2933
    %v2944 = vadd.f32 %v2908, %v2935
    %v2945 = vadd.f32 %v2909, %v2937
    %s2946 = sld [smem:[#allocation3 + $0x81]]
    %v2947 = vstv %s2946
    %v2948 = vmul.f32 %v2896, %v2947
    %v2949 = vmul.f32 %v2897, %v2947
    %v2950 = vmul.f32 %v2898, %v2947
    %v2951 = vmul.f32 %v2899, %v2947
    %2956 = vrot.lane.b32.xlu0 %v2948, 127
    %v2957 = vpop.permute.xlu0 %2956
    %2958 = vrot.lane.b32.xlu0 %v2949, 127
    %v2959 = vpop.permute.xlu0 %2958
    %2960 = vrot.lane.b32.xlu0 %v2950, 127
    %v2961 = vpop.permute.xlu0 %2960
    %2962 = vrot.lane.b32.xlu0 %v2951, 127
    %v2963 = vpop.permute.xlu0 %2962
    %v2968 = vadd.f32 %v2916, %v2957
    %v2969 = vadd.f32 %v2917, %v2959
    %v2970 = vadd.f32 %v2918, %v2961
    %v2971 = vadd.f32 %v2919, %v2963
    %s2972 = sld [smem:[#allocation3 + $0x84]]
    %v2973 = vstv %s2972
    %v2974 = vmul.f32 %v2896, %v2973
    %v2975 = vmul.f32 %v2897, %v2973
    %v2976 = vmul.f32 %v2898, %v2973
    %v2977 = vmul.f32 %v2899, %v2973
    %2982 = vrot.lane.b32.xlu0 %v2974, 126
    %v2983 = vpop.permute.xlu0 %2982
    %2984 = vrot.lane.b32.xlu0 %v2975, 126
    %v2985 = vpop.permute.xlu0 %2984
    %2986 = vrot.lane.b32.xlu0 %v2976, 126
    %v2987 = vpop.permute.xlu0 %2986
    %2988 = vrot.lane.b32.xlu0 %v2977, 126
    %v2989 = vpop.permute.xlu0 %2988
    %v2994 = vadd.f32 %v2942, %v2983
    %v2995 = vadd.f32 %v2943, %v2985
    %v2996 = vadd.f32 %v2944, %v2987
    %v2997 = vadd.f32 %v2945, %v2989
    %s2998 = sld [smem:[#allocation3 + $0x85]]
    %v2999 = vstv %s2998
    %v3000 = vmul.f32 %v2896, %v2999
    %v3001 = vmul.f32 %v2897, %v2999
    %v3002 = vmul.f32 %v2898, %v2999
    %v3003 = vmul.f32 %v2899, %v2999
    %3008 = vrot.lane.b32.xlu0 %v3000, 126
    %v3009 = vpop.permute.xlu0 %3008
    %3010 = vrot.lane.b32.xlu0 %v3001, 126
    %v3011 = vpop.permute.xlu0 %3010
    %3012 = vrot.lane.b32.xlu0 %v3002, 126
    %v3013 = vpop.permute.xlu0 %3012
    %3014 = vrot.lane.b32.xlu0 %v3003, 126
    %v3015 = vpop.permute.xlu0 %3014
    %v3020 = vadd.f32 %v2968, %v3009
    %v3021 = vadd.f32 %v2969, %v3011
    %v3022 = vadd.f32 %v2970, %v3013
    %v3023 = vadd.f32 %v2971, %v3015
    %v3024 = vld [vmem:[%s1038 + $0x1] sm:$0xff]
    %v3025 = vld [vmem:[%s1038 + $0x9] sm:$0xff]
    %v3026 = vld [vmem:[%s1038 + $0x19] sm:$0xff]
    %v3027 = vld [vmem:[%s1038 + $0x21] sm:$0xff]
    %s3028 = sld [smem:[#allocation3 + $0x88]]
    %v3029 = vstv %s3028
    %v3030 = vmul.f32 %v3024, %v3029
    %v3031 = vmul.f32 %v3025, %v3029
    %v3032 = vmul.f32 %v3026, %v3029
    %v3033 = vmul.f32 %v3027, %v3029
    %v3034 = vadd.f32 %v2994, %v3030
    %v3035 = vadd.f32 %v2995, %v3031
    %v3036 = vadd.f32 %v2996, %v3032
    %v3037 = vadd.f32 %v2997, %v3033
    %s3038 = sld [smem:[#allocation3 + $0x89]]
    %v3039 = vstv %s3038
    %v3040 = vmul.f32 %v3024, %v3039
    %v3041 = vmul.f32 %v3025, %v3039
    %v3042 = vmul.f32 %v3026, %v3039
    %v3043 = vmul.f32 %v3027, %v3039
    %v3044 = vadd.f32 %v3020, %v3040
    %v3045 = vadd.f32 %v3021, %v3041
    %v3046 = vadd.f32 %v3022, %v3042
    %v3047 = vadd.f32 %v3023, %v3043
    %s3048 = sld [smem:[#allocation3 + $0x8c]]
    %v3049 = vstv %s3048
    %v3050 = vmul.f32 %v3024, %v3049
    %v3051 = vmul.f32 %v3025, %v3049
    %v3052 = vmul.f32 %v3026, %v3049
    %v3053 = vmul.f32 %v3027, %v3049
    %3058 = vrot.lane.b32.xlu0 %v3050, 127
    %v3059 = vpop.permute.xlu0 %3058
    %3060 = vrot.lane.b32.xlu0 %v3051, 127
    %v3061 = vpop.permute.xlu0 %3060
    %3062 = vrot.lane.b32.xlu0 %v3052, 127
    %v3063 = vpop.permute.xlu0 %3062
    %3064 = vrot.lane.b32.xlu0 %v3053, 127
    %v3065 = vpop.permute.xlu0 %3064
    %v3070 = vadd.f32 %v3034, %v3059
    %v3071 = vadd.f32 %v3035, %v3061
    %v3072 = vadd.f32 %v3036, %v3063
    %v3073 = vadd.f32 %v3037, %v3065
    %s3074 = sld [smem:[#allocation3 + $0x8d]]
    %v3075 = vstv %s3074
    %v3076 = vmul.f32 %v3024, %v3075
    %v3077 = vmul.f32 %v3025, %v3075
    %v3078 = vmul.f32 %v3026, %v3075
    %v3079 = vmul.f32 %v3027, %v3075
    %3084 = vrot.lane.b32.xlu0 %v3076, 127
    %v3085 = vpop.permute.xlu0 %3084
    %3086 = vrot.lane.b32.xlu0 %v3077, 127
    %v3087 = vpop.permute.xlu0 %3086
    %3088 = vrot.lane.b32.xlu0 %v3078, 127
    %v3089 = vpop.permute.xlu0 %3088
    %3090 = vrot.lane.b32.xlu0 %v3079, 127
    %v3091 = vpop.permute.xlu0 %3090
    %v3096 = vadd.f32 %v3044, %v3085
    %v3097 = vadd.f32 %v3045, %v3087
    %v3098 = vadd.f32 %v3046, %v3089
    %v3099 = vadd.f32 %v3047, %v3091
    %s3100 = sld [smem:[#allocation3 + $0x90]]
    %v3101 = vstv %s3100
    %v3102 = vmul.f32 %v3024, %v3101
    %v3103 = vmul.f32 %v3025, %v3101
    %v3104 = vmul.f32 %v3026, %v3101
    %v3105 = vmul.f32 %v3027, %v3101
    %3110 = vrot.lane.b32.xlu0 %v3102, 126
    %v3111 = vpop.permute.xlu0 %3110
    %3112 = vrot.lane.b32.xlu0 %v3103, 126
    %v3113 = vpop.permute.xlu0 %3112
    %3114 = vrot.lane.b32.xlu0 %v3104, 126
    %v3115 = vpop.permute.xlu0 %3114
    %3116 = vrot.lane.b32.xlu0 %v3105, 126
    %v3117 = vpop.permute.xlu0 %3116
    %v3122 = vadd.f32 %v3070, %v3111
    %v3123 = vadd.f32 %v3071, %v3113
    %v3124 = vadd.f32 %v3072, %v3115
    %v3125 = vadd.f32 %v3073, %v3117
    %s3126 = sld [smem:[#allocation3 + $0x91]]
    %v3127 = vstv %s3126
    %v3128 = vmul.f32 %v3024, %v3127
    %v3129 = vmul.f32 %v3025, %v3127
    %v3130 = vmul.f32 %v3026, %v3127
    %v3131 = vmul.f32 %v3027, %v3127
    %3136 = vrot.lane.b32.xlu0 %v3128, 126
    %v3137 = vpop.permute.xlu0 %3136
    %3138 = vrot.lane.b32.xlu0 %v3129, 126
    %v3139 = vpop.permute.xlu0 %3138
    %3140 = vrot.lane.b32.xlu0 %v3130, 126
    %v3141 = vpop.permute.xlu0 %3140
    %3142 = vrot.lane.b32.xlu0 %v3131, 126
    %v3143 = vpop.permute.xlu0 %3142
    %v3148 = vadd.f32 %v3096, %v3137
    %v3149 = vadd.f32 %v3097, %v3139
    %v3150 = vadd.f32 %v3098, %v3141
    %v3151 = vadd.f32 %v3099, %v3143
    %v3152 = vld [vmem:[%s1038 + $0x2] sm:$0xff]
    %v3153 = vld [vmem:[%s1038 + $0xa] sm:$0xff]
    %v3154 = vld [vmem:[%s1038 + $0x1a] sm:$0xff]
    %v3155 = vld [vmem:[%s1038 + $0x22] sm:$0xff]
    %s3156 = sld [smem:[#allocation3 + $0x94]]
    %v3157 = vstv %s3156
    %v3158 = vmul.f32 %v3152, %v3157
    %v3159 = vmul.f32 %v3153, %v3157
    %v3160 = vmul.f32 %v3154, %v3157
    %v3161 = vmul.f32 %v3155, %v3157
    %v3162 = vadd.f32 %v3122, %v3158
    %v3163 = vadd.f32 %v3123, %v3159
    %v3164 = vadd.f32 %v3124, %v3160
    %v3165 = vadd.f32 %v3125, %v3161
    %s3166 = sld [smem:[#allocation3 + $0x95]]
    %v3167 = vstv %s3166
    %v3168 = vmul.f32 %v3152, %v3167
    %v3169 = vmul.f32 %v3153, %v3167
    %v3170 = vmul.f32 %v3154, %v3167
    %v3171 = vmul.f32 %v3155, %v3167
    %v3172 = vadd.f32 %v3148, %v3168
    %v3173 = vadd.f32 %v3149, %v3169
    %v3174 = vadd.f32 %v3150, %v3170
    %v3175 = vadd.f32 %v3151, %v3171
    %s3176 = sld [smem:[#allocation3 + $0x98]]
    %v3177 = vstv %s3176
    %v3178 = vmul.f32 %v3152, %v3177
    %v3179 = vmul.f32 %v3153, %v3177
    %v3180 = vmul.f32 %v3154, %v3177
    %v3181 = vmul.f32 %v3155, %v3177
    %3186 = vrot.lane.b32.xlu0 %v3178, 127
    %v3187 = vpop.permute.xlu0 %3186
    %3188 = vrot.lane.b32.xlu0 %v3179, 127
    %v3189 = vpop.permute.xlu0 %3188
    %3190 = vrot.lane.b32.xlu0 %v3180, 127
    %v3191 = vpop.permute.xlu0 %3190
    %3192 = vrot.lane.b32.xlu0 %v3181, 127
    %v3193 = vpop.permute.xlu0 %3192
    %v3198 = vadd.f32 %v3162, %v3187
    %v3199 = vadd.f32 %v3163, %v3189
    %v3200 = vadd.f32 %v3164, %v3191
    %v3201 = vadd.f32 %v3165, %v3193
    %s3202 = sld [smem:[#allocation3 + $0x99]]
    %v3203 = vstv %s3202
    %v3204 = vmul.f32 %v3152, %v3203
    %v3205 = vmul.f32 %v3153, %v3203
    %v3206 = vmul.f32 %v3154, %v3203
    %v3207 = vmul.f32 %v3155, %v3203
    %3212 = vrot.lane.b32.xlu0 %v3204, 127
    %v3213 = vpop.permute.xlu0 %3212
    %3214 = vrot.lane.b32.xlu0 %v3205, 127
    %v3215 = vpop.permute.xlu0 %3214
    %3216 = vrot.lane.b32.xlu0 %v3206, 127
    %v3217 = vpop.permute.xlu0 %3216
    %3218 = vrot.lane.b32.xlu0 %v3207, 127
    %v3219 = vpop.permute.xlu0 %3218
    %v3224 = vadd.f32 %v3172, %v3213
    %v3225 = vadd.f32 %v3173, %v3215
    %v3226 = vadd.f32 %v3174, %v3217
    %v3227 = vadd.f32 %v3175, %v3219
    %s3228 = sld [smem:[#allocation3 + $0x9c]]
    %v3229 = vstv %s3228
    %v3230 = vmul.f32 %v3152, %v3229
    %v3231 = vmul.f32 %v3153, %v3229
    %v3232 = vmul.f32 %v3154, %v3229
    %v3233 = vmul.f32 %v3155, %v3229
    %3238 = vrot.lane.b32.xlu0 %v3230, 126
    %v3239 = vpop.permute.xlu0 %3238
    %3240 = vrot.lane.b32.xlu0 %v3231, 126
    %v3241 = vpop.permute.xlu0 %3240
    %3242 = vrot.lane.b32.xlu0 %v3232, 126
    %v3243 = vpop.permute.xlu0 %3242
    %3244 = vrot.lane.b32.xlu0 %v3233, 126
    %v3245 = vpop.permute.xlu0 %3244
    %v3250 = vadd.f32 %v3198, %v3239
    %v3251 = vadd.f32 %v3199, %v3241
    %v3252 = vadd.f32 %v3200, %v3243
    %v3253 = vadd.f32 %v3201, %v3245
    %s3254 = sld [smem:[#allocation3 + $0x9d]]
    %v3255 = vstv %s3254
    %v3256 = vmul.f32 %v3152, %v3255
    %v3257 = vmul.f32 %v3153, %v3255
    %v3258 = vmul.f32 %v3154, %v3255
    %v3259 = vmul.f32 %v3155, %v3255
    %3264 = vrot.lane.b32.xlu0 %v3256, 126
    %v3265 = vpop.permute.xlu0 %3264
    %3266 = vrot.lane.b32.xlu0 %v3257, 126
    %v3267 = vpop.permute.xlu0 %3266
    %3268 = vrot.lane.b32.xlu0 %v3258, 126
    %v3269 = vpop.permute.xlu0 %3268
    %3270 = vrot.lane.b32.xlu0 %v3259, 126
    %v3271 = vpop.permute.xlu0 %3270
    %v3276 = vadd.f32 %v3224, %v3265
    %v3277 = vadd.f32 %v3225, %v3267
    %v3278 = vadd.f32 %v3226, %v3269
    %v3279 = vadd.f32 %v3227, %v3271
    %v3280 = vld [vmem:[%s1059] sm:$0xff]
    %v3281 = vld [vmem:[%s1059 + $0x8] sm:$0xff]
    %v3282 = vld [vmem:[%s1059 + $0x18] sm:$0xff]
    %v3283 = vld [vmem:[%s1059 + $0x20] sm:$0xff]
    %s3284 = sld [smem:[#allocation3 + $0x7e]]
    %v3285 = vstv %s3284
    %v3286 = vmul.f32 %v3280, %v3285
    %v3287 = vmul.f32 %v3281, %v3285
    %v3288 = vmul.f32 %v3282, %v3285
    %v3289 = vmul.f32 %v3283, %v3285
    %v3290 = vadd.f32 %v3250, %v3286
    %v3291 = vadd.f32 %v3251, %v3287
    %v3292 = vadd.f32 %v3252, %v3288
    %v3293 = vadd.f32 %v3253, %v3289
    %s3294 = sld [smem:[#allocation3 + $0x7f]]
    %v3295 = vstv %s3294
    %v3296 = vmul.f32 %v3280, %v3295
    %v3297 = vmul.f32 %v3281, %v3295
    %v3298 = vmul.f32 %v3282, %v3295
    %v3299 = vmul.f32 %v3283, %v3295
    %v3300 = vadd.f32 %v3276, %v3296
    %v3301 = vadd.f32 %v3277, %v3297
    %v3302 = vadd.f32 %v3278, %v3298
    %v3303 = vadd.f32 %v3279, %v3299
    %s3304 = sld [smem:[#allocation3 + $0x82]]
    %v3305 = vstv %s3304
    %v3306 = vmul.f32 %v3280, %v3305
    %v3307 = vmul.f32 %v3281, %v3305
    %v3308 = vmul.f32 %v3282, %v3305
    %v3309 = vmul.f32 %v3283, %v3305
    %3314 = vrot.lane.b32.xlu0 %v3306, 127
    %v3315 = vpop.permute.xlu0 %3314
    %3316 = vrot.lane.b32.xlu0 %v3307, 127
    %v3317 = vpop.permute.xlu0 %3316
    %3318 = vrot.lane.b32.xlu0 %v3308, 127
    %v3319 = vpop.permute.xlu0 %3318
    %3320 = vrot.lane.b32.xlu0 %v3309, 127
    %v3321 = vpop.permute.xlu0 %3320
    %v3326 = vadd.f32 %v3290, %v3315
    %v3327 = vadd.f32 %v3291, %v3317
    %v3328 = vadd.f32 %v3292, %v3319
    %v3329 = vadd.f32 %v3293, %v3321
    %s3330 = sld [smem:[#allocation3 + $0x83]]
    %v3331 = vstv %s3330
    %v3332 = vmul.f32 %v3280, %v3331
    %v3333 = vmul.f32 %v3281, %v3331
    %v3334 = vmul.f32 %v3282, %v3331
    %v3335 = vmul.f32 %v3283, %v3331
    %3340 = vrot.lane.b32.xlu0 %v3332, 127
    %v3341 = vpop.permute.xlu0 %3340
    %3342 = vrot.lane.b32.xlu0 %v3333, 127
    %v3343 = vpop.permute.xlu0 %3342
    %3344 = vrot.lane.b32.xlu0 %v3334, 127
    %v3345 = vpop.permute.xlu0 %3344
    %3346 = vrot.lane.b32.xlu0 %v3335, 127
    %v3347 = vpop.permute.xlu0 %3346
    %v3352 = vadd.f32 %v3300, %v3341
    %v3353 = vadd.f32 %v3301, %v3343
    %v3354 = vadd.f32 %v3302, %v3345
    %v3355 = vadd.f32 %v3303, %v3347
    %s3356 = sld [smem:[#allocation3 + $0x86]]
    %v3357 = vstv %s3356
    %v3358 = vmul.f32 %v3280, %v3357
    %v3359 = vmul.f32 %v3281, %v3357
    %v3360 = vmul.f32 %v3282, %v3357
    %v3361 = vmul.f32 %v3283, %v3357
    %3366 = vrot.lane.b32.xlu0 %v3358, 126
    %v3367 = vpop.permute.xlu0 %3366
    %3368 = vrot.lane.b32.xlu0 %v3359, 126
    %v3369 = vpop.permute.xlu0 %3368
    %3370 = vrot.lane.b32.xlu0 %v3360, 126
    %v3371 = vpop.permute.xlu0 %3370
    %3372 = vrot.lane.b32.xlu0 %v3361, 126
    %v3373 = vpop.permute.xlu0 %3372
    %v3378 = vadd.f32 %v3326, %v3367
    %v3379 = vadd.f32 %v3327, %v3369
    %v3380 = vadd.f32 %v3328, %v3371
    %v3381 = vadd.f32 %v3329, %v3373
    %s3382 = sld [smem:[#allocation3 + $0x87]]
    %v3383 = vstv %s3382
    %v3384 = vmul.f32 %v3280, %v3383
    %v3385 = vmul.f32 %v3281, %v3383
    %v3386 = vmul.f32 %v3282, %v3383
    %v3387 = vmul.f32 %v3283, %v3383
    %3392 = vrot.lane.b32.xlu0 %v3384, 126
    %v3393 = vpop.permute.xlu0 %3392
    %3394 = vrot.lane.b32.xlu0 %v3385, 126
    %v3395 = vpop.permute.xlu0 %3394
    %3396 = vrot.lane.b32.xlu0 %v3386, 126
    %v3397 = vpop.permute.xlu0 %3396
    %3398 = vrot.lane.b32.xlu0 %v3387, 126
    %v3399 = vpop.permute.xlu0 %3398
    %v3404 = vadd.f32 %v3352, %v3393
    %v3405 = vadd.f32 %v3353, %v3395
    %v3406 = vadd.f32 %v3354, %v3397
    %v3407 = vadd.f32 %v3355, %v3399
    %v3408 = vld [vmem:[%s1059 + $0x1] sm:$0xff]
    %v3409 = vld [vmem:[%s1059 + $0x9] sm:$0xff]
    %v3410 = vld [vmem:[%s1059 + $0x19] sm:$0xff]
    %v3411 = vld [vmem:[%s1059 + $0x21] sm:$0xff]
    %s3412 = sld [smem:[#allocation3 + $0x8a]]
    %v3413 = vstv %s3412
    %v3414 = vmul.f32 %v3408, %v3413
    %v3415 = vmul.f32 %v3409, %v3413
    %v3416 = vmul.f32 %v3410, %v3413
    %v3417 = vmul.f32 %v3411, %v3413
    %v3418 = vadd.f32 %v3378, %v3414
    %v3419 = vadd.f32 %v3379, %v3415
    %v3420 = vadd.f32 %v3380, %v3416
    %v3421 = vadd.f32 %v3381, %v3417
    %s3422 = sld [smem:[#allocation3 + $0x8b]]
    %v3423 = vstv %s3422
    %v3424 = vmul.f32 %v3408, %v3423
    %v3425 = vmul.f32 %v3409, %v3423
    %v3426 = vmul.f32 %v3410, %v3423
    %v3427 = vmul.f32 %v3411, %v3423
    %v3428 = vadd.f32 %v3404, %v3424
    %v3429 = vadd.f32 %v3405, %v3425
    %v3430 = vadd.f32 %v3406, %v3426
    %v3431 = vadd.f32 %v3407, %v3427
    %s3432 = sld [smem:[#allocation3 + $0x8e]]
    %v3433 = vstv %s3432
    %v3434 = vmul.f32 %v3408, %v3433
    %v3435 = vmul.f32 %v3409, %v3433
    %v3436 = vmul.f32 %v3410, %v3433
    %v3437 = vmul.f32 %v3411, %v3433
    %3442 = vrot.lane.b32.xlu0 %v3434, 127
    %v3443 = vpop.permute.xlu0 %3442
    %3444 = vrot.lane.b32.xlu0 %v3435, 127
    %v3445 = vpop.permute.xlu0 %3444
    %3446 = vrot.lane.b32.xlu0 %v3436, 127
    %v3447 = vpop.permute.xlu0 %3446
    %3448 = vrot.lane.b32.xlu0 %v3437, 127
    %v3449 = vpop.permute.xlu0 %3448
    %v3454 = vadd.f32 %v3418, %v3443
    %v3455 = vadd.f32 %v3419, %v3445
    %v3456 = vadd.f32 %v3420, %v3447
    %v3457 = vadd.f32 %v3421, %v3449
    %s3458 = sld [smem:[#allocation3 + $0x8f]]
    %v3459 = vstv %s3458
    %v3460 = vmul.f32 %v3408, %v3459
    %v3461 = vmul.f32 %v3409, %v3459
    %v3462 = vmul.f32 %v3410, %v3459
    %v3463 = vmul.f32 %v3411, %v3459
    %3468 = vrot.lane.b32.xlu0 %v3460, 127
    %v3469 = vpop.permute.xlu0 %3468
    %3470 = vrot.lane.b32.xlu0 %v3461, 127
    %v3471 = vpop.permute.xlu0 %3470
    %3472 = vrot.lane.b32.xlu0 %v3462, 127
    %v3473 = vpop.permute.xlu0 %3472
    %3474 = vrot.lane.b32.xlu0 %v3463, 127
    %v3475 = vpop.permute.xlu0 %3474
    %v3480 = vadd.f32 %v3428, %v3469
    %v3481 = vadd.f32 %v3429, %v3471
    %v3482 = vadd.f32 %v3430, %v3473
    %v3483 = vadd.f32 %v3431, %v3475
    %s3484 = sld [smem:[#allocation3 + $0x92]]
    %v3485 = vstv %s3484
    %v3486 = vmul.f32 %v3408, %v3485
    %v3487 = vmul.f32 %v3409, %v3485
    %v3488 = vmul.f32 %v3410, %v3485
    %v3489 = vmul.f32 %v3411, %v3485
    %3494 = vrot.lane.b32.xlu0 %v3486, 126
    %v3495 = vpop.permute.xlu0 %3494
    %3496 = vrot.lane.b32.xlu0 %v3487, 126
    %v3497 = vpop.permute.xlu0 %3496
    %3498 = vrot.lane.b32.xlu0 %v3488, 126
    %v3499 = vpop.permute.xlu0 %3498
    %3500 = vrot.lane.b32.xlu0 %v3489, 126
    %v3501 = vpop.permute.xlu0 %3500
    %v3506 = vadd.f32 %v3454, %v3495
    %v3507 = vadd.f32 %v3455, %v3497
    %v3508 = vadd.f32 %v3456, %v3499
    %v3509 = vadd.f32 %v3457, %v3501
    %s3510 = sld [smem:[#allocation3 + $0x93]]
    %v3511 = vstv %s3510
    %v3512 = vmul.f32 %v3408, %v3511
    %v3513 = vmul.f32 %v3409, %v3511
    %v3514 = vmul.f32 %v3410, %v3511
    %v3515 = vmul.f32 %v3411, %v3511
    %3520 = vrot.lane.b32.xlu0 %v3512, 126
    %v3521 = vpop.permute.xlu0 %3520
    %3522 = vrot.lane.b32.xlu0 %v3513, 126
    %v3523 = vpop.permute.xlu0 %3522
    %3524 = vrot.lane.b32.xlu0 %v3514, 126
    %v3525 = vpop.permute.xlu0 %3524
    %3526 = vrot.lane.b32.xlu0 %v3515, 126
    %v3527 = vpop.permute.xlu0 %3526
    %v3532 = vadd.f32 %v3480, %v3521
    %v3533 = vadd.f32 %v3481, %v3523
    %v3534 = vadd.f32 %v3482, %v3525
    %v3535 = vadd.f32 %v3483, %v3527
    %v3536 = vld [vmem:[%s1059 + $0x2] sm:$0xff]
    %v3537 = vld [vmem:[%s1059 + $0xa] sm:$0xff]
    %v3538 = vld [vmem:[%s1059 + $0x1a] sm:$0xff]
    %v3539 = vld [vmem:[%s1059 + $0x22] sm:$0xff]
    %s3540 = sld [smem:[#allocation3 + $0x96]]
    %v3541 = vstv %s3540
    %v3542 = vmul.f32 %v3536, %v3541
    %v3543 = vmul.f32 %v3537, %v3541
    %v3544 = vmul.f32 %v3538, %v3541
    %v3545 = vmul.f32 %v3539, %v3541
    %v3546 = vadd.f32 %v3506, %v3542
    %v3547 = vadd.f32 %v3507, %v3543
    %v3548 = vadd.f32 %v3508, %v3544
    %v3549 = vadd.f32 %v3509, %v3545
    %s3550 = sld [smem:[#allocation3 + $0x97]]
    %v3551 = vstv %s3550
    %v3552 = vmul.f32 %v3536, %v3551
    %v3553 = vmul.f32 %v3537, %v3551
    %v3554 = vmul.f32 %v3538, %v3551
    %v3555 = vmul.f32 %v3539, %v3551
    %v3556 = vadd.f32 %v3532, %v3552
    %v3557 = vadd.f32 %v3533, %v3553
    %v3558 = vadd.f32 %v3534, %v3554
    %v3559 = vadd.f32 %v3535, %v3555
    %s3560 = sld [smem:[#allocation3 + $0x9a]]
    %v3561 = vstv %s3560
    %v3562 = vmul.f32 %v3536, %v3561
    %v3563 = vmul.f32 %v3537, %v3561
    %v3564 = vmul.f32 %v3538, %v3561
    %v3565 = vmul.f32 %v3539, %v3561
    %3570 = vrot.lane.b32.xlu0 %v3562, 127
    %v3571 = vpop.permute.xlu0 %3570
    %3572 = vrot.lane.b32.xlu0 %v3563, 127
    %v3573 = vpop.permute.xlu0 %3572
    %3574 = vrot.lane.b32.xlu0 %v3564, 127
    %v3575 = vpop.permute.xlu0 %3574
    %3576 = vrot.lane.b32.xlu0 %v3565, 127
    %v3577 = vpop.permute.xlu0 %3576
    %v3582 = vadd.f32 %v3546, %v3571
    %v3583 = vadd.f32 %v3547, %v3573
    %v3584 = vadd.f32 %v3548, %v3575
    %v3585 = vadd.f32 %v3549, %v3577
    %s3586 = sld [smem:[#allocation3 + $0x9b]]
    %v3587 = vstv %s3586
    %v3588 = vmul.f32 %v3536, %v3587
    %v3589 = vmul.f32 %v3537, %v3587
    %v3590 = vmul.f32 %v3538, %v3587
    %v3591 = vmul.f32 %v3539, %v3587
    %3596 = vrot.lane.b32.xlu0 %v3588, 127
    %v3597 = vpop.permute.xlu0 %3596
    %3598 = vrot.lane.b32.xlu0 %v3589, 127
    %v3599 = vpop.permute.xlu0 %3598
    %3600 = vrot.lane.b32.xlu0 %v3590, 127
    %v3601 = vpop.permute.xlu0 %3600
    %3602 = vrot.lane.b32.xlu0 %v3591, 127
    %v3603 = vpop.permute.xlu0 %3602
    %v3608 = vadd.f32 %v3556, %v3597
    %v3609 = vadd.f32 %v3557, %v3599
    %v3610 = vadd.f32 %v3558, %v3601
    %v3611 = vadd.f32 %v3559, %v3603
    %s3612 = sld [smem:[#allocation3 + $0x9e]]
    %v3613 = vstv %s3612
    %v3614 = vmul.f32 %v3536, %v3613
    %v3615 = vmul.f32 %v3537, %v3613
    %v3616 = vmul.f32 %v3538, %v3613
    %v3617 = vmul.f32 %v3539, %v3613
    %3622 = vrot.lane.b32.xlu0 %v3614, 126
    %v3623 = vpop.permute.xlu0 %3622
    %3624 = vrot.lane.b32.xlu0 %v3615, 126
    %v3625 = vpop.permute.xlu0 %3624
    %3626 = vrot.lane.b32.xlu0 %v3616, 126
    %v3627 = vpop.permute.xlu0 %3626
    %3628 = vrot.lane.b32.xlu0 %v3617, 126
    %v3629 = vpop.permute.xlu0 %3628
    %v3634 = vadd.f32 %v3582, %v3623
    %v3635 = vadd.f32 %v3583, %v3625
    %v3636 = vadd.f32 %v3584, %v3627
    %v3637 = vadd.f32 %v3585, %v3629
    %s3638 = sld [smem:[#allocation3 + $0x9f]]
    %v3639 = vstv %s3638
    %v3640 = vmul.f32 %v3536, %v3639
    %v3641 = vmul.f32 %v3537, %v3639
    %v3642 = vmul.f32 %v3538, %v3639
    %v3643 = vmul.f32 %v3539, %v3639
    %3648 = vrot.lane.b32.xlu0 %v3640, 126
    %v3649 = vpop.permute.xlu0 %3648
    %3650 = vrot.lane.b32.xlu0 %v3641, 126
    %v3651 = vpop.permute.xlu0 %3650
    %3652 = vrot.lane.b32.xlu0 %v3642, 126
    %v3653 = vpop.permute.xlu0 %3652
    %3654 = vrot.lane.b32.xlu0 %v3643, 126
    %v3655 = vpop.permute.xlu0 %3654
    %v3660 = vadd.f32 %v3608, %v3649
    %v3661 = vadd.f32 %v3609, %v3651
    %v3662 = vadd.f32 %v3610, %v3653
    %v3663 = vadd.f32 %v3611, %v3655
    %s3664 = sld [smem:[#allocation3 + $0xa6]]
    %v3665 = vstv %s3664
    %v3666 = vadd.f32 %v3665, 0.0
    %s3667 = sld [smem:[#allocation3 + $0xa2]]
    %v3668 = vstv %s3667
    %v3669 = vmul.f32 %v1916, %v3668
    %v3670 = vmul.f32 %v1917, %v3668
    %v3671 = vmul.f32 %v1918, %v3668
    %v3672 = vmul.f32 %v1919, %v3668
    %v3673 = vadd.f32 %v3666, %v3669
    %v3674 = vadd.f32 %v3666, %v3670
    %v3675 = vadd.f32 %v3666, %v3671
    %v3676 = vadd.f32 %v3666, %v3672
    %s3677 = sld [smem:[#allocation3 + $0xa4]]
    %v3678 = vstv %s3677
    %v3679 = vmul.f32 %v1920, %v3678
    %v3680 = vmul.f32 %v1921, %v3678
    %v3681 = vmul.f32 %v1922, %v3678
    %v3682 = vmul.f32 %v1923, %v3678
    %v3683 = vadd.f32 %v3673, %v3679
    %v3684 = vadd.f32 %v3674, %v3680
    %v3685 = vadd.f32 %v3675, %v3681
    %v3686 = vadd.f32 %v3676, %v3682
    %vm3687 = vcmp.gt.f32.partialorder %v3634, 0.0
    %vm3688 = vcmp.gt.f32.partialorder %v3635, 0.0
    %vm3689 = vcmp.gt.f32.partialorder %v3636, 0.0
    %vm3690 = vcmp.gt.f32.partialorder %v3637, 0.0
    %v3691 = vmul.f32 %v3634, 0.1
    %v3692 = vmul.f32 %v3635, 0.1
    %v3693 = vmul.f32 %v3636, 0.1
    %v3694 = vmul.f32 %v3637, 0.1
    %v3695 = vsel %vm3687, %v3634, %v3691
    %v3696 = vsel %vm3688, %v3635, %v3692
    %v3697 = vsel %vm3689, %v3636, %v3693
    %v3698 = vsel %vm3690, %v3637, %v3694
    %v3699 = vadd.f32 %v3695, %v3683
    %v3700 = vadd.f32 %v3696, %v3684
    %v3701 = vadd.f32 %v3697, %v3685
    %v3702 = vadd.f32 %v3698, %v3686
    %s3703 = sld [smem:[#allocation3 + $0xa7]]
    %v3704 = vstv %s3703
    %v3705 = vadd.f32 %v3704, 0.0
    %s3706 = sld [smem:[#allocation3 + $0xa3]]
    %v3707 = vstv %s3706
    %v3708 = vmul.f32 %v1916, %v3707
    %v3709 = vmul.f32 %v1917, %v3707
    %v3710 = vmul.f32 %v1918, %v3707
    %v3711 = vmul.f32 %v1919, %v3707
    %v3712 = vadd.f32 %v3705, %v3708
    %v3713 = vadd.f32 %v3705, %v3709
    %v3714 = vadd.f32 %v3705, %v3710
    %v3715 = vadd.f32 %v3705, %v3711
    %s3716 = sld [smem:[#allocation3 + $0xa5]]
    %v3717 = vstv %s3716
    %v3718 = vmul.f32 %v1920, %v3717
    %v3719 = vmul.f32 %v1921, %v3717
    %v3720 = vmul.f32 %v1922, %v3717
    %v3721 = vmul.f32 %v1923, %v3717
    %v3722 = vadd.f32 %v3712, %v3718
    %v3723 = vadd.f32 %v3713, %v3719
    %v3724 = vadd.f32 %v3714, %v3720
    %v3725 = vadd.f32 %v3715, %v3721
    %vm3726 = vcmp.gt.f32.partialorder %v3660, 0.0
    %vm3727 = vcmp.gt.f32.partialorder %v3661, 0.0
    %vm3728 = vcmp.gt.f32.partialorder %v3662, 0.0
    %vm3729 = vcmp.gt.f32.partialorder %v3663, 0.0
    %v3730 = vmul.f32 %v3660, 0.1
    %v3731 = vmul.f32 %v3661, 0.1
    %v3732 = vmul.f32 %v3662, 0.1
    %v3733 = vmul.f32 %v3663, 0.1
    %v3734 = vsel %vm3726, %v3660, %v3730
    %v3735 = vsel %vm3727, %v3661, %v3731
    %v3736 = vsel %vm3728, %v3662, %v3732
    %v3737 = vsel %vm3729, %v3663, %v3733
    %v3738 = vadd.f32 %v3734, %v3722
    %v3739 = vadd.f32 %v3735, %v3723
    %v3740 = vadd.f32 %v3736, %v3724
    %v3741 = vadd.f32 %v3737, %v3725
    %3742 = vst.msk [vmem:[#allocation2 + $0x1] sm:$0xff] %vm109, %v1929
    %3743 = vst.msk [vmem:[#allocation2 + $0x9] sm:$0xff] %vm109, %v1931
    %3744 = vst.msk [vmem:[#allocation2 + $0x19] sm:$0xff] %vm109, %v1933
    %3745 = vst.msk [vmem:[#allocation2 + $0x21] sm:$0xff] %vm109, %v1935
    %3746 = vst.msk [vmem:[%s130 + $0x1] sm:$0xff] %vm109, %v1949
    %3747 = vst.msk [vmem:[%s130 + $0x9] sm:$0xff] %vm109, %v1951
    %3748 = vst.msk [vmem:[%s130 + $0x19] sm:$0xff] %vm109, %v1953
    %3749 = vst.msk [vmem:[%s130 + $0x21] sm:$0xff] %vm109, %v1955
    %s3750 = sld [smem:[#allocation3 + $0xcc]]
    %v3751 = vstv %s3750
    %v3752 = vadd.f32 %v3751, 0.0
    %s3753 = sld [smem:[#allocation3 + $0xcd]]
    %v3754 = vstv %s3753
    %v3755 = vadd.f32 %v3754, 0.0
    %v3756 = vld [vmem:[#allocation2] sm:$0xff]
    %v3757 = vld [vmem:[#allocation2 + $0x8] sm:$0xff]
    %v3758 = vld [vmem:[#allocation2 + $0x18] sm:$0xff]
    %v3759 = vld [vmem:[#allocation2 + $0x20] sm:$0xff]
    %s3760 = sld [smem:[#allocation3 + $0xa8]]
    %v3761 = vstv %s3760
    %v3762 = vmul.f32 %v3756, %v3761
    %v3763 = vmul.f32 %v3757, %v3761
    %v3764 = vmul.f32 %v3758, %v3761
    %v3765 = vmul.f32 %v3759, %v3761
    %v3766 = vadd.f32 %v3752, %v3762
    %v3767 = vadd.f32 %v3752, %v3763
    %v3768 = vadd.f32 %v3752, %v3764
    %v3769 = vadd.f32 %v3752, %v3765
    %s3770 = sld [smem:[#allocation3 + $0xa9]]
    %v3771 = vstv %s3770
    %v3772 = vmul.f32 %v3756, %v3771
    %v3773 = vmul.f32 %v3757, %v3771
    %v3774 = vmul.f32 %v3758, %v3771
    %v3775 = vmul.f32 %v3759, %v3771
    %v3776 = vadd.f32 %v3755, %v3772
    %v3777 = vadd.f32 %v3755, %v3773
    %v3778 = vadd.f32 %v3755, %v3774
    %v3779 = vadd.f32 %v3755, %v3775
    %s3780 = sld [smem:[#allocation3 + $0xac]]
    %v3781 = vstv %s3780
    %v3782 = vmul.f32 %v3756, %v3781
    %v3783 = vmul.f32 %v3757, %v3781
    %v3784 = vmul.f32 %v3758, %v3781
    %v3785 = vmul.f32 %v3759, %v3781
    %3790 = vrot.lane.b32.xlu0 %v3782, 127
    %v3791 = vpop.permute.xlu0 %3790
    %3792 = vrot.lane.b32.xlu0 %v3783, 127
    %v3793 = vpop.permute.xlu0 %3792
    %3794 = vrot.lane.b32.xlu0 %v3784, 127
    %v3795 = vpop.permute.xlu0 %3794
    %3796 = vrot.lane.b32.xlu0 %v3785, 127
    %v3797 = vpop.permute.xlu0 %3796
    %v3802 = vadd.f32 %v3766, %v3791
    %v3803 = vadd.f32 %v3767, %v3793
    %v3804 = vadd.f32 %v3768, %v3795
    %v3805 = vadd.f32 %v3769, %v3797
    %s3806 = sld [smem:[#allocation3 + $0xad]]
    %v3807 = vstv %s3806
    %v3808 = vmul.f32 %v3756, %v3807
    %v3809 = vmul.f32 %v3757, %v3807
    %v3810 = vmul.f32 %v3758, %v3807
    %v3811 = vmul.f32 %v3759, %v3807
    %3816 = vrot.lane.b32.xlu0 %v3808, 127
    %v3817 = vpop.permute.xlu0 %3816
    %3818 = vrot.lane.b32.xlu0 %v3809, 127
    %v3819 = vpop.permute.xlu0 %3818
    %3820 = vrot.lane.b32.xlu0 %v3810, 127
    %v3821 = vpop.permute.xlu0 %3820
    %3822 = vrot.lane.b32.xlu0 %v3811, 127
    %v3823 = vpop.permute.xlu0 %3822
    %v3828 = vadd.f32 %v3776, %v3817
    %v3829 = vadd.f32 %v3777, %v3819
    %v3830 = vadd.f32 %v3778, %v3821
    %v3831 = vadd.f32 %v3779, %v3823
    %s3832 = sld [smem:[#allocation3 + $0xb0]]
    %v3833 = vstv %s3832
    %v3834 = vmul.f32 %v3756, %v3833
    %v3835 = vmul.f32 %v3757, %v3833
    %v3836 = vmul.f32 %v3758, %v3833
    %v3837 = vmul.f32 %v3759, %v3833
    %3842 = vrot.lane.b32.xlu0 %v3834, 126
    %v3843 = vpop.permute.xlu0 %3842
    %3844 = vrot.lane.b32.xlu0 %v3835, 126
    %v3845 = vpop.permute.xlu0 %3844
    %3846 = vrot.lane.b32.xlu0 %v3836, 126
    %v3847 = vpop.permute.xlu0 %3846
    %3848 = vrot.lane.b32.xlu0 %v3837, 126
    %v3849 = vpop.permute.xlu0 %3848
    %v3854 = vadd.f32 %v3802, %v3843
    %v3855 = vadd.f32 %v3803, %v3845
    %v3856 = vadd.f32 %v3804, %v3847
    %v3857 = vadd.f32 %v3805, %v3849
    %s3858 = sld [smem:[#allocation3 + $0xb1]]
    %v3859 = vstv %s3858
    %v3860 = vmul.f32 %v3756, %v3859
    %v3861 = vmul.f32 %v3757, %v3859
    %v3862 = vmul.f32 %v3758, %v3859
    %v3863 = vmul.f32 %v3759, %v3859
    %3868 = vrot.lane.b32.xlu0 %v3860, 126
    %v3869 = vpop.permute.xlu0 %3868
    %3870 = vrot.lane.b32.xlu0 %v3861, 126
    %v3871 = vpop.permute.xlu0 %3870
    %3872 = vrot.lane.b32.xlu0 %v3862, 126
    %v3873 = vpop.permute.xlu0 %3872
    %3874 = vrot.lane.b32.xlu0 %v3863, 126
    %v3875 = vpop.permute.xlu0 %3874
    %v3880 = vadd.f32 %v3828, %v3869
    %v3881 = vadd.f32 %v3829, %v3871
    %v3882 = vadd.f32 %v3830, %v3873
    %v3883 = vadd.f32 %v3831, %v3875
    %v3884 = vld [vmem:[#allocation2 + $0x1] sm:$0xff]
    %v3885 = vld [vmem:[#allocation2 + $0x9] sm:$0xff]
    %v3886 = vld [vmem:[#allocation2 + $0x19] sm:$0xff]
    %v3887 = vld [vmem:[#allocation2 + $0x21] sm:$0xff]
    %s3888 = sld [smem:[#allocation3 + $0xb4]]
    %v3889 = vstv %s3888
    %v3890 = vmul.f32 %v3884, %v3889
    %v3891 = vmul.f32 %v3885, %v3889
    %v3892 = vmul.f32 %v3886, %v3889
    %v3893 = vmul.f32 %v3887, %v3889
    %v3894 = vadd.f32 %v3854, %v3890
    %v3895 = vadd.f32 %v3855, %v3891
    %v3896 = vadd.f32 %v3856, %v3892
    %v3897 = vadd.f32 %v3857, %v3893
    %s3898 = sld [smem:[#allocation3 + $0xb5]]
    %v3899 = vstv %s3898
    %v3900 = vmul.f32 %v3884, %v3899
    %v3901 = vmul.f32 %v3885, %v3899
    %v3902 = vmul.f32 %v3886, %v3899
    %v3903 = vmul.f32 %v3887, %v3899
    %v3904 = vadd.f32 %v3880, %v3900
    %v3905 = vadd.f32 %v3881, %v3901
    %v3906 = vadd.f32 %v3882, %v3902
    %v3907 = vadd.f32 %v3883, %v3903
    %s3908 = sld [smem:[#allocation3 + $0xb8]]
    %v3909 = vstv %s3908
    %v3910 = vmul.f32 %v3884, %v3909
    %v3911 = vmul.f32 %v3885, %v3909
    %v3912 = vmul.f32 %v3886, %v3909
    %v3913 = vmul.f32 %v3887, %v3909
    %3918 = vrot.lane.b32.xlu0 %v3910, 127
    %v3919 = vpop.permute.xlu0 %3918
    %3920 = vrot.lane.b32.xlu0 %v3911, 127
    %v3921 = vpop.permute.xlu0 %3920
    %3922 = vrot.lane.b32.xlu0 %v3912, 127
    %v3923 = vpop.permute.xlu0 %3922
    %3924 = vrot.lane.b32.xlu0 %v3913, 127
    %v3925 = vpop.permute.xlu0 %3924
    %v3930 = vadd.f32 %v3894, %v3919
    %v3931 = vadd.f32 %v3895, %v3921
    %v3932 = vadd.f32 %v3896, %v3923
    %v3933 = vadd.f32 %v3897, %v3925
    %s3934 = sld [smem:[#allocation3 + $0xb9]]
    %v3935 = vstv %s3934
    %v3936 = vmul.f32 %v3884, %v3935
    %v3937 = vmul.f32 %v3885, %v3935
    %v3938 = vmul.f32 %v3886, %v3935
    %v3939 = vmul.f32 %v3887, %v3935
    %3944 = vrot.lane.b32.xlu0 %v3936, 127
    %v3945 = vpop.permute.xlu0 %3944
    %3946 = vrot.lane.b32.xlu0 %v3937, 127
    %v3947 = vpop.permute.xlu0 %3946
    %3948 = vrot.lane.b32.xlu0 %v3938, 127
    %v3949 = vpop.permute.xlu0 %3948
    %3950 = vrot.lane.b32.xlu0 %v3939, 127
    %v3951 = vpop.permute.xlu0 %3950
    %v3956 = vadd.f32 %v3904, %v3945
    %v3957 = vadd.f32 %v3905, %v3947
    %v3958 = vadd.f32 %v3906, %v3949
    %v3959 = vadd.f32 %v3907, %v3951
    %s3960 = sld [smem:[#allocation3 + $0xbc]]
    %v3961 = vstv %s3960
    %v3962 = vmul.f32 %v3884, %v3961
    %v3963 = vmul.f32 %v3885, %v3961
    %v3964 = vmul.f32 %v3886, %v3961
    %v3965 = vmul.f32 %v3887, %v3961
    %3970 = vrot.lane.b32.xlu0 %v3962, 126
    %v3971 = vpop.permute.xlu0 %3970
    %3972 = vrot.lane.b32.xlu0 %v3963, 126
    %v3973 = vpop.permute.xlu0 %3972
    %3974 = vrot.lane.b32.xlu0 %v3964, 126
    %v3975 = vpop.permute.xlu0 %3974
    %3976 = vrot.lane.b32.xlu0 %v3965, 126
    %v3977 = vpop.permute.xlu0 %3976
    %v3982 = vadd.f32 %v3930, %v3971
    %v3983 = vadd.f32 %v3931, %v3973
    %v3984 = vadd.f32 %v3932, %v3975
    %v3985 = vadd.f32 %v3933, %v3977
    %s3986 = sld [smem:[#allocation3 + $0xbd]]
    %v3987 = vstv %s3986
    %v3988 = vmul.f32 %v3884, %v3987
    %v3989 = vmul.f32 %v3885, %v3987
    %v3990 = vmul.f32 %v3886, %v3987
    %v3991 = vmul.f32 %v3887, %v3987
    %3996 = vrot.lane.b32.xlu0 %v3988, 126
    %v3997 = vpop.permute.xlu0 %3996
    %3998 = vrot.lane.b32.xlu0 %v3989, 126
    %v3999 = vpop.permute.xlu0 %3998
    %4000 = vrot.lane.b32.xlu0 %v3990, 126
    %v4001 = vpop.permute.xlu0 %4000
    %4002 = vrot.lane.b32.xlu0 %v3991, 126
    %v4003 = vpop.permute.xlu0 %4002
    %v4008 = vadd.f32 %v3956, %v3997
    %v4009 = vadd.f32 %v3957, %v3999
    %v4010 = vadd.f32 %v3958, %v4001
    %v4011 = vadd.f32 %v3959, %v4003
    %v4012 = vld [vmem:[#allocation2 + $0x2] sm:$0xff]
    %v4013 = vld [vmem:[#allocation2 + $0xa] sm:$0xff]
    %v4014 = vld [vmem:[#allocation2 + $0x1a] sm:$0xff]
    %v4015 = vld [vmem:[#allocation2 + $0x22] sm:$0xff]
    %s4016 = sld [smem:[#allocation3 + $0xc0]]
    %v4017 = vstv %s4016
    %v4018 = vmul.f32 %v4012, %v4017
    %v4019 = vmul.f32 %v4013, %v4017
    %v4020 = vmul.f32 %v4014, %v4017
    %v4021 = vmul.f32 %v4015, %v4017
    %v4022 = vadd.f32 %v3982, %v4018
    %v4023 = vadd.f32 %v3983, %v4019
    %v4024 = vadd.f32 %v3984, %v4020
    %v4025 = vadd.f32 %v3985, %v4021
    %s4026 = sld [smem:[#allocation3 + $0xc1]]
    %v4027 = vstv %s4026
    %v4028 = vmul.f32 %v4012, %v4027
    %v4029 = vmul.f32 %v4013, %v4027
    %v4030 = vmul.f32 %v4014, %v4027
    %v4031 = vmul.f32 %v4015, %v4027
    %v4032 = vadd.f32 %v4008, %v4028
    %v4033 = vadd.f32 %v4009, %v4029
    %v4034 = vadd.f32 %v4010, %v4030
    %v4035 = vadd.f32 %v4011, %v4031
    %s4036 = sld [smem:[#allocation3 + $0xc4]]
    %v4037 = vstv %s4036
    %v4038 = vmul.f32 %v4012, %v4037
    %v4039 = vmul.f32 %v4013, %v4037
    %v4040 = vmul.f32 %v4014, %v4037
    %v4041 = vmul.f32 %v4015, %v4037
    %4046 = vrot.lane.b32.xlu0 %v4038, 127
    %v4047 = vpop.permute.xlu0 %4046
    %4048 = vrot.lane.b32.xlu0 %v4039, 127
    %v4049 = vpop.permute.xlu0 %4048
    %4050 = vrot.lane.b32.xlu0 %v4040, 127
    %v4051 = vpop.permute.xlu0 %4050
    %4052 = vrot.lane.b32.xlu0 %v4041, 127
    %v4053 = vpop.permute.xlu0 %4052
    %v4058 = vadd.f32 %v4022, %v4047
    %v4059 = vadd.f32 %v4023, %v4049
    %v4060 = vadd.f32 %v4024, %v4051
    %v4061 = vadd.f32 %v4025, %v4053
    %s4062 = sld [smem:[#allocation3 + $0xc5]]
    %v4063 = vstv %s4062
    %v4064 = vmul.f32 %v4012, %v4063
    %v4065 = vmul.f32 %v4013, %v4063
    %v4066 = vmul.f32 %v4014, %v4063
    %v4067 = vmul.f32 %v4015, %v4063
    %4072 = vrot.lane.b32.xlu0 %v4064, 127
    %v4073 = vpop.permute.xlu0 %4072
    %4074 = vrot.lane.b32.xlu0 %v4065, 127
    %v4075 = vpop.permute.xlu0 %4074
    %4076 = vrot.lane.b32.xlu0 %v4066, 127
    %v4077 = vpop.permute.xlu0 %4076
    %4078 = vrot.lane.b32.xlu0 %v4067, 127
    %v4079 = vpop.permute.xlu0 %4078
    %v4084 = vadd.f32 %v4032, %v4073
    %v4085 = vadd.f32 %v4033, %v4075
    %v4086 = vadd.f32 %v4034, %v4077
    %v4087 = vadd.f32 %v4035, %v4079
    %s4088 = sld [smem:[#allocation3 + $0xc8]]
    %v4089 = vstv %s4088
    %v4090 = vmul.f32 %v4012, %v4089
    %v4091 = vmul.f32 %v4013, %v4089
    %v4092 = vmul.f32 %v4014, %v4089
    %v4093 = vmul.f32 %v4015, %v4089
    %4098 = vrot.lane.b32.xlu0 %v4090, 126
    %v4099 = vpop.permute.xlu0 %4098
    %4100 = vrot.lane.b32.xlu0 %v4091, 126
    %v4101 = vpop.permute.xlu0 %4100
    %4102 = vrot.lane.b32.xlu0 %v4092, 126
    %v4103 = vpop.permute.xlu0 %4102
    %4104 = vrot.lane.b32.xlu0 %v4093, 126
    %v4105 = vpop.permute.xlu0 %4104
    %v4110 = vadd.f32 %v4058, %v4099
    %v4111 = vadd.f32 %v4059, %v4101
    %v4112 = vadd.f32 %v4060, %v4103
    %v4113 = vadd.f32 %v4061, %v4105
    %s4114 = sld [smem:[#allocation3 + $0xc9]]
    %v4115 = vstv %s4114
    %v4116 = vmul.f32 %v4012, %v4115
    %v4117 = vmul.f32 %v4013, %v4115
    %v4118 = vmul.f32 %v4014, %v4115
    %v4119 = vmul.f32 %v4015, %v4115
    %4124 = vrot.lane.b32.xlu0 %v4116, 126
    %v4125 = vpop.permute.xlu0 %4124
    %4126 = vrot.lane.b32.xlu0 %v4117, 126
    %v4127 = vpop.permute.xlu0 %4126
    %4128 = vrot.lane.b32.xlu0 %v4118, 126
    %v4129 = vpop.permute.xlu0 %4128
    %4130 = vrot.lane.b32.xlu0 %v4119, 126
    %v4131 = vpop.permute.xlu0 %4130
    %v4136 = vadd.f32 %v4084, %v4125
    %v4137 = vadd.f32 %v4085, %v4127
    %v4138 = vadd.f32 %v4086, %v4129
    %v4139 = vadd.f32 %v4087, %v4131
    %v4140 = vld [vmem:[%s130] sm:$0xff]
    %v4141 = vld [vmem:[%s130 + $0x8] sm:$0xff]
    %v4142 = vld [vmem:[%s130 + $0x18] sm:$0xff]
    %v4143 = vld [vmem:[%s130 + $0x20] sm:$0xff]
    %s4144 = sld [smem:[#allocation3 + $0xaa]]
    %v4145 = vstv %s4144
    %v4146 = vmul.f32 %v4140, %v4145
    %v4147 = vmul.f32 %v4141, %v4145
    %v4148 = vmul.f32 %v4142, %v4145
    %v4149 = vmul.f32 %v4143, %v4145
    %v4150 = vadd.f32 %v4110, %v4146
    %v4151 = vadd.f32 %v4111, %v4147
    %v4152 = vadd.f32 %v4112, %v4148
    %v4153 = vadd.f32 %v4113, %v4149
    %s4154 = sld [smem:[#allocation3 + $0xab]]
    %v4155 = vstv %s4154
    %v4156 = vmul.f32 %v4140, %v4155
    %v4157 = vmul.f32 %v4141, %v4155
    %v4158 = vmul.f32 %v4142, %v4155
    %v4159 = vmul.f32 %v4143, %v4155
    %v4160 = vadd.f32 %v4136, %v4156
    %v4161 = vadd.f32 %v4137, %v4157
    %v4162 = vadd.f32 %v4138, %v4158
    %v4163 = vadd.f32 %v4139, %v4159
    %s4164 = sld [smem:[#allocation3 + $0xae]]
    %v4165 = vstv %s4164
    %v4166 = vmul.f32 %v4140, %v4165
    %v4167 = vmul.f32 %v4141, %v4165
    %v4168 = vmul.f32 %v4142, %v4165
    %v4169 = vmul.f32 %v4143, %v4165
    %4174 = vrot.lane.b32.xlu0 %v4166, 127
    %v4175 = vpop.permute.xlu0 %4174
    %4176 = vrot.lane.b32.xlu0 %v4167, 127
    %v4177 = vpop.permute.xlu0 %4176
    %4178 = vrot.lane.b32.xlu0 %v4168, 127
    %v4179 = vpop.permute.xlu0 %4178
    %4180 = vrot.lane.b32.xlu0 %v4169, 127
    %v4181 = vpop.permute.xlu0 %4180
    %v4186 = vadd.f32 %v4150, %v4175
    %v4187 = vadd.f32 %v4151, %v4177
    %v4188 = vadd.f32 %v4152, %v4179
    %v4189 = vadd.f32 %v4153, %v4181
    %s4190 = sld [smem:[#allocation3 + $0xaf]]
    %v4191 = vstv %s4190
    %v4192 = vmul.f32 %v4140, %v4191
    %v4193 = vmul.f32 %v4141, %v4191
    %v4194 = vmul.f32 %v4142, %v4191
    %v4195 = vmul.f32 %v4143, %v4191
    %4200 = vrot.lane.b32.xlu0 %v4192, 127
    %v4201 = vpop.permute.xlu0 %4200
    %4202 = vrot.lane.b32.xlu0 %v4193, 127
    %v4203 = vpop.permute.xlu0 %4202
    %4204 = vrot.lane.b32.xlu0 %v4194, 127
    %v4205 = vpop.permute.xlu0 %4204
    %4206 = vrot.lane.b32.xlu0 %v4195, 127
    %v4207 = vpop.permute.xlu0 %4206
    %v4212 = vadd.f32 %v4160, %v4201
    %v4213 = vadd.f32 %v4161, %v4203
    %v4214 = vadd.f32 %v4162, %v4205
    %v4215 = vadd.f32 %v4163, %v4207
    %s4216 = sld [smem:[#allocation3 + $0xb2]]
    %v4217 = vstv %s4216
    %v4218 = vmul.f32 %v4140, %v4217
    %v4219 = vmul.f32 %v4141, %v4217
    %v4220 = vmul.f32 %v4142, %v4217
    %v4221 = vmul.f32 %v4143, %v4217
    %4226 = vrot.lane.b32.xlu0 %v4218, 126
    %v4227 = vpop.permute.xlu0 %4226
    %4228 = vrot.lane.b32.xlu0 %v4219, 126
    %v4229 = vpop.permute.xlu0 %4228
    %4230 = vrot.lane.b32.xlu0 %v4220, 126
    %v4231 = vpop.permute.xlu0 %4230
    %4232 = vrot.lane.b32.xlu0 %v4221, 126
    %v4233 = vpop.permute.xlu0 %4232
    %v4238 = vadd.f32 %v4186, %v4227
    %v4239 = vadd.f32 %v4187, %v4229
    %v4240 = vadd.f32 %v4188, %v4231
    %v4241 = vadd.f32 %v4189, %v4233
    %s4242 = sld [smem:[#allocation3 + $0xb3]]
    %v4243 = vstv %s4242
    %v4244 = vmul.f32 %v4140, %v4243
    %v4245 = vmul.f32 %v4141, %v4243
    %v4246 = vmul.f32 %v4142, %v4243
    %v4247 = vmul.f32 %v4143, %v4243
    %4252 = vrot.lane.b32.xlu0 %v4244, 126
    %v4253 = vpop.permute.xlu0 %4252
    %4254 = vrot.lane.b32.xlu0 %v4245, 126
    %v4255 = vpop.permute.xlu0 %4254
    %4256 = vrot.lane.b32.xlu0 %v4246, 126
    %v4257 = vpop.permute.xlu0 %4256
    %4258 = vrot.lane.b32.xlu0 %v4247, 126
    %v4259 = vpop.permute.xlu0 %4258
    %v4264 = vadd.f32 %v4212, %v4253
    %v4265 = vadd.f32 %v4213, %v4255
    %v4266 = vadd.f32 %v4214, %v4257
    %v4267 = vadd.f32 %v4215, %v4259
    %v4268 = vld [vmem:[%s130 + $0x1] sm:$0xff]
    %v4269 = vld [vmem:[%s130 + $0x9] sm:$0xff]
    %v4270 = vld [vmem:[%s130 + $0x19] sm:$0xff]
    %v4271 = vld [vmem:[%s130 + $0x21] sm:$0xff]
    %s4272 = sld [smem:[#allocation3 + $0xb6]]
    %v4273 = vstv %s4272
    %v4274 = vmul.f32 %v4268, %v4273
    %v4275 = vmul.f32 %v4269, %v4273
    %v4276 = vmul.f32 %v4270, %v4273
    %v4277 = vmul.f32 %v4271, %v4273
    %v4278 = vadd.f32 %v4238, %v4274
    %v4279 = vadd.f32 %v4239, %v4275
    %v4280 = vadd.f32 %v4240, %v4276
    %v4281 = vadd.f32 %v4241, %v4277
    %s4282 = sld [smem:[#allocation3 + $0xb7]]
    %v4283 = vstv %s4282
    %v4284 = vmul.f32 %v4268, %v4283
    %v4285 = vmul.f32 %v4269, %v4283
    %v4286 = vmul.f32 %v4270, %v4283
    %v4287 = vmul.f32 %v4271, %v4283
    %v4288 = vadd.f32 %v4264, %v4284
    %v4289 = vadd.f32 %v4265, %v4285
    %v4290 = vadd.f32 %v4266, %v4286
    %v4291 = vadd.f32 %v4267, %v4287
    %s4292 = sld [smem:[#allocation3 + $0xba]]
    %v4293 = vstv %s4292
    %v4294 = vmul.f32 %v4268, %v4293
    %v4295 = vmul.f32 %v4269, %v4293
    %v4296 = vmul.f32 %v4270, %v4293
    %v4297 = vmul.f32 %v4271, %v4293
    %4302 = vrot.lane.b32.xlu0 %v4294, 127
    %v4303 = vpop.permute.xlu0 %4302
    %4304 = vrot.lane.b32.xlu0 %v4295, 127
    %v4305 = vpop.permute.xlu0 %4304
    %4306 = vrot.lane.b32.xlu0 %v4296, 127
    %v4307 = vpop.permute.xlu0 %4306
    %4308 = vrot.lane.b32.xlu0 %v4297, 127
    %v4309 = vpop.permute.xlu0 %4308
    %v4314 = vadd.f32 %v4278, %v4303
    %v4315 = vadd.f32 %v4279, %v4305
    %v4316 = vadd.f32 %v4280, %v4307
    %v4317 = vadd.f32 %v4281, %v4309
    %s4318 = sld [smem:[#allocation3 + $0xbb]]
    %v4319 = vstv %s4318
    %v4320 = vmul.f32 %v4268, %v4319
    %v4321 = vmul.f32 %v4269, %v4319
    %v4322 = vmul.f32 %v4270, %v4319
    %v4323 = vmul.f32 %v4271, %v4319
    %4328 = vrot.lane.b32.xlu0 %v4320, 127
    %v4329 = vpop.permute.xlu0 %4328
    %4330 = vrot.lane.b32.xlu0 %v4321, 127
    %v4331 = vpop.permute.xlu0 %4330
    %4332 = vrot.lane.b32.xlu0 %v4322, 127
    %v4333 = vpop.permute.xlu0 %4332
    %4334 = vrot.lane.b32.xlu0 %v4323, 127
    %v4335 = vpop.permute.xlu0 %4334
    %v4340 = vadd.f32 %v4288, %v4329
    %v4341 = vadd.f32 %v4289, %v4331
    %v4342 = vadd.f32 %v4290, %v4333
    %v4343 = vadd.f32 %v4291, %v4335
    %s4344 = sld [smem:[#allocation3 + $0xbe]]
    %v4345 = vstv %s4344
    %v4346 = vmul.f32 %v4268, %v4345
    %v4347 = vmul.f32 %v4269, %v4345
    %v4348 = vmul.f32 %v4270, %v4345
    %v4349 = vmul.f32 %v4271, %v4345
    %4354 = vrot.lane.b32.xlu0 %v4346, 126
    %v4355 = vpop.permute.xlu0 %4354
    %4356 = vrot.lane.b32.xlu0 %v4347, 126
    %v4357 = vpop.permute.xlu0 %4356
    %4358 = vrot.lane.b32.xlu0 %v4348, 126
    %v4359 = vpop.permute.xlu0 %4358
    %4360 = vrot.lane.b32.xlu0 %v4349, 126
    %v4361 = vpop.permute.xlu0 %4360
    %v4366 = vadd.f32 %v4314, %v4355
    %v4367 = vadd.f32 %v4315, %v4357
    %v4368 = vadd.f32 %v4316, %v4359
    %v4369 = vadd.f32 %v4317, %v4361
    %s4370 = sld [smem:[#allocation3 + $0xbf]]
    %v4371 = vstv %s4370
    %v4372 = vmul.f32 %v4268, %v4371
    %v4373 = vmul.f32 %v4269, %v4371
    %v4374 = vmul.f32 %v4270, %v4371
    %v4375 = vmul.f32 %v4271, %v4371
    %4380 = vrot.lane.b32.xlu0 %v4372, 126
    %v4381 = vpop.permute.xlu0 %4380
    %4382 = vrot.lane.b32.xlu0 %v4373, 126
    %v4383 = vpop.permute.xlu0 %4382
    %4384 = vrot.lane.b32.xlu0 %v4374, 126
    %v4385 = vpop.permute.xlu0 %4384
    %4386 = vrot.lane.b32.xlu0 %v4375, 126
    %v4387 = vpop.permute.xlu0 %4386
    %v4392 = vadd.f32 %v4340, %v4381
    %v4393 = vadd.f32 %v4341, %v4383
    %v4394 = vadd.f32 %v4342, %v4385
    %v4395 = vadd.f32 %v4343, %v4387
    %v4396 = vld [vmem:[%s130 + $0x2] sm:$0xff]
    %v4397 = vld [vmem:[%s130 + $0xa] sm:$0xff]
    %v4398 = vld [vmem:[%s130 + $0x1a] sm:$0xff]
    %v4399 = vld [vmem:[%s130 + $0x22] sm:$0xff]
    %s4400 = sld [smem:[#allocation3 + $0xc2]]
    %v4401 = vstv %s4400
    %v4402 = vmul.f32 %v4396, %v4401
    %v4403 = vmul.f32 %v4397, %v4401
    %v4404 = vmul.f32 %v4398, %v4401
    %v4405 = vmul.f32 %v4399, %v4401
    %v4406 = vadd.f32 %v4366, %v4402
    %v4407 = vadd.f32 %v4367, %v4403
    %v4408 = vadd.f32 %v4368, %v4404
    %v4409 = vadd.f32 %v4369, %v4405
    %s4410 = sld [smem:[#allocation3 + $0xc3]]
    %v4411 = vstv %s4410
    %v4412 = vmul.f32 %v4396, %v4411
    %v4413 = vmul.f32 %v4397, %v4411
    %v4414 = vmul.f32 %v4398, %v4411
    %v4415 = vmul.f32 %v4399, %v4411
    %v4416 = vadd.f32 %v4392, %v4412
    %v4417 = vadd.f32 %v4393, %v4413
    %v4418 = vadd.f32 %v4394, %v4414
    %v4419 = vadd.f32 %v4395, %v4415
    %s4420 = sld [smem:[#allocation3 + $0xc6]]
    %v4421 = vstv %s4420
    %v4422 = vmul.f32 %v4396, %v4421
    %v4423 = vmul.f32 %v4397, %v4421
    %v4424 = vmul.f32 %v4398, %v4421
    %v4425 = vmul.f32 %v4399, %v4421
    %4430 = vrot.lane.b32.xlu0 %v4422, 127
    %v4431 = vpop.permute.xlu0 %4430
    %4432 = vrot.lane.b32.xlu0 %v4423, 127
    %v4433 = vpop.permute.xlu0 %4432
    %4434 = vrot.lane.b32.xlu0 %v4424, 127
    %v4435 = vpop.permute.xlu0 %4434
    %4436 = vrot.lane.b32.xlu0 %v4425, 127
    %v4437 = vpop.permute.xlu0 %4436
    %v4442 = vadd.f32 %v4406, %v4431
    %v4443 = vadd.f32 %v4407, %v4433
    %v4444 = vadd.f32 %v4408, %v4435
    %v4445 = vadd.f32 %v4409, %v4437
    %s4446 = sld [smem:[#allocation3 + $0xc7]]
    %v4447 = vstv %s4446
    %v4448 = vmul.f32 %v4396, %v4447
    %v4449 = vmul.f32 %v4397, %v4447
    %v4450 = vmul.f32 %v4398, %v4447
    %v4451 = vmul.f32 %v4399, %v4447
    %4456 = vrot.lane.b32.xlu0 %v4448, 127
    %v4457 = vpop.permute.xlu0 %4456
    %4458 = vrot.lane.b32.xlu0 %v4449, 127
    %v4459 = vpop.permute.xlu0 %4458
    %4460 = vrot.lane.b32.xlu0 %v4450, 127
    %v4461 = vpop.permute.xlu0 %4460
    %4462 = vrot.lane.b32.xlu0 %v4451, 127
    %v4463 = vpop.permute.xlu0 %4462
    %v4468 = vadd.f32 %v4416, %v4457
    %v4469 = vadd.f32 %v4417, %v4459
    %v4470 = vadd.f32 %v4418, %v4461
    %v4471 = vadd.f32 %v4419, %v4463
    %s4472 = sld [smem:[#allocation3 + $0xca]]
    %v4473 = vstv %s4472
    %v4474 = vmul.f32 %v4396, %v4473
    %v4475 = vmul.f32 %v4397, %v4473
    %v4476 = vmul.f32 %v4398, %v4473
    %v4477 = vmul.f32 %v4399, %v4473
    %4482 = vrot.lane.b32.xlu0 %v4474, 126
    %v4483 = vpop.permute.xlu0 %4482
    %4484 = vrot.lane.b32.xlu0 %v4475, 126
    %v4485 = vpop.permute.xlu0 %4484
    %4486 = vrot.lane.b32.xlu0 %v4476, 126
    %v4487 = vpop.permute.xlu0 %4486
    %4488 = vrot.lane.b32.xlu0 %v4477, 126
    %v4489 = vpop.permute.xlu0 %4488
    %v4494 = vadd.f32 %v4442, %v4483
    %v4495 = vadd.f32 %v4443, %v4485
    %v4496 = vadd.f32 %v4444, %v4487
    %v4497 = vadd.f32 %v4445, %v4489
    %s4498 = sld [smem:[#allocation3 + $0xcb]]
    %v4499 = vstv %s4498
    %v4500 = vmul.f32 %v4396, %v4499
    %v4501 = vmul.f32 %v4397, %v4499
    %v4502 = vmul.f32 %v4398, %v4499
    %v4503 = vmul.f32 %v4399, %v4499
    %4508 = vrot.lane.b32.xlu0 %v4500, 126
    %v4509 = vpop.permute.xlu0 %4508
    %4510 = vrot.lane.b32.xlu0 %v4501, 126
    %v4511 = vpop.permute.xlu0 %4510
    %4512 = vrot.lane.b32.xlu0 %v4502, 126
    %v4513 = vpop.permute.xlu0 %4512
    %4514 = vrot.lane.b32.xlu0 %v4503, 126
    %v4515 = vpop.permute.xlu0 %4514
    %v4520 = vadd.f32 %v4468, %v4509
    %v4521 = vadd.f32 %v4469, %v4511
    %v4522 = vadd.f32 %v4470, %v4513
    %v4523 = vadd.f32 %v4471, %v4515
    %v4524 = vsel %vm909, %v4494, 0.0
    %4525 = vadd.xlane.f32.xlu0 %v4524
    %v4526 = vpop.xlane.xlu0 %4525
    %v4527 = vsel %vm909, %v4495, 0.0
    %4528 = vadd.xlane.f32.xlu0 %v4527
    %v4529 = vpop.xlane.xlu0 %4528
    %v4530 = vsel %vm909, %v4496, 0.0
    %4531 = vadd.xlane.f32.xlu0 %v4530
    %v4532 = vpop.xlane.xlu0 %4531
    %v4533 = vsel %vm909, %v4497, 0.0
    %4534 = vadd.xlane.f32.xlu0 %v4533
    %v4535 = vpop.xlane.xlu0 %4534
    %v4536 = vadd.f32 %v4526, %v4529
    %v4537 = vrot.slane %v4536, 4
    %v4538 = vadd.f32 %v4536, %v4537
    %v4539 = vrot.slane %v4538, 2
    %v4540 = vadd.f32 %v4538, %v4539
    %v4541 = vrot.slane %v4540, 1
    %v4542 = vadd.f32 %v4540, %v4541
    %v4543 = vadd.f32 %v4532, %v4535
    %v4544 = vrot.slane %v4543, 4
    %v4545 = vadd.f32 %v4543, %v4544
    %v4546 = vrot.slane %v4545, 2
    %v4547 = vadd.f32 %v4545, %v4546
    %v4548 = vrot.slane %v4547, 1
    %v4549 = vadd.f32 %v4547, %v4548
    %v4550 = vmul.f32 %v4542, 0.00390625
    %v4551 = vmul.f32 %v4549, 0.00390625
    %v4552 = vmul.f32 %v4494, %v4494
    %v4553 = vmul.f32 %v4495, %v4495
    %v4554 = vmul.f32 %v4496, %v4496
    %v4555 = vmul.f32 %v4497, %v4497
    %v4556 = vsel %vm909, %v4552, 0.0
    %4557 = vadd.xlane.f32.xlu0 %v4556
    %v4558 = vpop.xlane.xlu0 %4557
    %v4559 = vsel %vm909, %v4553, 0.0
    %4560 = vadd.xlane.f32.xlu0 %v4559
    %v4561 = vpop.xlane.xlu0 %4560
    %v4562 = vsel %vm909, %v4554, 0.0
    %4563 = vadd.xlane.f32.xlu0 %v4562
    %v4564 = vpop.xlane.xlu0 %4563
    %v4565 = vsel %vm909, %v4555, 0.0
    %4566 = vadd.xlane.f32.xlu0 %v4565
    %v4567 = vpop.xlane.xlu0 %4566
    %v4568 = vadd.f32 %v4558, %v4561
    %v4569 = vrot.slane %v4568, 4
    %v4570 = vadd.f32 %v4568, %v4569
    %v4571 = vrot.slane %v4570, 2
    %v4572 = vadd.f32 %v4570, %v4571
    %v4573 = vrot.slane %v4572, 1
    %v4574 = vadd.f32 %v4572, %v4573
    %v4575 = vadd.f32 %v4564, %v4567
    %v4576 = vrot.slane %v4575, 4
    %v4577 = vadd.f32 %v4575, %v4576
    %v4578 = vrot.slane %v4577, 2
    %v4579 = vadd.f32 %v4577, %v4578
    %v4580 = vrot.slane %v4579, 1
    %v4581 = vadd.f32 %v4579, %v4580
    %v4582 = vmul.f32 %v4574, 0.00390625
    %v4583 = vmul.f32 %v4581, 0.00390625
    %v4584 = vmul.f32 %v4550, %v4550
    %v4585 = vmul.f32 %v4551, %v4551
    %v4586 = vsub.f32 %v4582, %v4584
    %v4587 = vsub.f32 %v4583, %v4585
    %v4588 = vsub.f32 %v4494, %v4550
    %v4589 = vsub.f32 %v4495, %v4550
    %v4590 = vsub.f32 %v4496, %v4551
    %v4591 = vsub.f32 %v4497, %v4551
    %v4592 = vadd.f32 %v4586, 1e-05
    %v4593 = vadd.f32 %v4587, 1e-05
    %v4594 = vrsqrt.pop %v4592
    %v4595 = vrsqrt.pop %v4593
    %v4596 = vmul.f32 %v4588, %v4594
    %v4597 = vmul.f32 %v4589, %v4594
    %v4598 = vmul.f32 %v4590, %v4595
    %v4599 = vmul.f32 %v4591, %v4595
    %s4600 = sld [smem:[#allocation3 + $0xce]]
    %v4601 = vstv %s4600
    %v4602 = vmul.f32 %v4596, %v4601
    %v4603 = vmul.f32 %v4597, %v4601
    %v4604 = vmul.f32 %v4598, %v4601
    %v4605 = vmul.f32 %v4599, %v4601
    %s4606 = sld [smem:[#allocation3 + $0xcf]]
    %v4607 = vstv %s4606
    %v4608 = vadd.f32 %v4602, %v4607
    %v4609 = vadd.f32 %v4603, %v4607
    %v4610 = vadd.f32 %v4604, %v4607
    %v4611 = vadd.f32 %v4605, %v4607
    %vm4612 = vcmp.gt.f32.partialorder %v4608, 0.0
    %vm4613 = vcmp.gt.f32.partialorder %v4609, 0.0
    %vm4614 = vcmp.gt.f32.partialorder %v4610, 0.0
    %vm4615 = vcmp.gt.f32.partialorder %v4611, 0.0
    %v4616 = vmul.f32 %v4608, 0.1
    %v4617 = vmul.f32 %v4609, 0.1
    %v4618 = vmul.f32 %v4610, 0.1
    %v4619 = vmul.f32 %v4611, 0.1
    %v4620 = vsel %vm4612, %v4608, %v4616
    %v4621 = vsel %vm4613, %v4609, %v4617
    %v4622 = vsel %vm4614, %v4610, %v4618
    %v4623 = vsel %vm4615, %v4611, %v4619
    %vm4624 = vcmp.gt.f32.partialorder %v4520, 0.0
    %vm4625 = vcmp.gt.f32.partialorder %v4521, 0.0
    %vm4626 = vcmp.gt.f32.partialorder %v4522, 0.0
    %vm4627 = vcmp.gt.f32.partialorder %v4523, 0.0
    %v4628 = vmul.f32 %v4520, 0.1
    %v4629 = vmul.f32 %v4521, 0.1
    %v4630 = vmul.f32 %v4522, 0.1
    %v4631 = vmul.f32 %v4523, 0.1
    %v4632 = vsel %vm4624, %v4520, %v4628
    %v4633 = vsel %vm4625, %v4521, %v4629
    %v4634 = vsel %vm4626, %v4522, %v4630
    %v4635 = vsel %vm4627, %v4523, %v4631
    %4640 = vrot.lane.b32.xlu0 %v4620, 1
    %v4641 = vpop.permute.xlu0 %4640
    %4642 = vrot.lane.b32.xlu0 %v4621, 1
    %v4643 = vpop.permute.xlu0 %4642
    %4644 = vrot.lane.b32.xlu0 %v4622, 1
    %v4645 = vpop.permute.xlu0 %4644
    %4646 = vrot.lane.b32.xlu0 %v4623, 1
    %v4647 = vpop.permute.xlu0 %4646
    %4652 = vst.msk [vmem:[%s1038 + $0x1] sm:$0xff] %vm109, %v4641
    %4653 = vst.msk [vmem:[%s1038 + $0x9] sm:$0xff] %vm109, %v4643
    %4654 = vst.msk [vmem:[%s1038 + $0x19] sm:$0xff] %vm109, %v4645
    %4655 = vst.msk [vmem:[%s1038 + $0x21] sm:$0xff] %vm109, %v4647
    %4660 = vrot.lane.b32.xlu0 %v4632, 1
    %v4661 = vpop.permute.xlu0 %4660
    %4662 = vrot.lane.b32.xlu0 %v4633, 1
    %v4663 = vpop.permute.xlu0 %4662
    %4664 = vrot.lane.b32.xlu0 %v4634, 1
    %v4665 = vpop.permute.xlu0 %4664
    %4666 = vrot.lane.b32.xlu0 %v4635, 1
    %v4667 = vpop.permute.xlu0 %4666
    %4672 = vst.msk [vmem:[%s1059 + $0x1] sm:$0xff] %vm109, %v4661
    %4673 = vst.msk [vmem:[%s1059 + $0x9] sm:$0xff] %vm109, %v4663
    %4674 = vst.msk [vmem:[%s1059 + $0x19] sm:$0xff] %vm109, %v4665
    %4675 = vst.msk [vmem:[%s1059 + $0x21] sm:$0xff] %vm109, %v4667
    %s4676 = sld [smem:[#allocation3 + $0xf4]]
    %v4677 = vstv %s4676
    %v4678 = vadd.f32 %v4677, 0.0
    %s4679 = sld [smem:[#allocation3 + $0xf5]]
    %v4680 = vstv %s4679
    %v4681 = vadd.f32 %v4680, 0.0
    %v4682 = vld [vmem:[%s1038] sm:$0xff]
    %v4683 = vld [vmem:[%s1038 + $0x8] sm:$0xff]
    %v4684 = vld [vmem:[%s1038 + $0x18] sm:$0xff]
    %v4685 = vld [vmem:[%s1038 + $0x20] sm:$0xff]
    %s4686 = sld [smem:[#allocation3 + $0xd0]]
    %v4687 = vstv %s4686
    %v4688 = vmul.f32 %v4682, %v4687
    %v4689 = vmul.f32 %v4683, %v4687
    %v4690 = vmul.f32 %v4684, %v4687
    %v4691 = vmul.f32 %v4685, %v4687
    %v4692 = vadd.f32 %v4678, %v4688
    %v4693 = vadd.f32 %v4678, %v4689
    %v4694 = vadd.f32 %v4678, %v4690
    %v4695 = vadd.f32 %v4678, %v4691
    %s4696 = sld [smem:[#allocation3 + $0xd1]]
    %v4697 = vstv %s4696
    %v4698 = vmul.f32 %v4682, %v4697
    %v4699 = vmul.f32 %v4683, %v4697
    %v4700 = vmul.f32 %v4684, %v4697
    %v4701 = vmul.f32 %v4685, %v4697
    %v4702 = vadd.f32 %v4681, %v4698
    %v4703 = vadd.f32 %v4681, %v4699
    %v4704 = vadd.f32 %v4681, %v4700
    %v4705 = vadd.f32 %v4681, %v4701
    %s4706 = sld [smem:[#allocation3 + $0xd4]]
    %v4707 = vstv %s4706
    %v4708 = vmul.f32 %v4682, %v4707
    %v4709 = vmul.f32 %v4683, %v4707
    %v4710 = vmul.f32 %v4684, %v4707
    %v4711 = vmul.f32 %v4685, %v4707
    %4716 = vrot.lane.b32.xlu0 %v4708, 127
    %v4717 = vpop.permute.xlu0 %4716
    %4718 = vrot.lane.b32.xlu0 %v4709, 127
    %v4719 = vpop.permute.xlu0 %4718
    %4720 = vrot.lane.b32.xlu0 %v4710, 127
    %v4721 = vpop.permute.xlu0 %4720
    %4722 = vrot.lane.b32.xlu0 %v4711, 127
    %v4723 = vpop.permute.xlu0 %4722
    %v4728 = vadd.f32 %v4692, %v4717
    %v4729 = vadd.f32 %v4693, %v4719
    %v4730 = vadd.f32 %v4694, %v4721
    %v4731 = vadd.f32 %v4695, %v4723
    %s4732 = sld [smem:[#allocation3 + $0xd5]]
    %v4733 = vstv %s4732
    %v4734 = vmul.f32 %v4682, %v4733
    %v4735 = vmul.f32 %v4683, %v4733
    %v4736 = vmul.f32 %v4684, %v4733
    %v4737 = vmul.f32 %v4685, %v4733
    %4742 = vrot.lane.b32.xlu0 %v4734, 127
    %v4743 = vpop.permute.xlu0 %4742
    %4744 = vrot.lane.b32.xlu0 %v4735, 127
    %v4745 = vpop.permute.xlu0 %4744
    %4746 = vrot.lane.b32.xlu0 %v4736, 127
    %v4747 = vpop.permute.xlu0 %4746
    %4748 = vrot.lane.b32.xlu0 %v4737, 127
    %v4749 = vpop.permute.xlu0 %4748
    %v4754 = vadd.f32 %v4702, %v4743
    %v4755 = vadd.f32 %v4703, %v4745
    %v4756 = vadd.f32 %v4704, %v4747
    %v4757 = vadd.f32 %v4705, %v4749
    %s4758 = sld [smem:[#allocation3 + $0xd8]]
    %v4759 = vstv %s4758
    %v4760 = vmul.f32 %v4682, %v4759
    %v4761 = vmul.f32 %v4683, %v4759
    %v4762 = vmul.f32 %v4684, %v4759
    %v4763 = vmul.f32 %v4685, %v4759
    %4768 = vrot.lane.b32.xlu0 %v4760, 126
    %v4769 = vpop.permute.xlu0 %4768
    %4770 = vrot.lane.b32.xlu0 %v4761, 126
    %v4771 = vpop.permute.xlu0 %4770
    %4772 = vrot.lane.b32.xlu0 %v4762, 126
    %v4773 = vpop.permute.xlu0 %4772
    %4774 = vrot.lane.b32.xlu0 %v4763, 126
    %v4775 = vpop.permute.xlu0 %4774
    %v4780 = vadd.f32 %v4728, %v4769
    %v4781 = vadd.f32 %v4729, %v4771
    %v4782 = vadd.f32 %v4730, %v4773
    %v4783 = vadd.f32 %v4731, %v4775
    %s4784 = sld [smem:[#allocation3 + $0xd9]]
    %v4785 = vstv %s4784
    %v4786 = vmul.f32 %v4682, %v4785
    %v4787 = vmul.f32 %v4683, %v4785
    %v4788 = vmul.f32 %v4684, %v4785
    %v4789 = vmul.f32 %v4685, %v4785
    %4794 = vrot.lane.b32.xlu0 %v4786, 126
    %v4795 = vpop.permute.xlu0 %4794
    %4796 = vrot.lane.b32.xlu0 %v4787, 126
    %v4797 = vpop.permute.xlu0 %4796
    %4798 = vrot.lane.b32.xlu0 %v4788, 126
    %v4799 = vpop.permute.xlu0 %4798
    %4800 = vrot.lane.b32.xlu0 %v4789, 126
    %v4801 = vpop.permute.xlu0 %4800
    %v4806 = vadd.f32 %v4754, %v4795
    %v4807 = vadd.f32 %v4755, %v4797
    %v4808 = vadd.f32 %v4756, %v4799
    %v4809 = vadd.f32 %v4757, %v4801
    %v4810 = vld [vmem:[%s1038 + $0x1] sm:$0xff]
    %v4811 = vld [vmem:[%s1038 + $0x9] sm:$0xff]
    %v4812 = vld [vmem:[%s1038 + $0x19] sm:$0xff]
    %v4813 = vld [vmem:[%s1038 + $0x21] sm:$0xff]
    %s4814 = sld [smem:[#allocation3 + $0xdc]]
    %v4815 = vstv %s4814
    %v4816 = vmul.f32 %v4810, %v4815
    %v4817 = vmul.f32 %v4811, %v4815
    %v4818 = vmul.f32 %v4812, %v4815
    %v4819 = vmul.f32 %v4813, %v4815
    %v4820 = vadd.f32 %v4780, %v4816
    %v4821 = vadd.f32 %v4781, %v4817
    %v4822 = vadd.f32 %v4782, %v4818
    %v4823 = vadd.f32 %v4783, %v4819
    %s4824 = sld [smem:[#allocation3 + $0xdd]]
    %v4825 = vstv %s4824
    %v4826 = vmul.f32 %v4810, %v4825
    %v4827 = vmul.f32 %v4811, %v4825
    %v4828 = vmul.f32 %v4812, %v4825
    %v4829 = vmul.f32 %v4813, %v4825
    %v4830 = vadd.f32 %v4806, %v4826
    %v4831 = vadd.f32 %v4807, %v4827
    %v4832 = vadd.f32 %v4808, %v4828
    %v4833 = vadd.f32 %v4809, %v4829
    %s4834 = sld [smem:[#allocation3 + $0xe0]]
    %v4835 = vstv %s4834
    %v4836 = vmul.f32 %v4810, %v4835
    %v4837 = vmul.f32 %v4811, %v4835
    %v4838 = vmul.f32 %v4812, %v4835
    %v4839 = vmul.f32 %v4813, %v4835
    %4844 = vrot.lane.b32.xlu0 %v4836, 127
    %v4845 = vpop.permute.xlu0 %4844
    %4846 = vrot.lane.b32.xlu0 %v4837, 127
    %v4847 = vpop.permute.xlu0 %4846
    %4848 = vrot.lane.b32.xlu0 %v4838, 127
    %v4849 = vpop.permute.xlu0 %4848
    %4850 = vrot.lane.b32.xlu0 %v4839, 127
    %v4851 = vpop.permute.xlu0 %4850
    %v4856 = vadd.f32 %v4820, %v4845
    %v4857 = vadd.f32 %v4821, %v4847
    %v4858 = vadd.f32 %v4822, %v4849
    %v4859 = vadd.f32 %v4823, %v4851
    %s4860 = sld [smem:[#allocation3 + $0xe1]]
    %v4861 = vstv %s4860
    %v4862 = vmul.f32 %v4810, %v4861
    %v4863 = vmul.f32 %v4811, %v4861
    %v4864 = vmul.f32 %v4812, %v4861
    %v4865 = vmul.f32 %v4813, %v4861
    %4870 = vrot.lane.b32.xlu0 %v4862, 127
    %v4871 = vpop.permute.xlu0 %4870
    %4872 = vrot.lane.b32.xlu0 %v4863, 127
    %v4873 = vpop.permute.xlu0 %4872
    %4874 = vrot.lane.b32.xlu0 %v4864, 127
    %v4875 = vpop.permute.xlu0 %4874
    %4876 = vrot.lane.b32.xlu0 %v4865, 127
    %v4877 = vpop.permute.xlu0 %4876
    %v4882 = vadd.f32 %v4830, %v4871
    %v4883 = vadd.f32 %v4831, %v4873
    %v4884 = vadd.f32 %v4832, %v4875
    %v4885 = vadd.f32 %v4833, %v4877
    %s4886 = sld [smem:[#allocation3 + $0xe4]]
    %v4887 = vstv %s4886
    %v4888 = vmul.f32 %v4810, %v4887
    %v4889 = vmul.f32 %v4811, %v4887
    %v4890 = vmul.f32 %v4812, %v4887
    %v4891 = vmul.f32 %v4813, %v4887
    %4896 = vrot.lane.b32.xlu0 %v4888, 126
    %v4897 = vpop.permute.xlu0 %4896
    %4898 = vrot.lane.b32.xlu0 %v4889, 126
    %v4899 = vpop.permute.xlu0 %4898
    %4900 = vrot.lane.b32.xlu0 %v4890, 126
    %v4901 = vpop.permute.xlu0 %4900
    %4902 = vrot.lane.b32.xlu0 %v4891, 126
    %v4903 = vpop.permute.xlu0 %4902
    %v4908 = vadd.f32 %v4856, %v4897
    %v4909 = vadd.f32 %v4857, %v4899
    %v4910 = vadd.f32 %v4858, %v4901
    %v4911 = vadd.f32 %v4859, %v4903
    %s4912 = sld [smem:[#allocation3 + $0xe5]]
    %v4913 = vstv %s4912
    %v4914 = vmul.f32 %v4810, %v4913
    %v4915 = vmul.f32 %v4811, %v4913
    %v4916 = vmul.f32 %v4812, %v4913
    %v4917 = vmul.f32 %v4813, %v4913
    %4922 = vrot.lane.b32.xlu0 %v4914, 126
    %v4923 = vpop.permute.xlu0 %4922
    %4924 = vrot.lane.b32.xlu0 %v4915, 126
    %v4925 = vpop.permute.xlu0 %4924
    %4926 = vrot.lane.b32.xlu0 %v4916, 126
    %v4927 = vpop.permute.xlu0 %4926
    %4928 = vrot.lane.b32.xlu0 %v4917, 126
    %v4929 = vpop.permute.xlu0 %4928
    %v4934 = vadd.f32 %v4882, %v4923
    %v4935 = vadd.f32 %v4883, %v4925
    %v4936 = vadd.f32 %v4884, %v4927
    %v4937 = vadd.f32 %v4885, %v4929
    %v4938 = vld [vmem:[%s1038 + $0x2] sm:$0xff]
    %v4939 = vld [vmem:[%s1038 + $0xa] sm:$0xff]
    %v4940 = vld [vmem:[%s1038 + $0x1a] sm:$0xff]
    %v4941 = vld [vmem:[%s1038 + $0x22] sm:$0xff]
    %s4942 = sld [smem:[#allocation3 + $0xe8]]
    %v4943 = vstv %s4942
    %v4944 = vmul.f32 %v4938, %v4943
    %v4945 = vmul.f32 %v4939, %v4943
    %v4946 = vmul.f32 %v4940, %v4943
    %v4947 = vmul.f32 %v4941, %v4943
    %v4948 = vadd.f32 %v4908, %v4944
    %v4949 = vadd.f32 %v4909, %v4945
    %v4950 = vadd.f32 %v4910, %v4946
    %v4951 = vadd.f32 %v4911, %v4947
    %s4952 = sld [smem:[#allocation3 + $0xe9]]
    %v4953 = vstv %s4952
    %v4954 = vmul.f32 %v4938, %v4953
    %v4955 = vmul.f32 %v4939, %v4953
    %v4956 = vmul.f32 %v4940, %v4953
    %v4957 = vmul.f32 %v4941, %v4953
    %v4958 = vadd.f32 %v4934, %v4954
    %v4959 = vadd.f32 %v4935, %v4955
    %v4960 = vadd.f32 %v4936, %v4956
    %v4961 = vadd.f32 %v4937, %v4957
    %s4962 = sld [smem:[#allocation3 + $0xec]]
    %v4963 = vstv %s4962
    %v4964 = vmul.f32 %v4938, %v4963
    %v4965 = vmul.f32 %v4939, %v4963
    %v4966 = vmul.f32 %v4940, %v4963
    %v4967 = vmul.f32 %v4941, %v4963
    %4972 = vrot.lane.b32.xlu0 %v4964, 127
    %v4973 = vpop.permute.xlu0 %4972
    %4974 = vrot.lane.b32.xlu0 %v4965, 127
    %v4975 = vpop.permute.xlu0 %4974
    %4976 = vrot.lane.b32.xlu0 %v4966, 127
    %v4977 = vpop.permute.xlu0 %4976
    %4978 = vrot.lane.b32.xlu0 %v4967, 127
    %v4979 = vpop.permute.xlu0 %4978
    %v4984 = vadd.f32 %v4948, %v4973
    %v4985 = vadd.f32 %v4949, %v4975
    %v4986 = vadd.f32 %v4950, %v4977
    %v4987 = vadd.f32 %v4951, %v4979
    %s4988 = sld [smem:[#allocation3 + $0xed]]
    %v4989 = vstv %s4988
    %v4990 = vmul.f32 %v4938, %v4989
    %v4991 = vmul.f32 %v4939, %v4989
    %v4992 = vmul.f32 %v4940, %v4989
    %v4993 = vmul.f32 %v4941, %v4989
    %4998 = vrot.lane.b32.xlu0 %v4990, 127
    %v4999 = vpop.permute.xlu0 %4998
    %5000 = vrot.lane.b32.xlu0 %v4991, 127
    %v5001 = vpop.permute.xlu0 %5000
    %5002 = vrot.lane.b32.xlu0 %v4992, 127
    %v5003 = vpop.permute.xlu0 %5002
    %5004 = vrot.lane.b32.xlu0 %v4993, 127
    %v5005 = vpop.permute.xlu0 %5004
    %v5010 = vadd.f32 %v4958, %v4999
    %v5011 = vadd.f32 %v4959, %v5001
    %v5012 = vadd.f32 %v4960, %v5003
    %v5013 = vadd.f32 %v4961, %v5005
    %s5014 = sld [smem:[#allocation3 + $0xf0]]
    %v5015 = vstv %s5014
    %v5016 = vmul.f32 %v4938, %v5015
    %v5017 = vmul.f32 %v4939, %v5015
    %v5018 = vmul.f32 %v4940, %v5015
    %v5019 = vmul.f32 %v4941, %v5015
    %5024 = vrot.lane.b32.xlu0 %v5016, 126
    %v5025 = vpop.permute.xlu0 %5024
    %5026 = vrot.lane.b32.xlu0 %v5017, 126
    %v5027 = vpop.permute.xlu0 %5026
    %5028 = vrot.lane.b32.xlu0 %v5018, 126
    %v5029 = vpop.permute.xlu0 %5028
    %5030 = vrot.lane.b32.xlu0 %v5019, 126
    %v5031 = vpop.permute.xlu0 %5030
    %v5036 = vadd.f32 %v4984, %v5025
    %v5037 = vadd.f32 %v4985, %v5027
    %v5038 = vadd.f32 %v4986, %v5029
    %v5039 = vadd.f32 %v4987, %v5031
    %s5040 = sld [smem:[#allocation3 + $0xf1]]
    %v5041 = vstv %s5040
    %v5042 = vmul.f32 %v4938, %v5041
    %v5043 = vmul.f32 %v4939, %v5041
    %v5044 = vmul.f32 %v4940, %v5041
    %v5045 = vmul.f32 %v4941, %v5041
    %5050 = vrot.lane.b32.xlu0 %v5042, 126
    %v5051 = vpop.permute.xlu0 %5050
    %5052 = vrot.lane.b32.xlu0 %v5043, 126
    %v5053 = vpop.permute.xlu0 %5052
    %5054 = vrot.lane.b32.xlu0 %v5044, 126
    %v5055 = vpop.permute.xlu0 %5054
    %5056 = vrot.lane.b32.xlu0 %v5045, 126
    %v5057 = vpop.permute.xlu0 %5056
    %v5062 = vadd.f32 %v5010, %v5051
    %v5063 = vadd.f32 %v5011, %v5053
    %v5064 = vadd.f32 %v5012, %v5055
    %v5065 = vadd.f32 %v5013, %v5057
    %v5066 = vld [vmem:[%s1059] sm:$0xff]
    %v5067 = vld [vmem:[%s1059 + $0x8] sm:$0xff]
    %v5068 = vld [vmem:[%s1059 + $0x18] sm:$0xff]
    %v5069 = vld [vmem:[%s1059 + $0x20] sm:$0xff]
    %s5070 = sld [smem:[#allocation3 + $0xd2]]
    %v5071 = vstv %s5070
    %v5072 = vmul.f32 %v5066, %v5071
    %v5073 = vmul.f32 %v5067, %v5071
    %v5074 = vmul.f32 %v5068, %v5071
    %v5075 = vmul.f32 %v5069, %v5071
    %v5076 = vadd.f32 %v5036, %v5072
    %v5077 = vadd.f32 %v5037, %v5073
    %v5078 = vadd.f32 %v5038, %v5074
    %v5079 = vadd.f32 %v5039, %v5075
    %s5080 = sld [smem:[#allocation3 + $0xd3]]
    %v5081 = vstv %s5080
    %v5082 = vmul.f32 %v5066, %v5081
    %v5083 = vmul.f32 %v5067, %v5081
    %v5084 = vmul.f32 %v5068, %v5081
    %v5085 = vmul.f32 %v5069, %v5081
    %v5086 = vadd.f32 %v5062, %v5082
    %v5087 = vadd.f32 %v5063, %v5083
    %v5088 = vadd.f32 %v5064, %v5084
    %v5089 = vadd.f32 %v5065, %v5085
    %s5090 = sld [smem:[#allocation3 + $0xd6]]
    %v5091 = vstv %s5090
    %v5092 = vmul.f32 %v5066, %v5091
    %v5093 = vmul.f32 %v5067, %v5091
    %v5094 = vmul.f32 %v5068, %v5091
    %v5095 = vmul.f32 %v5069, %v5091
    %5100 = vrot.lane.b32.xlu0 %v5092, 127
    %v5101 = vpop.permute.xlu0 %5100
    %5102 = vrot.lane.b32.xlu0 %v5093, 127
    %v5103 = vpop.permute.xlu0 %5102
    %5104 = vrot.lane.b32.xlu0 %v5094, 127
    %v5105 = vpop.permute.xlu0 %5104
    %5106 = vrot.lane.b32.xlu0 %v5095, 127
    %v5107 = vpop.permute.xlu0 %5106
    %v5112 = vadd.f32 %v5076, %v5101
    %v5113 = vadd.f32 %v5077, %v5103
    %v5114 = vadd.f32 %v5078, %v5105
    %v5115 = vadd.f32 %v5079, %v5107
    %s5116 = sld [smem:[#allocation3 + $0xd7]]
    %v5117 = vstv %s5116
    %v5118 = vmul.f32 %v5066, %v5117
    %v5119 = vmul.f32 %v5067, %v5117
    %v5120 = vmul.f32 %v5068, %v5117
    %v5121 = vmul.f32 %v5069, %v5117
    %5126 = vrot.lane.b32.xlu0 %v5118, 127
    %v5127 = vpop.permute.xlu0 %5126
    %5128 = vrot.lane.b32.xlu0 %v5119, 127
    %v5129 = vpop.permute.xlu0 %5128
    %5130 = vrot.lane.b32.xlu0 %v5120, 127
    %v5131 = vpop.permute.xlu0 %5130
    %5132 = vrot.lane.b32.xlu0 %v5121, 127
    %v5133 = vpop.permute.xlu0 %5132
    %v5138 = vadd.f32 %v5086, %v5127
    %v5139 = vadd.f32 %v5087, %v5129
    %v5140 = vadd.f32 %v5088, %v5131
    %v5141 = vadd.f32 %v5089, %v5133
    %s5142 = sld [smem:[#allocation3 + $0xda]]
    %v5143 = vstv %s5142
    %v5144 = vmul.f32 %v5066, %v5143
    %v5145 = vmul.f32 %v5067, %v5143
    %v5146 = vmul.f32 %v5068, %v5143
    %v5147 = vmul.f32 %v5069, %v5143
    %5152 = vrot.lane.b32.xlu0 %v5144, 126
    %v5153 = vpop.permute.xlu0 %5152
    %5154 = vrot.lane.b32.xlu0 %v5145, 126
    %v5155 = vpop.permute.xlu0 %5154
    %5156 = vrot.lane.b32.xlu0 %v5146, 126
    %v5157 = vpop.permute.xlu0 %5156
    %5158 = vrot.lane.b32.xlu0 %v5147, 126
    %v5159 = vpop.permute.xlu0 %5158
    %v5164 = vadd.f32 %v5112, %v5153
    %v5165 = vadd.f32 %v5113, %v5155
    %v5166 = vadd.f32 %v5114, %v5157
    %v5167 = vadd.f32 %v5115, %v5159
    %s5168 = sld [smem:[#allocation3 + $0xdb]]
    %v5169 = vstv %s5168
    %v5170 = vmul.f32 %v5066, %v5169
    %v5171 = vmul.f32 %v5067, %v5169
    %v5172 = vmul.f32 %v5068, %v5169
    %v5173 = vmul.f32 %v5069, %v5169
    %5178 = vrot.lane.b32.xlu0 %v5170, 126
    %v5179 = vpop.permute.xlu0 %5178
    %5180 = vrot.lane.b32.xlu0 %v5171, 126
    %v5181 = vpop.permute.xlu0 %5180
    %5182 = vrot.lane.b32.xlu0 %v5172, 126
    %v5183 = vpop.permute.xlu0 %5182
    %5184 = vrot.lane.b32.xlu0 %v5173, 126
    %v5185 = vpop.permute.xlu0 %5184
    %v5190 = vadd.f32 %v5138, %v5179
    %v5191 = vadd.f32 %v5139, %v5181
    %v5192 = vadd.f32 %v5140, %v5183
    %v5193 = vadd.f32 %v5141, %v5185
    %v5194 = vld [vmem:[%s1059 + $0x1] sm:$0xff]
    %v5195 = vld [vmem:[%s1059 + $0x9] sm:$0xff]
    %v5196 = vld [vmem:[%s1059 + $0x19] sm:$0xff]
    %v5197 = vld [vmem:[%s1059 + $0x21] sm:$0xff]
    %s5198 = sld [smem:[#allocation3 + $0xde]]
    %v5199 = vstv %s5198
    %v5200 = vmul.f32 %v5194, %v5199
    %v5201 = vmul.f32 %v5195, %v5199
    %v5202 = vmul.f32 %v5196, %v5199
    %v5203 = vmul.f32 %v5197, %v5199
    %v5204 = vadd.f32 %v5164, %v5200
    %v5205 = vadd.f32 %v5165, %v5201
    %v5206 = vadd.f32 %v5166, %v5202
    %v5207 = vadd.f32 %v5167, %v5203
    %s5208 = sld [smem:[#allocation3 + $0xdf]]
    %v5209 = vstv %s5208
    %v5210 = vmul.f32 %v5194, %v5209
    %v5211 = vmul.f32 %v5195, %v5209
    %v5212 = vmul.f32 %v5196, %v5209
    %v5213 = vmul.f32 %v5197, %v5209
    %v5214 = vadd.f32 %v5190, %v5210
    %v5215 = vadd.f32 %v5191, %v5211
    %v5216 = vadd.f32 %v5192, %v5212
    %v5217 = vadd.f32 %v5193, %v5213
    %s5218 = sld [smem:[#allocation3 + $0xe2]]
    %v5219 = vstv %s5218
    %v5220 = vmul.f32 %v5194, %v5219
    %v5221 = vmul.f32 %v5195, %v5219
    %v5222 = vmul.f32 %v5196, %v5219
    %v5223 = vmul.f32 %v5197, %v5219
    %5228 = vrot.lane.b32.xlu0 %v5220, 127
    %v5229 = vpop.permute.xlu0 %5228
    %5230 = vrot.lane.b32.xlu0 %v5221, 127
    %v5231 = vpop.permute.xlu0 %5230
    %5232 = vrot.lane.b32.xlu0 %v5222, 127
    %v5233 = vpop.permute.xlu0 %5232
    %5234 = vrot.lane.b32.xlu0 %v5223, 127
    %v5235 = vpop.permute.xlu0 %5234
    %v5240 = vadd.f32 %v5204, %v5229
    %v5241 = vadd.f32 %v5205, %v5231
    %v5242 = vadd.f32 %v5206, %v5233
    %v5243 = vadd.f32 %v5207, %v5235
    %s5244 = sld [smem:[#allocation3 + $0xe3]]
    %v5245 = vstv %s5244
    %v5246 = vmul.f32 %v5194, %v5245
    %v5247 = vmul.f32 %v5195, %v5245
    %v5248 = vmul.f32 %v5196, %v5245
    %v5249 = vmul.f32 %v5197, %v5245
    %5254 = vrot.lane.b32.xlu0 %v5246, 127
    %v5255 = vpop.permute.xlu0 %5254
    %5256 = vrot.lane.b32.xlu0 %v5247, 127
    %v5257 = vpop.permute.xlu0 %5256
    %5258 = vrot.lane.b32.xlu0 %v5248, 127
    %v5259 = vpop.permute.xlu0 %5258
    %5260 = vrot.lane.b32.xlu0 %v5249, 127
    %v5261 = vpop.permute.xlu0 %5260
    %v5266 = vadd.f32 %v5214, %v5255
    %v5267 = vadd.f32 %v5215, %v5257
    %v5268 = vadd.f32 %v5216, %v5259
    %v5269 = vadd.f32 %v5217, %v5261
    %s5270 = sld [smem:[#allocation3 + $0xe6]]
    %v5271 = vstv %s5270
    %v5272 = vmul.f32 %v5194, %v5271
    %v5273 = vmul.f32 %v5195, %v5271
    %v5274 = vmul.f32 %v5196, %v5271
    %v5275 = vmul.f32 %v5197, %v5271
    %5280 = vrot.lane.b32.xlu0 %v5272, 126
    %v5281 = vpop.permute.xlu0 %5280
    %5282 = vrot.lane.b32.xlu0 %v5273, 126
    %v5283 = vpop.permute.xlu0 %5282
    %5284 = vrot.lane.b32.xlu0 %v5274, 126
    %v5285 = vpop.permute.xlu0 %5284
    %5286 = vrot.lane.b32.xlu0 %v5275, 126
    %v5287 = vpop.permute.xlu0 %5286
    %v5292 = vadd.f32 %v5240, %v5281
    %v5293 = vadd.f32 %v5241, %v5283
    %v5294 = vadd.f32 %v5242, %v5285
    %v5295 = vadd.f32 %v5243, %v5287
    %s5296 = sld [smem:[#allocation3 + $0xe7]]
    %v5297 = vstv %s5296
    %v5298 = vmul.f32 %v5194, %v5297
    %v5299 = vmul.f32 %v5195, %v5297
    %v5300 = vmul.f32 %v5196, %v5297
    %v5301 = vmul.f32 %v5197, %v5297
    %5306 = vrot.lane.b32.xlu0 %v5298, 126
    %v5307 = vpop.permute.xlu0 %5306
    %5308 = vrot.lane.b32.xlu0 %v5299, 126
    %v5309 = vpop.permute.xlu0 %5308
    %5310 = vrot.lane.b32.xlu0 %v5300, 126
    %v5311 = vpop.permute.xlu0 %5310
    %5312 = vrot.lane.b32.xlu0 %v5301, 126
    %v5313 = vpop.permute.xlu0 %5312
    %v5318 = vadd.f32 %v5266, %v5307
    %v5319 = vadd.f32 %v5267, %v5309
    %v5320 = vadd.f32 %v5268, %v5311
    %v5321 = vadd.f32 %v5269, %v5313
    %v5322 = vld [vmem:[%s1059 + $0x2] sm:$0xff]
    %v5323 = vld [vmem:[%s1059 + $0xa] sm:$0xff]
    %v5324 = vld [vmem:[%s1059 + $0x1a] sm:$0xff]
    %v5325 = vld [vmem:[%s1059 + $0x22] sm:$0xff]
    %s5326 = sld [smem:[#allocation3 + $0xea]]
    %v5327 = vstv %s5326
    %v5328 = vmul.f32 %v5322, %v5327
    %v5329 = vmul.f32 %v5323, %v5327
    %v5330 = vmul.f32 %v5324, %v5327
    %v5331 = vmul.f32 %v5325, %v5327
    %v5332 = vadd.f32 %v5292, %v5328
    %v5333 = vadd.f32 %v5293, %v5329
    %v5334 = vadd.f32 %v5294, %v5330
    %v5335 = vadd.f32 %v5295, %v5331
    %s5336 = sld [smem:[#allocation3 + $0xeb]]
    %v5337 = vstv %s5336
    %v5338 = vmul.f32 %v5322, %v5337
    %v5339 = vmul.f32 %v5323, %v5337
    %v5340 = vmul.f32 %v5324, %v5337
    %v5341 = vmul.f32 %v5325, %v5337
    %v5342 = vadd.f32 %v5318, %v5338
    %v5343 = vadd.f32 %v5319, %v5339
    %v5344 = vadd.f32 %v5320, %v5340
    %v5345 = vadd.f32 %v5321, %v5341
    %s5346 = sld [smem:[#allocation3 + $0xee]]
    %v5347 = vstv %s5346
    %v5348 = vmul.f32 %v5322, %v5347
    %v5349 = vmul.f32 %v5323, %v5347
    %v5350 = vmul.f32 %v5324, %v5347
    %v5351 = vmul.f32 %v5325, %v5347
    %5356 = vrot.lane.b32.xlu0 %v5348, 127
    %v5357 = vpop.permute.xlu0 %5356
    %5358 = vrot.lane.b32.xlu0 %v5349, 127
    %v5359 = vpop.permute.xlu0 %5358
    %5360 = vrot.lane.b32.xlu0 %v5350, 127
    %v5361 = vpop.permute.xlu0 %5360
    %5362 = vrot.lane.b32.xlu0 %v5351, 127
    %v5363 = vpop.permute.xlu0 %5362
    %v5368 = vadd.f32 %v5332, %v5357
    %v5369 = vadd.f32 %v5333, %v5359
    %v5370 = vadd.f32 %v5334, %v5361
    %v5371 = vadd.f32 %v5335, %v5363
    %s5372 = sld [smem:[#allocation3 + $0xef]]
    %v5373 = vstv %s5372
    %v5374 = vmul.f32 %v5322, %v5373
    %v5375 = vmul.f32 %v5323, %v5373
    %v5376 = vmul.f32 %v5324, %v5373
    %v5377 = vmul.f32 %v5325, %v5373
    %5382 = vrot.lane.b32.xlu0 %v5374, 127
    %v5383 = vpop.permute.xlu0 %5382
    %5384 = vrot.lane.b32.xlu0 %v5375, 127
    %v5385 = vpop.permute.xlu0 %5384
    %5386 = vrot.lane.b32.xlu0 %v5376, 127
    %v5387 = vpop.permute.xlu0 %5386
    %5388 = vrot.lane.b32.xlu0 %v5377, 127
    %v5389 = vpop.permute.xlu0 %5388
    %v5394 = vadd.f32 %v5342, %v5383
    %v5395 = vadd.f32 %v5343, %v5385
    %v5396 = vadd.f32 %v5344, %v5387
    %v5397 = vadd.f32 %v5345, %v5389
    %s5398 = sld [smem:[#allocation3 + $0xf2]]
    %v5399 = vstv %s5398
    %v5400 = vmul.f32 %v5322, %v5399
    %v5401 = vmul.f32 %v5323, %v5399
    %v5402 = vmul.f32 %v5324, %v5399
    %v5403 = vmul.f32 %v5325, %v5399
    %5408 = vrot.lane.b32.xlu0 %v5400, 126
    %v5409 = vpop.permute.xlu0 %5408
    %5410 = vrot.lane.b32.xlu0 %v5401, 126
    %v5411 = vpop.permute.xlu0 %5410
    %5412 = vrot.lane.b32.xlu0 %v5402, 126
    %v5413 = vpop.permute.xlu0 %5412
    %5414 = vrot.lane.b32.xlu0 %v5403, 126
    %v5415 = vpop.permute.xlu0 %5414
    %v5420 = vadd.f32 %v5368, %v5409
    %v5421 = vadd.f32 %v5369, %v5411
    %v5422 = vadd.f32 %v5370, %v5413
    %v5423 = vadd.f32 %v5371, %v5415
    %s5424 = sld [smem:[#allocation3 + $0xf3]]
    %v5425 = vstv %s5424
    %v5426 = vmul.f32 %v5322, %v5425
    %v5427 = vmul.f32 %v5323, %v5425
    %v5428 = vmul.f32 %v5324, %v5425
    %v5429 = vmul.f32 %v5325, %v5425
    %5434 = vrot.lane.b32.xlu0 %v5426, 126
    %v5435 = vpop.permute.xlu0 %5434
    %5436 = vrot.lane.b32.xlu0 %v5427, 126
    %v5437 = vpop.permute.xlu0 %5436
    %5438 = vrot.lane.b32.xlu0 %v5428, 126
    %v5439 = vpop.permute.xlu0 %5438
    %5440 = vrot.lane.b32.xlu0 %v5429, 126
    %v5441 = vpop.permute.xlu0 %5440
    %v5446 = vadd.f32 %v5394, %v5435
    %v5447 = vadd.f32 %v5395, %v5437
    %v5448 = vadd.f32 %v5396, %v5439
    %v5449 = vadd.f32 %v5397, %v5441
    %s5450 = sld [smem:[#allocation3 + $0xfa]]
    %v5451 = vstv %s5450
    %v5452 = vadd.f32 %v5451, 0.0
    %s5453 = sld [smem:[#allocation3 + $0xf6]]
    %v5454 = vstv %s5453
    %v5455 = vmul.f32 %v1916, %v5454
    %v5456 = vmul.f32 %v1917, %v5454
    %v5457 = vmul.f32 %v1918, %v5454
    %v5458 = vmul.f32 %v1919, %v5454
    %v5459 = vadd.f32 %v5452, %v5455
    %v5460 = vadd.f32 %v5452, %v5456
    %v5461 = vadd.f32 %v5452, %v5457
    %v5462 = vadd.f32 %v5452, %v5458
    %s5463 = sld [smem:[#allocation3 + $0xf8]]
    %v5464 = vstv %s5463
    %v5465 = vmul.f32 %v1920, %v5464
    %v5466 = vmul.f32 %v1921, %v5464
    %v5467 = vmul.f32 %v1922, %v5464
    %v5468 = vmul.f32 %v1923, %v5464
    %v5469 = vadd.f32 %v5459, %v5465
    %v5470 = vadd.f32 %v5460, %v5466
    %v5471 = vadd.f32 %v5461, %v5467
    %v5472 = vadd.f32 %v5462, %v5468
    %vm5473 = vcmp.gt.f32.partialorder %v5420, 0.0
    %vm5474 = vcmp.gt.f32.partialorder %v5421, 0.0
    %vm5475 = vcmp.gt.f32.partialorder %v5422, 0.0
    %vm5476 = vcmp.gt.f32.partialorder %v5423, 0.0
    %v5477 = vmul.f32 %v5420, 0.1
    %v5478 = vmul.f32 %v5421, 0.1
    %v5479 = vmul.f32 %v5422, 0.1
    %v5480 = vmul.f32 %v5423, 0.1
    %v5481 = vsel %vm5473, %v5420, %v5477
    %v5482 = vsel %vm5474, %v5421, %v5478
    %v5483 = vsel %vm5475, %v5422, %v5479
    %v5484 = vsel %vm5476, %v5423, %v5480
    %v5485 = vadd.f32 %v5481, %v5469
    %v5486 = vadd.f32 %v5482, %v5470
    %v5487 = vadd.f32 %v5483, %v5471
    %v5488 = vadd.f32 %v5484, %v5472
    %s5489 = sld [smem:[#allocation3 + $0xfb]]
    %v5490 = vstv %s5489
    %v5491 = vadd.f32 %v5490, 0.0
    %s5492 = sld [smem:[#allocation3 + $0xf7]]
    %v5493 = vstv %s5492
    %v5494 = vmul.f32 %v1916, %v5493
    %v5495 = vmul.f32 %v1917, %v5493
    %v5496 = vmul.f32 %v1918, %v5493
    %v5497 = vmul.f32 %v1919, %v5493
    %v5498 = vadd.f32 %v5491, %v5494
    %v5499 = vadd.f32 %v5491, %v5495
    %v5500 = vadd.f32 %v5491, %v5496
    %v5501 = vadd.f32 %v5491, %v5497
    %s5502 = sld [smem:[#allocation3 + $0xf9]]
    %v5503 = vstv %s5502
    %v5504 = vmul.f32 %v1920, %v5503
    %v5505 = vmul.f32 %v1921, %v5503
    %v5506 = vmul.f32 %v1922, %v5503
    %v5507 = vmul.f32 %v1923, %v5503
    %v5508 = vadd.f32 %v5498, %v5504
    %v5509 = vadd.f32 %v5499, %v5505
    %v5510 = vadd.f32 %v5500, %v5506
    %v5511 = vadd.f32 %v5501, %v5507
    %vm5512 = vcmp.gt.f32.partialorder %v5446, 0.0
    %vm5513 = vcmp.gt.f32.partialorder %v5447, 0.0
    %vm5514 = vcmp.gt.f32.partialorder %v5448, 0.0
    %vm5515 = vcmp.gt.f32.partialorder %v5449, 0.0
    %v5516 = vmul.f32 %v5446, 0.1
    %v5517 = vmul.f32 %v5447, 0.1
    %v5518 = vmul.f32 %v5448, 0.1
    %v5519 = vmul.f32 %v5449, 0.1
    %v5520 = vsel %vm5512, %v5446, %v5516
    %v5521 = vsel %vm5513, %v5447, %v5517
    %v5522 = vsel %vm5514, %v5448, %v5518
    %v5523 = vsel %vm5515, %v5449, %v5519
    %v5524 = vadd.f32 %v5520, %v5508
    %v5525 = vadd.f32 %v5521, %v5509
    %v5526 = vadd.f32 %v5522, %v5510
    %v5527 = vadd.f32 %v5523, %v5511
    %v5528 = vadd.f32 %v74, %v1916
    %v5529 = vadd.f32 %v75, %v1917
    %v5530 = vadd.f32 %v76, %v1918
    %v5531 = vadd.f32 %v77, %v1919
    %5532 = vst.msk [vmem:[%s5] sm:$0xff] %vm909, %v5528
    %5533 = vst.msk [vmem:[%s5 + $0x8] sm:$0xff] %vm909, %v5529
    %5534 = vst.msk [vmem:[%s5 + $0x10] sm:$0xff] %vm909, %v5530
    %5535 = vst.msk [vmem:[%s5 + $0x18] sm:$0xff] %vm909, %v5531
    %v5536 = vadd.f32 %v79, %v1920
    %v5537 = vadd.f32 %v80, %v1921
    %v5538 = vadd.f32 %v81, %v1922
    %v5539 = vadd.f32 %v82, %v1923
    %s5540 = scalar_lea.vmem %s5, 32
    %5541 = vst.msk [vmem:[%s5540] sm:$0xff] %vm909, %v5536
    %5542 = vst.msk [vmem:[%s5540 + $0x8] sm:$0xff] %vm909, %v5537
    %5543 = vst.msk [vmem:[%s5540 + $0x10] sm:$0xff] %vm909, %v5538
    %5544 = vst.msk [vmem:[%s5540 + $0x18] sm:$0xff] %vm909, %v5539
    %v5545 = vsub.f32 0.0, %v3699
    %v5546 = vsub.f32 0.0, %v3700
    %v5547 = vsub.f32 0.0, %v3701
    %v5548 = vsub.f32 0.0, %v3702
    %v5549 = vmul.f32 %v5545, 1.442695
    %v5550 = vpow.pop %v5549
    %v5551 = vmul.f32 %v5546, 1.442695
    %v5552 = vpow.pop %v5551
    %v5553 = vmul.f32 %v5547, 1.442695
    %v5554 = vpow.pop %v5553
    %v5555 = vmul.f32 %v5548, 1.442695
    %v5556 = vpow.pop %v5555
    %v5557 = vadd.f32 %v5550, 1.0
    %v5558 = vadd.f32 %v5552, 1.0
    %v5559 = vadd.f32 %v5554, 1.0
    %v5560 = vadd.f32 %v5556, 1.0
    %v5561 = vrcp.pop %v5557
    %v5562 = vmul.f32 1.0, %v5561
    %v5563 = vrcp.pop %v5558
    %v5564 = vmul.f32 1.0, %v5563
    %v5565 = vrcp.pop %v5559
    %v5566 = vmul.f32 1.0, %v5565
    %v5567 = vrcp.pop %v5560
    %v5568 = vmul.f32 1.0, %v5567
    %v5569 = vmul.f32 %v5562, 2.0
    %v5570 = vmul.f32 %v5564, 2.0
    %v5571 = vmul.f32 %v5566, 2.0
    %v5572 = vmul.f32 %v5568, 2.0
    %v5573 = vsub.f32 %v5569, 1.0
    %v5574 = vsub.f32 %v5570, 1.0
    %v5575 = vsub.f32 %v5571, 1.0
    %v5576 = vsub.f32 %v5572, 1.0
    %v5577 = vmul.f32 %v5573, 0.8
    %v5578 = vmul.f32 %v5574, 0.8
    %v5579 = vmul.f32 %v5575, 0.8
    %v5580 = vmul.f32 %v5576, 0.8
    %v5581 = vmul.f32 %v5577, 1.442695
    %v5582 = vpow.pop %v5581
    %v5583 = vmul.f32 %v5578, 1.442695
    %v5584 = vpow.pop %v5583
    %v5585 = vmul.f32 %v5579, 1.442695
    %v5586 = vpow.pop %v5585
    %v5587 = vmul.f32 %v5580, 1.442695
    %v5588 = vpow.pop %v5587
    %v5589 = vmul.f32 %v84, %v5582
    %v5590 = vmul.f32 %v85, %v5584
    %v5591 = vmul.f32 %v86, %v5586
    %v5592 = vmul.f32 %v87, %v5588
    %v5593 = vadd.f32 %v5589, %v5485
    %v5594 = vadd.f32 %v5590, %v5486
    %v5595 = vadd.f32 %v5591, %v5487
    %v5596 = vadd.f32 %v5592, %v5488
    %v5597 = vadd.f32 %v84, %v5593
    %v5598 = vadd.f32 %v85, %v5594
    %v5599 = vadd.f32 %v86, %v5595
    %v5600 = vadd.f32 %v87, %v5596
    %s5601 = scalar_lea.vmem %s5, 64
    %5602 = vst.msk [vmem:[%s5601] sm:$0xff] %vm909, %v5597
    %5603 = vst.msk [vmem:[%s5601 + $0x8] sm:$0xff] %vm909, %v5598
    %5604 = vst.msk [vmem:[%s5601 + $0x10] sm:$0xff] %vm909, %v5599
    %5605 = vst.msk [vmem:[%s5601 + $0x18] sm:$0xff] %vm909, %v5600
    %v5606 = vsub.f32 0.0, %v3738
    %v5607 = vsub.f32 0.0, %v3739
    %v5608 = vsub.f32 0.0, %v3740
    %v5609 = vsub.f32 0.0, %v3741
    %v5610 = vmul.f32 %v5606, 1.442695
    %v5611 = vpow.pop %v5610
    %v5612 = vmul.f32 %v5607, 1.442695
    %v5613 = vpow.pop %v5612
    %v5614 = vmul.f32 %v5608, 1.442695
    %v5615 = vpow.pop %v5614
    %v5616 = vmul.f32 %v5609, 1.442695
    %v5617 = vpow.pop %v5616
    %v5618 = vadd.f32 %v5611, 1.0
    %v5619 = vadd.f32 %v5613, 1.0
    %v5620 = vadd.f32 %v5615, 1.0
    %v5621 = vadd.f32 %v5617, 1.0
    %v5622 = vrcp.pop %v5618
    %v5623 = vmul.f32 1.0, %v5622
    %v5624 = vrcp.pop %v5619
    %v5625 = vmul.f32 1.0, %v5624
    %v5626 = vrcp.pop %v5620
    %v5627 = vmul.f32 1.0, %v5626
    %v5628 = vrcp.pop %v5621
    %v5629 = vmul.f32 1.0, %v5628
    %v5630 = vmul.f32 %v5623, 2.0
    %v5631 = vmul.f32 %v5625, 2.0
    %v5632 = vmul.f32 %v5627, 2.0
    %v5633 = vmul.f32 %v5629, 2.0
    %v5634 = vsub.f32 %v5630, 1.0
    %v5635 = vsub.f32 %v5631, 1.0
    %v5636 = vsub.f32 %v5632, 1.0
    %v5637 = vsub.f32 %v5633, 1.0
    %v5638 = vmul.f32 %v5634, 0.8
    %v5639 = vmul.f32 %v5635, 0.8
    %v5640 = vmul.f32 %v5636, 0.8
    %v5641 = vmul.f32 %v5637, 0.8
    %v5642 = vmul.f32 %v5638, 1.442695
    %v5643 = vpow.pop %v5642
    %v5644 = vmul.f32 %v5639, 1.442695
    %v5645 = vpow.pop %v5644
    %v5646 = vmul.f32 %v5640, 1.442695
    %v5647 = vpow.pop %v5646
    %v5648 = vmul.f32 %v5641, 1.442695
    %v5649 = vpow.pop %v5648
    %v5650 = vmul.f32 %v89, %v5643
    %v5651 = vmul.f32 %v90, %v5645
    %v5652 = vmul.f32 %v91, %v5647
    %v5653 = vmul.f32 %v92, %v5649
    %v5654 = vadd.f32 %v5650, %v5524
    %v5655 = vadd.f32 %v5651, %v5525
    %v5656 = vadd.f32 %v5652, %v5526
    %v5657 = vadd.f32 %v5653, %v5527
    %v5658 = vadd.f32 %v89, %v5654
    %v5659 = vadd.f32 %v90, %v5655
    %v5660 = vadd.f32 %v91, %v5656
    %v5661 = vadd.f32 %v92, %v5657
    %s5662 = scalar_lea.vmem %s5, 96
    %5663 = vst.msk [vmem:[%s5662] sm:$0xff] %vm909, %v5658
    %5664 = vst.msk [vmem:[%s5662 + $0x8] sm:$0xff] %vm909, %v5659
    %5665 = vst.msk [vmem:[%s5662 + $0x10] sm:$0xff] %vm909, %v5660
    %5666 = vst.msk [vmem:[%s5662 + $0x18] sm:$0xff] %vm909, %v5661
    %v5667 = vld [vmem:[%s1] sm:$0xf]
    %s5668 = scalar_lea.vmem %s1, 4
    %v5669 = vld [vmem:[%s5668] sm:$0xf]
    %s5670 = scalar_lea.vmem %s1, 8
    %v5671 = vld [vmem:[%s5670] sm:$0xf]
    %s5672 = scalar_lea.vmem %s1, 12
    %v5673 = vld [vmem:[%s5672] sm:$0xf]
    %v5674 = vld [vmem:[%s2] sm:$0xf]
    %s5675 = scalar_lea.vmem %s2, 4
    %v5676 = vld [vmem:[%s5675] sm:$0xf]
    %s5677 = scalar_lea.vmem %s2, 8
    %v5678 = vld [vmem:[%s5677] sm:$0xf]
    %s5679 = scalar_lea.vmem %s2, 12
    %v5680 = vld [vmem:[%s5679] sm:$0xf]
    %s5681 = sld [smem:[#allocation5 + $0x10]]
    %v5682 = vstv %s5681
    %v5683 = vadd.f32 %v5682, 0.0
    %s5684 = sld [smem:[#allocation5]]
    %v5685 = vstv %s5684
    %v5686 = vmul.f32 %v5667, %v5685
    %v5687 = vadd.f32 %v5683, %v5686
    %s5688 = sld [smem:[#allocation5 + $0x4]]
    %v5689 = vstv %s5688
    %v5690 = vmul.f32 %v5669, %v5689
    %v5691 = vadd.f32 %v5687, %v5690
    %s5692 = sld [smem:[#allocation5 + $0x8]]
    %v5693 = vstv %s5692
    %v5694 = vmul.f32 %v5671, %v5693
    %v5695 = vadd.f32 %v5691, %v5694
    %s5696 = sld [smem:[#allocation5 + $0xc]]
    %v5697 = vstv %s5696
    %v5698 = vmul.f32 %v5673, %v5697
    %v5699 = vadd.f32 %v5695, %v5698
    %s5700 = sld [smem:[#allocation5 + $0x11]]
    %v5701 = vstv %s5700
    %v5702 = vadd.f32 %v5701, 0.0
    %s5703 = sld [smem:[#allocation5 + $0x1]]
    %v5704 = vstv %s5703
    %v5705 = vmul.f32 %v5667, %v5704
    %v5706 = vadd.f32 %v5702, %v5705
    %s5707 = sld [smem:[#allocation5 + $0x5]]
    %v5708 = vstv %s5707
    %v5709 = vmul.f32 %v5669, %v5708
    %v5710 = vadd.f32 %v5706, %v5709
    %s5711 = sld [smem:[#allocation5 + $0x9]]
    %v5712 = vstv %s5711
    %v5713 = vmul.f32 %v5671, %v5712
    %v5714 = vadd.f32 %v5710, %v5713
    %s5715 = sld [smem:[#allocation5 + $0xd]]
    %v5716 = vstv %s5715
    %v5717 = vmul.f32 %v5673, %v5716
    %v5718 = vadd.f32 %v5714, %v5717
    %s5719 = sld [smem:[#allocation5 + $0x12]]
    %v5720 = vstv %s5719
    %v5721 = vadd.f32 %v5720, 0.0
    %s5722 = sld [smem:[#allocation5 + $0x2]]
    %v5723 = vstv %s5722
    %v5724 = vmul.f32 %v5667, %v5723
    %v5725 = vadd.f32 %v5721, %v5724
    %s5726 = sld [smem:[#allocation5 + $0x6]]
    %v5727 = vstv %s5726
    %v5728 = vmul.f32 %v5669, %v5727
    %v5729 = vadd.f32 %v5725, %v5728
    %s5730 = sld [smem:[#allocation5 + $0xa]]
    %v5731 = vstv %s5730
    %v5732 = vmul.f32 %v5671, %v5731
    %v5733 = vadd.f32 %v5729, %v5732
    %s5734 = sld [smem:[#allocation5 + $0xe]]
    %v5735 = vstv %s5734
    %v5736 = vmul.f32 %v5673, %v5735
    %v5737 = vadd.f32 %v5733, %v5736
    %s5738 = sld [smem:[#allocation5 + $0x13]]
    %v5739 = vstv %s5738
    %v5740 = vadd.f32 %v5739, 0.0
    %s5741 = sld [smem:[#allocation5 + $0x3]]
    %v5742 = vstv %s5741
    %v5743 = vmul.f32 %v5667, %v5742
    %v5744 = vadd.f32 %v5740, %v5743
    %s5745 = sld [smem:[#allocation5 + $0x7]]
    %v5746 = vstv %s5745
    %v5747 = vmul.f32 %v5669, %v5746
    %v5748 = vadd.f32 %v5744, %v5747
    %s5749 = sld [smem:[#allocation5 + $0xb]]
    %v5750 = vstv %s5749
    %v5751 = vmul.f32 %v5671, %v5750
    %v5752 = vadd.f32 %v5748, %v5751
    %s5753 = sld [smem:[#allocation5 + $0xf]]
    %v5754 = vstv %s5753
    %v5755 = vmul.f32 %v5673, %v5754
    %v5756 = vadd.f32 %v5752, %v5755
    %vm5757 = vcmp.gt.f32.partialorder %v5699, 0.0
    %v5758 = vmul.f32 %v5699, 0.1
    %v5759 = vsel %vm5757, %v5699, %v5758
    %vm5760 = vcmp.gt.f32.partialorder %v5718, 0.0
    %v5761 = vmul.f32 %v5718, 0.1
    %v5762 = vsel %vm5760, %v5718, %v5761
    %vm5763 = vcmp.gt.f32.partialorder %v5737, 0.0
    %v5764 = vmul.f32 %v5737, 0.1
    %v5765 = vsel %vm5763, %v5737, %v5764
    %vm5766 = vcmp.gt.f32.partialorder %v5756, 0.0
    %v5767 = vmul.f32 %v5756, 0.1
    %v5768 = vsel %vm5766, %v5756, %v5767
    %s5769 = sld [smem:[#allocation5 + $0x24]]
    %v5770 = vstv %s5769
    %v5771 = vadd.f32 %v5770, 0.0
    %s5772 = sld [smem:[#allocation5 + $0x14]]
    %v5773 = vstv %s5772
    %v5774 = vmul.f32 %v5759, %v5773
    %v5775 = vadd.f32 %v5771, %v5774
    %s5776 = sld [smem:[#allocation5 + $0x18]]
    %v5777 = vstv %s5776
    %v5778 = vmul.f32 %v5762, %v5777
    %v5779 = vadd.f32 %v5775, %v5778
    %s5780 = sld [smem:[#allocation5 + $0x1c]]
    %v5781 = vstv %s5780
    %v5782 = vmul.f32 %v5765, %v5781
    %v5783 = vadd.f32 %v5779, %v5782
    %s5784 = sld [smem:[#allocation5 + $0x20]]
    %v5785 = vstv %s5784
    %v5786 = vmul.f32 %v5768, %v5785
    %v5787 = vadd.f32 %v5783, %v5786
    %s5788 = sld [smem:[#allocation5 + $0x25]]
    %v5789 = vstv %s5788
    %v5790 = vadd.f32 %v5789, 0.0
    %s5791 = sld [smem:[#allocation5 + $0x15]]
    %v5792 = vstv %s5791
    %v5793 = vmul.f32 %v5759, %v5792
    %v5794 = vadd.f32 %v5790, %v5793
    %s5795 = sld [smem:[#allocation5 + $0x19]]
    %v5796 = vstv %s5795
    %v5797 = vmul.f32 %v5762, %v5796
    %v5798 = vadd.f32 %v5794, %v5797
    %s5799 = sld [smem:[#allocation5 + $0x1d]]
    %v5800 = vstv %s5799
    %v5801 = vmul.f32 %v5765, %v5800
    %v5802 = vadd.f32 %v5798, %v5801
    %s5803 = sld [smem:[#allocation5 + $0x21]]
    %v5804 = vstv %s5803
    %v5805 = vmul.f32 %v5768, %v5804
    %v5806 = vadd.f32 %v5802, %v5805
    %s5807 = sld [smem:[#allocation5 + $0x26]]
    %v5808 = vstv %s5807
    %v5809 = vadd.f32 %v5808, 0.0
    %s5810 = sld [smem:[#allocation5 + $0x16]]
    %v5811 = vstv %s5810
    %v5812 = vmul.f32 %v5759, %v5811
    %v5813 = vadd.f32 %v5809, %v5812
    %s5814 = sld [smem:[#allocation5 + $0x1a]]
    %v5815 = vstv %s5814
    %v5816 = vmul.f32 %v5762, %v5815
    %v5817 = vadd.f32 %v5813, %v5816
    %s5818 = sld [smem:[#allocation5 + $0x1e]]
    %v5819 = vstv %s5818
    %v5820 = vmul.f32 %v5765, %v5819
    %v5821 = vadd.f32 %v5817, %v5820
    %s5822 = sld [smem:[#allocation5 + $0x22]]
    %v5823 = vstv %s5822
    %v5824 = vmul.f32 %v5768, %v5823
    %v5825 = vadd.f32 %v5821, %v5824
    %s5826 = sld [smem:[#allocation5 + $0x27]]
    %v5827 = vstv %s5826
    %v5828 = vadd.f32 %v5827, 0.0
    %s5829 = sld [smem:[#allocation5 + $0x17]]
    %v5830 = vstv %s5829
    %v5831 = vmul.f32 %v5759, %v5830
    %v5832 = vadd.f32 %v5828, %v5831
    %s5833 = sld [smem:[#allocation5 + $0x1b]]
    %v5834 = vstv %s5833
    %v5835 = vmul.f32 %v5762, %v5834
    %v5836 = vadd.f32 %v5832, %v5835
    %s5837 = sld [smem:[#allocation5 + $0x1f]]
    %v5838 = vstv %s5837
    %v5839 = vmul.f32 %v5765, %v5838
    %v5840 = vadd.f32 %v5836, %v5839
    %s5841 = sld [smem:[#allocation5 + $0x23]]
    %v5842 = vstv %s5841
    %v5843 = vmul.f32 %v5768, %v5842
    %v5844 = vadd.f32 %v5840, %v5843
    %s5845 = sld [smem:[#allocation5 + $0x38]]
    %v5846 = vstv %s5845
    %v5847 = vadd.f32 %v5846, 0.0
    %s5848 = sld [smem:[#allocation5 + $0x28]]
    %v5849 = vstv %s5848
    %v5850 = vmul.f32 %v5674, %v5849
    %v5851 = vadd.f32 %v5847, %v5850
    %s5852 = sld [smem:[#allocation5 + $0x2c]]
    %v5853 = vstv %s5852
    %v5854 = vmul.f32 %v5676, %v5853
    %v5855 = vadd.f32 %v5851, %v5854
    %s5856 = sld [smem:[#allocation5 + $0x30]]
    %v5857 = vstv %s5856
    %v5858 = vmul.f32 %v5678, %v5857
    %v5859 = vadd.f32 %v5855, %v5858
    %s5860 = sld [smem:[#allocation5 + $0x34]]
    %v5861 = vstv %s5860
    %v5862 = vmul.f32 %v5680, %v5861
    %v5863 = vadd.f32 %v5859, %v5862
    %s5864 = sld [smem:[#allocation5 + $0x39]]
    %v5865 = vstv %s5864
    %v5866 = vadd.f32 %v5865, 0.0
    %s5867 = sld [smem:[#allocation5 + $0x29]]
    %v5868 = vstv %s5867
    %v5869 = vmul.f32 %v5674, %v5868
    %v5870 = vadd.f32 %v5866, %v5869
    %s5871 = sld [smem:[#allocation5 + $0x2d]]
    %v5872 = vstv %s5871
    %v5873 = vmul.f32 %v5676, %v5872
    %v5874 = vadd.f32 %v5870, %v5873
    %s5875 = sld [smem:[#allocation5 + $0x31]]
    %v5876 = vstv %s5875
    %v5877 = vmul.f32 %v5678, %v5876
    %v5878 = vadd.f32 %v5874, %v5877
    %s5879 = sld [smem:[#allocation5 + $0x35]]
    %v5880 = vstv %s5879
    %v5881 = vmul.f32 %v5680, %v5880
    %v5882 = vadd.f32 %v5878, %v5881
    %s5883 = sld [smem:[#allocation5 + $0x3a]]
    %v5884 = vstv %s5883
    %v5885 = vadd.f32 %v5884, 0.0
    %s5886 = sld [smem:[#allocation5 + $0x2a]]
    %v5887 = vstv %s5886
    %v5888 = vmul.f32 %v5674, %v5887
    %v5889 = vadd.f32 %v5885, %v5888
    %s5890 = sld [smem:[#allocation5 + $0x2e]]
    %v5891 = vstv %s5890
    %v5892 = vmul.f32 %v5676, %v5891
    %v5893 = vadd.f32 %v5889, %v5892
    %s5894 = sld [smem:[#allocation5 + $0x32]]
    %v5895 = vstv %s5894
    %v5896 = vmul.f32 %v5678, %v5895
    %v5897 = vadd.f32 %v5893, %v5896
    %s5898 = sld [smem:[#allocation5 + $0x36]]
    %v5899 = vstv %s5898
    %v5900 = vmul.f32 %v5680, %v5899
    %v5901 = vadd.f32 %v5897, %v5900
    %s5902 = sld [smem:[#allocation5 + $0x3b]]
    %v5903 = vstv %s5902
    %v5904 = vadd.f32 %v5903, 0.0
    %s5905 = sld [smem:[#allocation5 + $0x2b]]
    %v5906 = vstv %s5905
    %v5907 = vmul.f32 %v5674, %v5906
    %v5908 = vadd.f32 %v5904, %v5907
    %s5909 = sld [smem:[#allocation5 + $0x2f]]
    %v5910 = vstv %s5909
    %v5911 = vmul.f32 %v5676, %v5910
    %v5912 = vadd.f32 %v5908, %v5911
    %s5913 = sld [smem:[#allocation5 + $0x33]]
    %v5914 = vstv %s5913
    %v5915 = vmul.f32 %v5678, %v5914
    %v5916 = vadd.f32 %v5912, %v5915
    %s5917 = sld [smem:[#allocation5 + $0x37]]
    %v5918 = vstv %s5917
    %v5919 = vmul.f32 %v5680, %v5918
    %v5920 = vadd.f32 %v5916, %v5919
    %vm5921 = vcmp.gt.f32.partialorder %v5863, 0.0
    %v5922 = vmul.f32 %v5863, 0.1
    %v5923 = vsel %vm5921, %v5863, %v5922
    %vm5924 = vcmp.gt.f32.partialorder %v5882, 0.0
    %v5925 = vmul.f32 %v5882, 0.1
    %v5926 = vsel %vm5924, %v5882, %v5925
    %vm5927 = vcmp.gt.f32.partialorder %v5901, 0.0
    %v5928 = vmul.f32 %v5901, 0.1
    %v5929 = vsel %vm5927, %v5901, %v5928
    %vm5930 = vcmp.gt.f32.partialorder %v5920, 0.0
    %v5931 = vmul.f32 %v5920, 0.1
    %v5932 = vsel %vm5930, %v5920, %v5931
    %s5933 = sld [smem:[#allocation5 + $0x4c]]
    %v5934 = vstv %s5933
    %v5935 = vadd.f32 %v5934, 0.0
    %s5936 = sld [smem:[#allocation5 + $0x3c]]
    %v5937 = vstv %s5936
    %v5938 = vmul.f32 %v5923, %v5937
    %v5939 = vadd.f32 %v5935, %v5938
    %s5940 = sld [smem:[#allocation5 + $0x40]]
    %v5941 = vstv %s5940
    %v5942 = vmul.f32 %v5926, %v5941
    %v5943 = vadd.f32 %v5939, %v5942
    %s5944 = sld [smem:[#allocation5 + $0x44]]
    %v5945 = vstv %s5944
    %v5946 = vmul.f32 %v5929, %v5945
    %v5947 = vadd.f32 %v5943, %v5946
    %s5948 = sld [smem:[#allocation5 + $0x48]]
    %v5949 = vstv %s5948
    %v5950 = vmul.f32 %v5932, %v5949
    %v5951 = vadd.f32 %v5947, %v5950
    %s5952 = sld [smem:[#allocation5 + $0x4d]]
    %v5953 = vstv %s5952
    %v5954 = vadd.f32 %v5953, 0.0
    %s5955 = sld [smem:[#allocation5 + $0x3d]]
    %v5956 = vstv %s5955
    %v5957 = vmul.f32 %v5923, %v5956
    %v5958 = vadd.f32 %v5954, %v5957
    %s5959 = sld [smem:[#allocation5 + $0x41]]
    %v5960 = vstv %s5959
    %v5961 = vmul.f32 %v5926, %v5960
    %v5962 = vadd.f32 %v5958, %v5961
    %s5963 = sld [smem:[#allocation5 + $0x45]]
    %v5964 = vstv %s5963
    %v5965 = vmul.f32 %v5929, %v5964
    %v5966 = vadd.f32 %v5962, %v5965
    %s5967 = sld [smem:[#allocation5 + $0x49]]
    %v5968 = vstv %s5967
    %v5969 = vmul.f32 %v5932, %v5968
    %v5970 = vadd.f32 %v5966, %v5969
    %s5971 = sld [smem:[#allocation5 + $0x4e]]
    %v5972 = vstv %s5971
    %v5973 = vadd.f32 %v5972, 0.0
    %s5974 = sld [smem:[#allocation5 + $0x3e]]
    %v5975 = vstv %s5974
    %v5976 = vmul.f32 %v5923, %v5975
    %v5977 = vadd.f32 %v5973, %v5976
    %s5978 = sld [smem:[#allocation5 + $0x42]]
    %v5979 = vstv %s5978
    %v5980 = vmul.f32 %v5926, %v5979
    %v5981 = vadd.f32 %v5977, %v5980
    %s5982 = sld [smem:[#allocation5 + $0x46]]
    %v5983 = vstv %s5982
    %v5984 = vmul.f32 %v5929, %v5983
    %v5985 = vadd.f32 %v5981, %v5984
    %s5986 = sld [smem:[#allocation5 + $0x4a]]
    %v5987 = vstv %s5986
    %v5988 = vmul.f32 %v5932, %v5987
    %v5989 = vadd.f32 %v5985, %v5988
    %s5990 = sld [smem:[#allocation5 + $0x4f]]
    %v5991 = vstv %s5990
    %v5992 = vadd.f32 %v5991, 0.0
    %s5993 = sld [smem:[#allocation5 + $0x3f]]
    %v5994 = vstv %s5993
    %v5995 = vmul.f32 %v5923, %v5994
    %v5996 = vadd.f32 %v5992, %v5995
    %s5997 = sld [smem:[#allocation5 + $0x43]]
    %v5998 = vstv %s5997
    %v5999 = vmul.f32 %v5926, %v5998
    %v6000 = vadd.f32 %v5996, %v5999
    %s6001 = sld [smem:[#allocation5 + $0x47]]
    %v6002 = vstv %s6001
    %v6003 = vmul.f32 %v5929, %v6002
    %v6004 = vadd.f32 %v6000, %v6003
    %s6005 = sld [smem:[#allocation5 + $0x4b]]
    %v6006 = vstv %s6005
    %v6007 = vmul.f32 %v5932, %v6006
    %v6008 = vadd.f32 %v6004, %v6007
    %v6009 = vand.u32 2147483647, %v5951
    %vm6010 = vcmp.le.f32.partialorder %v6009, 0.7853982
    %vm6011 = vcmp.lt.s32.totalorder %v5951, 0
    %v6012 = vand.u32 %v5951, 2139095040
    %v6013 = vshrl.u32 %v6012, 23
    %v6014 = vsub.s32 %v6013, 127
    %v6015 = vand.u32 2147483647, %v5951
    %v6016 = vand.u32 %v6015, 8388607
    %v6017 = vor.u32 %v6016, 8388608
    %v6018 = vsub.s32 0, %v6017
    %v6019 = vadd.s32 %v6014, 1
    %vm6020 = vcmp.gt.s32.totalorder %v6019, 0
    %v6021 = vsel %vm6020, %v6019, 0
    %v6022 = vshrl.u32 %v6021, 5
    %v6023 = vand.u32 %v6021, 31
    %v6024 = vsub.s32 32, %v6023
    %v6025 = vshrl.u32 683565275, %v6024
    %v6026 = vshll.u32 683565275, %v6023
    %v6027 = vshrl.u32 2475754826, %v6024
    %v6028 = vor.u32 %v6026, %v6027
    %v6029 = vshll.u32 2475754826, %v6023
    %v6030 = vshrl.u32 2131351028, %v6024
    %v6031 = vor.u32 %v6029, %v6030
    %v6032 = vshll.u32 2131351028, %v6023
    %v6033 = vshrl.u32 2102212464, %v6024
    %v6034 = vor.u32 %v6032, %v6033
    %v6035 = vshll.u32 2102212464, %v6023
    %v6036 = vshrl.u32 920167782, %v6024
    %v6037 = vor.u32 %v6035, %v6036
    %v6038 = vshll.u32 920167782, %v6023
    %v6039 = vshrl.u32 1326507024, %v6024
    %v6040 = vor.u32 %v6038, %v6039
    %vm6041 = vcmp.lt.s32.totalorder %v6022, 1
    %vm6042 = vcmp.lt.s32.totalorder %v6022, 2
    %vm6043 = vcmp.lt.s32.totalorder %v6022, 3
    %vm6044 = vcmp.lt.s32.totalorder %v6022, 4
    %v6045 = vsel %vm6041, %v6025, %v6028
    %v6046 = vsel %vm6044, %v6034, 2102212464
    %v6047 = vsel %vm6043, %v6031, %v6046
    %v6048 = vsel %vm6042, %v6045, %v6047
    %v6049 = vsel %vm6041, %v6028, %v6031
    %v6050 = vsel %vm6044, %v6037, 920167782
    %v6051 = vsel %vm6043, %v6034, %v6050
    %v6052 = vsel %vm6042, %v6049, %v6051
    %v6053 = vsel %vm6041, %v6031, %v6034
    %v6054 = vsel %vm6044, %v6040, 1326507024
    %v6055 = vsel %vm6043, %v6037, %v6054
    %v6056 = vsel %vm6042, %v6053, %v6055
    %v6057 = vshll.u32 %v6017, 8
    %v6058 = vmul.u32.u64.compose %v6057, %v6056
    %v6059 = vextract.low.u32 %v6058
    %v6060 = vextract.high.u32 %v6058
    %v6061 = vmul.u32.u64.compose %v6057, %v6052
    %v6062 = vextract.low.u32 %v6061
    %v6063 = vextract.high.u32 %v6061
    %v6064 = vmul.u32 %v6057, %v6048
    %v6065 = vadd.s32 %v6060, %v6062
    %vm6066 = vc.u32 %v6060, %v6062
    %v6067 = vadd.s32 %v6063, 1
    %v6068 = vsel %vm6066, %v6067, %v6063
    %v6069 = vadd.s32 %v6064, %v6068
    %v6070 = vadd.s32 %v6069, 536870912
    %v6071 = vshrl.u32 %v6070, 30
    %v6072 = vshll.u32 %v6071, 30
    %v6073 = vsub.s32 %v6069, %v6072
    %vm6074 = vcmp.lt.s32.totalorder %v6073, 0
    %v6075 = vsub.s32 0, %v6073
    %v6076 = vsel %vm6074, %v6075, %v6073
    %v6077 = vclz %v6076
    %v6078 = vsub.s32 %v6077, 2
    %vm6079 = vcmp.gt.s32.totalorder 0, %v6078
    %v6080 = vsel %vm6079, 0, %v6078
    %v6081 = vsub.s32 32, %v6080
    %v6082 = vshll.u32 %v6073, %v6080
    %v6083 = vshrl.u32 %v6065, %v6081
    %v6084 = vor.u32 %v6082, %v6083
    %v6085 = vsub.s32 4294967266, %v6080
    %v6086 = vadd.s32 %v6085, 127
    %v6087 = vshll.u32 %v6086, 23
    %v6088 = vor.u32 4788187, %v6087
    %v6089 = vand.u32 2147483647, %v6088
    %v6091 = vcvt.s32.f32 %v6084
    %v6092 = vmul.f32 %v6091, %v6089
    %v6093 = vxor.u32 %v6092, 2147483648
    %v6094 = vsel %vm6011, %v6093, %v6092
    %v6095 = vsub.s32 4, %v6071
    %v6096 = vsel %vm6011, %v6095, %v6071
    %v6097 = vsel %vm6010, %v5951, %v6094
    %v6098 = vsel %vm6010, 0, %v6096
    %v6099 = vcosq.f32.pop %v6097
    %v6100 = vsinq.f32.pop %v6097
    %vm6101 = vweird.f32 %v5951
    %v6102 = vand.u32 %v6098, 3
    %vm6103 = vcmp.lt.s32.totalorder %v6102, 2
    %vm6104 = vcmp.eq.s32.totalorder %v6102, 0
    %v6105 = vxor.u32 %v6100, 2147483648
    %v6106 = vsel %vm6104, %v6099, %v6105
    %vm6107 = vcmp.eq.s32.totalorder %v6102, 2
    %v6108 = vxor.u32 %v6099, 2147483648
    %v6109 = vsel %vm6107, %v6108, %v6100
    %v6110 = vsel %vm6103, %v6106, %v6109
    %v6111 = vsel %vm6101, nan, %v6110
    %v6112 = vmul.f32 %v5787, %v6111
    %vm6113 = vcmask 1041408
    %vm6114 = vcmask 125954
    %vm6115 = vmor %vm6114, %vm6113
    %6116 = vst.msk [vmem:[%s6] sm:$0xf] %vm6115, %v6112
    %v6117 = vand.u32 2147483647, %v5951
    %vm6118 = vcmp.le.f32.partialorder %v6117, 0.7853982
    %vm6119 = vcmp.lt.s32.totalorder %v5951, 0
    %v6120 = vand.u32 %v5951, 2139095040
    %v6121 = vshrl.u32 %v6120, 23
    %v6122 = vsub.s32 %v6121, 127
    %v6123 = vand.u32 2147483647, %v5951
    %v6124 = vand.u32 %v6123, 8388607
    %v6125 = vor.u32 %v6124, 8388608
    %v6126 = vsub.s32 0, %v6125
    %v6127 = vadd.s32 %v6122, 1
    %vm6128 = vcmp.gt.s32.totalorder %v6127, 0
    %v6129 = vsel %vm6128, %v6127, 0
    %v6130 = vshrl.u32 %v6129, 5
    %v6131 = vand.u32 %v6129, 31
    %v6132 = vsub.s32 32, %v6131
    %v6133 = vshrl.u32 683565275, %v6132
    %v6134 = vshll.u32 683565275, %v6131
    %v6135 = vshrl.u32 2475754826, %v6132
    %v6136 = vor.u32 %v6134, %v6135
    %v6137 = vshll.u32 2475754826, %v6131
    %v6138 = vshrl.u32 2131351028, %v6132
    %v6139 = vor.u32 %v6137, %v6138
    %v6140 = vshll.u32 2131351028, %v6131
    %v6141 = vshrl.u32 2102212464, %v6132
    %v6142 = vor.u32 %v6140, %v6141
    %v6143 = vshll.u32 2102212464, %v6131
    %v6144 = vshrl.u32 920167782, %v6132
    %v6145 = vor.u32 %v6143, %v6144
    %v6146 = vshll.u32 920167782, %v6131
    %v6147 = vshrl.u32 1326507024, %v6132
    %v6148 = vor.u32 %v6146, %v6147
    %vm6149 = vcmp.lt.s32.totalorder %v6130, 1
    %vm6150 = vcmp.lt.s32.totalorder %v6130, 2
    %vm6151 = vcmp.lt.s32.totalorder %v6130, 3
    %vm6152 = vcmp.lt.s32.totalorder %v6130, 4
    %v6153 = vsel %vm6149, %v6133, %v6136
    %v6154 = vsel %vm6152, %v6142, 2102212464
    %v6155 = vsel %vm6151, %v6139, %v6154
    %v6156 = vsel %vm6150, %v6153, %v6155
    %v6157 = vsel %vm6149, %v6136, %v6139
    %v6158 = vsel %vm6152, %v6145, 920167782
    %v6159 = vsel %vm6151, %v6142, %v6158
    %v6160 = vsel %vm6150, %v6157, %v6159
    %v6161 = vsel %vm6149, %v6139, %v6142
    %v6162 = vsel %vm6152, %v6148, 1326507024
    %v6163 = vsel %vm6151, %v6145, %v6162
    %v6164 = vsel %vm6150, %v6161, %v6163
    %v6165 = vshll.u32 %v6125, 8
    %v6166 = vmul.u32.u64.compose %v6165, %v6164
    %v6167 = vextract.low.u32 %v6166
    %v6168 = vextract.high.u32 %v6166
    %v6169 = vmul.u32.u64.compose %v6165, %v6160
    %v6170 = vextract.low.u32 %v6169
    %v6171 = vextract.high.u32 %v6169
    %v6172 = vmul.u32 %v6165, %v6156
    %v6173 = vadd.s32 %v6168, %v6170
    %vm6174 = vc.u32 %v6168, %v6170
    %v6175 = vadd.s32 %v6171, 1
    %v6176 = vsel %vm6174, %v6175, %v6171
    %v6177 = vadd.s32 %v6172, %v6176
    %v6178 = vadd.s32 %v6177, 536870912
    %v6179 = vshrl.u32 %v6178, 30
    %v6180 = vshll.u32 %v6179, 30
    %v6181 = vsub.s32 %v6177, %v6180
    %vm6182 = vcmp.lt.s32.totalorder %v6181, 0
    %v6183 = vsub.s32 0, %v6181
    %v6184 = vsel %vm6182, %v6183, %v6181
    %v6185 = vclz %v6184
    %v6186 = vsub.s32 %v6185, 2
    %vm6187 = vcmp.gt.s32.totalorder 0, %v6186
    %v6188 = vsel %vm6187, 0, %v6186
    %v6189 = vsub.s32 32, %v6188
    %v6190 = vshll.u32 %v6181, %v6188
    %v6191 = vshrl.u32 %v6173, %v6189
    %v6192 = vor.u32 %v6190, %v6191
    %v6193 = vsub.s32 4294967266, %v6188
    %v6194 = vadd.s32 %v6193, 127
    %v6195 = vshll.u32 %v6194, 23
    %v6196 = vor.u32 4788187, %v6195
    %v6197 = vand.u32 2147483647, %v6196
    %v6199 = vcvt.s32.f32 %v6192
    %v6200 = vmul.f32 %v6199, %v6197
    %v6201 = vxor.u32 %v6200, 2147483648
    %v6202 = vsel %vm6119, %v6201, %v6200
    %v6203 = vsub.s32 4, %v6179
    %v6204 = vsel %vm6119, %v6203, %v6179
    %v6205 = vsel %vm6118, %v5951, %v6202
    %v6206 = vsel %vm6118, 0, %v6204
    %v6207 = vcosq.f32.pop %v6205
    %v6208 = vsinq.f32.pop %v6205
    %vm6209 = vweird.f32 %v5951
    %v6210 = vadd.s32 %v6206, 3
    %v6211 = vand.u32 %v6210, 3
    %vm6212 = vcmp.lt.s32.totalorder %v6211, 2
    %vm6213 = vcmp.eq.s32.totalorder %v6211, 0
    %v6214 = vxor.u32 %v6208, 2147483648
    %v6215 = vsel %vm6213, %v6207, %v6214
    %vm6216 = vcmp.eq.s32.totalorder %v6211, 2
    %v6217 = vxor.u32 %v6207, 2147483648
    %v6218 = vsel %vm6216, %v6217, %v6208
    %v6219 = vsel %vm6212, %v6215, %v6218
    %v6220 = vsel %vm6209, nan, %v6219
    %v6221 = vmul.f32 %v5787, %v6220
    %6222 = vst.msk [vmem:[%s7] sm:$0xf] %vm6115, %v6221
    %v6223 = vand.u32 2147483647, %v5970
    %vm6224 = vcmp.le.f32.partialorder %v6223, 0.7853982
    %vm6225 = vcmp.lt.s32.totalorder %v5970, 0
    %v6226 = vand.u32 %v5970, 2139095040
    %v6227 = vshrl.u32 %v6226, 23
    %v6228 = vsub.s32 %v6227, 127
    %v6229 = vand.u32 2147483647, %v5970
    %v6230 = vand.u32 %v6229, 8388607
    %v6231 = vor.u32 %v6230, 8388608
    %v6232 = vsub.s32 0, %v6231
    %v6233 = vadd.s32 %v6228, 1
    %vm6234 = vcmp.gt.s32.totalorder %v6233, 0
    %v6235 = vsel %vm6234, %v6233, 0
    %v6236 = vshrl.u32 %v6235, 5
    %v6237 = vand.u32 %v6235, 31
    %v6238 = vsub.s32 32, %v6237
    %v6239 = vshrl.u32 683565275, %v6238
    %v6240 = vshll.u32 683565275, %v6237
    %v6241 = vshrl.u32 2475754826, %v6238
    %v6242 = vor.u32 %v6240, %v6241
    %v6243 = vshll.u32 2475754826, %v6237
    %v6244 = vshrl.u32 2131351028, %v6238
    %v6245 = vor.u32 %v6243, %v6244
    %v6246 = vshll.u32 2131351028, %v6237
    %v6247 = vshrl.u32 2102212464, %v6238
    %v6248 = vor.u32 %v6246, %v6247
    %v6249 = vshll.u32 2102212464, %v6237
    %v6250 = vshrl.u32 920167782, %v6238
    %v6251 = vor.u32 %v6249, %v6250
    %v6252 = vshll.u32 920167782, %v6237
    %v6253 = vshrl.u32 1326507024, %v6238
    %v6254 = vor.u32 %v6252, %v6253
    %vm6255 = vcmp.lt.s32.totalorder %v6236, 1
    %vm6256 = vcmp.lt.s32.totalorder %v6236, 2
    %vm6257 = vcmp.lt.s32.totalorder %v6236, 3
    %vm6258 = vcmp.lt.s32.totalorder %v6236, 4
    %v6259 = vsel %vm6255, %v6239, %v6242
    %v6260 = vsel %vm6258, %v6248, 2102212464
    %v6261 = vsel %vm6257, %v6245, %v6260
    %v6262 = vsel %vm6256, %v6259, %v6261
    %v6263 = vsel %vm6255, %v6242, %v6245
    %v6264 = vsel %vm6258, %v6251, 920167782
    %v6265 = vsel %vm6257, %v6248, %v6264
    %v6266 = vsel %vm6256, %v6263, %v6265
    %v6267 = vsel %vm6255, %v6245, %v6248
    %v6268 = vsel %vm6258, %v6254, 1326507024
    %v6269 = vsel %vm6257, %v6251, %v6268
    %v6270 = vsel %vm6256, %v6267, %v6269
    %v6271 = vshll.u32 %v6231, 8
    %v6272 = vmul.u32.u64.compose %v6271, %v6270
    %v6273 = vextract.low.u32 %v6272
    %v6274 = vextract.high.u32 %v6272
    %v6275 = vmul.u32.u64.compose %v6271, %v6266
    %v6276 = vextract.low.u32 %v6275
    %v6277 = vextract.high.u32 %v6275
    %v6278 = vmul.u32 %v6271, %v6262
    %v6279 = vadd.s32 %v6274, %v6276
    %vm6280 = vc.u32 %v6274, %v6276
    %v6281 = vadd.s32 %v6277, 1
    %v6282 = vsel %vm6280, %v6281, %v6277
    %v6283 = vadd.s32 %v6278, %v6282
    %v6284 = vadd.s32 %v6283, 536870912
    %v6285 = vshrl.u32 %v6284, 30
    %v6286 = vshll.u32 %v6285, 30
    %v6287 = vsub.s32 %v6283, %v6286
    %vm6288 = vcmp.lt.s32.totalorder %v6287, 0
    %v6289 = vsub.s32 0, %v6287
    %v6290 = vsel %vm6288, %v6289, %v6287
    %v6291 = vclz %v6290
    %v6292 = vsub.s32 %v6291, 2
    %vm6293 = vcmp.gt.s32.totalorder 0, %v6292
    %v6294 = vsel %vm6293, 0, %v6292
    %v6295 = vsub.s32 32, %v6294
    %v6296 = vshll.u32 %v6287, %v6294
    %v6297 = vshrl.u32 %v6279, %v6295
    %v6298 = vor.u32 %v6296, %v6297
    %v6299 = vsub.s32 4294967266, %v6294
    %v6300 = vadd.s32 %v6299, 127
    %v6301 = vshll.u32 %v6300, 23
    %v6302 = vor.u32 4788187, %v6301
    %v6303 = vand.u32 2147483647, %v6302
    %v6305 = vcvt.s32.f32 %v6298
    %v6306 = vmul.f32 %v6305, %v6303
    %v6307 = vxor.u32 %v6306, 2147483648
    %v6308 = vsel %vm6225, %v6307, %v6306
    %v6309 = vsub.s32 4, %v6285
    %v6310 = vsel %vm6225, %v6309, %v6285
    %v6311 = vsel %vm6224, %v5970, %v6308
    %v6312 = vsel %vm6224, 0, %v6310
    %v6313 = vcosq.f32.pop %v6311
    %v6314 = vsinq.f32.pop %v6311
    %vm6315 = vweird.f32 %v5970
    %v6316 = vand.u32 %v6312, 3
    %vm6317 = vcmp.lt.s32.totalorder %v6316, 2
    %vm6318 = vcmp.eq.s32.totalorder %v6316, 0
    %v6319 = vxor.u32 %v6314, 2147483648
    %v6320 = vsel %vm6318, %v6313, %v6319
    %vm6321 = vcmp.eq.s32.totalorder %v6316, 2
    %v6322 = vxor.u32 %v6313, 2147483648
    %v6323 = vsel %vm6321, %v6322, %v6314
    %v6324 = vsel %vm6317, %v6320, %v6323
    %v6325 = vsel %vm6315, nan, %v6324
    %v6326 = vmul.f32 %v5806, %v6325
    %s6327 = scalar_lea.vmem %s6, 4
    %6328 = vst.msk [vmem:[%s6327] sm:$0xf] %vm6115, %v6326
    %v6329 = vand.u32 2147483647, %v5970
    %vm6330 = vcmp.le.f32.partialorder %v6329, 0.7853982
    %vm6331 = vcmp.lt.s32.totalorder %v5970, 0
    %v6332 = vand.u32 %v5970, 2139095040
    %v6333 = vshrl.u32 %v6332, 23
    %v6334 = vsub.s32 %v6333, 127
    %v6335 = vand.u32 2147483647, %v5970
    %v6336 = vand.u32 %v6335, 8388607
    %v6337 = vor.u32 %v6336, 8388608
    %v6338 = vsub.s32 0, %v6337
    %v6339 = vadd.s32 %v6334, 1
    %vm6340 = vcmp.gt.s32.totalorder %v6339, 0
    %v6341 = vsel %vm6340, %v6339, 0
    %v6342 = vshrl.u32 %v6341, 5
    %v6343 = vand.u32 %v6341, 31
    %v6344 = vsub.s32 32, %v6343
    %v6345 = vshrl.u32 683565275, %v6344
    %v6346 = vshll.u32 683565275, %v6343
    %v6347 = vshrl.u32 2475754826, %v6344
    %v6348 = vor.u32 %v6346, %v6347
    %v6349 = vshll.u32 2475754826, %v6343
    %v6350 = vshrl.u32 2131351028, %v6344
    %v6351 = vor.u32 %v6349, %v6350
    %v6352 = vshll.u32 2131351028, %v6343
    %v6353 = vshrl.u32 2102212464, %v6344
    %v6354 = vor.u32 %v6352, %v6353
    %v6355 = vshll.u32 2102212464, %v6343
    %v6356 = vshrl.u32 920167782, %v6344
    %v6357 = vor.u32 %v6355, %v6356
    %v6358 = vshll.u32 920167782, %v6343
    %v6359 = vshrl.u32 1326507024, %v6344
    %v6360 = vor.u32 %v6358, %v6359
    %vm6361 = vcmp.lt.s32.totalorder %v6342, 1
    %vm6362 = vcmp.lt.s32.totalorder %v6342, 2
    %vm6363 = vcmp.lt.s32.totalorder %v6342, 3
    %vm6364 = vcmp.lt.s32.totalorder %v6342, 4
    %v6365 = vsel %vm6361, %v6345, %v6348
    %v6366 = vsel %vm6364, %v6354, 2102212464
    %v6367 = vsel %vm6363, %v6351, %v6366
    %v6368 = vsel %vm6362, %v6365, %v6367
    %v6369 = vsel %vm6361, %v6348, %v6351
    %v6370 = vsel %vm6364, %v6357, 920167782
    %v6371 = vsel %vm6363, %v6354, %v6370
    %v6372 = vsel %vm6362, %v6369, %v6371
    %v6373 = vsel %vm6361, %v6351, %v6354
    %v6374 = vsel %vm6364, %v6360, 1326507024
    %v6375 = vsel %vm6363, %v6357, %v6374
    %v6376 = vsel %vm6362, %v6373, %v6375
    %v6377 = vshll.u32 %v6337, 8
    %v6378 = vmul.u32.u64.compose %v6377, %v6376
    %v6379 = vextract.low.u32 %v6378
    %v6380 = vextract.high.u32 %v6378
    %v6381 = vmul.u32.u64.compose %v6377, %v6372
    %v6382 = vextract.low.u32 %v6381
    %v6383 = vextract.high.u32 %v6381
    %v6384 = vmul.u32 %v6377, %v6368
    %v6385 = vadd.s32 %v6380, %v6382
    %vm6386 = vc.u32 %v6380, %v6382
    %v6387 = vadd.s32 %v6383, 1
    %v6388 = vsel %vm6386, %v6387, %v6383
    %v6389 = vadd.s32 %v6384, %v6388
    %v6390 = vadd.s32 %v6389, 536870912
    %v6391 = vshrl.u32 %v6390, 30
    %v6392 = vshll.u32 %v6391, 30
    %v6393 = vsub.s32 %v6389, %v6392
    %vm6394 = vcmp.lt.s32.totalorder %v6393, 0
    %v6395 = vsub.s32 0, %v6393
    %v6396 = vsel %vm6394, %v6395, %v6393
    %v6397 = vclz %v6396
    %v6398 = vsub.s32 %v6397, 2
    %vm6399 = vcmp.gt.s32.totalorder 0, %v6398
    %v6400 = vsel %vm6399, 0, %v6398
    %v6401 = vsub.s32 32, %v6400
    %v6402 = vshll.u32 %v6393, %v6400
    %v6403 = vshrl.u32 %v6385, %v6401
    %v6404 = vor.u32 %v6402, %v6403
    %v6405 = vsub.s32 4294967266, %v6400
    %v6406 = vadd.s32 %v6405, 127
    %v6407 = vshll.u32 %v6406, 23
    %v6408 = vor.u32 4788187, %v6407
    %v6409 = vand.u32 2147483647, %v6408
    %v6411 = vcvt.s32.f32 %v6404
    %v6412 = vmul.f32 %v6411, %v6409
    %v6413 = vxor.u32 %v6412, 2147483648
    %v6414 = vsel %vm6331, %v6413, %v6412
    %v6415 = vsub.s32 4, %v6391
    %v6416 = vsel %vm6331, %v6415, %v6391
    %v6417 = vsel %vm6330, %v5970, %v6414
    %v6418 = vsel %vm6330, 0, %v6416
    %v6419 = vcosq.f32.pop %v6417
    %v6420 = vsinq.f32.pop %v6417
    %vm6421 = vweird.f32 %v5970
    %v6422 = vadd.s32 %v6418, 3
    %v6423 = vand.u32 %v6422, 3
    %vm6424 = vcmp.lt.s32.totalorder %v6423, 2
    %vm6425 = vcmp.eq.s32.totalorder %v6423, 0
    %v6426 = vxor.u32 %v6420, 2147483648
    %v6427 = vsel %vm6425, %v6419, %v6426
    %vm6428 = vcmp.eq.s32.totalorder %v6423, 2
    %v6429 = vxor.u32 %v6419, 2147483648
    %v6430 = vsel %vm6428, %v6429, %v6420
    %v6431 = vsel %vm6424, %v6427, %v6430
    %v6432 = vsel %vm6421, nan, %v6431
    %v6433 = vmul.f32 %v5806, %v6432
    %s6434 = scalar_lea.vmem %s7, 4
    %6435 = vst.msk [vmem:[%s6434] sm:$0xf] %vm6115, %v6433
    %v6436 = vand.u32 2147483647, %v5989
    %vm6437 = vcmp.le.f32.partialorder %v6436, 0.7853982
    %vm6438 = vcmp.lt.s32.totalorder %v5989, 0
    %v6439 = vand.u32 %v5989, 2139095040
    %v6440 = vshrl.u32 %v6439, 23
    %v6441 = vsub.s32 %v6440, 127
    %v6442 = vand.u32 2147483647, %v5989
    %v6443 = vand.u32 %v6442, 8388607
    %v6444 = vor.u32 %v6443, 8388608
    %v6445 = vsub.s32 0, %v6444
    %v6446 = vadd.s32 %v6441, 1
    %vm6447 = vcmp.gt.s32.totalorder %v6446, 0
    %v6448 = vsel %vm6447, %v6446, 0
    %v6449 = vshrl.u32 %v6448, 5
    %v6450 = vand.u32 %v6448, 31
    %v6451 = vsub.s32 32, %v6450
    %v6452 = vshrl.u32 683565275, %v6451
    %v6453 = vshll.u32 683565275, %v6450
    %v6454 = vshrl.u32 2475754826, %v6451
    %v6455 = vor.u32 %v6453, %v6454
    %v6456 = vshll.u32 2475754826, %v6450
    %v6457 = vshrl.u32 2131351028, %v6451
    %v6458 = vor.u32 %v6456, %v6457
    %v6459 = vshll.u32 2131351028, %v6450
    %v6460 = vshrl.u32 2102212464, %v6451
    %v6461 = vor.u32 %v6459, %v6460
    %v6462 = vshll.u32 2102212464, %v6450
    %v6463 = vshrl.u32 920167782, %v6451
    %v6464 = vor.u32 %v6462, %v6463
    %v6465 = vshll.u32 920167782, %v6450
    %v6466 = vshrl.u32 1326507024, %v6451
    %v6467 = vor.u32 %v6465, %v6466
    %vm6468 = vcmp.lt.s32.totalorder %v6449, 1
    %vm6469 = vcmp.lt.s32.totalorder %v6449, 2
    %vm6470 = vcmp.lt.s32.totalorder %v6449, 3
    %vm6471 = vcmp.lt.s32.totalorder %v6449, 4
    %v6472 = vsel %vm6468, %v6452, %v6455
    %v6473 = vsel %vm6471, %v6461, 2102212464
    %v6474 = vsel %vm6470, %v6458, %v6473
    %v6475 = vsel %vm6469, %v6472, %v6474
    %v6476 = vsel %vm6468, %v6455, %v6458
    %v6477 = vsel %vm6471, %v6464, 920167782
    %v6478 = vsel %vm6470, %v6461, %v6477
    %v6479 = vsel %vm6469, %v6476, %v6478
    %v6480 = vsel %vm6468, %v6458, %v6461
    %v6481 = vsel %vm6471, %v6467, 1326507024
    %v6482 = vsel %vm6470, %v6464, %v6481
    %v6483 = vsel %vm6469, %v6480, %v6482
    %v6484 = vshll.u32 %v6444, 8
    %v6485 = vmul.u32.u64.compose %v6484, %v6483
    %v6486 = vextract.low.u32 %v6485
    %v6487 = vextract.high.u32 %v6485
    %v6488 = vmul.u32.u64.compose %v6484, %v6479
    %v6489 = vextract.low.u32 %v6488
    %v6490 = vextract.high.u32 %v6488
    %v6491 = vmul.u32 %v6484, %v6475
    %v6492 = vadd.s32 %v6487, %v6489
    %vm6493 = vc.u32 %v6487, %v6489
    %v6494 = vadd.s32 %v6490, 1
    %v6495 = vsel %vm6493, %v6494, %v6490
    %v6496 = vadd.s32 %v6491, %v6495
    %v6497 = vadd.s32 %v6496, 536870912
    %v6498 = vshrl.u32 %v6497, 30
    %v6499 = vshll.u32 %v6498, 30
    %v6500 = vsub.s32 %v6496, %v6499
    %vm6501 = vcmp.lt.s32.totalorder %v6500, 0
    %v6502 = vsub.s32 0, %v6500
    %v6503 = vsel %vm6501, %v6502, %v6500
    %v6504 = vclz %v6503
    %v6505 = vsub.s32 %v6504, 2
    %vm6506 = vcmp.gt.s32.totalorder 0, %v6505
    %v6507 = vsel %vm6506, 0, %v6505
    %v6508 = vsub.s32 32, %v6507
    %v6509 = vshll.u32 %v6500, %v6507
    %v6510 = vshrl.u32 %v6492, %v6508
    %v6511 = vor.u32 %v6509, %v6510
    %v6512 = vsub.s32 4294967266, %v6507
    %v6513 = vadd.s32 %v6512, 127
    %v6514 = vshll.u32 %v6513, 23
    %v6515 = vor.u32 4788187, %v6514
    %v6516 = vand.u32 2147483647, %v6515
    %v6518 = vcvt.s32.f32 %v6511
    %v6519 = vmul.f32 %v6518, %v6516
    %v6520 = vxor.u32 %v6519, 2147483648
    %v6521 = vsel %vm6438, %v6520, %v6519
    %v6522 = vsub.s32 4, %v6498
    %v6523 = vsel %vm6438, %v6522, %v6498
    %v6524 = vsel %vm6437, %v5989, %v6521
    %v6525 = vsel %vm6437, 0, %v6523
    %v6526 = vcosq.f32.pop %v6524
    %v6527 = vsinq.f32.pop %v6524
    %vm6528 = vweird.f32 %v5989
    %v6529 = vand.u32 %v6525, 3
    %vm6530 = vcmp.lt.s32.totalorder %v6529, 2
    %vm6531 = vcmp.eq.s32.totalorder %v6529, 0
    %v6532 = vxor.u32 %v6527, 2147483648
    %v6533 = vsel %vm6531, %v6526, %v6532
    %vm6534 = vcmp.eq.s32.totalorder %v6529, 2
    %v6535 = vxor.u32 %v6526, 2147483648
    %v6536 = vsel %vm6534, %v6535, %v6527
    %v6537 = vsel %vm6530, %v6533, %v6536
    %v6538 = vsel %vm6528, nan, %v6537
    %v6539 = vmul.f32 %v5825, %v6538
    %s6540 = scalar_lea.vmem %s6, 8
    %6541 = vst.msk [vmem:[%s6540] sm:$0xf] %vm6115, %v6539
    %v6542 = vand.u32 2147483647, %v5989
    %vm6543 = vcmp.le.f32.partialorder %v6542, 0.7853982
    %vm6544 = vcmp.lt.s32.totalorder %v5989, 0
    %v6545 = vand.u32 %v5989, 2139095040
    %v6546 = vshrl.u32 %v6545, 23
    %v6547 = vsub.s32 %v6546, 127
    %v6548 = vand.u32 2147483647, %v5989
    %v6549 = vand.u32 %v6548, 8388607
    %v6550 = vor.u32 %v6549, 8388608
    %v6551 = vsub.s32 0, %v6550
    %v6552 = vadd.s32 %v6547, 1
    %vm6553 = vcmp.gt.s32.totalorder %v6552, 0
    %v6554 = vsel %vm6553, %v6552, 0
    %v6555 = vshrl.u32 %v6554, 5
    %v6556 = vand.u32 %v6554, 31
    %v6557 = vsub.s32 32, %v6556
    %v6558 = vshrl.u32 683565275, %v6557
    %v6559 = vshll.u32 683565275, %v6556
    %v6560 = vshrl.u32 2475754826, %v6557
    %v6561 = vor.u32 %v6559, %v6560
    %v6562 = vshll.u32 2475754826, %v6556
    %v6563 = vshrl.u32 2131351028, %v6557
    %v6564 = vor.u32 %v6562, %v6563
    %v6565 = vshll.u32 2131351028, %v6556
    %v6566 = vshrl.u32 2102212464, %v6557
    %v6567 = vor.u32 %v6565, %v6566
    %v6568 = vshll.u32 2102212464, %v6556
    %v6569 = vshrl.u32 920167782, %v6557
    %v6570 = vor.u32 %v6568, %v6569
    %v6571 = vshll.u32 920167782, %v6556
    %v6572 = vshrl.u32 1326507024, %v6557
    %v6573 = vor.u32 %v6571, %v6572
    %vm6574 = vcmp.lt.s32.totalorder %v6555, 1
    %vm6575 = vcmp.lt.s32.totalorder %v6555, 2
    %vm6576 = vcmp.lt.s32.totalorder %v6555, 3
    %vm6577 = vcmp.lt.s32.totalorder %v6555, 4
    %v6578 = vsel %vm6574, %v6558, %v6561
    %v6579 = vsel %vm6577, %v6567, 2102212464
    %v6580 = vsel %vm6576, %v6564, %v6579
    %v6581 = vsel %vm6575, %v6578, %v6580
    %v6582 = vsel %vm6574, %v6561, %v6564
    %v6583 = vsel %vm6577, %v6570, 920167782
    %v6584 = vsel %vm6576, %v6567, %v6583
    %v6585 = vsel %vm6575, %v6582, %v6584
    %v6586 = vsel %vm6574, %v6564, %v6567
    %v6587 = vsel %vm6577, %v6573, 1326507024
    %v6588 = vsel %vm6576, %v6570, %v6587
    %v6589 = vsel %vm6575, %v6586, %v6588
    %v6590 = vshll.u32 %v6550, 8
    %v6591 = vmul.u32.u64.compose %v6590, %v6589
    %v6592 = vextract.low.u32 %v6591
    %v6593 = vextract.high.u32 %v6591
    %v6594 = vmul.u32.u64.compose %v6590, %v6585
    %v6595 = vextract.low.u32 %v6594
    %v6596 = vextract.high.u32 %v6594
    %v6597 = vmul.u32 %v6590, %v6581
    %v6598 = vadd.s32 %v6593, %v6595
    %vm6599 = vc.u32 %v6593, %v6595
    %v6600 = vadd.s32 %v6596, 1
    %v6601 = vsel %vm6599, %v6600, %v6596
    %v6602 = vadd.s32 %v6597, %v6601
    %v6603 = vadd.s32 %v6602, 536870912
    %v6604 = vshrl.u32 %v6603, 30
    %v6605 = vshll.u32 %v6604, 30
    %v6606 = vsub.s32 %v6602, %v6605
    %vm6607 = vcmp.lt.s32.totalorder %v6606, 0
    %v6608 = vsub.s32 0, %v6606
    %v6609 = vsel %vm6607, %v6608, %v6606
    %v6610 = vclz %v6609
    %v6611 = vsub.s32 %v6610, 2
    %vm6612 = vcmp.gt.s32.totalorder 0, %v6611
    %v6613 = vsel %vm6612, 0, %v6611
    %v6614 = vsub.s32 32, %v6613
    %v6615 = vshll.u32 %v6606, %v6613
    %v6616 = vshrl.u32 %v6598, %v6614
    %v6617 = vor.u32 %v6615, %v6616
    %v6618 = vsub.s32 4294967266, %v6613
    %v6619 = vadd.s32 %v6618, 127
    %v6620 = vshll.u32 %v6619, 23
    %v6621 = vor.u32 4788187, %v6620
    %v6622 = vand.u32 2147483647, %v6621
    %v6624 = vcvt.s32.f32 %v6617
    %v6625 = vmul.f32 %v6624, %v6622
    %v6626 = vxor.u32 %v6625, 2147483648
    %v6627 = vsel %vm6544, %v6626, %v6625
    %v6628 = vsub.s32 4, %v6604
    %v6629 = vsel %vm6544, %v6628, %v6604
    %v6630 = vsel %vm6543, %v5989, %v6627
    %v6631 = vsel %vm6543, 0, %v6629
    %v6632 = vcosq.f32.pop %v6630
    %v6633 = vsinq.f32.pop %v6630
    %vm6634 = vweird.f32 %v5989
    %v6635 = vadd.s32 %v6631, 3
    %v6636 = vand.u32 %v6635, 3
    %vm6637 = vcmp.lt.s32.totalorder %v6636, 2
    %vm6638 = vcmp.eq.s32.totalorder %v6636, 0
    %v6639 = vxor.u32 %v6633, 2147483648
    %v6640 = vsel %vm6638, %v6632, %v6639
    %vm6641 = vcmp.eq.s32.totalorder %v6636, 2
    %v6642 = vxor.u32 %v6632, 2147483648
    %v6643 = vsel %vm6641, %v6642, %v6633
    %v6644 = vsel %vm6637, %v6640, %v6643
    %v6645 = vsel %vm6634, nan, %v6644
    %v6646 = vmul.f32 %v5825, %v6645
    %s6647 = scalar_lea.vmem %s7, 8
    %6648 = vst.msk [vmem:[%s6647] sm:$0xf] %vm6115, %v6646
    %v6649 = vand.u32 2147483647, %v6008
    %vm6650 = vcmp.le.f32.partialorder %v6649, 0.7853982
    %vm6651 = vcmp.lt.s32.totalorder %v6008, 0
    %v6652 = vand.u32 %v6008, 2139095040
    %v6653 = vshrl.u32 %v6652, 23
    %v6654 = vsub.s32 %v6653, 127
    %v6655 = vand.u32 2147483647, %v6008
    %v6656 = vand.u32 %v6655, 8388607
    %v6657 = vor.u32 %v6656, 8388608
    %v6658 = vsub.s32 0, %v6657
    %v6659 = vadd.s32 %v6654, 1
    %vm6660 = vcmp.gt.s32.totalorder %v6659, 0
    %v6661 = vsel %vm6660, %v6659, 0
    %v6662 = vshrl.u32 %v6661, 5
    %v6663 = vand.u32 %v6661, 31
    %v6664 = vsub.s32 32, %v6663
    %v6665 = vshrl.u32 683565275, %v6664
    %v6666 = vshll.u32 683565275, %v6663
    %v6667 = vshrl.u32 2475754826, %v6664
    %v6668 = vor.u32 %v6666, %v6667
    %v6669 = vshll.u32 2475754826, %v6663
    %v6670 = vshrl.u32 2131351028, %v6664
    %v6671 = vor.u32 %v6669, %v6670
    %v6672 = vshll.u32 2131351028, %v6663
    %v6673 = vshrl.u32 2102212464, %v6664
    %v6674 = vor.u32 %v6672, %v6673
    %v6675 = vshll.u32 2102212464, %v6663
    %v6676 = vshrl.u32 920167782, %v6664
    %v6677 = vor.u32 %v6675, %v6676
    %v6678 = vshll.u32 920167782, %v6663
    %v6679 = vshrl.u32 1326507024, %v6664
    %v6680 = vor.u32 %v6678, %v6679
    %vm6681 = vcmp.lt.s32.totalorder %v6662, 1
    %vm6682 = vcmp.lt.s32.totalorder %v6662, 2
    %vm6683 = vcmp.lt.s32.totalorder %v6662, 3
    %vm6684 = vcmp.lt.s32.totalorder %v6662, 4
    %v6685 = vsel %vm6681, %v6665, %v6668
    %v6686 = vsel %vm6684, %v6674, 2102212464
    %v6687 = vsel %vm6683, %v6671, %v6686
    %v6688 = vsel %vm6682, %v6685, %v6687
    %v6689 = vsel %vm6681, %v6668, %v6671
    %v6690 = vsel %vm6684, %v6677, 920167782
    %v6691 = vsel %vm6683, %v6674, %v6690
    %v6692 = vsel %vm6682, %v6689, %v6691
    %v6693 = vsel %vm6681, %v6671, %v6674
    %v6694 = vsel %vm6684, %v6680, 1326507024
    %v6695 = vsel %vm6683, %v6677, %v6694
    %v6696 = vsel %vm6682, %v6693, %v6695
    %v6697 = vshll.u32 %v6657, 8
    %v6698 = vmul.u32.u64.compose %v6697, %v6696
    %v6699 = vextract.low.u32 %v6698
    %v6700 = vextract.high.u32 %v6698
    %v6701 = vmul.u32.u64.compose %v6697, %v6692
    %v6702 = vextract.low.u32 %v6701
    %v6703 = vextract.high.u32 %v6701
    %v6704 = vmul.u32 %v6697, %v6688
    %v6705 = vadd.s32 %v6700, %v6702
    %vm6706 = vc.u32 %v6700, %v6702
    %v6707 = vadd.s32 %v6703, 1
    %v6708 = vsel %vm6706, %v6707, %v6703
    %v6709 = vadd.s32 %v6704, %v6708
    %v6710 = vadd.s32 %v6709, 536870912
    %v6711 = vshrl.u32 %v6710, 30
    %v6712 = vshll.u32 %v6711, 30
    %v6713 = vsub.s32 %v6709, %v6712
    %vm6714 = vcmp.lt.s32.totalorder %v6713, 0
    %v6715 = vsub.s32 0, %v6713
    %v6716 = vsel %vm6714, %v6715, %v6713
    %v6717 = vclz %v6716
    %v6718 = vsub.s32 %v6717, 2
    %vm6719 = vcmp.gt.s32.totalorder 0, %v6718
    %v6720 = vsel %vm6719, 0, %v6718
    %v6721 = vsub.s32 32, %v6720
    %v6722 = vshll.u32 %v6713, %v6720
    %v6723 = vshrl.u32 %v6705, %v6721
    %v6724 = vor.u32 %v6722, %v6723
    %v6725 = vsub.s32 4294967266, %v6720
    %v6726 = vadd.s32 %v6725, 127
    %v6727 = vshll.u32 %v6726, 23
    %v6728 = vor.u32 4788187, %v6727
    %v6729 = vand.u32 2147483647, %v6728
    %v6731 = vcvt.s32.f32 %v6724
    %v6732 = vmul.f32 %v6731, %v6729
    %v6733 = vxor.u32 %v6732, 2147483648
    %v6734 = vsel %vm6651, %v6733, %v6732
    %v6735 = vsub.s32 4, %v6711
    %v6736 = vsel %vm6651, %v6735, %v6711
    %v6737 = vsel %vm6650, %v6008, %v6734
    %v6738 = vsel %vm6650, 0, %v6736
    %v6739 = vcosq.f32.pop %v6737
    %v6740 = vsinq.f32.pop %v6737
    %vm6741 = vweird.f32 %v6008
    %v6742 = vand.u32 %v6738, 3
    %vm6743 = vcmp.lt.s32.totalorder %v6742, 2
    %vm6744 = vcmp.eq.s32.totalorder %v6742, 0
    %v6745 = vxor.u32 %v6740, 2147483648
    %v6746 = vsel %vm6744, %v6739, %v6745
    %vm6747 = vcmp.eq.s32.totalorder %v6742, 2
    %v6748 = vxor.u32 %v6739, 2147483648
    %v6749 = vsel %vm6747, %v6748, %v6740
    %v6750 = vsel %vm6743, %v6746, %v6749
    %v6751 = vsel %vm6741, nan, %v6750
    %v6752 = vmul.f32 %v5844, %v6751
    %s6753 = scalar_lea.vmem %s6, 12
    %6754 = vst.msk [vmem:[%s6753] sm:$0xf] %vm6115, %v6752
    %v6755 = vand.u32 2147483647, %v6008
    %vm6756 = vcmp.le.f32.partialorder %v6755, 0.7853982
    %vm6757 = vcmp.lt.s32.totalorder %v6008, 0
    %v6758 = vand.u32 %v6008, 2139095040
    %v6759 = vshrl.u32 %v6758, 23
    %v6760 = vsub.s32 %v6759, 127
    %v6761 = vand.u32 2147483647, %v6008
    %v6762 = vand.u32 %v6761, 8388607
    %v6763 = vor.u32 %v6762, 8388608
    %v6764 = vsub.s32 0, %v6763
    %v6765 = vadd.s32 %v6760, 1
    %vm6766 = vcmp.gt.s32.totalorder %v6765, 0
    %v6767 = vsel %vm6766, %v6765, 0
    %v6768 = vshrl.u32 %v6767, 5
    %v6769 = vand.u32 %v6767, 31
    %v6770 = vsub.s32 32, %v6769
    %v6771 = vshrl.u32 683565275, %v6770
    %v6772 = vshll.u32 683565275, %v6769
    %v6773 = vshrl.u32 2475754826, %v6770
    %v6774 = vor.u32 %v6772, %v6773
    %v6775 = vshll.u32 2475754826, %v6769
    %v6776 = vshrl.u32 2131351028, %v6770
    %v6777 = vor.u32 %v6775, %v6776
    %v6778 = vshll.u32 2131351028, %v6769
    %v6779 = vshrl.u32 2102212464, %v6770
    %v6780 = vor.u32 %v6778, %v6779
    %v6781 = vshll.u32 2102212464, %v6769
    %v6782 = vshrl.u32 920167782, %v6770
    %v6783 = vor.u32 %v6781, %v6782
    %v6784 = vshll.u32 920167782, %v6769
    %v6785 = vshrl.u32 1326507024, %v6770
    %v6786 = vor.u32 %v6784, %v6785
    %vm6787 = vcmp.lt.s32.totalorder %v6768, 1
    %vm6788 = vcmp.lt.s32.totalorder %v6768, 2
    %vm6789 = vcmp.lt.s32.totalorder %v6768, 3
    %vm6790 = vcmp.lt.s32.totalorder %v6768, 4
    %v6791 = vsel %vm6787, %v6771, %v6774
    %v6792 = vsel %vm6790, %v6780, 2102212464
    %v6793 = vsel %vm6789, %v6777, %v6792
    %v6794 = vsel %vm6788, %v6791, %v6793
    %v6795 = vsel %vm6787, %v6774, %v6777
    %v6796 = vsel %vm6790, %v6783, 920167782
    %v6797 = vsel %vm6789, %v6780, %v6796
    %v6798 = vsel %vm6788, %v6795, %v6797
    %v6799 = vsel %vm6787, %v6777, %v6780
    %v6800 = vsel %vm6790, %v6786, 1326507024
    %v6801 = vsel %vm6789, %v6783, %v6800
    %v6802 = vsel %vm6788, %v6799, %v6801
    %v6803 = vshll.u32 %v6763, 8
    %v6804 = vmul.u32.u64.compose %v6803, %v6802
    %v6805 = vextract.low.u32 %v6804
    %v6806 = vextract.high.u32 %v6804
    %v6807 = vmul.u32.u64.compose %v6803, %v6798
    %v6808 = vextract.low.u32 %v6807
    %v6809 = vextract.high.u32 %v6807
    %v6810 = vmul.u32 %v6803, %v6794
    %v6811 = vadd.s32 %v6806, %v6808
    %vm6812 = vc.u32 %v6806, %v6808
    %v6813 = vadd.s32 %v6809, 1
    %v6814 = vsel %vm6812, %v6813, %v6809
    %v6815 = vadd.s32 %v6810, %v6814
    %v6816 = vadd.s32 %v6815, 536870912
    %v6817 = vshrl.u32 %v6816, 30
    %v6818 = vshll.u32 %v6817, 30
    %v6819 = vsub.s32 %v6815, %v6818
    %vm6820 = vcmp.lt.s32.totalorder %v6819, 0
    %v6821 = vsub.s32 0, %v6819
    %v6822 = vsel %vm6820, %v6821, %v6819
    %v6823 = vclz %v6822
    %v6824 = vsub.s32 %v6823, 2
    %vm6825 = vcmp.gt.s32.totalorder 0, %v6824
    %v6826 = vsel %vm6825, 0, %v6824
    %v6827 = vsub.s32 32, %v6826
    %v6828 = vshll.u32 %v6819, %v6826
    %v6829 = vshrl.u32 %v6811, %v6827
    %v6830 = vor.u32 %v6828, %v6829
    %v6831 = vsub.s32 4294967266, %v6826
    %v6832 = vadd.s32 %v6831, 127
    %v6833 = vshll.u32 %v6832, 23
    %v6834 = vor.u32 4788187, %v6833
    %v6835 = vand.u32 2147483647, %v6834
    %v6837 = vcvt.s32.f32 %v6830
    %v6838 = vmul.f32 %v6837, %v6835
    %v6839 = vxor.u32 %v6838, 2147483648
    %v6840 = vsel %vm6757, %v6839, %v6838
    %v6841 = vsub.s32 4, %v6817
    %v6842 = vsel %vm6757, %v6841, %v6817
    %v6843 = vsel %vm6756, %v6008, %v6840
    %v6844 = vsel %vm6756, 0, %v6842
    %v6845 = vcosq.f32.pop %v6843
    %v6846 = vsinq.f32.pop %v6843
    %vm6847 = vweird.f32 %v6008
    %v6848 = vadd.s32 %v6844, 3
    %v6849 = vand.u32 %v6848, 3
    %vm6850 = vcmp.lt.s32.totalorder %v6849, 2
    %vm6851 = vcmp.eq.s32.totalorder %v6849, 0
    %v6852 = vxor.u32 %v6846, 2147483648
    %v6853 = vsel %vm6851, %v6845, %v6852
    %vm6854 = vcmp.eq.s32.totalorder %v6849, 2
    %v6855 = vxor.u32 %v6845, 2147483648
    %v6856 = vsel %vm6854, %v6855, %v6846
    %v6857 = vsel %vm6850, %v6853, %v6856
    %v6858 = vsel %vm6847, nan, %v6857
    %v6859 = vmul.f32 %v5844, %v6858
    %s6860 = scalar_lea.vmem %s7, 12
    %6861 = vst.msk [vmem:[%s6860] sm:$0xf] %vm6115, %v6859
    // Predicated region
    $region30: #{process_block.2} parent=1 // pred_check
      _
    $region31: #{process_block.2} parent=1 // pred_check_branch
      %6863 = sbr.rel (0) target = $region33
    $region32: #{process_block.2} parent=1 // pred_region
      _
    $region33: #{process_block.2} parent=1 // pred_fallthru
      _
    // Predicated region
    $region34: #{process_block.2} parent=1 // pred_check
      _
    $region35: #{process_block.2} parent=1 // pred_check_branch
      %6865 = sbr.rel (0) target = $region37
    $region36: #{process_block.2} parent=1 // pred_region
      _
    $region37: #{process_block.2} parent=1 // pred_fallthru
      _
    // Predicated region
    $region38: #{process_block.2} parent=1 // pred_check
      _
    $region39: #{process_block.2} parent=1 // pred_check_branch
      %6867 = sbr.rel (0) target = $region41
    $region40: #{process_block.2} parent=1 // pred_region
      _
    $region41: #{process_block.2} parent=1 // pred_fallthru
      _
    // Predicated region
    $region42: #{process_block.2} parent=1 // pred_check
      _
    $region43: #{process_block.2} parent=1 // pred_check_branch
      %6869 = sbr.rel (0) target = $region45
    $region44: #{process_block.2} parent=1 // pred_region
      _
    $region45: #{process_block.2} parent=1 // pred_fallthru
      _
    // Predicated region
    $region46: #{process_block.2} parent=1 // pred_check
      _
    $region47: #{process_block.2} parent=1 // pred_check_branch
      %6871 = sbr.rel (0) target = $region49
    $region48: #{process_block.2} parent=1 // pred_region
      _
    $region49: #{process_block.2} parent=1 // pred_fallthru
      _
    // Predicated region
    $region50: #{process_block.2} parent=1 // pred_check
      _
    $region51: #{process_block.2} parent=1 // pred_check_branch
      %6873 = sbr.rel (0) target = $region53
    $region52: #{process_block.2} parent=1 // pred_region
      _
    $region53: #{process_block.2} parent=1 // pred_fallthru
      _
    %6874 = vsyncpa [#allocation4], 1
    %6875 = vsyncpa [#allocation6], 1

</llo_original>
